<compile_context>
chip_gen: v5e
topology: v5e:2x2
jax: 0.10.0
libtpu: 0.0.40
codegen_flags: <defaults>
</compile_context>

<pallas_src>
import functools

import jax
import jax.numpy as jnp
from jax.experimental import pallas as pl
from jax.experimental.pallas import tpu as pltpu


def _basic_block_kernel(x_ref, w1_ref, s1_ref, b1_ref, w2_ref, s2_ref, b2_ref,
                        out_ref, xpad_s, h1pad_s, *, H, W, Cp):
    # x_ref    : (1, H, W, Cp)    f32  input, channels zero-padded to Cp (lane-dense)
    # w*_ref   : (3, 3*Cp, Cp)    bf16 width-im2col folded conv weights (kh, kw*cin, cout)
    # s*/b*    : (1, Cp)          f32  folded BN scale / bias
    # out_ref  : (1, H, W, Cp)    f32
    # xpad_s / h1pad_s : (H+2, W+2, Cp) bf16 scratch with 1-px zero halo

    # Zero only the 1-px halo (interior is fully rewritten below). Done every
    # step so it stays correct if the batch axis is split across TensorCores.
    zrow = jnp.zeros((1, W + 2, Cp), jnp.bfloat16)
    zcol = jnp.zeros((H + 2, 1, Cp), jnp.bfloat16)
    for scr in (xpad_s, h1pad_s):
        scr[0:1, :, :] = zrow
        scr[H + 1:H + 2, :, :] = zrow
        scr[:, 0:1, :] = zcol
        scr[:, W + 1:W + 2, :] = zcol

    def conv3x3(src_ref, w_ref):
        # 3 MXU matmuls (one per kh); the 3 kw taps are folded into K = 3*Cp
        # via a lane-axis concat (each piece is a full 128-lane multiple).
        acc = jnp.zeros((H * W, Cp), jnp.float32)
        for dh in range(3):
            patch = jnp.concatenate(
                [src_ref[dh:dh + H, dw:dw + W, :] for dw in range(3)],
                axis=-1).reshape(H * W, 3 * Cp)
            acc = acc + jnp.dot(patch, w_ref[dh],
                                preferred_element_type=jnp.float32)
        return acc

    x = x_ref[0]                                            # (H, W, Cp) f32; also the residual
    xpad_s[1:H + 1, 1:W + 1, :] = x.astype(jnp.bfloat16)    # bf16 conv operand

    # conv1 -> bn1 (folded) -> relu
    y1 = jnp.maximum(conv3x3(xpad_s, w1_ref) * s1_ref[0] + b1_ref[0], 0.0)
    h1pad_s[1:H + 1, 1:W + 1, :] = y1.reshape(H, W, Cp).astype(jnp.bfloat16)

    # conv2 -> bn2 (folded) -> +residual -> relu
    y2 = conv3x3(h1pad_s, w2_ref) * s2_ref[0] + b2_ref[0]
    out_ref[0] = jnp.maximum(y2.reshape(H, W, Cp) + x, 0.0)


def basic_block_forward(x_nchw, params, eps=1e-5):
    """Pallas implementation of BasicBlock.forward (eval-mode BN, stride=1)."""
    (w1, g1, be1, m1, v1, w2, g2, be2, m2, v2) = params
    B, Cin, H, W = x_nchw.shape
    P = w1.shape[0]
    assert Cin == P, "stride=1 / downsample=None path requires inplanes == planes"

    # Lane-dense channel count (multiple of 128).
    Cp = max(128, ((P + 127) // 128) * 128)

    # NHWC, channels zero-padded to Cp (padded channels stay exactly zero
    # through conv/BN/residual and are sliced off at the end).
    x = jnp.transpose(x_nchw, (0, 2, 3, 1)).astype(jnp.float32)
    x = jnp.pad(x, ((0, 0), (0, 0), (0, 0), (0, Cp - Cin)))

    def fold_bn(g, be, m, v):
        s = g / jnp.sqrt(v + eps)
        b = be - m * s
        s = jnp.pad(s, (0, Cp - P)).reshape(1, Cp).astype(jnp.float32)
        b = jnp.pad(b, (0, Cp - P)).reshape(1, Cp).astype(jnp.float32)
        return s, b

    def fold_w(w):
        # (out, in, 3, 3) OIHW -> HWIO, zero-pad channels to Cp, fold kw into K.
        w_hwio = jnp.transpose(w, (2, 3, 1, 0)).astype(jnp.float32)
        w_hwio = jnp.pad(w_hwio, ((0, 0), (0, 0),
                                  (0, Cp - w.shape[1]), (0, Cp - w.shape[0])))
        return w_hwio.reshape(3, 3 * Cp, Cp).astype(jnp.bfloat16)

    s1, b1 = fold_bn(g1, be1, m1, v1)
    s2, b2 = fold_bn(g2, be2, m2, v2)
    w1_p, w2_p = fold_w(w1), fold_w(w2)

    kern = functools.partial(_basic_block_kernel, H=H, W=W, Cp=Cp)

    out = pl.pallas_call(
        kern,
        out_shape=jax.ShapeDtypeStruct((B, H, W, Cp), jnp.float32),
        grid_spec=pltpu.PrefetchScalarGridSpec(
            num_scalar_prefetch=0,
            grid=(B,),
            in_specs=[
                pl.BlockSpec((1, H, W, Cp), lambda b: (b, 0, 0, 0)),
                pl.BlockSpec((3, 3 * Cp, Cp), lambda b: (0, 0, 0)),
                pl.BlockSpec((1, Cp), lambda b: (0, 0)),
                pl.BlockSpec((1, Cp), lambda b: (0, 0)),
                pl.BlockSpec((3, 3 * Cp, Cp), lambda b: (0, 0, 0)),
                pl.BlockSpec((1, Cp), lambda b: (0, 0)),
                pl.BlockSpec((1, Cp), lambda b: (0, 0)),
            ],
            out_specs=pl.BlockSpec((1, H, W, Cp), lambda b: (b, 0, 0, 0)),
            scratch_shapes=[pltpu.VMEM((H + 2, W + 2, Cp), jnp.bfloat16),
                            pltpu.VMEM((H + 2, W + 2, Cp), jnp.bfloat16)],
        ),
        compiler_params=pltpu.CompilerParams(
            dimension_semantics=("parallel",),
            vmem_limit_bytes=48 * 1024 * 1024),
    )(x, w1_p, s1, b1, w2_p, s2, b2)

    return jnp.transpose(out[..., :P], (0, 3, 1, 2))        # back to NCHW


def basic_block_reference(x_nchw, params, eps=1e-5):
    """Pure-JAX f32 reference (same eval-mode BN semantics) for verification."""
    (w1, g1, be1, m1, v1, w2, g2, be2, m2, v2) = params
    x = x_nchw.astype(jnp.float32)

    def conv(a, w):
        return jax.lax.conv_general_dilated(
            a, w.astype(jnp.float32), window_strides=(1, 1),
            padding=((1, 1), (1, 1)),
            dimension_numbers=("NCHW", "OIHW", "NCHW"))

    def bn(a, g, b, m, v):
        c = (None, slice(None), None, None)
        return (a - m[c]) / jnp.sqrt(v[c] + eps) * g[c] + b[c]

    out = jax.nn.relu(bn(conv(x, w1), g1, be1, m1, v1))
    out = bn(conv(out, w2), g2, be2, m2, v2)
    return jax.nn.relu(out + x)


def make_params(key, inplanes, planes):
    ks = jax.random.split(key, 10)
    w1 = 0.1 * jax.random.normal(ks[0], (planes, inplanes, 3, 3), jnp.float32)
    g1 = 1.0 + 0.1 * jax.random.normal(ks[1], (planes,), jnp.float32)
    be1 = 0.1 * jax.random.normal(ks[2], (planes,), jnp.float32)
    m1 = 0.1 * jax.random.normal(ks[3], (planes,), jnp.float32)
    v1 = 0.5 + jax.random.uniform(ks[4], (planes,), jnp.float32)
    w2 = 0.1 * jax.random.normal(ks[5], (planes, planes, 3, 3), jnp.float32)
    g2 = 1.0 + 0.1 * jax.random.normal(ks[6], (planes,), jnp.float32)
    be2 = 0.1 * jax.random.normal(ks[7], (planes,), jnp.float32)
    m2 = 0.1 * jax.random.normal(ks[8], (planes,), jnp.float32)
    v2 = 0.5 + jax.random.uniform(ks[9], (planes,), jnp.float32)
    return (w1, g1, be1, m1, v1, w2, g2, be2, m2, v2)


if __name__ == "__main__":
    key = jax.random.PRNGKey(0)
    k_x, k_p = jax.random.split(key)

    B, C, H, W = 2, 4, 16, 16                 # inplanes = planes = 4, stride = 1
    x = jax.random.normal(k_x, (B, C, H, W), jnp.float32)
    params = make_params(k_p, C, C)

    out = jax.block_until_ready(basic_block_forward(x, params))

    ref = basic_block_reference(x, params)
    assert out.shape == ref.shape == (B, C, H, W)
    max_err = float(jnp.max(jnp.abs(out - ref)))
    # bf16 MXU operands vs. f32 reference -> relaxed tolerance.
    assert jnp.allclose(out, ref, atol=2e-2, rtol=2e-2), max_err

    print("KERNEL_OK")
</pallas_src>

<mosaic_0001>
module attributes {stable_mosaic.version = 11 : i64} {
  func.func @_basic_block_kernel(%arg0: i32, %arg1: memref<1x16x16x128xf32, #tpu.memory_space<vmem>>, %arg2: memref<3x384x128xbf16, #tpu.memory_space<vmem>>, %arg3: memref<1x128xf32, #tpu.memory_space<vmem>>, %arg4: memref<1x128xf32, #tpu.memory_space<vmem>>, %arg5: memref<3x384x128xbf16, #tpu.memory_space<vmem>>, %arg6: memref<1x128xf32, #tpu.memory_space<vmem>>, %arg7: memref<1x128xf32, #tpu.memory_space<vmem>>, %arg8: memref<1x16x16x128xf32, #tpu.memory_space<vmem>>, %arg9: memref<18x18x128xbf16, #tpu.memory_space<vmem>>, %arg10: memref<18x18x128xbf16, #tpu.memory_space<vmem>>) attributes {dimension_semantics = [#tpu.dimension_semantics<parallel>], iteration_bounds = array<i64: 2>, scalar_prefetch = 0 : i64, scratch_operands = 2 : i64, tpu.core_type = #tpu.core_type<tc>, window_params = [{transform_indices = @transform_0, window_bounds = array<i64: 1, 16, 16, 128>}, {pipeline_mode = #tpu.pipeline_mode<synchronous>, transform_indices = @transform_1, window_bounds = array<i64: 3, 384, 128>}, {pipeline_mode = #tpu.pipeline_mode<synchronous>, transform_indices = @transform_2, window_bounds = array<i64: 1, 128>}, {pipeline_mode = #tpu.pipeline_mode<synchronous>, transform_indices = @transform_3, window_bounds = array<i64: 1, 128>}, {pipeline_mode = #tpu.pipeline_mode<synchronous>, transform_indices = @transform_4, window_bounds = array<i64: 3, 384, 128>}, {pipeline_mode = #tpu.pipeline_mode<synchronous>, transform_indices = @transform_5, window_bounds = array<i64: 1, 128>}, {pipeline_mode = #tpu.pipeline_mode<synchronous>, transform_indices = @transform_6, window_bounds = array<i64: 1, 128>}, {transform_indices = @transform_7, window_bounds = array<i64: 1, 16, 16, 128>}]} {
    %cst = arith.constant 0.000000e+00 : bf16
    %0 = vector.broadcast %cst : bf16 to vector<1x18x128xbf16>
    %cst_0 = arith.constant 0.000000e+00 : bf16
    %1 = vector.broadcast %cst_0 : bf16 to vector<18x1x128xbf16>
    %c0 = arith.constant 0 : index
    %c0_1 = arith.constant 0 : index
    %c0_2 = arith.constant 0 : index
    %2 = vector.load %arg9[%c0, %c0_1, %c0_2] : memref<18x18x128xbf16, #tpu.memory_space<vmem>>, vector<1x18x128xbf16>
    tpu.vector_store %arg9[%c0, %c0_1, %c0_2], %0 {strides = array<i32>} : memref<18x18x128xbf16, #tpu.memory_space<vmem>>, vector<1x18x128xbf16>,
    %c17 = arith.constant 17 : index
    %c0_3 = arith.constant 0 : index
    %c0_4 = arith.constant 0 : index
    %3 = vector.load %arg9[%c17, %c0_3, %c0_4] : memref<18x18x128xbf16, #tpu.memory_space<vmem>>, vector<1x18x128xbf16>
    tpu.vector_store %arg9[%c17, %c0_3, %c0_4], %0 {strides = array<i32>} : memref<18x18x128xbf16, #tpu.memory_space<vmem>>, vector<1x18x128xbf16>,
    %c0_5 = arith.constant 0 : index
    %c0_6 = arith.constant 0 : index
    %c0_7 = arith.constant 0 : index
    %4 = vector.load %arg9[%c0_5, %c0_6, %c0_7] : memref<18x18x128xbf16, #tpu.memory_space<vmem>>, vector<18x1x128xbf16>
    tpu.vector_store %arg9[%c0_5, %c0_6, %c0_7], %1 {strides = array<i32>} : memref<18x18x128xbf16, #tpu.memory_space<vmem>>, vector<18x1x128xbf16>,
    %c0_8 = arith.constant 0 : index
    %c17_9 = arith.constant 17 : index
    %c0_10 = arith.constant 0 : index
    %5 = vector.load %arg9[%c0_8, %c17_9, %c0_10] : memref<18x18x128xbf16, #tpu.memory_space<vmem>>, vector<18x1x128xbf16>
    tpu.vector_store %arg9[%c0_8, %c17_9, %c0_10], %1 {strides = array<i32>} : memref<18x18x128xbf16, #tpu.memory_space<vmem>>, vector<18x1x128xbf16>,
    %c0_11 = arith.constant 0 : index
    %c0_12 = arith.constant 0 : index
    %c0_13 = arith.constant 0 : index
    %6 = vector.load %arg10[%c0_11, %c0_12, %c0_13] : memref<18x18x128xbf16, #tpu.memory_space<vmem>>, vector<1x18x128xbf16>
    tpu.vector_store %arg10[%c0_11, %c0_12, %c0_13], %0 {strides = array<i32>} : memref<18x18x128xbf16, #tpu.memory_space<vmem>>, vector<1x18x128xbf16>,
    %c17_14 = arith.constant 17 : index
    %c0_15 = arith.constant 0 : index
    %c0_16 = arith.constant 0 : index
    %7 = vector.load %arg10[%c17_14, %c0_15, %c0_16] : memref<18x18x128xbf16, #tpu.memory_space<vmem>>, vector<1x18x128xbf16>
    tpu.vector_store %arg10[%c17_14, %c0_15, %c0_16], %0 {strides = array<i32>} : memref<18x18x128xbf16, #tpu.memory_space<vmem>>, vector<1x18x128xbf16>,
    %c0_17 = arith.constant 0 : index
    %c0_18 = arith.constant 0 : index
    %c0_19 = arith.constant 0 : index
    %8 = vector.load %arg10[%c0_17, %c0_18, %c0_19] : memref<18x18x128xbf16, #tpu.memory_space<vmem>>, vector<18x1x128xbf16>
    tpu.vector_store %arg10[%c0_17, %c0_18, %c0_19], %1 {strides = array<i32>} : memref<18x18x128xbf16, #tpu.memory_space<vmem>>, vector<18x1x128xbf16>,
    %c0_20 = arith.constant 0 : index
    %c17_21 = arith.constant 17 : index
    %c0_22 = arith.constant 0 : index
    %9 = vector.load %arg10[%c0_20, %c17_21, %c0_22] : memref<18x18x128xbf16, #tpu.memory_space<vmem>>, vector<18x1x128xbf16>
    tpu.vector_store %arg10[%c0_20, %c17_21, %c0_22], %1 {strides = array<i32>} : memref<18x18x128xbf16, #tpu.memory_space<vmem>>, vector<18x1x128xbf16>,
    %c0_23 = arith.constant 0 : index
    %c0_24 = arith.constant 0 : index
    %c0_25 = arith.constant 0 : index
    %c0_26 = arith.constant 0 : index
    %10 = vector.load %arg1[%c0_23, %c0_24, %c0_25, %c0_26] : memref<1x16x16x128xf32, #tpu.memory_space<vmem>>, vector<1x16x16x128xf32>
    %11 = vector.shape_cast %10 : vector<1x16x16x128xf32> to vector<16x16x128xf32>
    %12 = arith.truncf %11 : vector<16x16x128xf32> to vector<16x16x128xbf16>
    %c1 = arith.constant 1 : index
    %c1_27 = arith.constant 1 : index
    %c0_28 = arith.constant 0 : index
    %13 = vector.load %arg9[%c1, %c1_27, %c0_28] : memref<18x18x128xbf16, #tpu.memory_space<vmem>>, vector<16x16x128xbf16>
    tpu.vector_store %arg9[%c1, %c1_27, %c0_28], %12 {strides = array<i32>} : memref<18x18x128xbf16, #tpu.memory_space<vmem>>, vector<16x16x128xbf16>,
    %cst_29 = arith.constant 0.000000e+00 : f32
    %14 = vector.broadcast %cst_29 : f32 to vector<256x128xf32>
    %c0_30 = arith.constant 0 : index
    %c0_31 = arith.constant 0 : index
    %c0_32 = arith.constant 0 : index
    %15 = vector.load %arg9[%c0_30, %c0_31, %c0_32] : memref<18x18x128xbf16, #tpu.memory_space<vmem>>, vector<16x16x128xbf16>
    %c0_33 = arith.constant 0 : index
    %c1_34 = arith.constant 1 : index
    %c0_35 = arith.constant 0 : index
    %16 = vector.load %arg9[%c0_33, %c1_34, %c0_35] : memref<18x18x128xbf16, #tpu.memory_space<vmem>>, vector<16x16x128xbf16>
    %c0_36 = arith.constant 0 : index
    %c2 = arith.constant 2 : index
    %c0_37 = arith.constant 0 : index
    %17 = vector.load %arg9[%c0_36, %c2, %c0_37] : memref<18x18x128xbf16, #tpu.memory_space<vmem>>, vector<16x16x128xbf16>
    %18 = tpu.concatenate %15, %16, %17 in 2 : vector<16x16x128xbf16>, vector<16x16x128xbf16>, vector<16x16x128xbf16> -> vector<16x16x384xbf16>
    %19 = vector.shape_cast %18 : vector<16x16x384xbf16> to vector<256x384xbf16>
    %c0_38 = arith.constant 0 : index
    %c0_39 = arith.constant 0 : index
    %c0_40 = arith.constant 0 : index
    %20 = vector.load %arg2[%c0_38, %c0_39, %c0_40] : memref<3x384x128xbf16, #tpu.memory_space<vmem>>, vector<1x384x128xbf16>
    %21 = vector.shape_cast %20 : vector<1x384x128xbf16> to vector<384x128xbf16>
    %cst_41 = arith.constant dense<0.000000e+00> : vector<256x128xf32>
    %22 = tpu.matmul %19, %21, %cst_41 {dimension_numbers = #tpu.dot_dimension_numbers<[1], [0], [0], [1], [0, 0, 1, 1], [], []>} : vector<256x384xbf16>, vector<384x128xbf16>, vector<256x128xf32> -> vector<256x128xf32>
    %23 = arith.addf %14, %22 : vector<256x128xf32>
    %c1_42 = arith.constant 1 : index
    %c0_43 = arith.constant 0 : index
    %c0_44 = arith.constant 0 : index
    %24 = vector.load %arg9[%c1_42, %c0_43, %c0_44] : memref<18x18x128xbf16, #tpu.memory_space<vmem>>, vector<16x16x128xbf16>
    %c1_45 = arith.constant 1 : index
    %c1_46 = arith.constant 1 : index
    %c0_47 = arith.constant 0 : index
    %25 = vector.load %arg9[%c1_45, %c1_46, %c0_47] : memref<18x18x128xbf16, #tpu.memory_space<vmem>>, vector<16x16x128xbf16>
    %c1_48 = arith.constant 1 : index
    %c2_49 = arith.constant 2 : index
    %c0_50 = arith.constant 0 : index
    %26 = vector.load %arg9[%c1_48, %c2_49, %c0_50] : memref<18x18x128xbf16, #tpu.memory_space<vmem>>, vector<16x16x128xbf16>
    %27 = tpu.concatenate %24, %25, %26 in 2 : vector<16x16x128xbf16>, vector<16x16x128xbf16>, vector<16x16x128xbf16> -> vector<16x16x384xbf16>
    %28 = vector.shape_cast %27 : vector<16x16x384xbf16> to vector<256x384xbf16>
    %c1_51 = arith.constant 1 : index
    %c0_52 = arith.constant 0 : index
    %c0_53 = arith.constant 0 : index
    %29 = vector.load %arg2[%c1_51, %c0_52, %c0_53] : memref<3x384x128xbf16, #tpu.memory_space<vmem>>, vector<1x384x128xbf16>
    %30 = vector.shape_cast %29 : vector<1x384x128xbf16> to vector<384x128xbf16>
    %cst_54 = arith.constant dense<0.000000e+00> : vector<256x128xf32>
    %31 = tpu.matmul %28, %30, %cst_54 {dimension_numbers = #tpu.dot_dimension_numbers<[1], [0], [0], [1], [0, 0, 1, 1], [], []>} : vector<256x384xbf16>, vector<384x128xbf16>, vector<256x128xf32> -> vector<256x128xf32>
    %32 = arith.addf %23, %31 : vector<256x128xf32>
    %c2_55 = arith.constant 2 : index
    %c0_56 = arith.constant 0 : index
    %c0_57 = arith.constant 0 : index
    %33 = vector.load %arg9[%c2_55, %c0_56, %c0_57] : memref<18x18x128xbf16, #tpu.memory_space<vmem>>, vector<16x16x128xbf16>
    %c2_58 = arith.constant 2 : index
    %c1_59 = arith.constant 1 : index
    %c0_60 = arith.constant 0 : index
    %34 = vector.load %arg9[%c2_58, %c1_59, %c0_60] : memref<18x18x128xbf16, #tpu.memory_space<vmem>>, vector<16x16x128xbf16>
    %c2_61 = arith.constant 2 : index
    %c2_62 = arith.constant 2 : index
    %c0_63 = arith.constant 0 : index
    %35 = vector.load %arg9[%c2_61, %c2_62, %c0_63] : memref<18x18x128xbf16, #tpu.memory_space<vmem>>, vector<16x16x128xbf16>
    %36 = tpu.concatenate %33, %34, %35 in 2 : vector<16x16x128xbf16>, vector<16x16x128xbf16>, vector<16x16x128xbf16> -> vector<16x16x384xbf16>
    %37 = vector.shape_cast %36 : vector<16x16x384xbf16> to vector<256x384xbf16>
    %c2_64 = arith.constant 2 : index
    %c0_65 = arith.constant 0 : index
    %c0_66 = arith.constant 0 : index
    %38 = vector.load %arg2[%c2_64, %c0_65, %c0_66] : memref<3x384x128xbf16, #tpu.memory_space<vmem>>, vector<1x384x128xbf16>
    %39 = vector.shape_cast %38 : vector<1x384x128xbf16> to vector<384x128xbf16>
    %cst_67 = arith.constant dense<0.000000e+00> : vector<256x128xf32>
    %40 = tpu.matmul %37, %39, %cst_67 {dimension_numbers = #tpu.dot_dimension_numbers<[1], [0], [0], [1], [0, 0, 1, 1], [], []>} : vector<256x384xbf16>, vector<384x128xbf16>, vector<256x128xf32> -> vector<256x128xf32>
    %41 = arith.addf %32, %40 : vector<256x128xf32>
    %c0_68 = arith.constant 0 : index
    %c0_69 = arith.constant 0 : index
    %42 = vector.load %arg3[%c0_68, %c0_69] : memref<1x128xf32, #tpu.memory_space<vmem>>, vector<1x128xf32>
    %43 = vector.shape_cast %42 : vector<1x128xf32> to vector<128xf32>
    %44 = vector.shape_cast %43 : vector<128xf32> to vector<1x128xf32>
    %45 = vector.broadcast %44 : vector<1x128xf32> to vector<256x128xf32>
    %46 = arith.mulf %41, %45 : vector<256x128xf32>
    %c0_70 = arith.constant 0 : index
    %c0_71 = arith.constant 0 : index
    %47 = vector.load %arg4[%c0_70, %c0_71] : memref<1x128xf32, #tpu.memory_space<vmem>>, vector<1x128xf32>
    %48 = vector.shape_cast %47 : vector<1x128xf32> to vector<128xf32>
    %49 = vector.shape_cast %48 : vector<128xf32> to vector<1x128xf32>
    %50 = vector.broadcast %49 : vector<1x128xf32> to vector<256x128xf32>
    %51 = arith.addf %46, %50 : vector<256x128xf32>
    %cst_72 = arith.constant 0.000000e+00 : f32
    %52 = vector.broadcast %cst_72 : f32 to vector<256x128xf32>
    %53 = arith.maximumf %51, %52 : vector<256x128xf32>
    %54 = vector.shape_cast %53 : vector<256x128xf32> to vector<16x16x128xf32>
    %55 = arith.truncf %54 : vector<16x16x128xf32> to vector<16x16x128xbf16>
    %c1_73 = arith.constant 1 : index
    %c1_74 = arith.constant 1 : index
    %c0_75 = arith.constant 0 : index
    %56 = vector.load %arg10[%c1_73, %c1_74, %c0_75] : memref<18x18x128xbf16, #tpu.memory_space<vmem>>, vector<16x16x128xbf16>
    tpu.vector_store %arg10[%c1_73, %c1_74, %c0_75], %55 {strides = array<i32>} : memref<18x18x128xbf16, #tpu.memory_space<vmem>>, vector<16x16x128xbf16>,
    %cst_76 = arith.constant 0.000000e+00 : f32
    %57 = vector.broadcast %cst_76 : f32 to vector<256x128xf32>
    %c0_77 = arith.constant 0 : index
    %c0_78 = arith.constant 0 : index
    %c0_79 = arith.constant 0 : index
    %58 = vector.load %arg10[%c0_77, %c0_78, %c0_79] : memref<18x18x128xbf16, #tpu.memory_space<vmem>>, vector<16x16x128xbf16>
    %c0_80 = arith.constant 0 : index
    %c1_81 = arith.constant 1 : index
    %c0_82 = arith.constant 0 : index
    %59 = vector.load %arg10[%c0_80, %c1_81, %c0_82] : memref<18x18x128xbf16, #tpu.memory_space<vmem>>, vector<16x16x128xbf16>
    %c0_83 = arith.constant 0 : index
    %c2_84 = arith.constant 2 : index
    %c0_85 = arith.constant 0 : index
    %60 = vector.load %arg10[%c0_83, %c2_84, %c0_85] : memref<18x18x128xbf16, #tpu.memory_space<vmem>>, vector<16x16x128xbf16>
    %61 = tpu.concatenate %58, %59, %60 in 2 : vector<16x16x128xbf16>, vector<16x16x128xbf16>, vector<16x16x128xbf16> -> vector<16x16x384xbf16>
    %62 = vector.shape_cast %61 : vector<16x16x384xbf16> to vector<256x384xbf16>
    %c0_86 = arith.constant 0 : index
    %c0_87 = arith.constant 0 : index
    %c0_88 = arith.constant 0 : index
    %63 = vector.load %arg5[%c0_86, %c0_87, %c0_88] : memref<3x384x128xbf16, #tpu.memory_space<vmem>>, vector<1x384x128xbf16>
    %64 = vector.shape_cast %63 : vector<1x384x128xbf16> to vector<384x128xbf16>
    %cst_89 = arith.constant dense<0.000000e+00> : vector<256x128xf32>
    %65 = tpu.matmul %62, %64, %cst_89 {dimension_numbers = #tpu.dot_dimension_numbers<[1], [0], [0], [1], [0, 0, 1, 1], [], []>} : vector<256x384xbf16>, vector<384x128xbf16>, vector<256x128xf32> -> vector<256x128xf32>
    %66 = arith.addf %57, %65 : vector<256x128xf32>
    %c1_90 = arith.constant 1 : index
    %c0_91 = arith.constant 0 : index
    %c0_92 = arith.constant 0 : index
    %67 = vector.load %arg10[%c1_90, %c0_91, %c0_92] : memref<18x18x128xbf16, #tpu.memory_space<vmem>>, vector<16x16x128xbf16>
    %c1_93 = arith.constant 1 : index
    %c1_94 = arith.constant 1 : index
    %c0_95 = arith.constant 0 : index
    %68 = vector.load %arg10[%c1_93, %c1_94, %c0_95] : memref<18x18x128xbf16, #tpu.memory_space<vmem>>, vector<16x16x128xbf16>
    %c1_96 = arith.constant 1 : index
    %c2_97 = arith.constant 2 : index
    %c0_98 = arith.constant 0 : index
    %69 = vector.load %arg10[%c1_96, %c2_97, %c0_98] : memref<18x18x128xbf16, #tpu.memory_space<vmem>>, vector<16x16x128xbf16>
    %70 = tpu.concatenate %67, %68, %69 in 2 : vector<16x16x128xbf16>, vector<16x16x128xbf16>, vector<16x16x128xbf16> -> vector<16x16x384xbf16>
    %71 = vector.shape_cast %70 : vector<16x16x384xbf16> to vector<256x384xbf16>
    %c1_99 = arith.constant 1 : index
    %c0_100 = arith.constant 0 : index
    %c0_101 = arith.constant 0 : index
    %72 = vector.load %arg5[%c1_99, %c0_100, %c0_101] : memref<3x384x128xbf16, #tpu.memory_space<vmem>>, vector<1x384x128xbf16>
    %73 = vector.shape_cast %72 : vector<1x384x128xbf16> to vector<384x128xbf16>
    %cst_102 = arith.constant dense<0.000000e+00> : vector<256x128xf32>
    %74 = tpu.matmul %71, %73, %cst_102 {dimension_numbers = #tpu.dot_dimension_numbers<[1], [0], [0], [1], [0, 0, 1, 1], [], []>} : vector<256x384xbf16>, vector<384x128xbf16>, vector<256x128xf32> -> vector<256x128xf32>
    %75 = arith.addf %66, %74 : vector<256x128xf32>
    %c2_103 = arith.constant 2 : index
    %c0_104 = arith.constant 0 : index
    %c0_105 = arith.constant 0 : index
    %76 = vector.load %arg10[%c2_103, %c0_104, %c0_105] : memref<18x18x128xbf16, #tpu.memory_space<vmem>>, vector<16x16x128xbf16>
    %c2_106 = arith.constant 2 : index
    %c1_107 = arith.constant 1 : index
    %c0_108 = arith.constant 0 : index
    %77 = vector.load %arg10[%c2_106, %c1_107, %c0_108] : memref<18x18x128xbf16, #tpu.memory_space<vmem>>, vector<16x16x128xbf16>
    %c2_109 = arith.constant 2 : index
    %c2_110 = arith.constant 2 : index
    %c0_111 = arith.constant 0 : index
    %78 = vector.load %arg10[%c2_109, %c2_110, %c0_111] : memref<18x18x128xbf16, #tpu.memory_space<vmem>>, vector<16x16x128xbf16>
    %79 = tpu.concatenate %76, %77, %78 in 2 : vector<16x16x128xbf16>, vector<16x16x128xbf16>, vector<16x16x128xbf16> -> vector<16x16x384xbf16>
    %80 = vector.shape_cast %79 : vector<16x16x384xbf16> to vector<256x384xbf16>
    %c2_112 = arith.constant 2 : index
    %c0_113 = arith.constant 0 : index
    %c0_114 = arith.constant 0 : index
    %81 = vector.load %arg5[%c2_112, %c0_113, %c0_114] : memref<3x384x128xbf16, #tpu.memory_space<vmem>>, vector<1x384x128xbf16>
    %82 = vector.shape_cast %81 : vector<1x384x128xbf16> to vector<384x128xbf16>
    %cst_115 = arith.constant dense<0.000000e+00> : vector<256x128xf32>
    %83 = tpu.matmul %80, %82, %cst_115 {dimension_numbers = #tpu.dot_dimension_numbers<[1], [0], [0], [1], [0, 0, 1, 1], [], []>} : vector<256x384xbf16>, vector<384x128xbf16>, vector<256x128xf32> -> vector<256x128xf32>
    %84 = arith.addf %75, %83 : vector<256x128xf32>
    %c0_116 = arith.constant 0 : index
    %c0_117 = arith.constant 0 : index
    %85 = vector.load %arg6[%c0_116, %c0_117] : memref<1x128xf32, #tpu.memory_space<vmem>>, vector<1x128xf32>
    %86 = vector.shape_cast %85 : vector<1x128xf32> to vector<128xf32>
    %87 = vector.shape_cast %86 : vector<128xf32> to vector<1x128xf32>
    %88 = vector.broadcast %87 : vector<1x128xf32> to vector<256x128xf32>
    %89 = arith.mulf %84, %88 : vector<256x128xf32>
    %c0_118 = arith.constant 0 : index
    %c0_119 = arith.constant 0 : index
    %90 = vector.load %arg7[%c0_118, %c0_119] : memref<1x128xf32, #tpu.memory_space<vmem>>, vector<1x128xf32>
    %91 = vector.shape_cast %90 : vector<1x128xf32> to vector<128xf32>
    %92 = vector.shape_cast %91 : vector<128xf32> to vector<1x128xf32>
    %93 = vector.broadcast %92 : vector<1x128xf32> to vector<256x128xf32>
    %94 = arith.addf %89, %93 : vector<256x128xf32>
    %95 = vector.shape_cast %94 : vector<256x128xf32> to vector<16x16x128xf32>
    %96 = arith.addf %95, %11 : vector<16x16x128xf32>
    %cst_120 = arith.constant 0.000000e+00 : f32
    %97 = vector.broadcast %cst_120 : f32 to vector<16x16x128xf32>
    %98 = arith.maximumf %96, %97 : vector<16x16x128xf32>
    %c0_121 = arith.constant 0 : index
    %c0_122 = arith.constant 0 : index
    %c0_123 = arith.constant 0 : index
    %c0_124 = arith.constant 0 : index
    %99 = vector.load %arg8[%c0_121, %c0_122, %c0_123, %c0_124] : memref<1x16x16x128xf32, #tpu.memory_space<vmem>>, vector<1x16x16x128xf32>
    %100 = vector.shape_cast %99 : vector<1x16x16x128xf32> to vector<16x16x128xf32>
    %101 = vector.shape_cast %98 : vector<16x16x128xf32> to vector<1x16x16x128xf32>
    tpu.vector_store %arg8[%c0_121, %c0_122, %c0_123, %c0_124], %101 {strides = array<i32>} : memref<1x16x16x128xf32, #tpu.memory_space<vmem>>, vector<1x16x16x128xf32>,
    return
  }
  func.func @transform_0(%arg0: i32) -> (i32, i32, i32, i32) {
    %c0_i32 = arith.constant 0 : i32
    %c0_i32_0 = arith.constant 0 : i32
    %c0_i32_1 = arith.constant 0 : i32
    %c0_i32_2 = arith.constant 0 : i32
    return %arg0, %c0_i32, %c0_i32_0, %c0_i32_1 : i32, i32, i32, i32
  }
  func.func @transform_1(%arg0: i32) -> (i32, i32, i32) {
    %c0_i32 = arith.constant 0 : i32
    %c0_i32_0 = arith.constant 0 : i32
    %c0_i32_1 = arith.constant 0 : i32
    %c0_i32_2 = arith.constant 0 : i32
    return %c0_i32, %c0_i32_0, %c0_i32_1 : i32, i32, i32
  }
  func.func @transform_2(%arg0: i32) -> (i32, i32) {
    %c0_i32 = arith.constant 0 : i32
    %c0_i32_0 = arith.constant 0 : i32
    %c0_i32_1 = arith.constant 0 : i32
    return %c0_i32, %c0_i32_0 : i32, i32
  }
  func.func @transform_3(%arg0: i32) -> (i32, i32) {
    %c0_i32 = arith.constant 0 : i32
    %c0_i32_0 = arith.constant 0 : i32
    %c0_i32_1 = arith.constant 0 : i32
    return %c0_i32, %c0_i32_0 : i32, i32
  }
  func.func @transform_4(%arg0: i32) -> (i32, i32, i32) {
    %c0_i32 = arith.constant 0 : i32
    %c0_i32_0 = arith.constant 0 : i32
    %c0_i32_1 = arith.constant 0 : i32
    %c0_i32_2 = arith.constant 0 : i32
    return %c0_i32, %c0_i32_0, %c0_i32_1 : i32, i32, i32
  }
  func.func @transform_5(%arg0: i32) -> (i32, i32) {
    %c0_i32 = arith.constant 0 : i32
    %c0_i32_0 = arith.constant 0 : i32
    %c0_i32_1 = arith.constant 0 : i32
    return %c0_i32, %c0_i32_0 : i32, i32
  }
  func.func @transform_6(%arg0: i32) -> (i32, i32) {
    %c0_i32 = arith.constant 0 : i32
    %c0_i32_0 = arith.constant 0 : i32
    %c0_i32_1 = arith.constant 0 : i32
    return %c0_i32, %c0_i32_0 : i32, i32
  }
  func.func @transform_7(%arg0: i32) -> (i32, i32, i32, i32) {
    %c0_i32 = arith.constant 0 : i32
    %c0_i32_0 = arith.constant 0 : i32
    %c0_i32_1 = arith.constant 0 : i32
    %c0_i32_2 = arith.constant 0 : i32
    return %arg0, %c0_i32, %c0_i32_0, %c0_i32_1 : i32, i32, i32, i32
  }
}

</mosaic_0001>

<llo_original>
// kernel: tpu_custom_call.1
$region0: #{tpu_custom_call.1}
  #allocation0 [shape = 'u32[]', space=smem, size = 0x4, offset = 0x4, fixed_abs, tag = 'smem constant byte address 0x4 - core index']
  #allocation1 [shape = 'u32[72,128]{1,0:T(1,128)}', space=vmem, size = 0x9000, scoped, tag = 'internal scratch']
  #allocation2 [shape = 'bf16[18,18,128]{2,1,0:T(8,128)(2,1)}', space=vmem, size = 0x1b000, scoped, tag = 'scratch operand']
  #allocation3 [shape = 'bf16[18,18,128]{2,1,0:T(8,128)(2,1)}', space=vmem, size = 0x1b000, scoped, tag = 'scratch operand']
  %s0 = inlined_call_operand.hbm [shape: f32[2,16,16,128], index: 0, kind: input, shape index: {}]
  %s1 = inlined_call_operand.hbm [shape: bf16[3,384,128], index: 1, kind: input, shape index: {}]
  %s2 = inlined_call_operand.vmem [shape: f32[1,128], index: 2, kind: input, shape index: {}]
  %s3 = inlined_call_operand.vmem [shape: f32[1,128], index: 3, kind: input, shape index: {}]
  %s4 = inlined_call_operand.hbm [shape: bf16[3,384,128], index: 4, kind: input, shape index: {}]
  %s5 = inlined_call_operand.vmem [shape: f32[1,128], index: 5, kind: input, shape index: {}]
  %s6 = inlined_call_operand.vmem [shape: f32[1,128], index: 6, kind: input, shape index: {}]
  %s7 = inlined_call_operand.hbm [shape: f32[2,16,16,128], index: 7, kind: output, shape index: {}]
  %s8 = sld [smem:[#allocation0]]
  $region73: #{tpu_custom_call.1} parent=0
    _
  %s10 = ssub.s32 1, %s8
  %s11 = scalar_select 0, %s10, %s8
  $region1: #{tpu_custom_call.1} parent=0
    #allocation4 [shape = 'u8[262144]{0}', space=vmem, size = 0x40000, scoped, tag = 'input window, operand 0']
    #allocation5 [shape = 's32[2]{0}', space=sflag, size = 0x8, scoped, tag = 'scoped memory for tpu_custom_call.1']
    #allocation6 [shape = 's32[2]{0}', space=sflag, size = 0x8, scoped, tag = 'scoped memory for tpu_custom_call.1']
    #allocation7 [shape = 'u8[294912]{0}', space=vmem, size = 0x48000, scoped, tag = 'input window, operand 1, single buffered']
    #allocation8 [shape = 's32[1]{0}', space=sflag, size = 0x4, scoped, tag = 'scoped memory for tpu_custom_call.1']
    #allocation9 [shape = 'u8[294912]{0}', space=vmem, size = 0x48000, scoped, tag = 'input window, operand 4, single buffered']
    #allocation10 [shape = 'u8[262144]{0}', space=vmem, size = 0x40000, scoped, tag = 'output window, operand 0']
    %12 = vsyncpa [#allocation5], 0
    %s13 = scalar_lea.sflag [#allocation5], 1
    %14 = vsyncpa %s13, 0
    %15 = vsyncpa [#allocation8], 0
    %16 = vsyncpa [#allocation6], 0
    %s17 = scalar_lea.sflag [#allocation6], 1
    %18 = vsyncpa %s17, 0
    loop: start=0, step=1, limit=4
    $region2: #{tpu_custom_call.1} parent=1 // loop_pre_header
      _
    $region3: #{tpu_custom_call.1} parent=1 // loop_header
      %s20 = sphi 0, %s24
      %p21 = scmp.ge.s32.totalorder %s20, 4
      %s30 = sphi 0, %s32
      %s33 = sphi 0, %s30
      %s34 = sphi 0, %s33
      %s50 = sphi 0, %s34
      %s54 = sphi 0, %s54
      %s56 = sphi 0, %s54
      %s57 = sphi 0, %s56
      %s71 = sphi 0, %s57
      %s75 = sphi 0, %s75
      %s77 = sphi 0, %s75
      %s78 = sphi 0, %s77
      %s92 = sphi 0, %s78
      %s96 = sphi 0, %s96
      %s98 = sphi 0, %s96
      %s99 = sphi 0, %s98
      %s113 = sphi 0, %s99
      %s117 = sphi 0, %s117
      %s119 = sphi 0, %s117
      %s120 = sphi 0, %s119
      %s134 = sphi 0, %s120
      %s138 = sphi 0, %s138
      %s140 = sphi 0, %s138
      %s141 = sphi 0, %s140
      %s155 = sphi 0, %s141
      %s159 = sphi 0, %s159
      %s161 = sphi 0, %s159
      %s162 = sphi 0, %s161
      %s176 = sphi 0, %s162
      %s182 = sphi 0, %s184
      %s185 = sphi 0, %s182
      %s186 = sphi 0, %s185
      %s202 = sphi 0, %s186
    $region4: #{tpu_custom_call.1} parent=1 // loop_header_branch
      %23 = sbr.rel (%p21) target = $region8
    $region5: #{tpu_custom_call.1} parent=1 // loop_body
      %s25 = ssub.s32 %s20, 1
      %s26 = ssub.s32 %s20, 2
      %s27 = sadd.s32 %s20, 1
      %s28 = ssub.s32 %s20, %s27
      %p29 = scmp.eq.s32.totalorder %s28, 0
      %s31 = sadd.s32 %s30, 1
      %s32 = scalar_select %p29, %s30, %s31
      %p35 = pneg %p29
      %p36 = scmp.eq.s32.totalorder %s20, 1
      %p37 = por %p35, %p36
      %p38 = scmp.ne.s32.totalorder %s30, %s33
      %p39 = scmp.eq.s32.totalorder %s20, 0
      %p40 = por %p38, %p39
      %p41 = scmp.ne.s32.totalorder %s30, %s33
      %p42 = scmp.eq.s32.totalorder %s25, 1
      %p43 = por %p41, %p42
      %p44 = scmp.ne.s32.totalorder %s33, %s34
      %p45 = scmp.eq.s32.totalorder %s25, 0
      %p46 = por %p44, %p45
      %p47 = scmp.ne.s32.totalorder %s33, %s34
      %p48 = scmp.eq.s32.totalorder %s26, 1
      %p49 = por %p47, %p48
      %p51 = scmp.ne.s32.totalorder %s34, %s50
      %p52 = scmp.eq.s32.totalorder %s26, 0
      %p53 = por %p51, %p52
      %s55 = sadd.s32 %s54, 1
      %p58 = scmp.eq.s32.totalorder %s20, 1
      %p59 = scmp.ne.s32.totalorder %s54, %s56
      %p60 = scmp.eq.s32.totalorder %s20, 0
      %p61 = por %p59, %p60
      %p62 = scmp.ne.s32.totalorder %s54, %s56
      %p63 = scmp.eq.s32.totalorder %s25, 1
      %p64 = por %p62, %p63
      %p65 = scmp.ne.s32.totalorder %s56, %s57
      %p66 = scmp.eq.s32.totalorder %s25, 0
      %p67 = por %p65, %p66
      %p68 = scmp.ne.s32.totalorder %s56, %s57
      %p69 = scmp.eq.s32.totalorder %s26, 1
      %p70 = por %p68, %p69
      %p72 = scmp.ne.s32.totalorder %s57, %s71
      %p73 = scmp.eq.s32.totalorder %s26, 0
      %p74 = por %p72, %p73
      %s76 = sadd.s32 %s75, 1
      %p79 = scmp.eq.s32.totalorder %s20, 1
      %p80 = scmp.ne.s32.totalorder %s75, %s77
      %p81 = scmp.eq.s32.totalorder %s20, 0
      %p82 = por %p80, %p81
      %p83 = scmp.ne.s32.totalorder %s75, %s77
      %p84 = scmp.eq.s32.totalorder %s25, 1
      %p85 = por %p83, %p84
      %p86 = scmp.ne.s32.totalorder %s77, %s78
      %p87 = scmp.eq.s32.totalorder %s25, 0
      %p88 = por %p86, %p87
      %p89 = scmp.ne.s32.totalorder %s77, %s78
      %p90 = scmp.eq.s32.totalorder %s26, 1
      %p91 = por %p89, %p90
      %p93 = scmp.ne.s32.totalorder %s78, %s92
      %p94 = scmp.eq.s32.totalorder %s26, 0
      %p95 = por %p93, %p94
      %s97 = sadd.s32 %s96, 1
      %p100 = scmp.eq.s32.totalorder %s20, 1
      %p101 = scmp.ne.s32.totalorder %s96, %s98
      %p102 = scmp.eq.s32.totalorder %s20, 0
      %p103 = por %p101, %p102
      %p104 = scmp.ne.s32.totalorder %s96, %s98
      %p105 = scmp.eq.s32.totalorder %s25, 1
      %p106 = por %p104, %p105
      %p107 = scmp.ne.s32.totalorder %s98, %s99
      %p108 = scmp.eq.s32.totalorder %s25, 0
      %p109 = por %p107, %p108
      %p110 = scmp.ne.s32.totalorder %s98, %s99
      %p111 = scmp.eq.s32.totalorder %s26, 1
      %p112 = por %p110, %p111
      %p114 = scmp.ne.s32.totalorder %s99, %s113
      %p115 = scmp.eq.s32.totalorder %s26, 0
      %p116 = por %p114, %p115
      %s118 = sadd.s32 %s117, 1
      %p121 = scmp.eq.s32.totalorder %s20, 1
      %p122 = scmp.ne.s32.totalorder %s117, %s119
      %p123 = scmp.eq.s32.totalorder %s20, 0
      %p124 = por %p122, %p123
      %p125 = scmp.ne.s32.totalorder %s117, %s119
      %p126 = scmp.eq.s32.totalorder %s25, 1
      %p127 = por %p125, %p126
      %p128 = scmp.ne.s32.totalorder %s119, %s120
      %p129 = scmp.eq.s32.totalorder %s25, 0
      %p130 = por %p128, %p129
      %p131 = scmp.ne.s32.totalorder %s119, %s120
      %p132 = scmp.eq.s32.totalorder %s26, 1
      %p133 = por %p131, %p132
      %p135 = scmp.ne.s32.totalorder %s120, %s134
      %p136 = scmp.eq.s32.totalorder %s26, 0
      %p137 = por %p135, %p136
      %s139 = sadd.s32 %s138, 1
      %p142 = scmp.eq.s32.totalorder %s20, 1
      %p143 = scmp.ne.s32.totalorder %s138, %s140
      %p144 = scmp.eq.s32.totalorder %s20, 0
      %p145 = por %p143, %p144
      %p146 = scmp.ne.s32.totalorder %s138, %s140
      %p147 = scmp.eq.s32.totalorder %s25, 1
      %p148 = por %p146, %p147
      %p149 = scmp.ne.s32.totalorder %s140, %s141
      %p150 = scmp.eq.s32.totalorder %s25, 0
      %p151 = por %p149, %p150
      %p152 = scmp.ne.s32.totalorder %s140, %s141
      %p153 = scmp.eq.s32.totalorder %s26, 1
      %p154 = por %p152, %p153
      %p156 = scmp.ne.s32.totalorder %s141, %s155
      %p157 = scmp.eq.s32.totalorder %s26, 0
      %p158 = por %p156, %p157
      %s160 = sadd.s32 %s159, 1
      %p163 = scmp.eq.s32.totalorder %s20, 1
      %p164 = scmp.ne.s32.totalorder %s159, %s161
      %p165 = scmp.eq.s32.totalorder %s20, 0
      %p166 = por %p164, %p165
      %p167 = scmp.ne.s32.totalorder %s159, %s161
      %p168 = scmp.eq.s32.totalorder %s25, 1
      %p169 = por %p167, %p168
      %p170 = scmp.ne.s32.totalorder %s161, %s162
      %p171 = scmp.eq.s32.totalorder %s25, 0
      %p172 = por %p170, %p171
      %p173 = scmp.ne.s32.totalorder %s161, %s162
      %p174 = scmp.eq.s32.totalorder %s26, 1
      %p175 = por %p173, %p174
      %p177 = scmp.ne.s32.totalorder %s162, %s176
      %p178 = scmp.eq.s32.totalorder %s26, 0
      %p179 = por %p177, %p178
      %s180 = ssub.s32 %s20, %s27
      %p181 = scmp.eq.s32.totalorder %s180, 0
      %s183 = sadd.s32 %s182, 1
      %s184 = scalar_select %p181, %s182, %s183
      %p187 = pneg %p181
      %p188 = scmp.eq.s32.totalorder %s20, 1
      %p189 = por %p187, %p188
      %p190 = scmp.ne.s32.totalorder %s182, %s185
      %p191 = scmp.eq.s32.totalorder %s20, 0
      %p192 = por %p190, %p191
      %p193 = scmp.ne.s32.totalorder %s182, %s185
      %p194 = scmp.eq.s32.totalorder %s25, 1
      %p195 = por %p193, %p194
      %p196 = scmp.ne.s32.totalorder %s185, %s186
      %p197 = scmp.eq.s32.totalorder %s25, 0
      %p198 = por %p196, %p197
      %p199 = scmp.ne.s32.totalorder %s185, %s186
      %p200 = scmp.eq.s32.totalorder %s26, 1
      %p201 = por %p199, %p200
      %p203 = scmp.ne.s32.totalorder %s186, %s202
      %p204 = scmp.eq.s32.totalorder %s26, 0
      %p205 = por %p203, %p204
      %p206 = scmp.le.s32.totalorder 1, %s20
      %p207 = scmp.lt.s32.totalorder %s20, 3
      %p208 = pnand %p206, %p207
      %p209 = pneg %p208
      // Predicated region
      $region9: #{tpu_custom_call.1} parent=5 // pred_check
        _
      $region10: #{tpu_custom_call.1} parent=5 // pred_check_branch
        %211 = sbr.rel (%p208) target = $region12
      $region11: #{tpu_custom_call.1} parent=5 // pred_region
        %s212 = ssub.s32 %s20, 1
        // Predicated region
        $region13: #{tpu_custom_call.1} parent=11 // pred_check
          %p213 = pneg %p67
        $region14: #{tpu_custom_call.1} parent=11 // pred_check_branch
          %215 = sbr.rel (%p213) target = $region16
        $region15: #{tpu_custom_call.1} parent=11 // pred_region
          %217 = vsyncadd [#allocation8], 0
          %s218 = sshll.u32 %s1, 4
          %s219 = int_to_ptr.hbm [resolvable:$true] %s218
          %s220 = sshll.u32 [#allocation7], 4
          %s221 = int_to_ptr.vmem [resolvable:$true] %s220
          %226 = dma.hbm_to_vmem [thread:$0]  %s219, 9216, %s221, [#allocation8], 64, 64, 4
        $region16: #{tpu_custom_call.1} parent=11 // pred_fallthru
          _
        // Predicated region
        $region17: #{tpu_custom_call.1} parent=11 // pred_check
          %p227 = pneg %p88
        $region18: #{tpu_custom_call.1} parent=11 // pred_check_branch
          %229 = sbr.rel (%p227) target = $region20
        $region19: #{tpu_custom_call.1} parent=11 // pred_region
          _
        $region20: #{tpu_custom_call.1} parent=11 // pred_fallthru
          _
        // Predicated region
        $region21: #{tpu_custom_call.1} parent=11 // pred_check
          %p230 = pneg %p109
        $region22: #{tpu_custom_call.1} parent=11 // pred_check_branch
          %232 = sbr.rel (%p230) target = $region24
        $region23: #{tpu_custom_call.1} parent=11 // pred_region
          _
        $region24: #{tpu_custom_call.1} parent=11 // pred_fallthru
          _
        // Predicated region
        $region25: #{tpu_custom_call.1} parent=11 // pred_check
          %p233 = pneg %p130
        $region26: #{tpu_custom_call.1} parent=11 // pred_check_branch
          %235 = sbr.rel (%p233) target = $region28
        $region27: #{tpu_custom_call.1} parent=11 // pred_region
          %237 = vsyncadd [#allocation8], 0
          %s238 = sshll.u32 %s4, 4
          %s239 = int_to_ptr.hbm [resolvable:$true] %s238
          %s240 = sshll.u32 [#allocation9], 4
          %s241 = int_to_ptr.vmem [resolvable:$true] %s240
          %246 = dma.hbm_to_vmem [thread:$0]  %s239, 9216, %s241, [#allocation8], 64, 64, 4
        $region28: #{tpu_custom_call.1} parent=11 // pred_fallthru
          _
        // Predicated region
        $region29: #{tpu_custom_call.1} parent=11 // pred_check
          %p247 = pneg %p151
        $region30: #{tpu_custom_call.1} parent=11 // pred_check_branch
          %249 = sbr.rel (%p247) target = $region32
        $region31: #{tpu_custom_call.1} parent=11 // pred_region
          _
        $region32: #{tpu_custom_call.1} parent=11 // pred_fallthru
          _
        // Predicated region
        $region33: #{tpu_custom_call.1} parent=11 // pred_check
          %p250 = pneg %p172
        $region34: #{tpu_custom_call.1} parent=11 // pred_check_branch
          %252 = sbr.rel (%p250) target = $region36
        $region35: #{tpu_custom_call.1} parent=11 // pred_region
          _
        $region36: #{tpu_custom_call.1} parent=11 // pred_fallthru
          _
      $region12: #{tpu_custom_call.1} parent=5 // pred_fallthru
        _
      %p253 = scmp.lt.s32.totalorder %s20, 2
      // Predicated region
      $region37: #{tpu_custom_call.1} parent=5 // pred_check
        %p254 = pneg %p253
      $region38: #{tpu_custom_call.1} parent=5 // pred_check_branch
        %256 = sbr.rel (%p254) target = $region40
      $region39: #{tpu_custom_call.1} parent=5 // pred_region
        // Predicated region
        $region41: #{tpu_custom_call.1} parent=39 // pred_check
          %p257 = pneg %p40
        $region42: #{tpu_custom_call.1} parent=39 // pred_check_branch
          %259 = sbr.rel (%p257) target = $region44
        $region43: #{tpu_custom_call.1} parent=39 // pred_region
          %s260 = sand.u32 %s30, 1
          %s261 = scalar_lea.sflag [#allocation5], %s260
          %s262 = sand.u32 %s30, 1
          %s263 = smul.addr %s262, 256
          %s264 = scalar_lea.vmem [#allocation4], %s263
          %266 = vsyncadd %s261, 0
          %s267 = smul.addr %s20, 32
          %s268 = smul.addr %s267, 8
          %s269 = scalar_lea.hbm %s0, %s268
          %s270 = sshll.u32 %s269, 4
          %s271 = int_to_ptr.hbm [resolvable:$true] %s270
          %s272 = sshll.u32 %s264, 4
          %s273 = int_to_ptr.vmem [resolvable:$true] %s272
          %278 = dma.hbm_to_vmem [thread:$0]  %s271, 4096, %s273, %s261, 128, 128, 8
        $region44: #{tpu_custom_call.1} parent=39 // pred_fallthru
          _
      $region40: #{tpu_custom_call.1} parent=5 // pred_fallthru
        _
      %p279 = scmp.le.s32.totalorder 1, %s20
      %p280 = scmp.lt.s32.totalorder %s20, 3
      %p281 = pnand %p279, %p280
      %p282 = pneg %p281
      // Predicated region
      $region45: #{tpu_custom_call.1} parent=5 // pred_check
        _
      $region46: #{tpu_custom_call.1} parent=5 // pred_check_branch
        %284 = sbr.rel (%p281) target = $region48
      $region47: #{tpu_custom_call.1} parent=5 // pred_region
        %s285 = ssub.s32 %s20, 1
        %s286 = sand.u32 %s33, 1
        %s287 = scalar_lea.sflag [#allocation5], %s286
        %s288 = sand.u32 %s33, 1
        %s289 = smul.addr %s288, 256
        %s290 = scalar_lea.vmem [#allocation4], %s289
        // Predicated region
        $region49: #{tpu_custom_call.1} parent=47 // pred_check
          %p291 = pneg %p46
        $region50: #{tpu_custom_call.1} parent=47 // pred_check_branch
          %293 = sbr.rel (%p291) target = $region52
        $region51: #{tpu_custom_call.1} parent=47 // pred_region
          %295 = dma.done %s287, 4096
        $region52: #{tpu_custom_call.1} parent=47 // pred_fallthru
          _
        // Predicated region
        $region53: #{tpu_custom_call.1} parent=47 // pred_check
          %p296 = pneg %p67
        $region54: #{tpu_custom_call.1} parent=47 // pred_check_branch
          %298 = sbr.rel (%p296) target = $region56
        $region55: #{tpu_custom_call.1} parent=47 // pred_region
          %300 = dma.done [#allocation8], 9216
        $region56: #{tpu_custom_call.1} parent=47 // pred_fallthru
          _
        // Predicated region
        $region57: #{tpu_custom_call.1} parent=47 // pred_check
          %p301 = pneg %p130
        $region58: #{tpu_custom_call.1} parent=47 // pred_check_branch
          %303 = sbr.rel (%p301) target = $region60
        $region59: #{tpu_custom_call.1} parent=47 // pred_region
          %305 = dma.done [#allocation8], 9216
        $region60: #{tpu_custom_call.1} parent=47 // pred_fallthru
          _
        %s306 = sand.u32 %s33, 1
        %s307 = scalar_lea.sflag [#allocation5], %s306
        %s308 = sand.u32 %s33, 1
        %s309 = smul.addr %s308, 256
        %s310 = scalar_lea.vmem [#allocation4], %s309
        %p311 = pneg %p46
        %p312 = pneg %p43
        %p313 = pneg %p67
        %p314 = pneg %p64
        %p315 = pneg %p88
        %p316 = pneg %p85
        %p317 = pneg %p109
        %p318 = pneg %p106
        %p319 = pneg %p130
        %p320 = pneg %p127
        %p321 = pneg %p151
        %p322 = pneg %p148
        %p323 = pneg %p172
        %p324 = pneg %p169
        %p325 = pneg %p198
        %p326 = pneg %p195
        %s327 = sand.u32 %s185, 1
        %s328 = scalar_lea.sflag [#allocation6], %s327
        %s329 = sand.u32 %s185, 1
        %s330 = smul.addr %s329, 256
        %s331 = scalar_lea.vmem [#allocation10], %s330
        %333 = vst [vmem:[#allocation2] sm:$0xf] 0
        %334 = vst [vmem:[#allocation2 + $0x4] sm:$0xf] 0
        %335 = vst [vmem:[#allocation2 + $0x8] sm:$0x1] 0
        %s336 = scalar_lea.vmem [#allocation2], 204
        %337 = vst [vmem:[%s336] sm:$0xf] 0
        %338 = vst [vmem:[%s336 + $0x4] sm:$0xf] 0
        %339 = vst [vmem:[%s336 + $0x8] sm:$0x1] 0
        %vm340 = vcmask 1040384
        %vm341 = vsmask.f32 256
        %vm342 = vmand %vm340, %vm341
        %v343 = vld [vmem:[#allocation2] sm:$0x1]
        %v344 = vsel %vm342, 0, %v343
        %345 = vst [vmem:[#allocation2] sm:$0x1] %v344
        %v346 = vld [vmem:[#allocation2 + $0xc] sm:$0x1]
        %v347 = vsel %vm342, 0, %v346
        %348 = vst [vmem:[#allocation2 + $0xc] sm:$0x1] %v347
        %v349 = vld [vmem:[#allocation2 + $0x18] sm:$0x1]
        %v350 = vsel %vm342, 0, %v349
        %351 = vst [vmem:[#allocation2 + $0x18] sm:$0x1] %v350
        %v352 = vld [vmem:[#allocation2 + $0x24] sm:$0x1]
        %v353 = vsel %vm342, 0, %v352
        %354 = vst [vmem:[#allocation2 + $0x24] sm:$0x1] %v353
        %v355 = vld [vmem:[#allocation2 + $0x30] sm:$0x1]
        %v356 = vsel %vm342, 0, %v355
        %357 = vst [vmem:[#allocation2 + $0x30] sm:$0x1] %v356
        %v358 = vld [vmem:[#allocation2 + $0x3c] sm:$0x1]
        %v359 = vsel %vm342, 0, %v358
        %360 = vst [vmem:[#allocation2 + $0x3c] sm:$0x1] %v359
        %v361 = vld [vmem:[#allocation2 + $0x48] sm:$0x1]
        %v362 = vsel %vm342, 0, %v361
        %363 = vst [vmem:[#allocation2 + $0x48] sm:$0x1] %v362
        %v364 = vld [vmem:[#allocation2 + $0x54] sm:$0x1]
        %v365 = vsel %vm342, 0, %v364
        %366 = vst [vmem:[#allocation2 + $0x54] sm:$0x1] %v365
        %v367 = vld [vmem:[#allocation2 + $0x60] sm:$0x1]
        %v368 = vsel %vm342, 0, %v367
        %369 = vst [vmem:[#allocation2 + $0x60] sm:$0x1] %v368
        %v370 = vld [vmem:[#allocation2 + $0x6c] sm:$0x1]
        %v371 = vsel %vm342, 0, %v370
        %372 = vst [vmem:[#allocation2 + $0x6c] sm:$0x1] %v371
        %v373 = vld [vmem:[#allocation2 + $0x78] sm:$0x1]
        %v374 = vsel %vm342, 0, %v373
        %375 = vst [vmem:[#allocation2 + $0x78] sm:$0x1] %v374
        %v376 = vld [vmem:[#allocation2 + $0x84] sm:$0x1]
        %v377 = vsel %vm342, 0, %v376
        %378 = vst [vmem:[#allocation2 + $0x84] sm:$0x1] %v377
        %v379 = vld [vmem:[#allocation2 + $0x90] sm:$0x1]
        %v380 = vsel %vm342, 0, %v379
        %381 = vst [vmem:[#allocation2 + $0x90] sm:$0x1] %v380
        %v382 = vld [vmem:[#allocation2 + $0x9c] sm:$0x1]
        %v383 = vsel %vm342, 0, %v382
        %384 = vst [vmem:[#allocation2 + $0x9c] sm:$0x1] %v383
        %v385 = vld [vmem:[#allocation2 + $0xa8] sm:$0x1]
        %v386 = vsel %vm342, 0, %v385
        %387 = vst [vmem:[#allocation2 + $0xa8] sm:$0x1] %v386
        %v388 = vld [vmem:[#allocation2 + $0xb4] sm:$0x1]
        %v389 = vsel %vm342, 0, %v388
        %390 = vst [vmem:[#allocation2 + $0xb4] sm:$0x1] %v389
        %v391 = vld [vmem:[#allocation2 + $0xc0] sm:$0x1]
        %v392 = vsel %vm342, 0, %v391
        %393 = vst [vmem:[#allocation2 + $0xc0] sm:$0x1] %v392
        %v394 = vld [vmem:[#allocation2 + $0xcc] sm:$0x1]
        %v395 = vsel %vm342, 0, %v394
        %396 = vst [vmem:[#allocation2 + $0xcc] sm:$0x1] %v395
        %vm397 = vsmask.f32 7938
        %vm398 = vmand %vm340, %vm397
        %v399 = vld [vmem:[#allocation2 + $0x8] sm:$0x1]
        %v400 = vsel %vm398, 0, %v399
        %401 = vst [vmem:[#allocation2 + $0x8] sm:$0x1] %v400
        %v402 = vld [vmem:[#allocation2 + $0x14] sm:$0x1]
        %v403 = vsel %vm398, 0, %v402
        %404 = vst [vmem:[#allocation2 + $0x14] sm:$0x1] %v403
        %v405 = vld [vmem:[#allocation2 + $0x20] sm:$0x1]
        %v406 = vsel %vm398, 0, %v405
        %407 = vst [vmem:[#allocation2 + $0x20] sm:$0x1] %v406
        %v408 = vld [vmem:[#allocation2 + $0x2c] sm:$0x1]
        %v409 = vsel %vm398, 0, %v408
        %410 = vst [vmem:[#allocation2 + $0x2c] sm:$0x1] %v409
        %v411 = vld [vmem:[#allocation2 + $0x38] sm:$0x1]
        %v412 = vsel %vm398, 0, %v411
        %413 = vst [vmem:[#allocation2 + $0x38] sm:$0x1] %v412
        %v414 = vld [vmem:[#allocation2 + $0x44] sm:$0x1]
        %v415 = vsel %vm398, 0, %v414
        %416 = vst [vmem:[#allocation2 + $0x44] sm:$0x1] %v415
        %v417 = vld [vmem:[#allocation2 + $0x50] sm:$0x1]
        %v418 = vsel %vm398, 0, %v417
        %419 = vst [vmem:[#allocation2 + $0x50] sm:$0x1] %v418
        %v420 = vld [vmem:[#allocation2 + $0x5c] sm:$0x1]
        %v421 = vsel %vm398, 0, %v420
        %422 = vst [vmem:[#allocation2 + $0x5c] sm:$0x1] %v421
        %v423 = vld [vmem:[#allocation2 + $0x68] sm:$0x1]
        %v424 = vsel %vm398, 0, %v423
        %425 = vst [vmem:[#allocation2 + $0x68] sm:$0x1] %v424
        %v426 = vld [vmem:[#allocation2 + $0x74] sm:$0x1]
        %v427 = vsel %vm398, 0, %v426
        %428 = vst [vmem:[#allocation2 + $0x74] sm:$0x1] %v427
        %v429 = vld [vmem:[#allocation2 + $0x80] sm:$0x1]
        %v430 = vsel %vm398, 0, %v429
        %431 = vst [vmem:[#allocation2 + $0x80] sm:$0x1] %v430
        %v432 = vld [vmem:[#allocation2 + $0x8c] sm:$0x1]
        %v433 = vsel %vm398, 0, %v432
        %434 = vst [vmem:[#allocation2 + $0x8c] sm:$0x1] %v433
        %v435 = vld [vmem:[#allocation2 + $0x98] sm:$0x1]
        %v436 = vsel %vm398, 0, %v435
        %437 = vst [vmem:[#allocation2 + $0x98] sm:$0x1] %v436
        %v438 = vld [vmem:[#allocation2 + $0xa4] sm:$0x1]
        %v439 = vsel %vm398, 0, %v438
        %440 = vst [vmem:[#allocation2 + $0xa4] sm:$0x1] %v439
        %v441 = vld [vmem:[#allocation2 + $0xb0] sm:$0x1]
        %v442 = vsel %vm398, 0, %v441
        %443 = vst [vmem:[#allocation2 + $0xb0] sm:$0x1] %v442
        %v444 = vld [vmem:[#allocation2 + $0xbc] sm:$0x1]
        %v445 = vsel %vm398, 0, %v444
        %446 = vst [vmem:[#allocation2 + $0xbc] sm:$0x1] %v445
        %v447 = vld [vmem:[#allocation2 + $0xc8] sm:$0x1]
        %v448 = vsel %vm398, 0, %v447
        %449 = vst [vmem:[#allocation2 + $0xc8] sm:$0x1] %v448
        %v450 = vld [vmem:[#allocation2 + $0xd4] sm:$0x1]
        %v451 = vsel %vm398, 0, %v450
        %452 = vst [vmem:[#allocation2 + $0xd4] sm:$0x1] %v451
        %453 = vst [vmem:[#allocation3] sm:$0xf] 0
        %454 = vst [vmem:[#allocation3 + $0x4] sm:$0xf] 0
        %455 = vst [vmem:[#allocation3 + $0x8] sm:$0x1] 0
        %s456 = scalar_lea.vmem [#allocation3], 204
        %457 = vst [vmem:[%s456] sm:$0xf] 0
        %458 = vst [vmem:[%s456 + $0x4] sm:$0xf] 0
        %459 = vst [vmem:[%s456 + $0x8] sm:$0x1] 0
        %v460 = vld [vmem:[#allocation3] sm:$0x1]
        %v461 = vsel %vm342, 0, %v460
        %462 = vst [vmem:[#allocation3] sm:$0x1] %v461
        %v463 = vld [vmem:[#allocation3 + $0xc] sm:$0x1]
        %v464 = vsel %vm342, 0, %v463
        %465 = vst [vmem:[#allocation3 + $0xc] sm:$0x1] %v464
        %v466 = vld [vmem:[#allocation3 + $0x18] sm:$0x1]
        %v467 = vsel %vm342, 0, %v466
        %468 = vst [vmem:[#allocation3 + $0x18] sm:$0x1] %v467
        %v469 = vld [vmem:[#allocation3 + $0x24] sm:$0x1]
        %v470 = vsel %vm342, 0, %v469
        %471 = vst [vmem:[#allocation3 + $0x24] sm:$0x1] %v470
        %v472 = vld [vmem:[#allocation3 + $0x30] sm:$0x1]
        %v473 = vsel %vm342, 0, %v472
        %474 = vst [vmem:[#allocation3 + $0x30] sm:$0x1] %v473
        %v475 = vld [vmem:[#allocation3 + $0x3c] sm:$0x1]
        %v476 = vsel %vm342, 0, %v475
        %477 = vst [vmem:[#allocation3 + $0x3c] sm:$0x1] %v476
        %v478 = vld [vmem:[#allocation3 + $0x48] sm:$0x1]
        %v479 = vsel %vm342, 0, %v478
        %480 = vst [vmem:[#allocation3 + $0x48] sm:$0x1] %v479
        %v481 = vld [vmem:[#allocation3 + $0x54] sm:$0x1]
        %v482 = vsel %vm342, 0, %v481
        %483 = vst [vmem:[#allocation3 + $0x54] sm:$0x1] %v482
        %v484 = vld [vmem:[#allocation3 + $0x60] sm:$0x1]
        %v485 = vsel %vm342, 0, %v484
        %486 = vst [vmem:[#allocation3 + $0x60] sm:$0x1] %v485
        %v487 = vld [vmem:[#allocation3 + $0x6c] sm:$0x1]
        %v488 = vsel %vm342, 0, %v487
        %489 = vst [vmem:[#allocation3 + $0x6c] sm:$0x1] %v488
        %v490 = vld [vmem:[#allocation3 + $0x78] sm:$0x1]
        %v491 = vsel %vm342, 0, %v490
        %492 = vst [vmem:[#allocation3 + $0x78] sm:$0x1] %v491
        %v493 = vld [vmem:[#allocation3 + $0x84] sm:$0x1]
        %v494 = vsel %vm342, 0, %v493
        %495 = vst [vmem:[#allocation3 + $0x84] sm:$0x1] %v494
        %v496 = vld [vmem:[#allocation3 + $0x90] sm:$0x1]
        %v497 = vsel %vm342, 0, %v496
        %498 = vst [vmem:[#allocation3 + $0x90] sm:$0x1] %v497
        %v499 = vld [vmem:[#allocation3 + $0x9c] sm:$0x1]
        %v500 = vsel %vm342, 0, %v499
        %501 = vst [vmem:[#allocation3 + $0x9c] sm:$0x1] %v500
        %v502 = vld [vmem:[#allocation3 + $0xa8] sm:$0x1]
        %v503 = vsel %vm342, 0, %v502
        %504 = vst [vmem:[#allocation3 + $0xa8] sm:$0x1] %v503
        %v505 = vld [vmem:[#allocation3 + $0xb4] sm:$0x1]
        %v506 = vsel %vm342, 0, %v505
        %507 = vst [vmem:[#allocation3 + $0xb4] sm:$0x1] %v506
        %v508 = vld [vmem:[#allocation3 + $0xc0] sm:$0x1]
        %v509 = vsel %vm342, 0, %v508
        %510 = vst [vmem:[#allocation3 + $0xc0] sm:$0x1] %v509
        %v511 = vld [vmem:[#allocation3 + $0xcc] sm:$0x1]
        %v512 = vsel %vm342, 0, %v511
        %513 = vst [vmem:[#allocation3 + $0xcc] sm:$0x1] %v512
        %v514 = vld [vmem:[#allocation3 + $0x8] sm:$0x1]
        %v515 = vsel %vm398, 0, %v514
        %516 = vst [vmem:[#allocation3 + $0x8] sm:$0x1] %v515
        %v517 = vld [vmem:[#allocation3 + $0x14] sm:$0x1]
        %v518 = vsel %vm398, 0, %v517
        %519 = vst [vmem:[#allocation3 + $0x14] sm:$0x1] %v518
        %v520 = vld [vmem:[#allocation3 + $0x20] sm:$0x1]
        %v521 = vsel %vm398, 0, %v520
        %522 = vst [vmem:[#allocation3 + $0x20] sm:$0x1] %v521
        %v523 = vld [vmem:[#allocation3 + $0x2c] sm:$0x1]
        %v524 = vsel %vm398, 0, %v523
        %525 = vst [vmem:[#allocation3 + $0x2c] sm:$0x1] %v524
        %v526 = vld [vmem:[#allocation3 + $0x38] sm:$0x1]
        %v527 = vsel %vm398, 0, %v526
        %528 = vst [vmem:[#allocation3 + $0x38] sm:$0x1] %v527
        %v529 = vld [vmem:[#allocation3 + $0x44] sm:$0x1]
        %v530 = vsel %vm398, 0, %v529
        %531 = vst [vmem:[#allocation3 + $0x44] sm:$0x1] %v530
        %v532 = vld [vmem:[#allocation3 + $0x50] sm:$0x1]
        %v533 = vsel %vm398, 0, %v532
        %534 = vst [vmem:[#allocation3 + $0x50] sm:$0x1] %v533
        %v535 = vld [vmem:[#allocation3 + $0x5c] sm:$0x1]
        %v536 = vsel %vm398, 0, %v535
        %537 = vst [vmem:[#allocation3 + $0x5c] sm:$0x1] %v536
        %v538 = vld [vmem:[#allocation3 + $0x68] sm:$0x1]
        %v539 = vsel %vm398, 0, %v538
        %540 = vst [vmem:[#allocation3 + $0x68] sm:$0x1] %v539
        %v541 = vld [vmem:[#allocation3 + $0x74] sm:$0x1]
        %v542 = vsel %vm398, 0, %v541
        %543 = vst [vmem:[#allocation3 + $0x74] sm:$0x1] %v542
        %v544 = vld [vmem:[#allocation3 + $0x80] sm:$0x1]
        %v545 = vsel %vm398, 0, %v544
        %546 = vst [vmem:[#allocation3 + $0x80] sm:$0x1] %v545
        %v547 = vld [vmem:[#allocation3 + $0x8c] sm:$0x1]
        %v548 = vsel %vm398, 0, %v547
        %549 = vst [vmem:[#allocation3 + $0x8c] sm:$0x1] %v548
        %v550 = vld [vmem:[#allocation3 + $0x98] sm:$0x1]
        %v551 = vsel %vm398, 0, %v550
        %552 = vst [vmem:[#allocation3 + $0x98] sm:$0x1] %v551
        %v553 = vld [vmem:[#allocation3 + $0xa4] sm:$0x1]
        %v554 = vsel %vm398, 0, %v553
        %555 = vst [vmem:[#allocation3 + $0xa4] sm:$0x1] %v554
        %v556 = vld [vmem:[#allocation3 + $0xb0] sm:$0x1]
        %v557 = vsel %vm398, 0, %v556
        %558 = vst [vmem:[#allocation3 + $0xb0] sm:$0x1] %v557
        %v559 = vld [vmem:[#allocation3 + $0xbc] sm:$0x1]
        %v560 = vsel %vm398, 0, %v559
        %561 = vst [vmem:[#allocation3 + $0xbc] sm:$0x1] %v560
        %v562 = vld [vmem:[#allocation3 + $0xc8] sm:$0x1]
        %v563 = vsel %vm398, 0, %v562
        %564 = vst [vmem:[#allocation3 + $0xc8] sm:$0x1] %v563
        %v565 = vld [vmem:[#allocation3 + $0xd4] sm:$0x1]
        %v566 = vsel %vm398, 0, %v565
        %567 = vst [vmem:[#allocation3 + $0xd4] sm:$0x1] %v566
        %v568 = vld [vmem:[%s290] sm:$0xff]
        %v569 = vld [vmem:[%s290 + $0x8] sm:$0xff]
        %v570 = vld [vmem:[%s290 + $0x10] sm:$0xff]
        %v571 = vld [vmem:[%s290 + $0x18] sm:$0xff]
        %v572 = vld [vmem:[%s290 + $0x20] sm:$0xff]
        %v573 = vld [vmem:[%s290 + $0x28] sm:$0xff]
        %v574 = vld [vmem:[%s290 + $0x30] sm:$0xff]
        %v575 = vld [vmem:[%s290 + $0x38] sm:$0xff]
        %v576 = vld [vmem:[%s290 + $0x40] sm:$0xff]
        %v577 = vld [vmem:[%s290 + $0x48] sm:$0xff]
        %v578 = vld [vmem:[%s290 + $0x50] sm:$0xff]
        %v579 = vld [vmem:[%s290 + $0x58] sm:$0xff]
        %v580 = vld [vmem:[%s290 + $0x60] sm:$0xff]
        %v581 = vld [vmem:[%s290 + $0x68] sm:$0xff]
        %v582 = vld [vmem:[%s290 + $0x70] sm:$0xff]
        %v583 = vld [vmem:[%s290 + $0x78] sm:$0xff]
        %v584 = vld [vmem:[%s290 + $0x80] sm:$0xff]
        %v585 = vld [vmem:[%s290 + $0x88] sm:$0xff]
        %v586 = vld [vmem:[%s290 + $0x90] sm:$0xff]
        %v587 = vld [vmem:[%s290 + $0x98] sm:$0xff]
        %v588 = vld [vmem:[%s290 + $0xa0] sm:$0xff]
        %v589 = vld [vmem:[%s290 + $0xa8] sm:$0xff]
        %v590 = vld [vmem:[%s290 + $0xb0] sm:$0xff]
        %v591 = vld [vmem:[%s290 + $0xb8] sm:$0xff]
        %v592 = vld [vmem:[%s290 + $0xc0] sm:$0xff]
        %v593 = vld [vmem:[%s290 + $0xc8] sm:$0xff]
        %v594 = vld [vmem:[%s290 + $0xd0] sm:$0xff]
        %v595 = vld [vmem:[%s290 + $0xd8] sm:$0xff]
        %v596 = vld [vmem:[%s290 + $0xe0] sm:$0xff]
        %v597 = vld [vmem:[%s290 + $0xe8] sm:$0xff]
        %v598 = vld [vmem:[%s290 + $0xf0] sm:$0xff]
        %v599 = vld [vmem:[%s290 + $0xf8] sm:$0xff]
        %v600 = vpack.c.bf16 %v568, %v568
        %v601 = vpack.c.bf16 %v569, %v569
        %v602 = vpack.c.bf16 %v570, %v570
        %v603 = vpack.c.bf16 %v571, %v571
        %v604 = vpack.c.bf16 %v572, %v572
        %v605 = vpack.c.bf16 %v573, %v573
        %v606 = vpack.c.bf16 %v574, %v574
        %v607 = vpack.c.bf16 %v575, %v575
        %v608 = vpack.c.bf16 %v576, %v576
        %v609 = vpack.c.bf16 %v577, %v577
        %v610 = vpack.c.bf16 %v578, %v578
        %v611 = vpack.c.bf16 %v579, %v579
        %v612 = vpack.c.bf16 %v580, %v580
        %v613 = vpack.c.bf16 %v581, %v581
        %v614 = vpack.c.bf16 %v582, %v582
        %v615 = vpack.c.bf16 %v583, %v583
        %v616 = vpack.c.bf16 %v584, %v584
        %v617 = vpack.c.bf16 %v585, %v585
        %v618 = vpack.c.bf16 %v586, %v586
        %v619 = vpack.c.bf16 %v587, %v587
        %v620 = vpack.c.bf16 %v588, %v588
        %v621 = vpack.c.bf16 %v589, %v589
        %v622 = vpack.c.bf16 %v590, %v590
        %v623 = vpack.c.bf16 %v591, %v591
        %v624 = vpack.c.bf16 %v592, %v592
        %v625 = vpack.c.bf16 %v593, %v593
        %v626 = vpack.c.bf16 %v594, %v594
        %v627 = vpack.c.bf16 %v595, %v595
        %v628 = vpack.c.bf16 %v596, %v596
        %v629 = vpack.c.bf16 %v597, %v597
        %v630 = vpack.c.bf16 %v598, %v598
        %v631 = vpack.c.bf16 %v599, %v599
        %vm632 = vsmask.f32 4368
        %vm633 = vmor %vm341, %vm632
        %v635 = vshrl.u32 %v600, 16
        %v637 = vrot.slane %v635, 7
        %v638 = vshll.u32 %v600, 16
        %v640 = vor.u32 %v637, %v638
        %v641 = vrot.slane %v637, 4
        %v643 = vshrl.u32 %v601, 16
        %v645 = vrot.slane %v643, 7
        %v646 = vshll.u32 %v601, 16
        %v648 = vor.u32 %v645, %v646
        %v649 = vsel %vm633, %v641, %v648
        %v650 = vrot.slane %v645, 4
        %v652 = vshrl.u32 %v602, 16
        %v654 = vrot.slane %v652, 7
        %v655 = vshll.u32 %v602, 16
        %v657 = vor.u32 %v654, %v655
        %v658 = vrot.slane %v654, 4
        %v660 = vshrl.u32 %v603, 16
        %v662 = vrot.slane %v660, 7
        %v663 = vshll.u32 %v603, 16
        %v665 = vor.u32 %v662, %v663
        %v666 = vsel %vm633, %v658, %v665
        %v667 = vrot.slane %v662, 4
        %v669 = vshrl.u32 %v604, 16
        %v671 = vrot.slane %v669, 7
        %v672 = vshll.u32 %v604, 16
        %v674 = vor.u32 %v671, %v672
        %v675 = vrot.slane %v671, 4
        %v677 = vshrl.u32 %v605, 16
        %v679 = vrot.slane %v677, 7
        %v680 = vshll.u32 %v605, 16
        %v682 = vor.u32 %v679, %v680
        %v683 = vsel %vm633, %v675, %v682
        %v684 = vrot.slane %v679, 4
        %v686 = vshrl.u32 %v606, 16
        %v688 = vrot.slane %v686, 7
        %v689 = vshll.u32 %v606, 16
        %v691 = vor.u32 %v688, %v689
        %v692 = vrot.slane %v688, 4
        %v694 = vshrl.u32 %v607, 16
        %v696 = vrot.slane %v694, 7
        %v697 = vshll.u32 %v607, 16
        %v699 = vor.u32 %v696, %v697
        %v700 = vsel %vm633, %v692, %v699
        %v701 = vrot.slane %v696, 4
        %v703 = vshrl.u32 %v608, 16
        %v705 = vrot.slane %v703, 7
        %v706 = vshll.u32 %v608, 16
        %v708 = vor.u32 %v705, %v706
        %v709 = vrot.slane %v705, 4
        %v711 = vshrl.u32 %v609, 16
        %v713 = vrot.slane %v711, 7
        %v714 = vshll.u32 %v609, 16
        %v716 = vor.u32 %v713, %v714
        %v717 = vsel %vm633, %v709, %v716
        %v718 = vrot.slane %v713, 4
        %v720 = vshrl.u32 %v610, 16
        %v722 = vrot.slane %v720, 7
        %v723 = vshll.u32 %v610, 16
        %v725 = vor.u32 %v722, %v723
        %v726 = vrot.slane %v722, 4
        %v728 = vshrl.u32 %v611, 16
        %v730 = vrot.slane %v728, 7
        %v731 = vshll.u32 %v611, 16
        %v733 = vor.u32 %v730, %v731
        %v734 = vsel %vm633, %v726, %v733
        %v735 = vrot.slane %v730, 4
        %v737 = vshrl.u32 %v612, 16
        %v739 = vrot.slane %v737, 7
        %v740 = vshll.u32 %v612, 16
        %v742 = vor.u32 %v739, %v740
        %v743 = vrot.slane %v739, 4
        %v745 = vshrl.u32 %v613, 16
        %v747 = vrot.slane %v745, 7
        %v748 = vshll.u32 %v613, 16
        %v750 = vor.u32 %v747, %v748
        %v751 = vsel %vm633, %v743, %v750
        %v752 = vrot.slane %v747, 4
        %v754 = vshrl.u32 %v614, 16
        %v756 = vrot.slane %v754, 7
        %v757 = vshll.u32 %v614, 16
        %v759 = vor.u32 %v756, %v757
        %v760 = vrot.slane %v756, 4
        %v762 = vshrl.u32 %v615, 16
        %v764 = vrot.slane %v762, 7
        %v765 = vshll.u32 %v615, 16
        %v767 = vor.u32 %v764, %v765
        %v768 = vsel %vm633, %v760, %v767
        %v769 = vrot.slane %v764, 4
        %v771 = vshrl.u32 %v616, 16
        %v773 = vrot.slane %v771, 7
        %v774 = vshll.u32 %v616, 16
        %v776 = vor.u32 %v773, %v774
        %v777 = vrot.slane %v773, 4
        %v779 = vshrl.u32 %v617, 16
        %v781 = vrot.slane %v779, 7
        %v782 = vshll.u32 %v617, 16
        %v784 = vor.u32 %v781, %v782
        %v785 = vsel %vm633, %v777, %v784
        %v786 = vrot.slane %v781, 4
        %v788 = vshrl.u32 %v618, 16
        %v790 = vrot.slane %v788, 7
        %v791 = vshll.u32 %v618, 16
        %v793 = vor.u32 %v790, %v791
        %v794 = vrot.slane %v790, 4
        %v796 = vshrl.u32 %v619, 16
        %v798 = vrot.slane %v796, 7
        %v799 = vshll.u32 %v619, 16
        %v801 = vor.u32 %v798, %v799
        %v802 = vsel %vm633, %v794, %v801
        %v803 = vrot.slane %v798, 4
        %v805 = vshrl.u32 %v620, 16
        %v807 = vrot.slane %v805, 7
        %v808 = vshll.u32 %v620, 16
        %v810 = vor.u32 %v807, %v808
        %v811 = vrot.slane %v807, 4
        %v813 = vshrl.u32 %v621, 16
        %v815 = vrot.slane %v813, 7
        %v816 = vshll.u32 %v621, 16
        %v818 = vor.u32 %v815, %v816
        %v819 = vsel %vm633, %v811, %v818
        %v820 = vrot.slane %v815, 4
        %v822 = vshrl.u32 %v622, 16
        %v824 = vrot.slane %v822, 7
        %v825 = vshll.u32 %v622, 16
        %v827 = vor.u32 %v824, %v825
        %v828 = vrot.slane %v824, 4
        %v830 = vshrl.u32 %v623, 16
        %v832 = vrot.slane %v830, 7
        %v833 = vshll.u32 %v623, 16
        %v835 = vor.u32 %v832, %v833
        %v836 = vsel %vm633, %v828, %v835
        %v837 = vrot.slane %v832, 4
        %v839 = vshrl.u32 %v624, 16
        %v841 = vrot.slane %v839, 7
        %v842 = vshll.u32 %v624, 16
        %v844 = vor.u32 %v841, %v842
        %v845 = vrot.slane %v841, 4
        %v847 = vshrl.u32 %v625, 16
        %v849 = vrot.slane %v847, 7
        %v850 = vshll.u32 %v625, 16
        %v852 = vor.u32 %v849, %v850
        %v853 = vsel %vm633, %v845, %v852
        %v854 = vrot.slane %v849, 4
        %v856 = vshrl.u32 %v626, 16
        %v858 = vrot.slane %v856, 7
        %v859 = vshll.u32 %v626, 16
        %v861 = vor.u32 %v858, %v859
        %v862 = vrot.slane %v858, 4
        %v864 = vshrl.u32 %v627, 16
        %v866 = vrot.slane %v864, 7
        %v867 = vshll.u32 %v627, 16
        %v869 = vor.u32 %v866, %v867
        %v870 = vsel %vm633, %v862, %v869
        %v871 = vrot.slane %v866, 4
        %v873 = vshrl.u32 %v628, 16
        %v875 = vrot.slane %v873, 7
        %v876 = vshll.u32 %v628, 16
        %v878 = vor.u32 %v875, %v876
        %v879 = vrot.slane %v875, 4
        %v881 = vshrl.u32 %v629, 16
        %v883 = vrot.slane %v881, 7
        %v884 = vshll.u32 %v629, 16
        %v886 = vor.u32 %v883, %v884
        %v887 = vsel %vm633, %v879, %v886
        %v888 = vrot.slane %v883, 4
        %v890 = vshrl.u32 %v630, 16
        %v892 = vrot.slane %v890, 7
        %v893 = vshll.u32 %v630, 16
        %v895 = vor.u32 %v892, %v893
        %v896 = vrot.slane %v892, 4
        %v898 = vshrl.u32 %v631, 16
        %v900 = vrot.slane %v898, 7
        %v901 = vshll.u32 %v631, 16
        %v903 = vor.u32 %v900, %v901
        %v904 = vsel %vm633, %v896, %v903
        %v905 = vrot.slane %v900, 4
        %s954 = scalar_lea.vmem [#allocation2], 12
        %vm955 = vcmask 1043456
        %vm956 = vmand %vm955, %vm397
        %v957 = vld [vmem:[%s954] sm:$0xf]
        %v958 = vsel %vm956, %v640, %v957
        %959 = vst [vmem:[%s954] sm:$0xf] %v958
        %960 = vst [vmem:[%s954 + $0x4] sm:$0xf] %v649
        %v961 = vld [vmem:[%s954 + $0x8] sm:$0x1]
        %v962 = vsel %vm342, %v650, %v961
        %963 = vst [vmem:[%s954 + $0x8] sm:$0x1] %v962
        %v964 = vld [vmem:[%s954 + $0xc] sm:$0xf]
        %v965 = vsel %vm956, %v657, %v964
        %966 = vst [vmem:[%s954 + $0xc] sm:$0xf] %v965
        %967 = vst [vmem:[%s954 + $0x10] sm:$0xf] %v666
        %v968 = vld [vmem:[%s954 + $0x14] sm:$0x1]
        %v969 = vsel %vm342, %v667, %v968
        %970 = vst [vmem:[%s954 + $0x14] sm:$0x1] %v969
        %v971 = vld [vmem:[%s954 + $0x18] sm:$0xf]
        %v972 = vsel %vm956, %v674, %v971
        %973 = vst [vmem:[%s954 + $0x18] sm:$0xf] %v972
        %974 = vst [vmem:[%s954 + $0x1c] sm:$0xf] %v683
        %v975 = vld [vmem:[%s954 + $0x20] sm:$0x1]
        %v976 = vsel %vm342, %v684, %v975
        %977 = vst [vmem:[%s954 + $0x20] sm:$0x1] %v976
        %v978 = vld [vmem:[%s954 + $0x24] sm:$0xf]
        %v979 = vsel %vm956, %v691, %v978
        %980 = vst [vmem:[%s954 + $0x24] sm:$0xf] %v979
        %981 = vst [vmem:[%s954 + $0x28] sm:$0xf] %v700
        %v982 = vld [vmem:[%s954 + $0x2c] sm:$0x1]
        %v983 = vsel %vm342, %v701, %v982
        %984 = vst [vmem:[%s954 + $0x2c] sm:$0x1] %v983
        %v985 = vld [vmem:[%s954 + $0x30] sm:$0xf]
        %v986 = vsel %vm956, %v708, %v985
        %987 = vst [vmem:[%s954 + $0x30] sm:$0xf] %v986
        %988 = vst [vmem:[%s954 + $0x34] sm:$0xf] %v717
        %v989 = vld [vmem:[%s954 + $0x38] sm:$0x1]
        %v990 = vsel %vm342, %v718, %v989
        %991 = vst [vmem:[%s954 + $0x38] sm:$0x1] %v990
        %v992 = vld [vmem:[%s954 + $0x3c] sm:$0xf]
        %v993 = vsel %vm956, %v725, %v992
        %994 = vst [vmem:[%s954 + $0x3c] sm:$0xf] %v993
        %995 = vst [vmem:[%s954 + $0x40] sm:$0xf] %v734
        %v996 = vld [vmem:[%s954 + $0x44] sm:$0x1]
        %v997 = vsel %vm342, %v735, %v996
        %998 = vst [vmem:[%s954 + $0x44] sm:$0x1] %v997
        %v999 = vld [vmem:[%s954 + $0x48] sm:$0xf]
        %v1000 = vsel %vm956, %v742, %v999
        %1001 = vst [vmem:[%s954 + $0x48] sm:$0xf] %v1000
        %1002 = vst [vmem:[%s954 + $0x4c] sm:$0xf] %v751
        %v1003 = vld [vmem:[%s954 + $0x50] sm:$0x1]
        %v1004 = vsel %vm342, %v752, %v1003
        %1005 = vst [vmem:[%s954 + $0x50] sm:$0x1] %v1004
        %v1006 = vld [vmem:[%s954 + $0x54] sm:$0xf]
        %v1007 = vsel %vm956, %v759, %v1006
        %1008 = vst [vmem:[%s954 + $0x54] sm:$0xf] %v1007
        %1009 = vst [vmem:[%s954 + $0x58] sm:$0xf] %v768
        %v1010 = vld [vmem:[%s954 + $0x5c] sm:$0x1]
        %v1011 = vsel %vm342, %v769, %v1010
        %1012 = vst [vmem:[%s954 + $0x5c] sm:$0x1] %v1011
        %v1013 = vld [vmem:[%s954 + $0x60] sm:$0xf]
        %v1014 = vsel %vm956, %v776, %v1013
        %1015 = vst [vmem:[%s954 + $0x60] sm:$0xf] %v1014
        %1016 = vst [vmem:[%s954 + $0x64] sm:$0xf] %v785
        %v1017 = vld [vmem:[%s954 + $0x68] sm:$0x1]
        %v1018 = vsel %vm342, %v786, %v1017
        %1019 = vst [vmem:[%s954 + $0x68] sm:$0x1] %v1018
        %v1020 = vld [vmem:[%s954 + $0x6c] sm:$0xf]
        %v1021 = vsel %vm956, %v793, %v1020
        %1022 = vst [vmem:[%s954 + $0x6c] sm:$0xf] %v1021
        %1023 = vst [vmem:[%s954 + $0x70] sm:$0xf] %v802
        %v1024 = vld [vmem:[%s954 + $0x74] sm:$0x1]
        %v1025 = vsel %vm342, %v803, %v1024
        %1026 = vst [vmem:[%s954 + $0x74] sm:$0x1] %v1025
        %v1027 = vld [vmem:[%s954 + $0x78] sm:$0xf]
        %v1028 = vsel %vm956, %v810, %v1027
        %1029 = vst [vmem:[%s954 + $0x78] sm:$0xf] %v1028
        %1030 = vst [vmem:[%s954 + $0x7c] sm:$0xf] %v819
        %v1031 = vld [vmem:[%s954 + $0x80] sm:$0x1]
        %v1032 = vsel %vm342, %v820, %v1031
        %1033 = vst [vmem:[%s954 + $0x80] sm:$0x1] %v1032
        %v1034 = vld [vmem:[%s954 + $0x84] sm:$0xf]
        %v1035 = vsel %vm956, %v827, %v1034
        %1036 = vst [vmem:[%s954 + $0x84] sm:$0xf] %v1035
        %1037 = vst [vmem:[%s954 + $0x88] sm:$0xf] %v836
        %v1038 = vld [vmem:[%s954 + $0x8c] sm:$0x1]
        %v1039 = vsel %vm342, %v837, %v1038
        %1040 = vst [vmem:[%s954 + $0x8c] sm:$0x1] %v1039
        %v1041 = vld [vmem:[%s954 + $0x90] sm:$0xf]
        %v1042 = vsel %vm956, %v844, %v1041
        %1043 = vst [vmem:[%s954 + $0x90] sm:$0xf] %v1042
        %1044 = vst [vmem:[%s954 + $0x94] sm:$0xf] %v853
        %v1045 = vld [vmem:[%s954 + $0x98] sm:$0x1]
        %v1046 = vsel %vm342, %v854, %v1045
        %1047 = vst [vmem:[%s954 + $0x98] sm:$0x1] %v1046
        %v1048 = vld [vmem:[%s954 + $0x9c] sm:$0xf]
        %v1049 = vsel %vm956, %v861, %v1048
        %1050 = vst [vmem:[%s954 + $0x9c] sm:$0xf] %v1049
        %1051 = vst [vmem:[%s954 + $0xa0] sm:$0xf] %v870
        %v1052 = vld [vmem:[%s954 + $0xa4] sm:$0x1]
        %v1053 = vsel %vm342, %v871, %v1052
        %1054 = vst [vmem:[%s954 + $0xa4] sm:$0x1] %v1053
        %v1055 = vld [vmem:[%s954 + $0xa8] sm:$0xf]
        %v1056 = vsel %vm956, %v878, %v1055
        %1057 = vst [vmem:[%s954 + $0xa8] sm:$0xf] %v1056
        %1058 = vst [vmem:[%s954 + $0xac] sm:$0xf] %v887
        %v1059 = vld [vmem:[%s954 + $0xb0] sm:$0x1]
        %v1060 = vsel %vm342, %v888, %v1059
        %1061 = vst [vmem:[%s954 + $0xb0] sm:$0x1] %v1060
        %v1062 = vld [vmem:[%s954 + $0xb4] sm:$0xf]
        %v1063 = vsel %vm956, %v895, %v1062
        %1064 = vst [vmem:[%s954 + $0xb4] sm:$0xf] %v1063
        %1065 = vst [vmem:[%s954 + $0xb8] sm:$0xf] %v904
        %v1066 = vld [vmem:[%s954 + $0xbc] sm:$0x1]
        %v1067 = vsel %vm342, %v905, %v1066
        %1068 = vst [vmem:[%s954 + $0xbc] sm:$0x1] %v1067
        %v1069 = vld [vmem:[#allocation2] sm:$0xf]
        %v1070 = vld [vmem:[#allocation2 + $0x4] sm:$0xf]
        %v1071 = vld [vmem:[#allocation2 + $0xc] sm:$0xf]
        %v1072 = vld [vmem:[#allocation2 + $0x10] sm:$0xf]
        %v1073 = vld [vmem:[#allocation2 + $0x18] sm:$0xf]
        %v1074 = vld [vmem:[#allocation2 + $0x1c] sm:$0xf]
        %v1075 = vld [vmem:[#allocation2 + $0x24] sm:$0xf]
        %v1076 = vld [vmem:[#allocation2 + $0x28] sm:$0xf]
        %v1077 = vld [vmem:[#allocation2 + $0x30] sm:$0xf]
        %v1078 = vld [vmem:[#allocation2 + $0x34] sm:$0xf]
        %v1079 = vld [vmem:[#allocation2 + $0x3c] sm:$0xf]
        %v1080 = vld [vmem:[#allocation2 + $0x40] sm:$0xf]
        %v1081 = vld [vmem:[#allocation2 + $0x48] sm:$0xf]
        %v1082 = vld [vmem:[#allocation2 + $0x4c] sm:$0xf]
        %v1083 = vld [vmem:[#allocation2 + $0x54] sm:$0xf]
        %v1084 = vld [vmem:[#allocation2 + $0x58] sm:$0xf]
        %v1085 = vld [vmem:[#allocation2 + $0x60] sm:$0xf]
        %v1086 = vld [vmem:[#allocation2 + $0x64] sm:$0xf]
        %v1087 = vld [vmem:[#allocation2 + $0x6c] sm:$0xf]
        %v1088 = vld [vmem:[#allocation2 + $0x70] sm:$0xf]
        %v1089 = vld [vmem:[#allocation2 + $0x78] sm:$0xf]
        %v1090 = vld [vmem:[#allocation2 + $0x7c] sm:$0xf]
        %v1091 = vld [vmem:[#allocation2 + $0x84] sm:$0xf]
        %v1092 = vld [vmem:[#allocation2 + $0x88] sm:$0xf]
        %v1093 = vld [vmem:[#allocation2 + $0x90] sm:$0xf]
        %v1094 = vld [vmem:[#allocation2 + $0x94] sm:$0xf]
        %v1095 = vld [vmem:[#allocation2 + $0x9c] sm:$0xf]
        %v1096 = vld [vmem:[#allocation2 + $0xa0] sm:$0xf]
        %v1097 = vld [vmem:[#allocation2 + $0xa8] sm:$0xf]
        %v1098 = vld [vmem:[#allocation2 + $0xac] sm:$0xf]
        %v1099 = vld [vmem:[#allocation2 + $0xb4] sm:$0xf]
        %v1100 = vld [vmem:[#allocation2 + $0xb8] sm:$0xf]
        %v1101 = vld [vmem:[#allocation2 + $0x8] sm:$0x1]
        %v1102 = vld [vmem:[#allocation2 + $0x14] sm:$0x1]
        %v1103 = vld [vmem:[#allocation2 + $0x20] sm:$0x1]
        %v1104 = vld [vmem:[#allocation2 + $0x2c] sm:$0x1]
        %v1105 = vld [vmem:[#allocation2 + $0x38] sm:$0x1]
        %v1106 = vld [vmem:[#allocation2 + $0x44] sm:$0x1]
        %v1107 = vld [vmem:[#allocation2 + $0x50] sm:$0x1]
        %v1108 = vld [vmem:[#allocation2 + $0x5c] sm:$0x1]
        %v1109 = vld [vmem:[#allocation2 + $0x68] sm:$0x1]
        %v1110 = vld [vmem:[#allocation2 + $0x74] sm:$0x1]
        %v1111 = vld [vmem:[#allocation2 + $0x80] sm:$0x1]
        %v1112 = vld [vmem:[#allocation2 + $0x8c] sm:$0x1]
        %v1113 = vld [vmem:[#allocation2 + $0x98] sm:$0x1]
        %v1114 = vld [vmem:[#allocation2 + $0xa4] sm:$0x1]
        %v1115 = vld [vmem:[#allocation2 + $0xb0] sm:$0x1]
        %v1116 = vld [vmem:[#allocation2 + $0xbc] sm:$0x1]
        %v1117 = vld [vmem:[#allocation2] sm:$0xe]
        %v1118 = vld [vmem:[#allocation2 + $0xc] sm:$0xe]
        %v1119 = vld [vmem:[#allocation2 + $0x18] sm:$0xe]
        %v1120 = vld [vmem:[#allocation2 + $0x24] sm:$0xe]
        %v1121 = vld [vmem:[#allocation2 + $0x30] sm:$0xe]
        %v1122 = vld [vmem:[#allocation2 + $0x3c] sm:$0xe]
        %v1123 = vld [vmem:[#allocation2 + $0x48] sm:$0xe]
        %v1124 = vld [vmem:[#allocation2 + $0x54] sm:$0xe]
        %v1125 = vld [vmem:[#allocation2 + $0x60] sm:$0xe]
        %v1126 = vld [vmem:[#allocation2 + $0x6c] sm:$0xe]
        %v1127 = vld [vmem:[#allocation2 + $0x78] sm:$0xe]
        %v1128 = vld [vmem:[#allocation2 + $0x84] sm:$0xe]
        %v1129 = vld [vmem:[#allocation2 + $0x90] sm:$0xe]
        %v1130 = vld [vmem:[#allocation2 + $0x9c] sm:$0xe]
        %v1131 = vld [vmem:[#allocation2 + $0xa8] sm:$0xe]
        %v1132 = vld [vmem:[#allocation2 + $0xb4] sm:$0xe]
        %v1165 = vunpack.c.l.b16 %v1069
        %v1166 = vunpack.c.l.b16 %v1070
        %v1167 = vunpack.c.l.b16 %v1071
        %v1168 = vunpack.c.l.b16 %v1072
        %v1169 = vunpack.c.l.b16 %v1073
        %v1170 = vunpack.c.l.b16 %v1074
        %v1171 = vunpack.c.l.b16 %v1075
        %v1172 = vunpack.c.l.b16 %v1076
        %v1173 = vunpack.c.l.b16 %v1077
        %v1174 = vunpack.c.l.b16 %v1078
        %v1175 = vunpack.c.l.b16 %v1079
        %v1176 = vunpack.c.l.b16 %v1080
        %v1177 = vunpack.c.l.b16 %v1081
        %v1178 = vunpack.c.l.b16 %v1082
        %v1179 = vunpack.c.l.b16 %v1083
        %v1180 = vunpack.c.l.b16 %v1084
        %v1181 = vunpack.c.l.b16 %v1085
        %v1182 = vunpack.c.l.b16 %v1086
        %v1183 = vunpack.c.l.b16 %v1087
        %v1184 = vunpack.c.l.b16 %v1088
        %v1185 = vunpack.c.l.b16 %v1089
        %v1186 = vunpack.c.l.b16 %v1090
        %v1187 = vunpack.c.l.b16 %v1091
        %v1188 = vunpack.c.l.b16 %v1092
        %v1189 = vunpack.c.l.b16 %v1093
        %v1190 = vunpack.c.l.b16 %v1094
        %v1191 = vunpack.c.l.b16 %v1095
        %v1192 = vunpack.c.l.b16 %v1096
        %v1193 = vunpack.c.l.b16 %v1097
        %v1194 = vunpack.c.l.b16 %v1098
        %v1195 = vunpack.c.l.b16 %v1099
        %v1196 = vunpack.c.l.b16 %v1100
        %v1197 = vpack.c.b16 %v1166, %v1165
        %v1198 = vpack.c.b16 %v1168, %v1167
        %v1199 = vpack.c.b16 %v1170, %v1169
        %v1200 = vpack.c.b16 %v1172, %v1171
        %v1201 = vpack.c.b16 %v1174, %v1173
        %v1202 = vpack.c.b16 %v1176, %v1175
        %v1203 = vpack.c.b16 %v1178, %v1177
        %v1204 = vpack.c.b16 %v1180, %v1179
        %v1205 = vpack.c.b16 %v1182, %v1181
        %v1206 = vpack.c.b16 %v1184, %v1183
        %v1207 = vpack.c.b16 %v1186, %v1185
        %v1208 = vpack.c.b16 %v1188, %v1187
        %v1209 = vpack.c.b16 %v1190, %v1189
        %v1210 = vpack.c.b16 %v1192, %v1191
        %v1211 = vpack.c.b16 %v1194, %v1193
        %v1212 = vpack.c.b16 %v1196, %v1195
        %v1245 = vunpack.c.l.b16 %v1101
        %v1246 = vunpack.c.l.b16 %v1102
        %v1247 = vunpack.c.l.b16 %v1103
        %v1248 = vunpack.c.l.b16 %v1104
        %v1249 = vunpack.c.l.b16 %v1105
        %v1250 = vunpack.c.l.b16 %v1106
        %v1251 = vunpack.c.l.b16 %v1107
        %v1252 = vunpack.c.l.b16 %v1108
        %v1253 = vunpack.c.l.b16 %v1109
        %v1254 = vunpack.c.l.b16 %v1110
        %v1255 = vunpack.c.l.b16 %v1111
        %v1256 = vunpack.c.l.b16 %v1112
        %v1257 = vunpack.c.l.b16 %v1113
        %v1258 = vunpack.c.l.b16 %v1114
        %v1259 = vunpack.c.l.b16 %v1115
        %v1260 = vunpack.c.l.b16 %v1116
        %v1261 = vpack.c.b16 %v1245, %v1245
        %v1262 = vpack.c.b16 %v1246, %v1246
        %v1263 = vpack.c.b16 %v1247, %v1247
        %v1264 = vpack.c.b16 %v1248, %v1248
        %v1265 = vpack.c.b16 %v1249, %v1249
        %v1266 = vpack.c.b16 %v1250, %v1250
        %v1267 = vpack.c.b16 %v1251, %v1251
        %v1268 = vpack.c.b16 %v1252, %v1252
        %v1269 = vpack.c.b16 %v1253, %v1253
        %v1270 = vpack.c.b16 %v1254, %v1254
        %v1271 = vpack.c.b16 %v1255, %v1255
        %v1272 = vpack.c.b16 %v1256, %v1256
        %v1273 = vpack.c.b16 %v1257, %v1257
        %v1274 = vpack.c.b16 %v1258, %v1258
        %v1275 = vpack.c.b16 %v1259, %v1259
        %v1276 = vpack.c.b16 %v1260, %v1260
        %vm1277 = vsmask.f32 7424
        %v1279 = vshrl.u32 %v1197, 16
        %v1281 = vshll.u32 %v1197, 16
        %v1283 = vrot.slane %v1281, 1
        %v1284 = vor.u32 %v1279, %v1283
        %v1286 = vshll.u32 %v1261, 16
        %v1288 = vrot.slane %v1286, 1
        %v1289 = vsel %vm1277, %v1284, %v1288
        %v1291 = vshrl.u32 %v1198, 16
        %v1293 = vshll.u32 %v1198, 16
        %v1295 = vrot.slane %v1293, 1
        %v1296 = vor.u32 %v1291, %v1295
        %v1298 = vshll.u32 %v1262, 16
        %v1300 = vrot.slane %v1298, 1
        %v1301 = vsel %vm1277, %v1296, %v1300
        %v1303 = vshrl.u32 %v1199, 16
        %v1305 = vshll.u32 %v1199, 16
        %v1307 = vrot.slane %v1305, 1
        %v1308 = vor.u32 %v1303, %v1307
        %v1310 = vshll.u32 %v1263, 16
        %v1312 = vrot.slane %v1310, 1
        %v1313 = vsel %vm1277, %v1308, %v1312
        %v1315 = vshrl.u32 %v1200, 16
        %v1317 = vshll.u32 %v1200, 16
        %v1319 = vrot.slane %v1317, 1
        %v1320 = vor.u32 %v1315, %v1319
        %v1322 = vshll.u32 %v1264, 16
        %v1324 = vrot.slane %v1322, 1
        %v1325 = vsel %vm1277, %v1320, %v1324
        %v1327 = vshrl.u32 %v1201, 16
        %v1329 = vshll.u32 %v1201, 16
        %v1331 = vrot.slane %v1329, 1
        %v1332 = vor.u32 %v1327, %v1331
        %v1334 = vshll.u32 %v1265, 16
        %v1336 = vrot.slane %v1334, 1
        %v1337 = vsel %vm1277, %v1332, %v1336
        %v1339 = vshrl.u32 %v1202, 16
        %v1341 = vshll.u32 %v1202, 16
        %v1343 = vrot.slane %v1341, 1
        %v1344 = vor.u32 %v1339, %v1343
        %v1346 = vshll.u32 %v1266, 16
        %v1348 = vrot.slane %v1346, 1
        %v1349 = vsel %vm1277, %v1344, %v1348
        %v1351 = vshrl.u32 %v1203, 16
        %v1353 = vshll.u32 %v1203, 16
        %v1355 = vrot.slane %v1353, 1
        %v1356 = vor.u32 %v1351, %v1355
        %v1358 = vshll.u32 %v1267, 16
        %v1360 = vrot.slane %v1358, 1
        %v1361 = vsel %vm1277, %v1356, %v1360
        %v1363 = vshrl.u32 %v1204, 16
        %v1365 = vshll.u32 %v1204, 16
        %v1367 = vrot.slane %v1365, 1
        %v1368 = vor.u32 %v1363, %v1367
        %v1370 = vshll.u32 %v1268, 16
        %v1372 = vrot.slane %v1370, 1
        %v1373 = vsel %vm1277, %v1368, %v1372
        %v1375 = vshrl.u32 %v1205, 16
        %v1377 = vshll.u32 %v1205, 16
        %v1379 = vrot.slane %v1377, 1
        %v1380 = vor.u32 %v1375, %v1379
        %v1382 = vshll.u32 %v1269, 16
        %v1384 = vrot.slane %v1382, 1
        %v1385 = vsel %vm1277, %v1380, %v1384
        %v1387 = vshrl.u32 %v1206, 16
        %v1389 = vshll.u32 %v1206, 16
        %v1391 = vrot.slane %v1389, 1
        %v1392 = vor.u32 %v1387, %v1391
        %v1394 = vshll.u32 %v1270, 16
        %v1396 = vrot.slane %v1394, 1
        %v1397 = vsel %vm1277, %v1392, %v1396
        %v1399 = vshrl.u32 %v1207, 16
        %v1401 = vshll.u32 %v1207, 16
        %v1403 = vrot.slane %v1401, 1
        %v1404 = vor.u32 %v1399, %v1403
        %v1406 = vshll.u32 %v1271, 16
        %v1408 = vrot.slane %v1406, 1
        %v1409 = vsel %vm1277, %v1404, %v1408
        %v1411 = vshrl.u32 %v1208, 16
        %v1413 = vshll.u32 %v1208, 16
        %v1415 = vrot.slane %v1413, 1
        %v1416 = vor.u32 %v1411, %v1415
        %v1418 = vshll.u32 %v1272, 16
        %v1420 = vrot.slane %v1418, 1
        %v1421 = vsel %vm1277, %v1416, %v1420
        %v1423 = vshrl.u32 %v1209, 16
        %v1425 = vshll.u32 %v1209, 16
        %v1427 = vrot.slane %v1425, 1
        %v1428 = vor.u32 %v1423, %v1427
        %v1430 = vshll.u32 %v1273, 16
        %v1432 = vrot.slane %v1430, 1
        %v1433 = vsel %vm1277, %v1428, %v1432
        %v1435 = vshrl.u32 %v1210, 16
        %v1437 = vshll.u32 %v1210, 16
        %v1439 = vrot.slane %v1437, 1
        %v1440 = vor.u32 %v1435, %v1439
        %v1442 = vshll.u32 %v1274, 16
        %v1444 = vrot.slane %v1442, 1
        %v1445 = vsel %vm1277, %v1440, %v1444
        %v1447 = vshrl.u32 %v1211, 16
        %v1449 = vshll.u32 %v1211, 16
        %v1451 = vrot.slane %v1449, 1
        %v1452 = vor.u32 %v1447, %v1451
        %v1454 = vshll.u32 %v1275, 16
        %v1456 = vrot.slane %v1454, 1
        %v1457 = vsel %vm1277, %v1452, %v1456
        %v1459 = vshrl.u32 %v1212, 16
        %v1461 = vshll.u32 %v1212, 16
        %v1463 = vrot.slane %v1461, 1
        %v1464 = vor.u32 %v1459, %v1463
        %v1466 = vshll.u32 %v1276, 16
        %v1468 = vrot.slane %v1466, 1
        %v1469 = vsel %vm1277, %v1464, %v1468
        %v1502 = vunpack.c.l.b16 %v1117
        %v1503 = vunpack.c.l.b16 %v1118
        %v1504 = vunpack.c.l.b16 %v1119
        %v1505 = vunpack.c.l.b16 %v1120
        %v1506 = vunpack.c.l.b16 %v1121
        %v1507 = vunpack.c.l.b16 %v1122
        %v1508 = vunpack.c.l.b16 %v1123
        %v1509 = vunpack.c.l.b16 %v1124
        %v1510 = vunpack.c.l.b16 %v1125
        %v1511 = vunpack.c.l.b16 %v1126
        %v1512 = vunpack.c.l.b16 %v1127
        %v1513 = vunpack.c.l.b16 %v1128
        %v1514 = vunpack.c.l.b16 %v1129
        %v1515 = vunpack.c.l.b16 %v1130
        %v1516 = vunpack.c.l.b16 %v1131
        %v1517 = vunpack.c.l.b16 %v1132
        %v1518 = vpack.c.b16 %v1166, %v1502
        %v1519 = vpack.c.b16 %v1168, %v1503
        %v1520 = vpack.c.b16 %v1170, %v1504
        %v1521 = vpack.c.b16 %v1172, %v1505
        %v1522 = vpack.c.b16 %v1174, %v1506
        %v1523 = vpack.c.b16 %v1176, %v1507
        %v1524 = vpack.c.b16 %v1178, %v1508
        %v1525 = vpack.c.b16 %v1180, %v1509
        %v1526 = vpack.c.b16 %v1182, %v1510
        %v1527 = vpack.c.b16 %v1184, %v1511
        %v1528 = vpack.c.b16 %v1186, %v1512
        %v1529 = vpack.c.b16 %v1188, %v1513
        %v1530 = vpack.c.b16 %v1190, %v1514
        %v1531 = vpack.c.b16 %v1192, %v1515
        %v1532 = vpack.c.b16 %v1194, %v1516
        %v1533 = vpack.c.b16 %v1196, %v1517
        %vm1534 = vcmask 1046528
        %v1535 = vrot.slane %v1518, 1
        %v1536 = vrot.slane %v1261, 1
        %v1537 = vsel %vm1534, %v1535, %v1536
        %v1538 = vrot.slane %v1519, 1
        %v1539 = vrot.slane %v1262, 1
        %v1540 = vsel %vm1534, %v1538, %v1539
        %v1541 = vrot.slane %v1520, 1
        %v1542 = vrot.slane %v1263, 1
        %v1543 = vsel %vm1534, %v1541, %v1542
        %v1544 = vrot.slane %v1521, 1
        %v1545 = vrot.slane %v1264, 1
        %v1546 = vsel %vm1534, %v1544, %v1545
        %v1547 = vrot.slane %v1522, 1
        %v1548 = vrot.slane %v1265, 1
        %v1549 = vsel %vm1534, %v1547, %v1548
        %v1550 = vrot.slane %v1523, 1
        %v1551 = vrot.slane %v1266, 1
        %v1552 = vsel %vm1534, %v1550, %v1551
        %v1553 = vrot.slane %v1524, 1
        %v1554 = vrot.slane %v1267, 1
        %v1555 = vsel %vm1534, %v1553, %v1554
        %v1556 = vrot.slane %v1525, 1
        %v1557 = vrot.slane %v1268, 1
        %v1558 = vsel %vm1534, %v1556, %v1557
        %v1559 = vrot.slane %v1526, 1
        %v1560 = vrot.slane %v1269, 1
        %v1561 = vsel %vm1534, %v1559, %v1560
        %v1562 = vrot.slane %v1527, 1
        %v1563 = vrot.slane %v1270, 1
        %v1564 = vsel %vm1534, %v1562, %v1563
        %v1565 = vrot.slane %v1528, 1
        %v1566 = vrot.slane %v1271, 1
        %v1567 = vsel %vm1534, %v1565, %v1566
        %v1568 = vrot.slane %v1529, 1
        %v1569 = vrot.slane %v1272, 1
        %v1570 = vsel %vm1534, %v1568, %v1569
        %v1571 = vrot.slane %v1530, 1
        %v1572 = vrot.slane %v1273, 1
        %v1573 = vsel %vm1534, %v1571, %v1572
        %v1574 = vrot.slane %v1531, 1
        %v1575 = vrot.slane %v1274, 1
        %v1576 = vsel %vm1534, %v1574, %v1575
        %v1577 = vrot.slane %v1532, 1
        %v1578 = vrot.slane %v1275, 1
        %v1579 = vsel %vm1534, %v1577, %v1578
        %v1580 = vrot.slane %v1533, 1
        %v1581 = vrot.slane %v1276, 1
        %v1582 = vsel %vm1534, %v1580, %v1581
        %v1599 = vld [vmem:[#allocation7] sm:$0xf]
        %v1600 = vld [vmem:[#allocation7 + $0x4] sm:$0xf]
        %v1601 = vld [vmem:[#allocation7 + $0x8] sm:$0xf]
        %v1602 = vld [vmem:[#allocation7 + $0xc] sm:$0xf]
        %v1603 = vld [vmem:[#allocation7 + $0x10] sm:$0xf]
        %v1604 = vld [vmem:[#allocation7 + $0x14] sm:$0xf]
        %v1605 = vld [vmem:[#allocation7 + $0x18] sm:$0xf]
        %v1606 = vld [vmem:[#allocation7 + $0x1c] sm:$0xf]
        %v1607 = vld [vmem:[#allocation7 + $0x20] sm:$0xf]
        %v1608 = vld [vmem:[#allocation7 + $0x24] sm:$0xf]
        %v1609 = vld [vmem:[#allocation7 + $0x28] sm:$0xf]
        %v1610 = vld [vmem:[#allocation7 + $0x2c] sm:$0xf]
        %v1611 = vld [vmem:[#allocation7 + $0x30] sm:$0xf]
        %v1612 = vld [vmem:[#allocation7 + $0x34] sm:$0xf]
        %v1613 = vld [vmem:[#allocation7 + $0x38] sm:$0xf]
        %v1614 = vld [vmem:[#allocation7 + $0x3c] sm:$0xf]
        %v1615 = vld [vmem:[#allocation7 + $0x40] sm:$0xf]
        %v1616 = vld [vmem:[#allocation7 + $0x44] sm:$0xf]
        %v1617 = vld [vmem:[#allocation7 + $0x48] sm:$0xf]
        %v1618 = vld [vmem:[#allocation7 + $0x4c] sm:$0xf]
        %v1619 = vld [vmem:[#allocation7 + $0x50] sm:$0xf]
        %v1620 = vld [vmem:[#allocation7 + $0x54] sm:$0xf]
        %v1621 = vld [vmem:[#allocation7 + $0x58] sm:$0xf]
        %v1622 = vld [vmem:[#allocation7 + $0x5c] sm:$0xf]
        %v1623 = vld [vmem:[#allocation7 + $0x60] sm:$0xf]
        %v1624 = vld [vmem:[#allocation7 + $0x64] sm:$0xf]
        %v1625 = vld [vmem:[#allocation7 + $0x68] sm:$0xf]
        %v1626 = vld [vmem:[#allocation7 + $0x6c] sm:$0xf]
        %v1627 = vld [vmem:[#allocation7 + $0x70] sm:$0xf]
        %v1628 = vld [vmem:[#allocation7 + $0x74] sm:$0xf]
        %v1629 = vld [vmem:[#allocation7 + $0x78] sm:$0xf]
        %v1630 = vld [vmem:[#allocation7 + $0x7c] sm:$0xf]
        %v1631 = vld [vmem:[#allocation7 + $0x80] sm:$0xf]
        %v1632 = vld [vmem:[#allocation7 + $0x84] sm:$0xf]
        %v1633 = vld [vmem:[#allocation7 + $0x88] sm:$0xf]
        %v1634 = vld [vmem:[#allocation7 + $0x8c] sm:$0xf]
        %v1635 = vld [vmem:[#allocation7 + $0x90] sm:$0xf]
        %v1636 = vld [vmem:[#allocation7 + $0x94] sm:$0xf]
        %v1637 = vld [vmem:[#allocation7 + $0x98] sm:$0xf]
        %v1638 = vld [vmem:[#allocation7 + $0x9c] sm:$0xf]
        %v1639 = vld [vmem:[#allocation7 + $0xa0] sm:$0xf]
        %v1640 = vld [vmem:[#allocation7 + $0xa4] sm:$0xf]
        %v1641 = vld [vmem:[#allocation7 + $0xa8] sm:$0xf]
        %v1642 = vld [vmem:[#allocation7 + $0xac] sm:$0xf]
        %v1643 = vld [vmem:[#allocation7 + $0xb0] sm:$0xf]
        %v1644 = vld [vmem:[#allocation7 + $0xb4] sm:$0xf]
        %v1645 = vld [vmem:[#allocation7 + $0xb8] sm:$0xf]
        %v1646 = vld [vmem:[#allocation7 + $0xbc] sm:$0xf]
        %v1647 = vld [vmem:[%s954] sm:$0xf]
        %v1648 = vld [vmem:[%s954 + $0x4] sm:$0xf]
        %v1649 = vld [vmem:[%s954 + $0xc] sm:$0xf]
        %v1650 = vld [vmem:[%s954 + $0x10] sm:$0xf]
        %v1651 = vld [vmem:[%s954 + $0x18] sm:$0xf]
        %v1652 = vld [vmem:[%s954 + $0x1c] sm:$0xf]
        %v1653 = vld [vmem:[%s954 + $0x24] sm:$0xf]
        %v1654 = vld [vmem:[%s954 + $0x28] sm:$0xf]
        %v1655 = vld [vmem:[%s954 + $0x30] sm:$0xf]
        %v1656 = vld [vmem:[%s954 + $0x34] sm:$0xf]
        %v1657 = vld [vmem:[%s954 + $0x3c] sm:$0xf]
        %v1658 = vld [vmem:[%s954 + $0x40] sm:$0xf]
        %v1659 = vld [vmem:[%s954 + $0x48] sm:$0xf]
        %v1660 = vld [vmem:[%s954 + $0x4c] sm:$0xf]
        %v1661 = vld [vmem:[%s954 + $0x54] sm:$0xf]
        %v1662 = vld [vmem:[%s954 + $0x58] sm:$0xf]
        %v1663 = vld [vmem:[%s954 + $0x60] sm:$0xf]
        %v1664 = vld [vmem:[%s954 + $0x64] sm:$0xf]
        %v1665 = vld [vmem:[%s954 + $0x6c] sm:$0xf]
        %v1666 = vld [vmem:[%s954 + $0x70] sm:$0xf]
        %v1667 = vld [vmem:[%s954 + $0x78] sm:$0xf]
        %v1668 = vld [vmem:[%s954 + $0x7c] sm:$0xf]
        %v1669 = vld [vmem:[%s954 + $0x84] sm:$0xf]
        %v1670 = vld [vmem:[%s954 + $0x88] sm:$0xf]
        %v1671 = vld [vmem:[%s954 + $0x90] sm:$0xf]
        %v1672 = vld [vmem:[%s954 + $0x94] sm:$0xf]
        %v1673 = vld [vmem:[%s954 + $0x9c] sm:$0xf]
        %v1674 = vld [vmem:[%s954 + $0xa0] sm:$0xf]
        %v1675 = vld [vmem:[%s954 + $0xa8] sm:$0xf]
        %v1676 = vld [vmem:[%s954 + $0xac] sm:$0xf]
        %v1677 = vld [vmem:[%s954 + $0xb4] sm:$0xf]
        %v1678 = vld [vmem:[%s954 + $0xb8] sm:$0xf]
        %v1679 = vld [vmem:[%s954 + $0x8] sm:$0x1]
        %v1680 = vld [vmem:[%s954 + $0x14] sm:$0x1]
        %v1681 = vld [vmem:[%s954 + $0x20] sm:$0x1]
        %v1682 = vld [vmem:[%s954 + $0x2c] sm:$0x1]
        %v1683 = vld [vmem:[%s954 + $0x38] sm:$0x1]
        %v1684 = vld [vmem:[%s954 + $0x44] sm:$0x1]
        %v1685 = vld [vmem:[%s954 + $0x50] sm:$0x1]
        %v1686 = vld [vmem:[%s954 + $0x5c] sm:$0x1]
        %v1687 = vld [vmem:[%s954 + $0x68] sm:$0x1]
        %v1688 = vld [vmem:[%s954 + $0x74] sm:$0x1]
        %v1689 = vld [vmem:[%s954 + $0x80] sm:$0x1]
        %v1690 = vld [vmem:[%s954 + $0x8c] sm:$0x1]
        %v1691 = vld [vmem:[%s954 + $0x98] sm:$0x1]
        %v1692 = vld [vmem:[%s954 + $0xa4] sm:$0x1]
        %v1693 = vld [vmem:[%s954 + $0xb0] sm:$0x1]
        %v1694 = vld [vmem:[%s954 + $0xbc] sm:$0x1]
        %v1695 = vld [vmem:[%s954] sm:$0xe]
        %v1696 = vld [vmem:[%s954 + $0xc] sm:$0xe]
        %v1697 = vld [vmem:[%s954 + $0x18] sm:$0xe]
        %v1698 = vld [vmem:[%s954 + $0x24] sm:$0xe]
        %v1699 = vld [vmem:[%s954 + $0x30] sm:$0xe]
        %v1700 = vld [vmem:[%s954 + $0x3c] sm:$0xe]
        %v1701 = vld [vmem:[%s954 + $0x48] sm:$0xe]
        %v1702 = vld [vmem:[%s954 + $0x54] sm:$0xe]
        %v1703 = vld [vmem:[%s954 + $0x60] sm:$0xe]
        %v1704 = vld [vmem:[%s954 + $0x6c] sm:$0xe]
        %v1705 = vld [vmem:[%s954 + $0x78] sm:$0xe]
        %v1706 = vld [vmem:[%s954 + $0x84] sm:$0xe]
        %v1707 = vld [vmem:[%s954 + $0x90] sm:$0xe]
        %v1708 = vld [vmem:[%s954 + $0x9c] sm:$0xe]
        %v1709 = vld [vmem:[%s954 + $0xa8] sm:$0xe]
        %v1710 = vld [vmem:[%s954 + $0xb4] sm:$0xe]
        %v1743 = vunpack.c.l.b16 %v1647
        %v1744 = vunpack.c.l.b16 %v1648
        %v1745 = vunpack.c.l.b16 %v1649
        %v1746 = vunpack.c.l.b16 %v1650
        %v1747 = vunpack.c.l.b16 %v1651
        %v1748 = vunpack.c.l.b16 %v1652
        %v1749 = vunpack.c.l.b16 %v1653
        %v1750 = vunpack.c.l.b16 %v1654
        %v1751 = vunpack.c.l.b16 %v1655
        %v1752 = vunpack.c.l.b16 %v1656
        %v1753 = vunpack.c.l.b16 %v1657
        %v1754 = vunpack.c.l.b16 %v1658
        %v1755 = vunpack.c.l.b16 %v1659
        %v1756 = vunpack.c.l.b16 %v1660
        %v1757 = vunpack.c.l.b16 %v1661
        %v1758 = vunpack.c.l.b16 %v1662
        %v1759 = vunpack.c.l.b16 %v1663
        %v1760 = vunpack.c.l.b16 %v1664
        %v1761 = vunpack.c.l.b16 %v1665
        %v1762 = vunpack.c.l.b16 %v1666
        %v1763 = vunpack.c.l.b16 %v1667
        %v1764 = vunpack.c.l.b16 %v1668
        %v1765 = vunpack.c.l.b16 %v1669
        %v1766 = vunpack.c.l.b16 %v1670
        %v1767 = vunpack.c.l.b16 %v1671
        %v1768 = vunpack.c.l.b16 %v1672
        %v1769 = vunpack.c.l.b16 %v1673
        %v1770 = vunpack.c.l.b16 %v1674
        %v1771 = vunpack.c.l.b16 %v1675
        %v1772 = vunpack.c.l.b16 %v1676
        %v1773 = vunpack.c.l.b16 %v1677
        %v1774 = vunpack.c.l.b16 %v1678
        %v1775 = vpack.c.b16 %v1744, %v1743
        %v1776 = vpack.c.b16 %v1746, %v1745
        %v1777 = vpack.c.b16 %v1748, %v1747
        %v1778 = vpack.c.b16 %v1750, %v1749
        %v1779 = vpack.c.b16 %v1752, %v1751
        %v1780 = vpack.c.b16 %v1754, %v1753
        %v1781 = vpack.c.b16 %v1756, %v1755
        %v1782 = vpack.c.b16 %v1758, %v1757
        %v1783 = vpack.c.b16 %v1760, %v1759
        %v1784 = vpack.c.b16 %v1762, %v1761
        %v1785 = vpack.c.b16 %v1764, %v1763
        %v1786 = vpack.c.b16 %v1766, %v1765
        %v1787 = vpack.c.b16 %v1768, %v1767
        %v1788 = vpack.c.b16 %v1770, %v1769
        %v1789 = vpack.c.b16 %v1772, %v1771
        %v1790 = vpack.c.b16 %v1774, %v1773
        %v1823 = vunpack.c.l.b16 %v1679
        %v1824 = vunpack.c.l.b16 %v1680
        %v1825 = vunpack.c.l.b16 %v1681
        %v1826 = vunpack.c.l.b16 %v1682
        %v1827 = vunpack.c.l.b16 %v1683
        %v1828 = vunpack.c.l.b16 %v1684
        %v1829 = vunpack.c.l.b16 %v1685
        %v1830 = vunpack.c.l.b16 %v1686
        %v1831 = vunpack.c.l.b16 %v1687
        %v1832 = vunpack.c.l.b16 %v1688
        %v1833 = vunpack.c.l.b16 %v1689
        %v1834 = vunpack.c.l.b16 %v1690
        %v1835 = vunpack.c.l.b16 %v1691
        %v1836 = vunpack.c.l.b16 %v1692
        %v1837 = vunpack.c.l.b16 %v1693
        %v1838 = vunpack.c.l.b16 %v1694
        %v1839 = vpack.c.b16 %v1823, %v1823
        %v1840 = vpack.c.b16 %v1824, %v1824
        %v1841 = vpack.c.b16 %v1825, %v1825
        %v1842 = vpack.c.b16 %v1826, %v1826
        %v1843 = vpack.c.b16 %v1827, %v1827
        %v1844 = vpack.c.b16 %v1828, %v1828
        %v1845 = vpack.c.b16 %v1829, %v1829
        %v1846 = vpack.c.b16 %v1830, %v1830
        %v1847 = vpack.c.b16 %v1831, %v1831
        %v1848 = vpack.c.b16 %v1832, %v1832
        %v1849 = vpack.c.b16 %v1833, %v1833
        %v1850 = vpack.c.b16 %v1834, %v1834
        %v1851 = vpack.c.b16 %v1835, %v1835
        %v1852 = vpack.c.b16 %v1836, %v1836
        %v1853 = vpack.c.b16 %v1837, %v1837
        %v1854 = vpack.c.b16 %v1838, %v1838
        %v1856 = vshrl.u32 %v1775, 16
        %v1858 = vshll.u32 %v1775, 16
        %v1860 = vrot.slane %v1858, 1
        %v1861 = vor.u32 %v1856, %v1860
        %v1863 = vshll.u32 %v1839, 16
        %v1865 = vrot.slane %v1863, 1
        %v1866 = vsel %vm1277, %v1861, %v1865
        %v1868 = vshrl.u32 %v1776, 16
        %v1870 = vshll.u32 %v1776, 16
        %v1872 = vrot.slane %v1870, 1
        %v1873 = vor.u32 %v1868, %v1872
        %v1875 = vshll.u32 %v1840, 16
        %v1877 = vrot.slane %v1875, 1
        %v1878 = vsel %vm1277, %v1873, %v1877
        %v1880 = vshrl.u32 %v1777, 16
        %v1882 = vshll.u32 %v1777, 16
        %v1884 = vrot.slane %v1882, 1
        %v1885 = vor.u32 %v1880, %v1884
        %v1887 = vshll.u32 %v1841, 16
        %v1889 = vrot.slane %v1887, 1
        %v1890 = vsel %vm1277, %v1885, %v1889
        %v1892 = vshrl.u32 %v1778, 16
        %v1894 = vshll.u32 %v1778, 16
        %v1896 = vrot.slane %v1894, 1
        %v1897 = vor.u32 %v1892, %v1896
        %v1899 = vshll.u32 %v1842, 16
        %v1901 = vrot.slane %v1899, 1
        %v1902 = vsel %vm1277, %v1897, %v1901
        %v1904 = vshrl.u32 %v1779, 16
        %v1906 = vshll.u32 %v1779, 16
        %v1908 = vrot.slane %v1906, 1
        %v1909 = vor.u32 %v1904, %v1908
        %v1911 = vshll.u32 %v1843, 16
        %v1913 = vrot.slane %v1911, 1
        %v1914 = vsel %vm1277, %v1909, %v1913
        %v1916 = vshrl.u32 %v1780, 16
        %v1918 = vshll.u32 %v1780, 16
        %v1920 = vrot.slane %v1918, 1
        %v1921 = vor.u32 %v1916, %v1920
        %v1923 = vshll.u32 %v1844, 16
        %v1925 = vrot.slane %v1923, 1
        %v1926 = vsel %vm1277, %v1921, %v1925
        %v1928 = vshrl.u32 %v1781, 16
        %v1930 = vshll.u32 %v1781, 16
        %v1932 = vrot.slane %v1930, 1
        %v1933 = vor.u32 %v1928, %v1932
        %v1935 = vshll.u32 %v1845, 16
        %v1937 = vrot.slane %v1935, 1
        %v1938 = vsel %vm1277, %v1933, %v1937
        %v1940 = vshrl.u32 %v1782, 16
        %v1942 = vshll.u32 %v1782, 16
        %v1944 = vrot.slane %v1942, 1
        %v1945 = vor.u32 %v1940, %v1944
        %v1947 = vshll.u32 %v1846, 16
        %v1949 = vrot.slane %v1947, 1
        %v1950 = vsel %vm1277, %v1945, %v1949
        %v1952 = vshrl.u32 %v1783, 16
        %v1954 = vshll.u32 %v1783, 16
        %v1956 = vrot.slane %v1954, 1
        %v1957 = vor.u32 %v1952, %v1956
        %v1959 = vshll.u32 %v1847, 16
        %v1961 = vrot.slane %v1959, 1
        %v1962 = vsel %vm1277, %v1957, %v1961
        %v1964 = vshrl.u32 %v1784, 16
        %v1966 = vshll.u32 %v1784, 16
        %v1968 = vrot.slane %v1966, 1
        %v1969 = vor.u32 %v1964, %v1968
        %v1971 = vshll.u32 %v1848, 16
        %v1973 = vrot.slane %v1971, 1
        %v1974 = vsel %vm1277, %v1969, %v1973
        %v1976 = vshrl.u32 %v1785, 16
        %v1978 = vshll.u32 %v1785, 16
        %v1980 = vrot.slane %v1978, 1
        %v1981 = vor.u32 %v1976, %v1980
        %v1983 = vshll.u32 %v1849, 16
        %v1985 = vrot.slane %v1983, 1
        %v1986 = vsel %vm1277, %v1981, %v1985
        %v1988 = vshrl.u32 %v1786, 16
        %v1990 = vshll.u32 %v1786, 16
        %v1992 = vrot.slane %v1990, 1
        %v1993 = vor.u32 %v1988, %v1992
        %v1995 = vshll.u32 %v1850, 16
        %v1997 = vrot.slane %v1995, 1
        %v1998 = vsel %vm1277, %v1993, %v1997
        %v2000 = vshrl.u32 %v1787, 16
        %v2002 = vshll.u32 %v1787, 16
        %v2004 = vrot.slane %v2002, 1
        %v2005 = vor.u32 %v2000, %v2004
        %v2007 = vshll.u32 %v1851, 16
        %v2009 = vrot.slane %v2007, 1
        %v2010 = vsel %vm1277, %v2005, %v2009
        %v2012 = vshrl.u32 %v1788, 16
        %v2014 = vshll.u32 %v1788, 16
        %v2016 = vrot.slane %v2014, 1
        %v2017 = vor.u32 %v2012, %v2016
        %v2019 = vshll.u32 %v1852, 16
        %v2021 = vrot.slane %v2019, 1
        %v2022 = vsel %vm1277, %v2017, %v2021
        %v2024 = vshrl.u32 %v1789, 16
        %v2026 = vshll.u32 %v1789, 16
        %v2028 = vrot.slane %v2026, 1
        %v2029 = vor.u32 %v2024, %v2028
        %v2031 = vshll.u32 %v1853, 16
        %v2033 = vrot.slane %v2031, 1
        %v2034 = vsel %vm1277, %v2029, %v2033
        %v2036 = vshrl.u32 %v1790, 16
        %v2038 = vshll.u32 %v1790, 16
        %v2040 = vrot.slane %v2038, 1
        %v2041 = vor.u32 %v2036, %v2040
        %v2043 = vshll.u32 %v1854, 16
        %v2045 = vrot.slane %v2043, 1
        %v2046 = vsel %vm1277, %v2041, %v2045
        %v2079 = vunpack.c.l.b16 %v1695
        %v2080 = vunpack.c.l.b16 %v1696
        %v2081 = vunpack.c.l.b16 %v1697
        %v2082 = vunpack.c.l.b16 %v1698
        %v2083 = vunpack.c.l.b16 %v1699
        %v2084 = vunpack.c.l.b16 %v1700
        %v2085 = vunpack.c.l.b16 %v1701
        %v2086 = vunpack.c.l.b16 %v1702
        %v2087 = vunpack.c.l.b16 %v1703
        %v2088 = vunpack.c.l.b16 %v1704
        %v2089 = vunpack.c.l.b16 %v1705
        %v2090 = vunpack.c.l.b16 %v1706
        %v2091 = vunpack.c.l.b16 %v1707
        %v2092 = vunpack.c.l.b16 %v1708
        %v2093 = vunpack.c.l.b16 %v1709
        %v2094 = vunpack.c.l.b16 %v1710
        %v2095 = vpack.c.b16 %v1744, %v2079
        %v2096 = vpack.c.b16 %v1746, %v2080
        %v2097 = vpack.c.b16 %v1748, %v2081
        %v2098 = vpack.c.b16 %v1750, %v2082
        %v2099 = vpack.c.b16 %v1752, %v2083
        %v2100 = vpack.c.b16 %v1754, %v2084
        %v2101 = vpack.c.b16 %v1756, %v2085
        %v2102 = vpack.c.b16 %v1758, %v2086
        %v2103 = vpack.c.b16 %v1760, %v2087
        %v2104 = vpack.c.b16 %v1762, %v2088
        %v2105 = vpack.c.b16 %v1764, %v2089
        %v2106 = vpack.c.b16 %v1766, %v2090
        %v2107 = vpack.c.b16 %v1768, %v2091
        %v2108 = vpack.c.b16 %v1770, %v2092
        %v2109 = vpack.c.b16 %v1772, %v2093
        %v2110 = vpack.c.b16 %v1774, %v2094
        %v2111 = vrot.slane %v2095, 1
        %v2112 = vrot.slane %v1839, 1
        %v2113 = vsel %vm1534, %v2111, %v2112
        %v2114 = vrot.slane %v2096, 1
        %v2115 = vrot.slane %v1840, 1
        %v2116 = vsel %vm1534, %v2114, %v2115
        %v2117 = vrot.slane %v2097, 1
        %v2118 = vrot.slane %v1841, 1
        %v2119 = vsel %vm1534, %v2117, %v2118
        %v2120 = vrot.slane %v2098, 1
        %v2121 = vrot.slane %v1842, 1
        %v2122 = vsel %vm1534, %v2120, %v2121
        %v2123 = vrot.slane %v2099, 1
        %v2124 = vrot.slane %v1843, 1
        %v2125 = vsel %vm1534, %v2123, %v2124
        %v2126 = vrot.slane %v2100, 1
        %v2127 = vrot.slane %v1844, 1
        %v2128 = vsel %vm1534, %v2126, %v2127
        %v2129 = vrot.slane %v2101, 1
        %v2130 = vrot.slane %v1845, 1
        %v2131 = vsel %vm1534, %v2129, %v2130
        %v2132 = vrot.slane %v2102, 1
        %v2133 = vrot.slane %v1846, 1
        %v2134 = vsel %vm1534, %v2132, %v2133
        %v2135 = vrot.slane %v2103, 1
        %v2136 = vrot.slane %v1847, 1
        %v2137 = vsel %vm1534, %v2135, %v2136
        %v2138 = vrot.slane %v2104, 1
        %v2139 = vrot.slane %v1848, 1
        %v2140 = vsel %vm1534, %v2138, %v2139
        %v2141 = vrot.slane %v2105, 1
        %v2142 = vrot.slane %v1849, 1
        %v2143 = vsel %vm1534, %v2141, %v2142
        %v2144 = vrot.slane %v2106, 1
        %v2145 = vrot.slane %v1850, 1
        %v2146 = vsel %vm1534, %v2144, %v2145
        %v2147 = vrot.slane %v2107, 1
        %v2148 = vrot.slane %v1851, 1
        %v2149 = vsel %vm1534, %v2147, %v2148
        %v2150 = vrot.slane %v2108, 1
        %v2151 = vrot.slane %v1852, 1
        %v2152 = vsel %vm1534, %v2150, %v2151
        %v2153 = vrot.slane %v2109, 1
        %v2154 = vrot.slane %v1853, 1
        %v2155 = vsel %vm1534, %v2153, %v2154
        %v2156 = vrot.slane %v2110, 1
        %v2157 = vrot.slane %v1854, 1
        %v2158 = vsel %vm1534, %v2156, %v2157
        %s2175 = scalar_lea.vmem [#allocation7], 192
        %v2176 = vld [vmem:[%s2175] sm:$0xf]
        %v2177 = vld [vmem:[%s2175 + $0x4] sm:$0xf]
        %v2178 = vld [vmem:[%s2175 + $0x8] sm:$0xf]
        %v2179 = vld [vmem:[%s2175 + $0xc] sm:$0xf]
        %v2180 = vld [vmem:[%s2175 + $0x10] sm:$0xf]
        %v2181 = vld [vmem:[%s2175 + $0x14] sm:$0xf]
        %v2182 = vld [vmem:[%s2175 + $0x18] sm:$0xf]
        %v2183 = vld [vmem:[%s2175 + $0x1c] sm:$0xf]
        %v2184 = vld [vmem:[%s2175 + $0x20] sm:$0xf]
        %v2185 = vld [vmem:[%s2175 + $0x24] sm:$0xf]
        %v2186 = vld [vmem:[%s2175 + $0x28] sm:$0xf]
        %v2187 = vld [vmem:[%s2175 + $0x2c] sm:$0xf]
        %v2188 = vld [vmem:[%s2175 + $0x30] sm:$0xf]
        %v2189 = vld [vmem:[%s2175 + $0x34] sm:$0xf]
        %v2190 = vld [vmem:[%s2175 + $0x38] sm:$0xf]
        %v2191 = vld [vmem:[%s2175 + $0x3c] sm:$0xf]
        %v2192 = vld [vmem:[%s2175 + $0x40] sm:$0xf]
        %v2193 = vld [vmem:[%s2175 + $0x44] sm:$0xf]
        %v2194 = vld [vmem:[%s2175 + $0x48] sm:$0xf]
        %v2195 = vld [vmem:[%s2175 + $0x4c] sm:$0xf]
        %v2196 = vld [vmem:[%s2175 + $0x50] sm:$0xf]
        %v2197 = vld [vmem:[%s2175 + $0x54] sm:$0xf]
        %v2198 = vld [vmem:[%s2175 + $0x58] sm:$0xf]
        %v2199 = vld [vmem:[%s2175 + $0x5c] sm:$0xf]
        %v2200 = vld [vmem:[%s2175 + $0x60] sm:$0xf]
        %v2201 = vld [vmem:[%s2175 + $0x64] sm:$0xf]
        %v2202 = vld [vmem:[%s2175 + $0x68] sm:$0xf]
        %v2203 = vld [vmem:[%s2175 + $0x6c] sm:$0xf]
        %v2204 = vld [vmem:[%s2175 + $0x70] sm:$0xf]
        %v2205 = vld [vmem:[%s2175 + $0x74] sm:$0xf]
        %v2206 = vld [vmem:[%s2175 + $0x78] sm:$0xf]
        %v2207 = vld [vmem:[%s2175 + $0x7c] sm:$0xf]
        %v2208 = vld [vmem:[%s2175 + $0x80] sm:$0xf]
        %v2209 = vld [vmem:[%s2175 + $0x84] sm:$0xf]
        %v2210 = vld [vmem:[%s2175 + $0x88] sm:$0xf]
        %v2211 = vld [vmem:[%s2175 + $0x8c] sm:$0xf]
        %v2212 = vld [vmem:[%s2175 + $0x90] sm:$0xf]
        %v2213 = vld [vmem:[%s2175 + $0x94] sm:$0xf]
        %v2214 = vld [vmem:[%s2175 + $0x98] sm:$0xf]
        %v2215 = vld [vmem:[%s2175 + $0x9c] sm:$0xf]
        %v2216 = vld [vmem:[%s2175 + $0xa0] sm:$0xf]
        %v2217 = vld [vmem:[%s2175 + $0xa4] sm:$0xf]
        %v2218 = vld [vmem:[%s2175 + $0xa8] sm:$0xf]
        %v2219 = vld [vmem:[%s2175 + $0xac] sm:$0xf]
        %v2220 = vld [vmem:[%s2175 + $0xb0] sm:$0xf]
        %v2221 = vld [vmem:[%s2175 + $0xb4] sm:$0xf]
        %v2222 = vld [vmem:[%s2175 + $0xb8] sm:$0xf]
        %v2223 = vld [vmem:[%s2175 + $0xbc] sm:$0xf]
        %v2272 = vunpack.c.l.b16 %v2176
        %v2273 = vunpack.c.l.b16 %v2177
        %v2274 = vunpack.c.l.b16 %v2178
        %v2275 = vunpack.c.l.b16 %v2179
        %v2276 = vunpack.c.l.b16 %v2180
        %v2277 = vunpack.c.l.b16 %v2181
        %v2278 = vunpack.c.l.b16 %v2182
        %v2279 = vunpack.c.l.b16 %v2183
        %v2280 = vunpack.c.l.b16 %v2184
        %v2281 = vunpack.c.l.b16 %v2185
        %v2282 = vunpack.c.l.b16 %v2186
        %v2283 = vunpack.c.l.b16 %v2187
        %v2284 = vunpack.c.l.b16 %v2188
        %v2285 = vunpack.c.l.b16 %v2189
        %v2286 = vunpack.c.l.b16 %v2190
        %v2287 = vunpack.c.l.b16 %v2191
        %v2288 = vunpack.c.l.b16 %v2192
        %v2289 = vunpack.c.l.b16 %v2193
        %v2290 = vunpack.c.l.b16 %v2194
        %v2291 = vunpack.c.l.b16 %v2195
        %v2292 = vunpack.c.l.b16 %v2196
        %v2293 = vunpack.c.l.b16 %v2197
        %v2294 = vunpack.c.l.b16 %v2198
        %v2295 = vunpack.c.l.b16 %v2199
        %v2296 = vunpack.c.l.b16 %v2200
        %v2297 = vunpack.c.l.b16 %v2201
        %v2298 = vunpack.c.l.b16 %v2202
        %v2299 = vunpack.c.l.b16 %v2203
        %v2300 = vunpack.c.l.b16 %v2204
        %v2301 = vunpack.c.l.b16 %v2205
        %v2302 = vunpack.c.l.b16 %v2206
        %v2303 = vunpack.c.l.b16 %v2207
        %v2304 = vunpack.c.l.b16 %v2208
        %v2305 = vunpack.c.l.b16 %v2209
        %v2306 = vunpack.c.l.b16 %v2210
        %v2307 = vunpack.c.l.b16 %v2211
        %v2308 = vunpack.c.l.b16 %v2212
        %v2309 = vunpack.c.l.b16 %v2213
        %v2310 = vunpack.c.l.b16 %v2214
        %v2311 = vunpack.c.l.b16 %v2215
        %v2312 = vunpack.c.l.b16 %v2216
        %v2313 = vunpack.c.l.b16 %v2217
        %v2314 = vunpack.c.l.b16 %v2218
        %v2315 = vunpack.c.l.b16 %v2219
        %v2316 = vunpack.c.l.b16 %v2220
        %v2317 = vunpack.c.l.b16 %v2221
        %v2318 = vunpack.c.l.b16 %v2222
        %v2319 = vunpack.c.l.b16 %v2223
        %v2320 = vpack.c.b16 %v2273, %v2272
        %v2321 = vpack.c.b16 %v2275, %v2274
        %v2322 = vpack.c.b16 %v2277, %v2276
        %v2323 = vpack.c.b16 %v2279, %v2278
        %v2324 = vpack.c.b16 %v2281, %v2280
        %v2325 = vpack.c.b16 %v2283, %v2282
        %v2326 = vpack.c.b16 %v2285, %v2284
        %v2327 = vpack.c.b16 %v2287, %v2286
        %v2328 = vpack.c.b16 %v2289, %v2288
        %v2329 = vpack.c.b16 %v2291, %v2290
        %v2330 = vpack.c.b16 %v2293, %v2292
        %v2331 = vpack.c.b16 %v2295, %v2294
        %v2332 = vpack.c.b16 %v2297, %v2296
        %v2333 = vpack.c.b16 %v2299, %v2298
        %v2334 = vpack.c.b16 %v2301, %v2300
        %v2335 = vpack.c.b16 %v2303, %v2302
        %v2336 = vpack.c.b16 %v2305, %v2304
        %v2337 = vpack.c.b16 %v2307, %v2306
        %v2338 = vpack.c.b16 %v2309, %v2308
        %v2339 = vpack.c.b16 %v2311, %v2310
        %v2340 = vpack.c.b16 %v2313, %v2312
        %v2341 = vpack.c.b16 %v2315, %v2314
        %v2342 = vpack.c.b16 %v2317, %v2316
        %v2343 = vpack.c.b16 %v2319, %v2318
        %2368 = vmatpush.bf16.msra.mxu0 %v2327
        %2369 = vmatpush.bf16.msra.mxu0 %v2326
        %2370 = vmatpush.bf16.msra.mxu0 %v2325
        %2371 = vmatpush.bf16.msra.mxu0 %v2324
        %2372 = vmatpush.bf16.msra.mxu0 %v2323
        %2373 = vmatpush.bf16.msra.mxu0 %v2322
        %2374 = vmatpush.bf16.msra.mxu0 %v2321
        %2375 = vmatpush.bf16.msra.mxu0 %v2320
        %2376 = vmatmul.bf16.gmra.mxu0 %v1775
        %v2377 = vpop.f32.mrf.mxu0
        %v2378 = vadd.f32 0.0, %v2377
        %v2379 = vpop.f32.mrf.mxu0
        %v2380 = vadd.f32 0.0, %v2379
        %2381 = vmatmul.bf16.gmra.mxu0 %v1776
        %v2382 = vpop.f32.mrf.mxu0
        %v2383 = vadd.f32 0.0, %v2382
        %v2384 = vpop.f32.mrf.mxu0
        %v2385 = vadd.f32 0.0, %v2384
        %2386 = vmatmul.bf16.gmra.mxu0 %v1777
        %v2387 = vpop.f32.mrf.mxu0
        %v2388 = vadd.f32 0.0, %v2387
        %v2389 = vpop.f32.mrf.mxu0
        %v2390 = vadd.f32 0.0, %v2389
        %2391 = vmatmul.bf16.gmra.mxu0 %v1778
        %v2392 = vpop.f32.mrf.mxu0
        %v2393 = vadd.f32 0.0, %v2392
        %v2394 = vpop.f32.mrf.mxu0
        %v2395 = vadd.f32 0.0, %v2394
        %2396 = vmatmul.bf16.gmra.mxu0 %v1779
        %v2397 = vpop.f32.mrf.mxu0
        %v2398 = vadd.f32 0.0, %v2397
        %v2399 = vpop.f32.mrf.mxu0
        %v2400 = vadd.f32 0.0, %v2399
        %2401 = vmatmul.bf16.gmra.mxu0 %v1780
        %v2402 = vpop.f32.mrf.mxu0
        %v2403 = vadd.f32 0.0, %v2402
        %v2404 = vpop.f32.mrf.mxu0
        %v2405 = vadd.f32 0.0, %v2404
        %2406 = vmatmul.bf16.gmra.mxu0 %v1781
        %v2407 = vpop.f32.mrf.mxu0
        %v2408 = vadd.f32 0.0, %v2407
        %v2409 = vpop.f32.mrf.mxu0
        %v2410 = vadd.f32 0.0, %v2409
        %2411 = vmatmul.bf16.gmra.mxu0 %v1782
        %v2412 = vpop.f32.mrf.mxu0
        %v2413 = vadd.f32 0.0, %v2412
        %v2414 = vpop.f32.mrf.mxu0
        %v2415 = vadd.f32 0.0, %v2414
        %2416 = vmatmul.bf16.gmra.mxu0 %v1783
        %v2417 = vpop.f32.mrf.mxu0
        %v2418 = vadd.f32 0.0, %v2417
        %v2419 = vpop.f32.mrf.mxu0
        %v2420 = vadd.f32 0.0, %v2419
        %2421 = vmatmul.bf16.gmra.mxu0 %v1784
        %v2422 = vpop.f32.mrf.mxu0
        %v2423 = vadd.f32 0.0, %v2422
        %v2424 = vpop.f32.mrf.mxu0
        %v2425 = vadd.f32 0.0, %v2424
        %2426 = vmatmul.bf16.gmra.mxu0 %v1785
        %v2427 = vpop.f32.mrf.mxu0
        %v2428 = vadd.f32 0.0, %v2427
        %v2429 = vpop.f32.mrf.mxu0
        %v2430 = vadd.f32 0.0, %v2429
        %2431 = vmatmul.bf16.gmra.mxu0 %v1786
        %v2432 = vpop.f32.mrf.mxu0
        %v2433 = vadd.f32 0.0, %v2432
        %v2434 = vpop.f32.mrf.mxu0
        %v2435 = vadd.f32 0.0, %v2434
        %2436 = vmatmul.bf16.gmra.mxu0 %v1787
        %v2437 = vpop.f32.mrf.mxu0
        %v2438 = vadd.f32 0.0, %v2437
        %v2439 = vpop.f32.mrf.mxu0
        %v2440 = vadd.f32 0.0, %v2439
        %2441 = vmatmul.bf16.gmra.mxu0 %v1788
        %v2442 = vpop.f32.mrf.mxu0
        %v2443 = vadd.f32 0.0, %v2442
        %v2444 = vpop.f32.mrf.mxu0
        %v2445 = vadd.f32 0.0, %v2444
        %2446 = vmatmul.bf16.gmra.mxu0 %v1789
        %v2447 = vpop.f32.mrf.mxu0
        %v2448 = vadd.f32 0.0, %v2447
        %v2449 = vpop.f32.mrf.mxu0
        %v2450 = vadd.f32 0.0, %v2449
        %2451 = vmatmul.bf16.gmra.mxu0 %v1790
        %v2452 = vpop.f32.mrf.mxu0
        %v2453 = vadd.f32 0.0, %v2452
        %v2454 = vpop.f32.mrf.mxu0
        %v2455 = vadd.f32 0.0, %v2454
        %2456 = vdwg.mxu0
        %2457 = vmatpush.bf16.msra.mxu0 %v2335
        %2458 = vmatpush.bf16.msra.mxu0 %v2334
        %2459 = vmatpush.bf16.msra.mxu0 %v2333
        %2460 = vmatpush.bf16.msra.mxu0 %v2332
        %2461 = vmatpush.bf16.msra.mxu0 %v2331
        %2462 = vmatpush.bf16.msra.mxu0 %v2330
        %2463 = vmatpush.bf16.msra.mxu0 %v2329
        %2464 = vmatpush.bf16.msra.mxu0 %v2328
        %2465 = vmatmul.bf16.gmra.mxu0 %v1866
        %v2466 = vpop.f32.mrf.mxu0
        %v2467 = vadd.f32 %v2378, %v2466
        %v2468 = vpop.f32.mrf.mxu0
        %v2469 = vadd.f32 %v2380, %v2468
        %2470 = vmatmul.bf16.gmra.mxu0 %v1878
        %v2471 = vpop.f32.mrf.mxu0
        %v2472 = vadd.f32 %v2383, %v2471
        %v2473 = vpop.f32.mrf.mxu0
        %v2474 = vadd.f32 %v2385, %v2473
        %2475 = vmatmul.bf16.gmra.mxu0 %v1890
        %v2476 = vpop.f32.mrf.mxu0
        %v2477 = vadd.f32 %v2388, %v2476
        %v2478 = vpop.f32.mrf.mxu0
        %v2479 = vadd.f32 %v2390, %v2478
        %2480 = vmatmul.bf16.gmra.mxu0 %v1902
        %v2481 = vpop.f32.mrf.mxu0
        %v2482 = vadd.f32 %v2393, %v2481
        %v2483 = vpop.f32.mrf.mxu0
        %v2484 = vadd.f32 %v2395, %v2483
        %2485 = vmatmul.bf16.gmra.mxu0 %v1914
        %v2486 = vpop.f32.mrf.mxu0
        %v2487 = vadd.f32 %v2398, %v2486
        %v2488 = vpop.f32.mrf.mxu0
        %v2489 = vadd.f32 %v2400, %v2488
        %2490 = vmatmul.bf16.gmra.mxu0 %v1926
        %v2491 = vpop.f32.mrf.mxu0
        %v2492 = vadd.f32 %v2403, %v2491
        %v2493 = vpop.f32.mrf.mxu0
        %v2494 = vadd.f32 %v2405, %v2493
        %2495 = vmatmul.bf16.gmra.mxu0 %v1938
        %v2496 = vpop.f32.mrf.mxu0
        %v2497 = vadd.f32 %v2408, %v2496
        %v2498 = vpop.f32.mrf.mxu0
        %v2499 = vadd.f32 %v2410, %v2498
        %2500 = vmatmul.bf16.gmra.mxu0 %v1950
        %v2501 = vpop.f32.mrf.mxu0
        %v2502 = vadd.f32 %v2413, %v2501
        %v2503 = vpop.f32.mrf.mxu0
        %v2504 = vadd.f32 %v2415, %v2503
        %2505 = vmatmul.bf16.gmra.mxu0 %v1962
        %v2506 = vpop.f32.mrf.mxu0
        %v2507 = vadd.f32 %v2418, %v2506
        %v2508 = vpop.f32.mrf.mxu0
        %v2509 = vadd.f32 %v2420, %v2508
        %2510 = vmatmul.bf16.gmra.mxu0 %v1974
        %v2511 = vpop.f32.mrf.mxu0
        %v2512 = vadd.f32 %v2423, %v2511
        %v2513 = vpop.f32.mrf.mxu0
        %v2514 = vadd.f32 %v2425, %v2513
        %2515 = vmatmul.bf16.gmra.mxu0 %v1986
        %v2516 = vpop.f32.mrf.mxu0
        %v2517 = vadd.f32 %v2428, %v2516
        %v2518 = vpop.f32.mrf.mxu0
        %v2519 = vadd.f32 %v2430, %v2518
        %2520 = vmatmul.bf16.gmra.mxu0 %v1998
        %v2521 = vpop.f32.mrf.mxu0
        %v2522 = vadd.f32 %v2433, %v2521
        %v2523 = vpop.f32.mrf.mxu0
        %v2524 = vadd.f32 %v2435, %v2523
        %2525 = vmatmul.bf16.gmra.mxu0 %v2010
        %v2526 = vpop.f32.mrf.mxu0
        %v2527 = vadd.f32 %v2438, %v2526
        %v2528 = vpop.f32.mrf.mxu0
        %v2529 = vadd.f32 %v2440, %v2528
        %2530 = vmatmul.bf16.gmra.mxu0 %v2022
        %v2531 = vpop.f32.mrf.mxu0
        %v2532 = vadd.f32 %v2443, %v2531
        %v2533 = vpop.f32.mrf.mxu0
        %v2534 = vadd.f32 %v2445, %v2533
        %2535 = vmatmul.bf16.gmra.mxu0 %v2034
        %v2536 = vpop.f32.mrf.mxu0
        %v2537 = vadd.f32 %v2448, %v2536
        %v2538 = vpop.f32.mrf.mxu0
        %v2539 = vadd.f32 %v2450, %v2538
        %2540 = vmatmul.bf16.gmra.mxu0 %v2046
        %v2541 = vpop.f32.mrf.mxu0
        %v2542 = vadd.f32 %v2453, %v2541
        %v2543 = vpop.f32.mrf.mxu0
        %v2544 = vadd.f32 %v2455, %v2543
        %2545 = vdwg.mxu0
        %2546 = vmatpush.bf16.msra.mxu0 %v2343
        %2547 = vmatpush.bf16.msra.mxu0 %v2342
        %2548 = vmatpush.bf16.msra.mxu0 %v2341
        %2549 = vmatpush.bf16.msra.mxu0 %v2340
        %2550 = vmatpush.bf16.msra.mxu0 %v2339
        %2551 = vmatpush.bf16.msra.mxu0 %v2338
        %2552 = vmatpush.bf16.msra.mxu0 %v2337
        %2553 = vmatpush.bf16.msra.mxu0 %v2336
        %2554 = vmatmul.bf16.gmra.mxu0 %v2113
        %v2555 = vpop.f32.mrf.mxu0
        %v2556 = vadd.f32 %v2467, %v2555
        %v2557 = vpop.f32.mrf.mxu0
        %v2558 = vadd.f32 %v2469, %v2557
        %2559 = vmatmul.bf16.gmra.mxu0 %v2116
        %v2560 = vpop.f32.mrf.mxu0
        %v2561 = vadd.f32 %v2472, %v2560
        %v2562 = vpop.f32.mrf.mxu0
        %v2563 = vadd.f32 %v2474, %v2562
        %2564 = vmatmul.bf16.gmra.mxu0 %v2119
        %v2565 = vpop.f32.mrf.mxu0
        %v2566 = vadd.f32 %v2477, %v2565
        %v2567 = vpop.f32.mrf.mxu0
        %v2568 = vadd.f32 %v2479, %v2567
        %2569 = vmatmul.bf16.gmra.mxu0 %v2122
        %v2570 = vpop.f32.mrf.mxu0
        %v2571 = vadd.f32 %v2482, %v2570
        %v2572 = vpop.f32.mrf.mxu0
        %v2573 = vadd.f32 %v2484, %v2572
        %2574 = vmatmul.bf16.gmra.mxu0 %v2125
        %v2575 = vpop.f32.mrf.mxu0
        %v2576 = vadd.f32 %v2487, %v2575
        %v2577 = vpop.f32.mrf.mxu0
        %v2578 = vadd.f32 %v2489, %v2577
        %2579 = vmatmul.bf16.gmra.mxu0 %v2128
        %v2580 = vpop.f32.mrf.mxu0
        %v2581 = vadd.f32 %v2492, %v2580
        %v2582 = vpop.f32.mrf.mxu0
        %v2583 = vadd.f32 %v2494, %v2582
        %2584 = vmatmul.bf16.gmra.mxu0 %v2131
        %v2585 = vpop.f32.mrf.mxu0
        %v2586 = vadd.f32 %v2497, %v2585
        %v2587 = vpop.f32.mrf.mxu0
        %v2588 = vadd.f32 %v2499, %v2587
        %2589 = vmatmul.bf16.gmra.mxu0 %v2134
        %v2590 = vpop.f32.mrf.mxu0
        %v2591 = vadd.f32 %v2502, %v2590
        %v2592 = vpop.f32.mrf.mxu0
        %v2593 = vadd.f32 %v2504, %v2592
        %2594 = vmatmul.bf16.gmra.mxu0 %v2137
        %v2595 = vpop.f32.mrf.mxu0
        %v2596 = vadd.f32 %v2507, %v2595
        %v2597 = vpop.f32.mrf.mxu0
        %v2598 = vadd.f32 %v2509, %v2597
        %2599 = vmatmul.bf16.gmra.mxu0 %v2140
        %v2600 = vpop.f32.mrf.mxu0
        %v2601 = vadd.f32 %v2512, %v2600
        %v2602 = vpop.f32.mrf.mxu0
        %v2603 = vadd.f32 %v2514, %v2602
        %2604 = vmatmul.bf16.gmra.mxu0 %v2143
        %v2605 = vpop.f32.mrf.mxu0
        %v2606 = vadd.f32 %v2517, %v2605
        %v2607 = vpop.f32.mrf.mxu0
        %v2608 = vadd.f32 %v2519, %v2607
        %2609 = vmatmul.bf16.gmra.mxu0 %v2146
        %v2610 = vpop.f32.mrf.mxu0
        %v2611 = vadd.f32 %v2522, %v2610
        %v2612 = vpop.f32.mrf.mxu0
        %v2613 = vadd.f32 %v2524, %v2612
        %2614 = vmatmul.bf16.gmra.mxu0 %v2149
        %v2615 = vpop.f32.mrf.mxu0
        %v2616 = vadd.f32 %v2527, %v2615
        %v2617 = vpop.f32.mrf.mxu0
        %v2618 = vadd.f32 %v2529, %v2617
        %2619 = vmatmul.bf16.gmra.mxu0 %v2152
        %v2620 = vpop.f32.mrf.mxu0
        %v2621 = vadd.f32 %v2532, %v2620
        %v2622 = vpop.f32.mrf.mxu0
        %v2623 = vadd.f32 %v2534, %v2622
        %2624 = vmatmul.bf16.gmra.mxu0 %v2155
        %v2625 = vpop.f32.mrf.mxu0
        %v2626 = vadd.f32 %v2537, %v2625
        %v2627 = vpop.f32.mrf.mxu0
        %v2628 = vadd.f32 %v2539, %v2627
        %2629 = vmatmul.bf16.gmra.mxu0 %v2158
        %v2630 = vpop.f32.mrf.mxu0
        %v2631 = vadd.f32 %v2542, %v2630
        %v2632 = vpop.f32.mrf.mxu0
        %v2633 = vadd.f32 %v2544, %v2632
        %2634 = vdwg.mxu0
        %v2683 = vunpack.c.l.b16 %v1599
        %v2684 = vunpack.c.l.b16 %v1600
        %v2685 = vunpack.c.l.b16 %v1601
        %v2686 = vunpack.c.l.b16 %v1602
        %v2687 = vunpack.c.l.b16 %v1603
        %v2688 = vunpack.c.l.b16 %v1604
        %v2689 = vunpack.c.l.b16 %v1605
        %v2690 = vunpack.c.l.b16 %v1606
        %v2691 = vunpack.c.l.b16 %v1607
        %v2692 = vunpack.c.l.b16 %v1608
        %v2693 = vunpack.c.l.b16 %v1609
        %v2694 = vunpack.c.l.b16 %v1610
        %v2695 = vunpack.c.l.b16 %v1611
        %v2696 = vunpack.c.l.b16 %v1612
        %v2697 = vunpack.c.l.b16 %v1613
        %v2698 = vunpack.c.l.b16 %v1614
        %v2699 = vunpack.c.l.b16 %v1615
        %v2700 = vunpack.c.l.b16 %v1616
        %v2701 = vunpack.c.l.b16 %v1617
        %v2702 = vunpack.c.l.b16 %v1618
        %v2703 = vunpack.c.l.b16 %v1619
        %v2704 = vunpack.c.l.b16 %v1620
        %v2705 = vunpack.c.l.b16 %v1621
        %v2706 = vunpack.c.l.b16 %v1622
        %v2707 = vunpack.c.l.b16 %v1623
        %v2708 = vunpack.c.l.b16 %v1624
        %v2709 = vunpack.c.l.b16 %v1625
        %v2710 = vunpack.c.l.b16 %v1626
        %v2711 = vunpack.c.l.b16 %v1627
        %v2712 = vunpack.c.l.b16 %v1628
        %v2713 = vunpack.c.l.b16 %v1629
        %v2714 = vunpack.c.l.b16 %v1630
        %v2715 = vunpack.c.l.b16 %v1631
        %v2716 = vunpack.c.l.b16 %v1632
        %v2717 = vunpack.c.l.b16 %v1633
        %v2718 = vunpack.c.l.b16 %v1634
        %v2719 = vunpack.c.l.b16 %v1635
        %v2720 = vunpack.c.l.b16 %v1636
        %v2721 = vunpack.c.l.b16 %v1637
        %v2722 = vunpack.c.l.b16 %v1638
        %v2723 = vunpack.c.l.b16 %v1639
        %v2724 = vunpack.c.l.b16 %v1640
        %v2725 = vunpack.c.l.b16 %v1641
        %v2726 = vunpack.c.l.b16 %v1642
        %v2727 = vunpack.c.l.b16 %v1643
        %v2728 = vunpack.c.l.b16 %v1644
        %v2729 = vunpack.c.l.b16 %v1645
        %v2730 = vunpack.c.l.b16 %v1646
        %v2731 = vpack.c.b16 %v2684, %v2683
        %v2732 = vpack.c.b16 %v2686, %v2685
        %v2733 = vpack.c.b16 %v2688, %v2687
        %v2734 = vpack.c.b16 %v2690, %v2689
        %v2735 = vpack.c.b16 %v2692, %v2691
        %v2736 = vpack.c.b16 %v2694, %v2693
        %v2737 = vpack.c.b16 %v2696, %v2695
        %v2738 = vpack.c.b16 %v2698, %v2697
        %v2739 = vpack.c.b16 %v2700, %v2699
        %v2740 = vpack.c.b16 %v2702, %v2701
        %v2741 = vpack.c.b16 %v2704, %v2703
        %v2742 = vpack.c.b16 %v2706, %v2705
        %v2743 = vpack.c.b16 %v2708, %v2707
        %v2744 = vpack.c.b16 %v2710, %v2709
        %v2745 = vpack.c.b16 %v2712, %v2711
        %v2746 = vpack.c.b16 %v2714, %v2713
        %v2747 = vpack.c.b16 %v2716, %v2715
        %v2748 = vpack.c.b16 %v2718, %v2717
        %v2749 = vpack.c.b16 %v2720, %v2719
        %v2750 = vpack.c.b16 %v2722, %v2721
        %v2751 = vpack.c.b16 %v2724, %v2723
        %v2752 = vpack.c.b16 %v2726, %v2725
        %v2753 = vpack.c.b16 %v2728, %v2727
        %v2754 = vpack.c.b16 %v2730, %v2729
        %2779 = vmatpush.bf16.msra.mxu0 %v2738
        %2780 = vmatpush.bf16.msra.mxu0 %v2737
        %2781 = vmatpush.bf16.msra.mxu0 %v2736
        %2782 = vmatpush.bf16.msra.mxu0 %v2735
        %2783 = vmatpush.bf16.msra.mxu0 %v2734
        %2784 = vmatpush.bf16.msra.mxu0 %v2733
        %2785 = vmatpush.bf16.msra.mxu0 %v2732
        %2786 = vmatpush.bf16.msra.mxu0 %v2731
        %2787 = vmatmul.bf16.gmra.mxu0 %v1197
        %v2788 = vpop.f32.mrf.mxu0
        %v2789 = vadd.f32 %v2556, %v2788
        %v2790 = vpop.f32.mrf.mxu0
        %v2791 = vadd.f32 %v2558, %v2790
        %2792 = vmatmul.bf16.gmra.mxu0 %v1198
        %v2793 = vpop.f32.mrf.mxu0
        %v2794 = vadd.f32 %v2561, %v2793
        %v2795 = vpop.f32.mrf.mxu0
        %v2796 = vadd.f32 %v2563, %v2795
        %2797 = vmatmul.bf16.gmra.mxu0 %v1199
        %v2798 = vpop.f32.mrf.mxu0
        %v2799 = vadd.f32 %v2566, %v2798
        %v2800 = vpop.f32.mrf.mxu0
        %v2801 = vadd.f32 %v2568, %v2800
        %2802 = vmatmul.bf16.gmra.mxu0 %v1200
        %v2803 = vpop.f32.mrf.mxu0
        %v2804 = vadd.f32 %v2571, %v2803
        %v2805 = vpop.f32.mrf.mxu0
        %v2806 = vadd.f32 %v2573, %v2805
        %2807 = vmatmul.bf16.gmra.mxu0 %v1201
        %v2808 = vpop.f32.mrf.mxu0
        %v2809 = vadd.f32 %v2576, %v2808
        %v2810 = vpop.f32.mrf.mxu0
        %v2811 = vadd.f32 %v2578, %v2810
        %2812 = vmatmul.bf16.gmra.mxu0 %v1202
        %v2813 = vpop.f32.mrf.mxu0
        %v2814 = vadd.f32 %v2581, %v2813
        %v2815 = vpop.f32.mrf.mxu0
        %v2816 = vadd.f32 %v2583, %v2815
        %2817 = vmatmul.bf16.gmra.mxu0 %v1203
        %v2818 = vpop.f32.mrf.mxu0
        %v2819 = vadd.f32 %v2586, %v2818
        %v2820 = vpop.f32.mrf.mxu0
        %v2821 = vadd.f32 %v2588, %v2820
        %2822 = vmatmul.bf16.gmra.mxu0 %v1204
        %v2823 = vpop.f32.mrf.mxu0
        %v2824 = vadd.f32 %v2591, %v2823
        %v2825 = vpop.f32.mrf.mxu0
        %v2826 = vadd.f32 %v2593, %v2825
        %2827 = vmatmul.bf16.gmra.mxu0 %v1205
        %v2828 = vpop.f32.mrf.mxu0
        %v2829 = vadd.f32 %v2596, %v2828
        %v2830 = vpop.f32.mrf.mxu0
        %v2831 = vadd.f32 %v2598, %v2830
        %2832 = vmatmul.bf16.gmra.mxu0 %v1206
        %v2833 = vpop.f32.mrf.mxu0
        %v2834 = vadd.f32 %v2601, %v2833
        %v2835 = vpop.f32.mrf.mxu0
        %v2836 = vadd.f32 %v2603, %v2835
        %2837 = vmatmul.bf16.gmra.mxu0 %v1207
        %v2838 = vpop.f32.mrf.mxu0
        %v2839 = vadd.f32 %v2606, %v2838
        %v2840 = vpop.f32.mrf.mxu0
        %v2841 = vadd.f32 %v2608, %v2840
        %2842 = vmatmul.bf16.gmra.mxu0 %v1208
        %v2843 = vpop.f32.mrf.mxu0
        %v2844 = vadd.f32 %v2611, %v2843
        %v2845 = vpop.f32.mrf.mxu0
        %v2846 = vadd.f32 %v2613, %v2845
        %2847 = vmatmul.bf16.gmra.mxu0 %v1209
        %v2848 = vpop.f32.mrf.mxu0
        %v2849 = vadd.f32 %v2616, %v2848
        %v2850 = vpop.f32.mrf.mxu0
        %v2851 = vadd.f32 %v2618, %v2850
        %2852 = vmatmul.bf16.gmra.mxu0 %v1210
        %v2853 = vpop.f32.mrf.mxu0
        %v2854 = vadd.f32 %v2621, %v2853
        %v2855 = vpop.f32.mrf.mxu0
        %v2856 = vadd.f32 %v2623, %v2855
        %2857 = vmatmul.bf16.gmra.mxu0 %v1211
        %v2858 = vpop.f32.mrf.mxu0
        %v2859 = vadd.f32 %v2626, %v2858
        %v2860 = vpop.f32.mrf.mxu0
        %v2861 = vadd.f32 %v2628, %v2860
        %2862 = vmatmul.bf16.gmra.mxu0 %v1212
        %v2863 = vpop.f32.mrf.mxu0
        %v2864 = vadd.f32 %v2631, %v2863
        %v2865 = vpop.f32.mrf.mxu0
        %v2866 = vadd.f32 %v2633, %v2865
        %2867 = vdwg.mxu0
        %2868 = vmatpush.bf16.msra.mxu0 %v2746
        %2869 = vmatpush.bf16.msra.mxu0 %v2745
        %2870 = vmatpush.bf16.msra.mxu0 %v2744
        %2871 = vmatpush.bf16.msra.mxu0 %v2743
        %2872 = vmatpush.bf16.msra.mxu0 %v2742
        %2873 = vmatpush.bf16.msra.mxu0 %v2741
        %2874 = vmatpush.bf16.msra.mxu0 %v2740
        %2875 = vmatpush.bf16.msra.mxu0 %v2739
        %2876 = vmatmul.bf16.gmra.mxu0 %v1289
        %v2877 = vpop.f32.mrf.mxu0
        %v2878 = vadd.f32 %v2789, %v2877
        %v2879 = vpop.f32.mrf.mxu0
        %v2880 = vadd.f32 %v2791, %v2879
        %2881 = vmatmul.bf16.gmra.mxu0 %v1301
        %v2882 = vpop.f32.mrf.mxu0
        %v2883 = vadd.f32 %v2794, %v2882
        %v2884 = vpop.f32.mrf.mxu0
        %v2885 = vadd.f32 %v2796, %v2884
        %2886 = vmatmul.bf16.gmra.mxu0 %v1313
        %v2887 = vpop.f32.mrf.mxu0
        %v2888 = vadd.f32 %v2799, %v2887
        %v2889 = vpop.f32.mrf.mxu0
        %v2890 = vadd.f32 %v2801, %v2889
        %2891 = vmatmul.bf16.gmra.mxu0 %v1325
        %v2892 = vpop.f32.mrf.mxu0
        %v2893 = vadd.f32 %v2804, %v2892
        %v2894 = vpop.f32.mrf.mxu0
        %v2895 = vadd.f32 %v2806, %v2894
        %2896 = vmatmul.bf16.gmra.mxu0 %v1337
        %v2897 = vpop.f32.mrf.mxu0
        %v2898 = vadd.f32 %v2809, %v2897
        %v2899 = vpop.f32.mrf.mxu0
        %v2900 = vadd.f32 %v2811, %v2899
        %2901 = vmatmul.bf16.gmra.mxu0 %v1349
        %v2902 = vpop.f32.mrf.mxu0
        %v2903 = vadd.f32 %v2814, %v2902
        %v2904 = vpop.f32.mrf.mxu0
        %v2905 = vadd.f32 %v2816, %v2904
        %2906 = vmatmul.bf16.gmra.mxu0 %v1361
        %v2907 = vpop.f32.mrf.mxu0
        %v2908 = vadd.f32 %v2819, %v2907
        %v2909 = vpop.f32.mrf.mxu0
        %v2910 = vadd.f32 %v2821, %v2909
        %2911 = vmatmul.bf16.gmra.mxu0 %v1373
        %v2912 = vpop.f32.mrf.mxu0
        %v2913 = vadd.f32 %v2824, %v2912
        %v2914 = vpop.f32.mrf.mxu0
        %v2915 = vadd.f32 %v2826, %v2914
        %2916 = vmatmul.bf16.gmra.mxu0 %v1385
        %v2917 = vpop.f32.mrf.mxu0
        %v2918 = vadd.f32 %v2829, %v2917
        %v2919 = vpop.f32.mrf.mxu0
        %v2920 = vadd.f32 %v2831, %v2919
        %2921 = vmatmul.bf16.gmra.mxu0 %v1397
        %v2922 = vpop.f32.mrf.mxu0
        %v2923 = vadd.f32 %v2834, %v2922
        %v2924 = vpop.f32.mrf.mxu0
        %v2925 = vadd.f32 %v2836, %v2924
        %2926 = vmatmul.bf16.gmra.mxu0 %v1409
        %v2927 = vpop.f32.mrf.mxu0
        %v2928 = vadd.f32 %v2839, %v2927
        %v2929 = vpop.f32.mrf.mxu0
        %v2930 = vadd.f32 %v2841, %v2929
        %2931 = vmatmul.bf16.gmra.mxu0 %v1421
        %v2932 = vpop.f32.mrf.mxu0
        %v2933 = vadd.f32 %v2844, %v2932
        %v2934 = vpop.f32.mrf.mxu0
        %v2935 = vadd.f32 %v2846, %v2934
        %2936 = vmatmul.bf16.gmra.mxu0 %v1433
        %v2937 = vpop.f32.mrf.mxu0
        %v2938 = vadd.f32 %v2849, %v2937
        %v2939 = vpop.f32.mrf.mxu0
        %v2940 = vadd.f32 %v2851, %v2939
        %2941 = vmatmul.bf16.gmra.mxu0 %v1445
        %v2942 = vpop.f32.mrf.mxu0
        %v2943 = vadd.f32 %v2854, %v2942
        %v2944 = vpop.f32.mrf.mxu0
        %v2945 = vadd.f32 %v2856, %v2944
        %2946 = vmatmul.bf16.gmra.mxu0 %v1457
        %v2947 = vpop.f32.mrf.mxu0
        %v2948 = vadd.f32 %v2859, %v2947
        %v2949 = vpop.f32.mrf.mxu0
        %v2950 = vadd.f32 %v2861, %v2949
        %2951 = vmatmul.bf16.gmra.mxu0 %v1469
        %v2952 = vpop.f32.mrf.mxu0
        %v2953 = vadd.f32 %v2864, %v2952
        %v2954 = vpop.f32.mrf.mxu0
        %v2955 = vadd.f32 %v2866, %v2954
        %2956 = vdwg.mxu0
        %2957 = vmatpush.bf16.msra.mxu0 %v2754
        %2958 = vmatpush.bf16.msra.mxu0 %v2753
        %2959 = vmatpush.bf16.msra.mxu0 %v2752
        %2960 = vmatpush.bf16.msra.mxu0 %v2751
        %2961 = vmatpush.bf16.msra.mxu0 %v2750
        %2962 = vmatpush.bf16.msra.mxu0 %v2749
        %2963 = vmatpush.bf16.msra.mxu0 %v2748
        %2964 = vmatpush.bf16.msra.mxu0 %v2747
        %2965 = vmatmul.bf16.gmra.mxu0 %v1537
        %v2966 = vpop.f32.mrf.mxu0
        %v2967 = vadd.f32 %v2878, %v2966
        %v2968 = vpop.f32.mrf.mxu0
        %v2969 = vadd.f32 %v2880, %v2968
        %2970 = vmatmul.bf16.gmra.mxu0 %v1540
        %v2971 = vpop.f32.mrf.mxu0
        %v2972 = vadd.f32 %v2883, %v2971
        %v2973 = vpop.f32.mrf.mxu0
        %v2974 = vadd.f32 %v2885, %v2973
        %2975 = vmatmul.bf16.gmra.mxu0 %v1543
        %v2976 = vpop.f32.mrf.mxu0
        %v2977 = vadd.f32 %v2888, %v2976
        %v2978 = vpop.f32.mrf.mxu0
        %v2979 = vadd.f32 %v2890, %v2978
        %2980 = vmatmul.bf16.gmra.mxu0 %v1546
        %v2981 = vpop.f32.mrf.mxu0
        %v2982 = vadd.f32 %v2893, %v2981
        %v2983 = vpop.f32.mrf.mxu0
        %v2984 = vadd.f32 %v2895, %v2983
        %2985 = vmatmul.bf16.gmra.mxu0 %v1549
        %v2986 = vpop.f32.mrf.mxu0
        %v2987 = vadd.f32 %v2898, %v2986
        %v2988 = vpop.f32.mrf.mxu0
        %v2989 = vadd.f32 %v2900, %v2988
        %2990 = vmatmul.bf16.gmra.mxu0 %v1552
        %v2991 = vpop.f32.mrf.mxu0
        %v2992 = vadd.f32 %v2903, %v2991
        %v2993 = vpop.f32.mrf.mxu0
        %v2994 = vadd.f32 %v2905, %v2993
        %2995 = vmatmul.bf16.gmra.mxu0 %v1555
        %v2996 = vpop.f32.mrf.mxu0
        %v2997 = vadd.f32 %v2908, %v2996
        %v2998 = vpop.f32.mrf.mxu0
        %v2999 = vadd.f32 %v2910, %v2998
        %3000 = vmatmul.bf16.gmra.mxu0 %v1558
        %v3001 = vpop.f32.mrf.mxu0
        %v3002 = vadd.f32 %v2913, %v3001
        %v3003 = vpop.f32.mrf.mxu0
        %v3004 = vadd.f32 %v2915, %v3003
        %3005 = vmatmul.bf16.gmra.mxu0 %v1561
        %v3006 = vpop.f32.mrf.mxu0
        %v3007 = vadd.f32 %v2918, %v3006
        %v3008 = vpop.f32.mrf.mxu0
        %v3009 = vadd.f32 %v2920, %v3008
        %3010 = vmatmul.bf16.gmra.mxu0 %v1564
        %v3011 = vpop.f32.mrf.mxu0
        %v3012 = vadd.f32 %v2923, %v3011
        %v3013 = vpop.f32.mrf.mxu0
        %v3014 = vadd.f32 %v2925, %v3013
        %3015 = vmatmul.bf16.gmra.mxu0 %v1567
        %v3016 = vpop.f32.mrf.mxu0
        %v3017 = vadd.f32 %v2928, %v3016
        %v3018 = vpop.f32.mrf.mxu0
        %v3019 = vadd.f32 %v2930, %v3018
        %3020 = vmatmul.bf16.gmra.mxu0 %v1570
        %v3021 = vpop.f32.mrf.mxu0
        %v3022 = vadd.f32 %v2933, %v3021
        %v3023 = vpop.f32.mrf.mxu0
        %v3024 = vadd.f32 %v2935, %v3023
        %3025 = vmatmul.bf16.gmra.mxu0 %v1573
        %v3026 = vpop.f32.mrf.mxu0
        %v3027 = vadd.f32 %v2938, %v3026
        %v3028 = vpop.f32.mrf.mxu0
        %v3029 = vadd.f32 %v2940, %v3028
        %3030 = vmatmul.bf16.gmra.mxu0 %v1576
        %v3031 = vpop.f32.mrf.mxu0
        %v3032 = vadd.f32 %v2943, %v3031
        %v3033 = vpop.f32.mrf.mxu0
        %v3034 = vadd.f32 %v2945, %v3033
        %3035 = vmatmul.bf16.gmra.mxu0 %v1579
        %v3036 = vpop.f32.mrf.mxu0
        %v3037 = vadd.f32 %v2948, %v3036
        %v3038 = vpop.f32.mrf.mxu0
        %v3039 = vadd.f32 %v2950, %v3038
        %3040 = vmatmul.bf16.gmra.mxu0 %v1582
        %v3041 = vpop.f32.mrf.mxu0
        %v3042 = vadd.f32 %v2953, %v3041
        %v3043 = vpop.f32.mrf.mxu0
        %v3044 = vadd.f32 %v2955, %v3043
        %3045 = vdwg.mxu0
        %s3046 = scalar_lea.vmem [#allocation2], 24
        %v3047 = vld [vmem:[%s3046] sm:$0xf]
        %v3048 = vld [vmem:[%s3046 + $0x4] sm:$0xf]
        %v3049 = vld [vmem:[%s3046 + $0xc] sm:$0xf]
        %v3050 = vld [vmem:[%s3046 + $0x10] sm:$0xf]
        %v3051 = vld [vmem:[%s3046 + $0x18] sm:$0xf]
        %v3052 = vld [vmem:[%s3046 + $0x1c] sm:$0xf]
        %v3053 = vld [vmem:[%s3046 + $0x24] sm:$0xf]
        %v3054 = vld [vmem:[%s3046 + $0x28] sm:$0xf]
        %v3055 = vld [vmem:[%s3046 + $0x30] sm:$0xf]
        %v3056 = vld [vmem:[%s3046 + $0x34] sm:$0xf]
        %v3057 = vld [vmem:[%s3046 + $0x3c] sm:$0xf]
        %v3058 = vld [vmem:[%s3046 + $0x40] sm:$0xf]
        %v3059 = vld [vmem:[%s3046 + $0x48] sm:$0xf]
        %v3060 = vld [vmem:[%s3046 + $0x4c] sm:$0xf]
        %v3061 = vld [vmem:[%s3046 + $0x54] sm:$0xf]
        %v3062 = vld [vmem:[%s3046 + $0x58] sm:$0xf]
        %v3063 = vld [vmem:[%s3046 + $0x60] sm:$0xf]
        %v3064 = vld [vmem:[%s3046 + $0x64] sm:$0xf]
        %v3065 = vld [vmem:[%s3046 + $0x6c] sm:$0xf]
        %v3066 = vld [vmem:[%s3046 + $0x70] sm:$0xf]
        %v3067 = vld [vmem:[%s3046 + $0x78] sm:$0xf]
        %v3068 = vld [vmem:[%s3046 + $0x7c] sm:$0xf]
        %v3069 = vld [vmem:[%s3046 + $0x84] sm:$0xf]
        %v3070 = vld [vmem:[%s3046 + $0x88] sm:$0xf]
        %v3071 = vld [vmem:[%s3046 + $0x90] sm:$0xf]
        %v3072 = vld [vmem:[%s3046 + $0x94] sm:$0xf]
        %v3073 = vld [vmem:[%s3046 + $0x9c] sm:$0xf]
        %v3074 = vld [vmem:[%s3046 + $0xa0] sm:$0xf]
        %v3075 = vld [vmem:[%s3046 + $0xa8] sm:$0xf]
        %v3076 = vld [vmem:[%s3046 + $0xac] sm:$0xf]
        %v3077 = vld [vmem:[%s3046 + $0xb4] sm:$0xf]
        %v3078 = vld [vmem:[%s3046 + $0xb8] sm:$0xf]
        %v3079 = vld [vmem:[%s3046 + $0x8] sm:$0x1]
        %v3080 = vld [vmem:[%s3046 + $0x14] sm:$0x1]
        %v3081 = vld [vmem:[%s3046 + $0x20] sm:$0x1]
        %v3082 = vld [vmem:[%s3046 + $0x2c] sm:$0x1]
        %v3083 = vld [vmem:[%s3046 + $0x38] sm:$0x1]
        %v3084 = vld [vmem:[%s3046 + $0x44] sm:$0x1]
        %v3085 = vld [vmem:[%s3046 + $0x50] sm:$0x1]
        %v3086 = vld [vmem:[%s3046 + $0x5c] sm:$0x1]
        %v3087 = vld [vmem:[%s3046 + $0x68] sm:$0x1]
        %v3088 = vld [vmem:[%s3046 + $0x74] sm:$0x1]
        %v3089 = vld [vmem:[%s3046 + $0x80] sm:$0x1]
        %v3090 = vld [vmem:[%s3046 + $0x8c] sm:$0x1]
        %v3091 = vld [vmem:[%s3046 + $0x98] sm:$0x1]
        %v3092 = vld [vmem:[%s3046 + $0xa4] sm:$0x1]
        %v3093 = vld [vmem:[%s3046 + $0xb0] sm:$0x1]
        %v3094 = vld [vmem:[%s3046 + $0xbc] sm:$0x1]
        %v3095 = vld [vmem:[%s3046] sm:$0xe]
        %v3096 = vld [vmem:[%s3046 + $0xc] sm:$0xe]
        %v3097 = vld [vmem:[%s3046 + $0x18] sm:$0xe]
        %v3098 = vld [vmem:[%s3046 + $0x24] sm:$0xe]
        %v3099 = vld [vmem:[%s3046 + $0x30] sm:$0xe]
        %v3100 = vld [vmem:[%s3046 + $0x3c] sm:$0xe]
        %v3101 = vld [vmem:[%s3046 + $0x48] sm:$0xe]
        %v3102 = vld [vmem:[%s3046 + $0x54] sm:$0xe]
        %v3103 = vld [vmem:[%s3046 + $0x60] sm:$0xe]
        %v3104 = vld [vmem:[%s3046 + $0x6c] sm:$0xe]
        %v3105 = vld [vmem:[%s3046 + $0x78] sm:$0xe]
        %v3106 = vld [vmem:[%s3046 + $0x84] sm:$0xe]
        %v3107 = vld [vmem:[%s3046 + $0x90] sm:$0xe]
        %v3108 = vld [vmem:[%s3046 + $0x9c] sm:$0xe]
        %v3109 = vld [vmem:[%s3046 + $0xa8] sm:$0xe]
        %v3110 = vld [vmem:[%s3046 + $0xb4] sm:$0xe]
        %v3143 = vunpack.c.l.b16 %v3047
        %v3144 = vunpack.c.l.b16 %v3048
        %v3145 = vunpack.c.l.b16 %v3049
        %v3146 = vunpack.c.l.b16 %v3050
        %v3147 = vunpack.c.l.b16 %v3051
        %v3148 = vunpack.c.l.b16 %v3052
        %v3149 = vunpack.c.l.b16 %v3053
        %v3150 = vunpack.c.l.b16 %v3054
        %v3151 = vunpack.c.l.b16 %v3055
        %v3152 = vunpack.c.l.b16 %v3056
        %v3153 = vunpack.c.l.b16 %v3057
        %v3154 = vunpack.c.l.b16 %v3058
        %v3155 = vunpack.c.l.b16 %v3059
        %v3156 = vunpack.c.l.b16 %v3060
        %v3157 = vunpack.c.l.b16 %v3061
        %v3158 = vunpack.c.l.b16 %v3062
        %v3159 = vunpack.c.l.b16 %v3063
        %v3160 = vunpack.c.l.b16 %v3064
        %v3161 = vunpack.c.l.b16 %v3065
        %v3162 = vunpack.c.l.b16 %v3066
        %v3163 = vunpack.c.l.b16 %v3067
        %v3164 = vunpack.c.l.b16 %v3068
        %v3165 = vunpack.c.l.b16 %v3069
        %v3166 = vunpack.c.l.b16 %v3070
        %v3167 = vunpack.c.l.b16 %v3071
        %v3168 = vunpack.c.l.b16 %v3072
        %v3169 = vunpack.c.l.b16 %v3073
        %v3170 = vunpack.c.l.b16 %v3074
        %v3171 = vunpack.c.l.b16 %v3075
        %v3172 = vunpack.c.l.b16 %v3076
        %v3173 = vunpack.c.l.b16 %v3077
        %v3174 = vunpack.c.l.b16 %v3078
        %v3175 = vpack.c.b16 %v3144, %v3143
        %v3176 = vpack.c.b16 %v3146, %v3145
        %v3177 = vpack.c.b16 %v3148, %v3147
        %v3178 = vpack.c.b16 %v3150, %v3149
        %v3179 = vpack.c.b16 %v3152, %v3151
        %v3180 = vpack.c.b16 %v3154, %v3153
        %v3181 = vpack.c.b16 %v3156, %v3155
        %v3182 = vpack.c.b16 %v3158, %v3157
        %v3183 = vpack.c.b16 %v3160, %v3159
        %v3184 = vpack.c.b16 %v3162, %v3161
        %v3185 = vpack.c.b16 %v3164, %v3163
        %v3186 = vpack.c.b16 %v3166, %v3165
        %v3187 = vpack.c.b16 %v3168, %v3167
        %v3188 = vpack.c.b16 %v3170, %v3169
        %v3189 = vpack.c.b16 %v3172, %v3171
        %v3190 = vpack.c.b16 %v3174, %v3173
        %v3223 = vunpack.c.l.b16 %v3079
        %v3224 = vunpack.c.l.b16 %v3080
        %v3225 = vunpack.c.l.b16 %v3081
        %v3226 = vunpack.c.l.b16 %v3082
        %v3227 = vunpack.c.l.b16 %v3083
        %v3228 = vunpack.c.l.b16 %v3084
        %v3229 = vunpack.c.l.b16 %v3085
        %v3230 = vunpack.c.l.b16 %v3086
        %v3231 = vunpack.c.l.b16 %v3087
        %v3232 = vunpack.c.l.b16 %v3088
        %v3233 = vunpack.c.l.b16 %v3089
        %v3234 = vunpack.c.l.b16 %v3090
        %v3235 = vunpack.c.l.b16 %v3091
        %v3236 = vunpack.c.l.b16 %v3092
        %v3237 = vunpack.c.l.b16 %v3093
        %v3238 = vunpack.c.l.b16 %v3094
        %v3239 = vpack.c.b16 %v3223, %v3223
        %v3240 = vpack.c.b16 %v3224, %v3224
        %v3241 = vpack.c.b16 %v3225, %v3225
        %v3242 = vpack.c.b16 %v3226, %v3226
        %v3243 = vpack.c.b16 %v3227, %v3227
        %v3244 = vpack.c.b16 %v3228, %v3228
        %v3245 = vpack.c.b16 %v3229, %v3229
        %v3246 = vpack.c.b16 %v3230, %v3230
        %v3247 = vpack.c.b16 %v3231, %v3231
        %v3248 = vpack.c.b16 %v3232, %v3232
        %v3249 = vpack.c.b16 %v3233, %v3233
        %v3250 = vpack.c.b16 %v3234, %v3234
        %v3251 = vpack.c.b16 %v3235, %v3235
        %v3252 = vpack.c.b16 %v3236, %v3236
        %v3253 = vpack.c.b16 %v3237, %v3237
        %v3254 = vpack.c.b16 %v3238, %v3238
        %v3256 = vshrl.u32 %v3175, 16
        %v3258 = vshll.u32 %v3175, 16
        %v3260 = vrot.slane %v3258, 1
        %v3261 = vor.u32 %v3256, %v3260
        %v3263 = vshll.u32 %v3239, 16
        %v3265 = vrot.slane %v3263, 1
        %v3266 = vsel %vm1277, %v3261, %v3265
        %v3268 = vshrl.u32 %v3176, 16
        %v3270 = vshll.u32 %v3176, 16
        %v3272 = vrot.slane %v3270, 1
        %v3273 = vor.u32 %v3268, %v3272
        %v3275 = vshll.u32 %v3240, 16
        %v3277 = vrot.slane %v3275, 1
        %v3278 = vsel %vm1277, %v3273, %v3277
        %v3280 = vshrl.u32 %v3177, 16
        %v3282 = vshll.u32 %v3177, 16
        %v3284 = vrot.slane %v3282, 1
        %v3285 = vor.u32 %v3280, %v3284
        %v3287 = vshll.u32 %v3241, 16
        %v3289 = vrot.slane %v3287, 1
        %v3290 = vsel %vm1277, %v3285, %v3289
        %v3292 = vshrl.u32 %v3178, 16
        %v3294 = vshll.u32 %v3178, 16
        %v3296 = vrot.slane %v3294, 1
        %v3297 = vor.u32 %v3292, %v3296
        %v3299 = vshll.u32 %v3242, 16
        %v3301 = vrot.slane %v3299, 1
        %v3302 = vsel %vm1277, %v3297, %v3301
        %v3304 = vshrl.u32 %v3179, 16
        %v3306 = vshll.u32 %v3179, 16
        %v3308 = vrot.slane %v3306, 1
        %v3309 = vor.u32 %v3304, %v3308
        %v3311 = vshll.u32 %v3243, 16
        %v3313 = vrot.slane %v3311, 1
        %v3314 = vsel %vm1277, %v3309, %v3313
        %v3316 = vshrl.u32 %v3180, 16
        %v3318 = vshll.u32 %v3180, 16
        %v3320 = vrot.slane %v3318, 1
        %v3321 = vor.u32 %v3316, %v3320
        %v3323 = vshll.u32 %v3244, 16
        %v3325 = vrot.slane %v3323, 1
        %v3326 = vsel %vm1277, %v3321, %v3325
        %v3328 = vshrl.u32 %v3181, 16
        %v3330 = vshll.u32 %v3181, 16
        %v3332 = vrot.slane %v3330, 1
        %v3333 = vor.u32 %v3328, %v3332
        %v3335 = vshll.u32 %v3245, 16
        %v3337 = vrot.slane %v3335, 1
        %v3338 = vsel %vm1277, %v3333, %v3337
        %v3340 = vshrl.u32 %v3182, 16
        %v3342 = vshll.u32 %v3182, 16
        %v3344 = vrot.slane %v3342, 1
        %v3345 = vor.u32 %v3340, %v3344
        %v3347 = vshll.u32 %v3246, 16
        %v3349 = vrot.slane %v3347, 1
        %v3350 = vsel %vm1277, %v3345, %v3349
        %v3352 = vshrl.u32 %v3183, 16
        %v3354 = vshll.u32 %v3183, 16
        %v3356 = vrot.slane %v3354, 1
        %v3357 = vor.u32 %v3352, %v3356
        %v3359 = vshll.u32 %v3247, 16
        %v3361 = vrot.slane %v3359, 1
        %v3362 = vsel %vm1277, %v3357, %v3361
        %v3364 = vshrl.u32 %v3184, 16
        %v3366 = vshll.u32 %v3184, 16
        %v3368 = vrot.slane %v3366, 1
        %v3369 = vor.u32 %v3364, %v3368
        %v3371 = vshll.u32 %v3248, 16
        %v3373 = vrot.slane %v3371, 1
        %v3374 = vsel %vm1277, %v3369, %v3373
        %v3376 = vshrl.u32 %v3185, 16
        %v3378 = vshll.u32 %v3185, 16
        %v3380 = vrot.slane %v3378, 1
        %v3381 = vor.u32 %v3376, %v3380
        %v3383 = vshll.u32 %v3249, 16
        %v3385 = vrot.slane %v3383, 1
        %v3386 = vsel %vm1277, %v3381, %v3385
        %v3388 = vshrl.u32 %v3186, 16
        %v3390 = vshll.u32 %v3186, 16
        %v3392 = vrot.slane %v3390, 1
        %v3393 = vor.u32 %v3388, %v3392
        %v3395 = vshll.u32 %v3250, 16
        %v3397 = vrot.slane %v3395, 1
        %v3398 = vsel %vm1277, %v3393, %v3397
        %v3400 = vshrl.u32 %v3187, 16
        %v3402 = vshll.u32 %v3187, 16
        %v3404 = vrot.slane %v3402, 1
        %v3405 = vor.u32 %v3400, %v3404
        %v3407 = vshll.u32 %v3251, 16
        %v3409 = vrot.slane %v3407, 1
        %v3410 = vsel %vm1277, %v3405, %v3409
        %v3412 = vshrl.u32 %v3188, 16
        %v3414 = vshll.u32 %v3188, 16
        %v3416 = vrot.slane %v3414, 1
        %v3417 = vor.u32 %v3412, %v3416
        %v3419 = vshll.u32 %v3252, 16
        %v3421 = vrot.slane %v3419, 1
        %v3422 = vsel %vm1277, %v3417, %v3421
        %v3424 = vshrl.u32 %v3189, 16
        %v3426 = vshll.u32 %v3189, 16
        %v3428 = vrot.slane %v3426, 1
        %v3429 = vor.u32 %v3424, %v3428
        %v3431 = vshll.u32 %v3253, 16
        %v3433 = vrot.slane %v3431, 1
        %v3434 = vsel %vm1277, %v3429, %v3433
        %v3436 = vshrl.u32 %v3190, 16
        %v3438 = vshll.u32 %v3190, 16
        %v3440 = vrot.slane %v3438, 1
        %v3441 = vor.u32 %v3436, %v3440
        %v3443 = vshll.u32 %v3254, 16
        %v3445 = vrot.slane %v3443, 1
        %v3446 = vsel %vm1277, %v3441, %v3445
        %v3479 = vunpack.c.l.b16 %v3095
        %v3480 = vunpack.c.l.b16 %v3096
        %v3481 = vunpack.c.l.b16 %v3097
        %v3482 = vunpack.c.l.b16 %v3098
        %v3483 = vunpack.c.l.b16 %v3099
        %v3484 = vunpack.c.l.b16 %v3100
        %v3485 = vunpack.c.l.b16 %v3101
        %v3486 = vunpack.c.l.b16 %v3102
        %v3487 = vunpack.c.l.b16 %v3103
        %v3488 = vunpack.c.l.b16 %v3104
        %v3489 = vunpack.c.l.b16 %v3105
        %v3490 = vunpack.c.l.b16 %v3106
        %v3491 = vunpack.c.l.b16 %v3107
        %v3492 = vunpack.c.l.b16 %v3108
        %v3493 = vunpack.c.l.b16 %v3109
        %v3494 = vunpack.c.l.b16 %v3110
        %v3495 = vpack.c.b16 %v3144, %v3479
        %v3496 = vpack.c.b16 %v3146, %v3480
        %v3497 = vpack.c.b16 %v3148, %v3481
        %v3498 = vpack.c.b16 %v3150, %v3482
        %v3499 = vpack.c.b16 %v3152, %v3483
        %v3500 = vpack.c.b16 %v3154, %v3484
        %v3501 = vpack.c.b16 %v3156, %v3485
        %v3502 = vpack.c.b16 %v3158, %v3486
        %v3503 = vpack.c.b16 %v3160, %v3487
        %v3504 = vpack.c.b16 %v3162, %v3488
        %v3505 = vpack.c.b16 %v3164, %v3489
        %v3506 = vpack.c.b16 %v3166, %v3490
        %v3507 = vpack.c.b16 %v3168, %v3491
        %v3508 = vpack.c.b16 %v3170, %v3492
        %v3509 = vpack.c.b16 %v3172, %v3493
        %v3510 = vpack.c.b16 %v3174, %v3494
        %v3511 = vrot.slane %v3495, 1
        %v3512 = vrot.slane %v3239, 1
        %v3513 = vsel %vm1534, %v3511, %v3512
        %v3514 = vrot.slane %v3496, 1
        %v3515 = vrot.slane %v3240, 1
        %v3516 = vsel %vm1534, %v3514, %v3515
        %v3517 = vrot.slane %v3497, 1
        %v3518 = vrot.slane %v3241, 1
        %v3519 = vsel %vm1534, %v3517, %v3518
        %v3520 = vrot.slane %v3498, 1
        %v3521 = vrot.slane %v3242, 1
        %v3522 = vsel %vm1534, %v3520, %v3521
        %v3523 = vrot.slane %v3499, 1
        %v3524 = vrot.slane %v3243, 1
        %v3525 = vsel %vm1534, %v3523, %v3524
        %v3526 = vrot.slane %v3500, 1
        %v3527 = vrot.slane %v3244, 1
        %v3528 = vsel %vm1534, %v3526, %v3527
        %v3529 = vrot.slane %v3501, 1
        %v3530 = vrot.slane %v3245, 1
        %v3531 = vsel %vm1534, %v3529, %v3530
        %v3532 = vrot.slane %v3502, 1
        %v3533 = vrot.slane %v3246, 1
        %v3534 = vsel %vm1534, %v3532, %v3533
        %v3535 = vrot.slane %v3503, 1
        %v3536 = vrot.slane %v3247, 1
        %v3537 = vsel %vm1534, %v3535, %v3536
        %v3538 = vrot.slane %v3504, 1
        %v3539 = vrot.slane %v3248, 1
        %v3540 = vsel %vm1534, %v3538, %v3539
        %v3541 = vrot.slane %v3505, 1
        %v3542 = vrot.slane %v3249, 1
        %v3543 = vsel %vm1534, %v3541, %v3542
        %v3544 = vrot.slane %v3506, 1
        %v3545 = vrot.slane %v3250, 1
        %v3546 = vsel %vm1534, %v3544, %v3545
        %v3547 = vrot.slane %v3507, 1
        %v3548 = vrot.slane %v3251, 1
        %v3549 = vsel %vm1534, %v3547, %v3548
        %v3550 = vrot.slane %v3508, 1
        %v3551 = vrot.slane %v3252, 1
        %v3552 = vsel %vm1534, %v3550, %v3551
        %v3553 = vrot.slane %v3509, 1
        %v3554 = vrot.slane %v3253, 1
        %v3555 = vsel %vm1534, %v3553, %v3554
        %v3556 = vrot.slane %v3510, 1
        %v3557 = vrot.slane %v3254, 1
        %v3558 = vsel %vm1534, %v3556, %v3557
        %s3575 = scalar_lea.vmem [#allocation7], 384
        %v3576 = vld [vmem:[%s3575] sm:$0xf]
        %v3577 = vld [vmem:[%s3575 + $0x4] sm:$0xf]
        %v3578 = vld [vmem:[%s3575 + $0x8] sm:$0xf]
        %v3579 = vld [vmem:[%s3575 + $0xc] sm:$0xf]
        %v3580 = vld [vmem:[%s3575 + $0x10] sm:$0xf]
        %v3581 = vld [vmem:[%s3575 + $0x14] sm:$0xf]
        %v3582 = vld [vmem:[%s3575 + $0x18] sm:$0xf]
        %v3583 = vld [vmem:[%s3575 + $0x1c] sm:$0xf]
        %v3584 = vld [vmem:[%s3575 + $0x20] sm:$0xf]
        %v3585 = vld [vmem:[%s3575 + $0x24] sm:$0xf]
        %v3586 = vld [vmem:[%s3575 + $0x28] sm:$0xf]
        %v3587 = vld [vmem:[%s3575 + $0x2c] sm:$0xf]
        %v3588 = vld [vmem:[%s3575 + $0x30] sm:$0xf]
        %v3589 = vld [vmem:[%s3575 + $0x34] sm:$0xf]
        %v3590 = vld [vmem:[%s3575 + $0x38] sm:$0xf]
        %v3591 = vld [vmem:[%s3575 + $0x3c] sm:$0xf]
        %v3592 = vld [vmem:[%s3575 + $0x40] sm:$0xf]
        %v3593 = vld [vmem:[%s3575 + $0x44] sm:$0xf]
        %v3594 = vld [vmem:[%s3575 + $0x48] sm:$0xf]
        %v3595 = vld [vmem:[%s3575 + $0x4c] sm:$0xf]
        %v3596 = vld [vmem:[%s3575 + $0x50] sm:$0xf]
        %v3597 = vld [vmem:[%s3575 + $0x54] sm:$0xf]
        %v3598 = vld [vmem:[%s3575 + $0x58] sm:$0xf]
        %v3599 = vld [vmem:[%s3575 + $0x5c] sm:$0xf]
        %v3600 = vld [vmem:[%s3575 + $0x60] sm:$0xf]
        %v3601 = vld [vmem:[%s3575 + $0x64] sm:$0xf]
        %v3602 = vld [vmem:[%s3575 + $0x68] sm:$0xf]
        %v3603 = vld [vmem:[%s3575 + $0x6c] sm:$0xf]
        %v3604 = vld [vmem:[%s3575 + $0x70] sm:$0xf]
        %v3605 = vld [vmem:[%s3575 + $0x74] sm:$0xf]
        %v3606 = vld [vmem:[%s3575 + $0x78] sm:$0xf]
        %v3607 = vld [vmem:[%s3575 + $0x7c] sm:$0xf]
        %v3608 = vld [vmem:[%s3575 + $0x80] sm:$0xf]
        %v3609 = vld [vmem:[%s3575 + $0x84] sm:$0xf]
        %v3610 = vld [vmem:[%s3575 + $0x88] sm:$0xf]
        %v3611 = vld [vmem:[%s3575 + $0x8c] sm:$0xf]
        %v3612 = vld [vmem:[%s3575 + $0x90] sm:$0xf]
        %v3613 = vld [vmem:[%s3575 + $0x94] sm:$0xf]
        %v3614 = vld [vmem:[%s3575 + $0x98] sm:$0xf]
        %v3615 = vld [vmem:[%s3575 + $0x9c] sm:$0xf]
        %v3616 = vld [vmem:[%s3575 + $0xa0] sm:$0xf]
        %v3617 = vld [vmem:[%s3575 + $0xa4] sm:$0xf]
        %v3618 = vld [vmem:[%s3575 + $0xa8] sm:$0xf]
        %v3619 = vld [vmem:[%s3575 + $0xac] sm:$0xf]
        %v3620 = vld [vmem:[%s3575 + $0xb0] sm:$0xf]
        %v3621 = vld [vmem:[%s3575 + $0xb4] sm:$0xf]
        %v3622 = vld [vmem:[%s3575 + $0xb8] sm:$0xf]
        %v3623 = vld [vmem:[%s3575 + $0xbc] sm:$0xf]
        %v3672 = vunpack.c.l.b16 %v3576
        %v3673 = vunpack.c.l.b16 %v3577
        %v3674 = vunpack.c.l.b16 %v3578
        %v3675 = vunpack.c.l.b16 %v3579
        %v3676 = vunpack.c.l.b16 %v3580
        %v3677 = vunpack.c.l.b16 %v3581
        %v3678 = vunpack.c.l.b16 %v3582
        %v3679 = vunpack.c.l.b16 %v3583
        %v3680 = vunpack.c.l.b16 %v3584
        %v3681 = vunpack.c.l.b16 %v3585
        %v3682 = vunpack.c.l.b16 %v3586
        %v3683 = vunpack.c.l.b16 %v3587
        %v3684 = vunpack.c.l.b16 %v3588
        %v3685 = vunpack.c.l.b16 %v3589
        %v3686 = vunpack.c.l.b16 %v3590
        %v3687 = vunpack.c.l.b16 %v3591
        %v3688 = vunpack.c.l.b16 %v3592
        %v3689 = vunpack.c.l.b16 %v3593
        %v3690 = vunpack.c.l.b16 %v3594
        %v3691 = vunpack.c.l.b16 %v3595
        %v3692 = vunpack.c.l.b16 %v3596
        %v3693 = vunpack.c.l.b16 %v3597
        %v3694 = vunpack.c.l.b16 %v3598
        %v3695 = vunpack.c.l.b16 %v3599
        %v3696 = vunpack.c.l.b16 %v3600
        %v3697 = vunpack.c.l.b16 %v3601
        %v3698 = vunpack.c.l.b16 %v3602
        %v3699 = vunpack.c.l.b16 %v3603
        %v3700 = vunpack.c.l.b16 %v3604
        %v3701 = vunpack.c.l.b16 %v3605
        %v3702 = vunpack.c.l.b16 %v3606
        %v3703 = vunpack.c.l.b16 %v3607
        %v3704 = vunpack.c.l.b16 %v3608
        %v3705 = vunpack.c.l.b16 %v3609
        %v3706 = vunpack.c.l.b16 %v3610
        %v3707 = vunpack.c.l.b16 %v3611
        %v3708 = vunpack.c.l.b16 %v3612
        %v3709 = vunpack.c.l.b16 %v3613
        %v3710 = vunpack.c.l.b16 %v3614
        %v3711 = vunpack.c.l.b16 %v3615
        %v3712 = vunpack.c.l.b16 %v3616
        %v3713 = vunpack.c.l.b16 %v3617
        %v3714 = vunpack.c.l.b16 %v3618
        %v3715 = vunpack.c.l.b16 %v3619
        %v3716 = vunpack.c.l.b16 %v3620
        %v3717 = vunpack.c.l.b16 %v3621
        %v3718 = vunpack.c.l.b16 %v3622
        %v3719 = vunpack.c.l.b16 %v3623
        %v3720 = vpack.c.b16 %v3673, %v3672
        %v3721 = vpack.c.b16 %v3675, %v3674
        %v3722 = vpack.c.b16 %v3677, %v3676
        %v3723 = vpack.c.b16 %v3679, %v3678
        %v3724 = vpack.c.b16 %v3681, %v3680
        %v3725 = vpack.c.b16 %v3683, %v3682
        %v3726 = vpack.c.b16 %v3685, %v3684
        %v3727 = vpack.c.b16 %v3687, %v3686
        %v3728 = vpack.c.b16 %v3689, %v3688
        %v3729 = vpack.c.b16 %v3691, %v3690
        %v3730 = vpack.c.b16 %v3693, %v3692
        %v3731 = vpack.c.b16 %v3695, %v3694
        %v3732 = vpack.c.b16 %v3697, %v3696
        %v3733 = vpack.c.b16 %v3699, %v3698
        %v3734 = vpack.c.b16 %v3701, %v3700
        %v3735 = vpack.c.b16 %v3703, %v3702
        %v3736 = vpack.c.b16 %v3705, %v3704
        %v3737 = vpack.c.b16 %v3707, %v3706
        %v3738 = vpack.c.b16 %v3709, %v3708
        %v3739 = vpack.c.b16 %v3711, %v3710
        %v3740 = vpack.c.b16 %v3713, %v3712
        %v3741 = vpack.c.b16 %v3715, %v3714
        %v3742 = vpack.c.b16 %v3717, %v3716
        %v3743 = vpack.c.b16 %v3719, %v3718
        %3768 = vmatpush.bf16.msra.mxu0 %v3727
        %3769 = vmatpush.bf16.msra.mxu0 %v3726
        %3770 = vmatpush.bf16.msra.mxu0 %v3725
        %3771 = vmatpush.bf16.msra.mxu0 %v3724
        %3772 = vmatpush.bf16.msra.mxu0 %v3723
        %3773 = vmatpush.bf16.msra.mxu0 %v3722
        %3774 = vmatpush.bf16.msra.mxu0 %v3721
        %3775 = vmatpush.bf16.msra.mxu0 %v3720
        %3776 = vmatmul.bf16.gmra.mxu0 %v3175
        %v3777 = vpop.f32.mrf.mxu0
        %v3778 = vadd.f32 0.0, %v3777
        %v3779 = vpop.f32.mrf.mxu0
        %v3780 = vadd.f32 0.0, %v3779
        %3781 = vmatmul.bf16.gmra.mxu0 %v3176
        %v3782 = vpop.f32.mrf.mxu0
        %v3783 = vadd.f32 0.0, %v3782
        %v3784 = vpop.f32.mrf.mxu0
        %v3785 = vadd.f32 0.0, %v3784
        %3786 = vmatmul.bf16.gmra.mxu0 %v3177
        %v3787 = vpop.f32.mrf.mxu0
        %v3788 = vadd.f32 0.0, %v3787
        %v3789 = vpop.f32.mrf.mxu0
        %v3790 = vadd.f32 0.0, %v3789
        %3791 = vmatmul.bf16.gmra.mxu0 %v3178
        %v3792 = vpop.f32.mrf.mxu0
        %v3793 = vadd.f32 0.0, %v3792
        %v3794 = vpop.f32.mrf.mxu0
        %v3795 = vadd.f32 0.0, %v3794
        %3796 = vmatmul.bf16.gmra.mxu0 %v3179
        %v3797 = vpop.f32.mrf.mxu0
        %v3798 = vadd.f32 0.0, %v3797
        %v3799 = vpop.f32.mrf.mxu0
        %v3800 = vadd.f32 0.0, %v3799
        %3801 = vmatmul.bf16.gmra.mxu0 %v3180
        %v3802 = vpop.f32.mrf.mxu0
        %v3803 = vadd.f32 0.0, %v3802
        %v3804 = vpop.f32.mrf.mxu0
        %v3805 = vadd.f32 0.0, %v3804
        %3806 = vmatmul.bf16.gmra.mxu0 %v3181
        %v3807 = vpop.f32.mrf.mxu0
        %v3808 = vadd.f32 0.0, %v3807
        %v3809 = vpop.f32.mrf.mxu0
        %v3810 = vadd.f32 0.0, %v3809
        %3811 = vmatmul.bf16.gmra.mxu0 %v3182
        %v3812 = vpop.f32.mrf.mxu0
        %v3813 = vadd.f32 0.0, %v3812
        %v3814 = vpop.f32.mrf.mxu0
        %v3815 = vadd.f32 0.0, %v3814
        %3816 = vmatmul.bf16.gmra.mxu0 %v3183
        %v3817 = vpop.f32.mrf.mxu0
        %v3818 = vadd.f32 0.0, %v3817
        %v3819 = vpop.f32.mrf.mxu0
        %v3820 = vadd.f32 0.0, %v3819
        %3821 = vmatmul.bf16.gmra.mxu0 %v3184
        %v3822 = vpop.f32.mrf.mxu0
        %v3823 = vadd.f32 0.0, %v3822
        %v3824 = vpop.f32.mrf.mxu0
        %v3825 = vadd.f32 0.0, %v3824
        %3826 = vmatmul.bf16.gmra.mxu0 %v3185
        %v3827 = vpop.f32.mrf.mxu0
        %v3828 = vadd.f32 0.0, %v3827
        %v3829 = vpop.f32.mrf.mxu0
        %v3830 = vadd.f32 0.0, %v3829
        %3831 = vmatmul.bf16.gmra.mxu0 %v3186
        %v3832 = vpop.f32.mrf.mxu0
        %v3833 = vadd.f32 0.0, %v3832
        %v3834 = vpop.f32.mrf.mxu0
        %v3835 = vadd.f32 0.0, %v3834
        %3836 = vmatmul.bf16.gmra.mxu0 %v3187
        %v3837 = vpop.f32.mrf.mxu0
        %v3838 = vadd.f32 0.0, %v3837
        %v3839 = vpop.f32.mrf.mxu0
        %v3840 = vadd.f32 0.0, %v3839
        %3841 = vmatmul.bf16.gmra.mxu0 %v3188
        %v3842 = vpop.f32.mrf.mxu0
        %v3843 = vadd.f32 0.0, %v3842
        %v3844 = vpop.f32.mrf.mxu0
        %v3845 = vadd.f32 0.0, %v3844
        %3846 = vmatmul.bf16.gmra.mxu0 %v3189
        %v3847 = vpop.f32.mrf.mxu0
        %v3848 = vadd.f32 0.0, %v3847
        %v3849 = vpop.f32.mrf.mxu0
        %v3850 = vadd.f32 0.0, %v3849
        %3851 = vmatmul.bf16.gmra.mxu0 %v3190
        %v3852 = vpop.f32.mrf.mxu0
        %v3853 = vadd.f32 0.0, %v3852
        %v3854 = vpop.f32.mrf.mxu0
        %v3855 = vadd.f32 0.0, %v3854
        %3856 = vdwg.mxu0
        %3857 = vmatpush.bf16.msra.mxu0 %v3735
        %3858 = vmatpush.bf16.msra.mxu0 %v3734
        %3859 = vmatpush.bf16.msra.mxu0 %v3733
        %3860 = vmatpush.bf16.msra.mxu0 %v3732
        %3861 = vmatpush.bf16.msra.mxu0 %v3731
        %3862 = vmatpush.bf16.msra.mxu0 %v3730
        %3863 = vmatpush.bf16.msra.mxu0 %v3729
        %3864 = vmatpush.bf16.msra.mxu0 %v3728
        %3865 = vmatmul.bf16.gmra.mxu0 %v3266
        %v3866 = vpop.f32.mrf.mxu0
        %v3867 = vadd.f32 %v3778, %v3866
        %v3868 = vpop.f32.mrf.mxu0
        %v3869 = vadd.f32 %v3780, %v3868
        %3870 = vmatmul.bf16.gmra.mxu0 %v3278
        %v3871 = vpop.f32.mrf.mxu0
        %v3872 = vadd.f32 %v3783, %v3871
        %v3873 = vpop.f32.mrf.mxu0
        %v3874 = vadd.f32 %v3785, %v3873
        %3875 = vmatmul.bf16.gmra.mxu0 %v3290
        %v3876 = vpop.f32.mrf.mxu0
        %v3877 = vadd.f32 %v3788, %v3876
        %v3878 = vpop.f32.mrf.mxu0
        %v3879 = vadd.f32 %v3790, %v3878
        %3880 = vmatmul.bf16.gmra.mxu0 %v3302
        %v3881 = vpop.f32.mrf.mxu0
        %v3882 = vadd.f32 %v3793, %v3881
        %v3883 = vpop.f32.mrf.mxu0
        %v3884 = vadd.f32 %v3795, %v3883
        %3885 = vmatmul.bf16.gmra.mxu0 %v3314
        %v3886 = vpop.f32.mrf.mxu0
        %v3887 = vadd.f32 %v3798, %v3886
        %v3888 = vpop.f32.mrf.mxu0
        %v3889 = vadd.f32 %v3800, %v3888
        %3890 = vmatmul.bf16.gmra.mxu0 %v3326
        %v3891 = vpop.f32.mrf.mxu0
        %v3892 = vadd.f32 %v3803, %v3891
        %v3893 = vpop.f32.mrf.mxu0
        %v3894 = vadd.f32 %v3805, %v3893
        %3895 = vmatmul.bf16.gmra.mxu0 %v3338
        %v3896 = vpop.f32.mrf.mxu0
        %v3897 = vadd.f32 %v3808, %v3896
        %v3898 = vpop.f32.mrf.mxu0
        %v3899 = vadd.f32 %v3810, %v3898
        %3900 = vmatmul.bf16.gmra.mxu0 %v3350
        %v3901 = vpop.f32.mrf.mxu0
        %v3902 = vadd.f32 %v3813, %v3901
        %v3903 = vpop.f32.mrf.mxu0
        %v3904 = vadd.f32 %v3815, %v3903
        %3905 = vmatmul.bf16.gmra.mxu0 %v3362
        %v3906 = vpop.f32.mrf.mxu0
        %v3907 = vadd.f32 %v3818, %v3906
        %v3908 = vpop.f32.mrf.mxu0
        %v3909 = vadd.f32 %v3820, %v3908
        %3910 = vmatmul.bf16.gmra.mxu0 %v3374
        %v3911 = vpop.f32.mrf.mxu0
        %v3912 = vadd.f32 %v3823, %v3911
        %v3913 = vpop.f32.mrf.mxu0
        %v3914 = vadd.f32 %v3825, %v3913
        %3915 = vmatmul.bf16.gmra.mxu0 %v3386
        %v3916 = vpop.f32.mrf.mxu0
        %v3917 = vadd.f32 %v3828, %v3916
        %v3918 = vpop.f32.mrf.mxu0
        %v3919 = vadd.f32 %v3830, %v3918
        %3920 = vmatmul.bf16.gmra.mxu0 %v3398
        %v3921 = vpop.f32.mrf.mxu0
        %v3922 = vadd.f32 %v3833, %v3921
        %v3923 = vpop.f32.mrf.mxu0
        %v3924 = vadd.f32 %v3835, %v3923
        %3925 = vmatmul.bf16.gmra.mxu0 %v3410
        %v3926 = vpop.f32.mrf.mxu0
        %v3927 = vadd.f32 %v3838, %v3926
        %v3928 = vpop.f32.mrf.mxu0
        %v3929 = vadd.f32 %v3840, %v3928
        %3930 = vmatmul.bf16.gmra.mxu0 %v3422
        %v3931 = vpop.f32.mrf.mxu0
        %v3932 = vadd.f32 %v3843, %v3931
        %v3933 = vpop.f32.mrf.mxu0
        %v3934 = vadd.f32 %v3845, %v3933
        %3935 = vmatmul.bf16.gmra.mxu0 %v3434
        %v3936 = vpop.f32.mrf.mxu0
        %v3937 = vadd.f32 %v3848, %v3936
        %v3938 = vpop.f32.mrf.mxu0
        %v3939 = vadd.f32 %v3850, %v3938
        %3940 = vmatmul.bf16.gmra.mxu0 %v3446
        %v3941 = vpop.f32.mrf.mxu0
        %v3942 = vadd.f32 %v3853, %v3941
        %v3943 = vpop.f32.mrf.mxu0
        %v3944 = vadd.f32 %v3855, %v3943
        %3945 = vdwg.mxu0
        %3946 = vmatpush.bf16.msra.mxu0 %v3743
        %3947 = vmatpush.bf16.msra.mxu0 %v3742
        %3948 = vmatpush.bf16.msra.mxu0 %v3741
        %3949 = vmatpush.bf16.msra.mxu0 %v3740
        %3950 = vmatpush.bf16.msra.mxu0 %v3739
        %3951 = vmatpush.bf16.msra.mxu0 %v3738
        %3952 = vmatpush.bf16.msra.mxu0 %v3737
        %3953 = vmatpush.bf16.msra.mxu0 %v3736
        %3954 = vmatmul.bf16.gmra.mxu0 %v3513
        %v3955 = vpop.f32.mrf.mxu0
        %v3956 = vadd.f32 %v3867, %v3955
        %v3957 = vpop.f32.mrf.mxu0
        %v3958 = vadd.f32 %v3869, %v3957
        %3959 = vmatmul.bf16.gmra.mxu0 %v3516
        %v3960 = vpop.f32.mrf.mxu0
        %v3961 = vadd.f32 %v3872, %v3960
        %v3962 = vpop.f32.mrf.mxu0
        %v3963 = vadd.f32 %v3874, %v3962
        %3964 = vmatmul.bf16.gmra.mxu0 %v3519
        %v3965 = vpop.f32.mrf.mxu0
        %v3966 = vadd.f32 %v3877, %v3965
        %v3967 = vpop.f32.mrf.mxu0
        %v3968 = vadd.f32 %v3879, %v3967
        %3969 = vmatmul.bf16.gmra.mxu0 %v3522
        %v3970 = vpop.f32.mrf.mxu0
        %v3971 = vadd.f32 %v3882, %v3970
        %v3972 = vpop.f32.mrf.mxu0
        %v3973 = vadd.f32 %v3884, %v3972
        %3974 = vmatmul.bf16.gmra.mxu0 %v3525
        %v3975 = vpop.f32.mrf.mxu0
        %v3976 = vadd.f32 %v3887, %v3975
        %v3977 = vpop.f32.mrf.mxu0
        %v3978 = vadd.f32 %v3889, %v3977
        %3979 = vmatmul.bf16.gmra.mxu0 %v3528
        %v3980 = vpop.f32.mrf.mxu0
        %v3981 = vadd.f32 %v3892, %v3980
        %v3982 = vpop.f32.mrf.mxu0
        %v3983 = vadd.f32 %v3894, %v3982
        %3984 = vmatmul.bf16.gmra.mxu0 %v3531
        %v3985 = vpop.f32.mrf.mxu0
        %v3986 = vadd.f32 %v3897, %v3985
        %v3987 = vpop.f32.mrf.mxu0
        %v3988 = vadd.f32 %v3899, %v3987
        %3989 = vmatmul.bf16.gmra.mxu0 %v3534
        %v3990 = vpop.f32.mrf.mxu0
        %v3991 = vadd.f32 %v3902, %v3990
        %v3992 = vpop.f32.mrf.mxu0
        %v3993 = vadd.f32 %v3904, %v3992
        %3994 = vmatmul.bf16.gmra.mxu0 %v3537
        %v3995 = vpop.f32.mrf.mxu0
        %v3996 = vadd.f32 %v3907, %v3995
        %v3997 = vpop.f32.mrf.mxu0
        %v3998 = vadd.f32 %v3909, %v3997
        %3999 = vmatmul.bf16.gmra.mxu0 %v3540
        %v4000 = vpop.f32.mrf.mxu0
        %v4001 = vadd.f32 %v3912, %v4000
        %v4002 = vpop.f32.mrf.mxu0
        %v4003 = vadd.f32 %v3914, %v4002
        %4004 = vmatmul.bf16.gmra.mxu0 %v3543
        %v4005 = vpop.f32.mrf.mxu0
        %v4006 = vadd.f32 %v3917, %v4005
        %v4007 = vpop.f32.mrf.mxu0
        %v4008 = vadd.f32 %v3919, %v4007
        %4009 = vmatmul.bf16.gmra.mxu0 %v3546
        %v4010 = vpop.f32.mrf.mxu0
        %v4011 = vadd.f32 %v3922, %v4010
        %v4012 = vpop.f32.mrf.mxu0
        %v4013 = vadd.f32 %v3924, %v4012
        %4014 = vmatmul.bf16.gmra.mxu0 %v3549
        %v4015 = vpop.f32.mrf.mxu0
        %v4016 = vadd.f32 %v3927, %v4015
        %v4017 = vpop.f32.mrf.mxu0
        %v4018 = vadd.f32 %v3929, %v4017
        %4019 = vmatmul.bf16.gmra.mxu0 %v3552
        %v4020 = vpop.f32.mrf.mxu0
        %v4021 = vadd.f32 %v3932, %v4020
        %v4022 = vpop.f32.mrf.mxu0
        %v4023 = vadd.f32 %v3934, %v4022
        %4024 = vmatmul.bf16.gmra.mxu0 %v3555
        %v4025 = vpop.f32.mrf.mxu0
        %v4026 = vadd.f32 %v3937, %v4025
        %v4027 = vpop.f32.mrf.mxu0
        %v4028 = vadd.f32 %v3939, %v4027
        %4029 = vmatmul.bf16.gmra.mxu0 %v3558
        %v4030 = vpop.f32.mrf.mxu0
        %v4031 = vadd.f32 %v3942, %v4030
        %v4032 = vpop.f32.mrf.mxu0
        %v4033 = vadd.f32 %v3944, %v4032
        %4034 = vdwg.mxu0
        %v4035 = vadd.f32 %v2967, %v3956
        %v4036 = vadd.f32 %v2969, %v3958
        %v4037 = vadd.f32 %v2972, %v3961
        %v4038 = vadd.f32 %v2974, %v3963
        %v4039 = vadd.f32 %v2977, %v3966
        %v4040 = vadd.f32 %v2979, %v3968
        %v4041 = vadd.f32 %v2982, %v3971
        %v4042 = vadd.f32 %v2984, %v3973
        %v4043 = vadd.f32 %v2987, %v3976
        %v4044 = vadd.f32 %v2989, %v3978
        %v4045 = vadd.f32 %v2992, %v3981
        %v4046 = vadd.f32 %v2994, %v3983
        %v4047 = vadd.f32 %v2997, %v3986
        %v4048 = vadd.f32 %v2999, %v3988
        %v4049 = vadd.f32 %v3002, %v3991
        %v4050 = vadd.f32 %v3004, %v3993
        %v4051 = vadd.f32 %v3007, %v3996
        %v4052 = vadd.f32 %v3009, %v3998
        %v4053 = vadd.f32 %v3012, %v4001
        %v4054 = vadd.f32 %v3014, %v4003
        %v4055 = vadd.f32 %v3017, %v4006
        %v4056 = vadd.f32 %v3019, %v4008
        %v4057 = vadd.f32 %v3022, %v4011
        %v4058 = vadd.f32 %v3024, %v4013
        %v4059 = vadd.f32 %v3027, %v4016
        %v4060 = vadd.f32 %v3029, %v4018
        %v4061 = vadd.f32 %v3032, %v4021
        %v4062 = vadd.f32 %v3034, %v4023
        %v4063 = vadd.f32 %v3037, %v4026
        %v4064 = vadd.f32 %v3039, %v4028
        %v4065 = vadd.f32 %v3042, %v4031
        %v4066 = vadd.f32 %v3044, %v4033
        %v4067 = vld [vmem:[%s2] sm:$0x1]
        %v4069 = vperm.slane %v4067, 0
        %v4071 = vmul.f32 %v4035, %v4069
        %v4072 = vmul.f32 %v4036, %v4069
        %v4073 = vmul.f32 %v4037, %v4069
        %v4074 = vmul.f32 %v4038, %v4069
        %v4075 = vmul.f32 %v4039, %v4069
        %v4076 = vmul.f32 %v4040, %v4069
        %v4077 = vmul.f32 %v4041, %v4069
        %v4078 = vmul.f32 %v4042, %v4069
        %v4079 = vmul.f32 %v4043, %v4069
        %v4080 = vmul.f32 %v4044, %v4069
        %v4081 = vmul.f32 %v4045, %v4069
        %v4082 = vmul.f32 %v4046, %v4069
        %v4083 = vmul.f32 %v4047, %v4069
        %v4084 = vmul.f32 %v4048, %v4069
        %v4085 = vmul.f32 %v4049, %v4069
        %v4086 = vmul.f32 %v4050, %v4069
        %v4087 = vmul.f32 %v4051, %v4069
        %v4088 = vmul.f32 %v4052, %v4069
        %v4089 = vmul.f32 %v4053, %v4069
        %v4090 = vmul.f32 %v4054, %v4069
        %v4091 = vmul.f32 %v4055, %v4069
        %v4092 = vmul.f32 %v4056, %v4069
        %v4093 = vmul.f32 %v4057, %v4069
        %v4094 = vmul.f32 %v4058, %v4069
        %v4095 = vmul.f32 %v4059, %v4069
        %v4096 = vmul.f32 %v4060, %v4069
        %v4097 = vmul.f32 %v4061, %v4069
        %v4098 = vmul.f32 %v4062, %v4069
        %v4099 = vmul.f32 %v4063, %v4069
        %v4100 = vmul.f32 %v4064, %v4069
        %v4101 = vmul.f32 %v4065, %v4069
        %v4102 = vmul.f32 %v4066, %v4069
        %v4103 = vld [vmem:[%s3] sm:$0x1]
        %v4105 = vperm.slane %v4103, 0
        %v4107 = vadd.f32 %v4071, %v4105
        %v4108 = vadd.f32 %v4072, %v4105
        %v4109 = vadd.f32 %v4073, %v4105
        %v4110 = vadd.f32 %v4074, %v4105
        %v4111 = vadd.f32 %v4075, %v4105
        %v4112 = vadd.f32 %v4076, %v4105
        %v4113 = vadd.f32 %v4077, %v4105
        %v4114 = vadd.f32 %v4078, %v4105
        %v4115 = vadd.f32 %v4079, %v4105
        %v4116 = vadd.f32 %v4080, %v4105
        %v4117 = vadd.f32 %v4081, %v4105
        %v4118 = vadd.f32 %v4082, %v4105
        %v4119 = vadd.f32 %v4083, %v4105
        %v4120 = vadd.f32 %v4084, %v4105
        %v4121 = vadd.f32 %v4085, %v4105
        %v4122 = vadd.f32 %v4086, %v4105
        %v4123 = vadd.f32 %v4087, %v4105
        %v4124 = vadd.f32 %v4088, %v4105
        %v4125 = vadd.f32 %v4089, %v4105
        %v4126 = vadd.f32 %v4090, %v4105
        %v4127 = vadd.f32 %v4091, %v4105
        %v4128 = vadd.f32 %v4092, %v4105
        %v4129 = vadd.f32 %v4093, %v4105
        %v4130 = vadd.f32 %v4094, %v4105
        %v4131 = vadd.f32 %v4095, %v4105
        %v4132 = vadd.f32 %v4096, %v4105
        %v4133 = vadd.f32 %v4097, %v4105
        %v4134 = vadd.f32 %v4098, %v4105
        %v4135 = vadd.f32 %v4099, %v4105
        %v4136 = vadd.f32 %v4100, %v4105
        %v4137 = vadd.f32 %v4101, %v4105
        %v4138 = vadd.f32 %v4102, %v4105
        %v4139 = vmax.f32 %v4107, 0.0
        %v4140 = vmax.f32 %v4108, 0.0
        %v4141 = vmax.f32 %v4109, 0.0
        %v4142 = vmax.f32 %v4110, 0.0
        %v4143 = vmax.f32 %v4111, 0.0
        %v4144 = vmax.f32 %v4112, 0.0
        %v4145 = vmax.f32 %v4113, 0.0
        %v4146 = vmax.f32 %v4114, 0.0
        %v4147 = vmax.f32 %v4115, 0.0
        %v4148 = vmax.f32 %v4116, 0.0
        %v4149 = vmax.f32 %v4117, 0.0
        %v4150 = vmax.f32 %v4118, 0.0
        %v4151 = vmax.f32 %v4119, 0.0
        %v4152 = vmax.f32 %v4120, 0.0
        %v4153 = vmax.f32 %v4121, 0.0
        %v4154 = vmax.f32 %v4122, 0.0
        %v4155 = vmax.f32 %v4123, 0.0
        %v4156 = vmax.f32 %v4124, 0.0
        %v4157 = vmax.f32 %v4125, 0.0
        %v4158 = vmax.f32 %v4126, 0.0
        %v4159 = vmax.f32 %v4127, 0.0
        %v4160 = vmax.f32 %v4128, 0.0
        %v4161 = vmax.f32 %v4129, 0.0
        %v4162 = vmax.f32 %v4130, 0.0
        %v4163 = vmax.f32 %v4131, 0.0
        %v4164 = vmax.f32 %v4132, 0.0
        %v4165 = vmax.f32 %v4133, 0.0
        %v4166 = vmax.f32 %v4134, 0.0
        %v4167 = vmax.f32 %v4135, 0.0
        %v4168 = vmax.f32 %v4136, 0.0
        %v4169 = vmax.f32 %v4137, 0.0
        %v4170 = vmax.f32 %v4138, 0.0
        %v4171 = vpack.c.bf16 %v4139, %v4139
        %v4172 = vpack.c.bf16 %v4140, %v4140
        %v4173 = vpack.c.bf16 %v4141, %v4141
        %v4174 = vpack.c.bf16 %v4142, %v4142
        %v4175 = vpack.c.bf16 %v4143, %v4143
        %v4176 = vpack.c.bf16 %v4144, %v4144
        %v4177 = vpack.c.bf16 %v4145, %v4145
        %v4178 = vpack.c.bf16 %v4146, %v4146
        %v4179 = vpack.c.bf16 %v4147, %v4147
        %v4180 = vpack.c.bf16 %v4148, %v4148
        %v4181 = vpack.c.bf16 %v4149, %v4149
        %v4182 = vpack.c.bf16 %v4150, %v4150
        %v4183 = vpack.c.bf16 %v4151, %v4151
        %v4184 = vpack.c.bf16 %v4152, %v4152
        %v4185 = vpack.c.bf16 %v4153, %v4153
        %v4186 = vpack.c.bf16 %v4154, %v4154
        %v4187 = vpack.c.bf16 %v4155, %v4155
        %v4188 = vpack.c.bf16 %v4156, %v4156
        %v4189 = vpack.c.bf16 %v4157, %v4157
        %v4190 = vpack.c.bf16 %v4158, %v4158
        %v4191 = vpack.c.bf16 %v4159, %v4159
        %v4192 = vpack.c.bf16 %v4160, %v4160
        %v4193 = vpack.c.bf16 %v4161, %v4161
        %v4194 = vpack.c.bf16 %v4162, %v4162
        %v4195 = vpack.c.bf16 %v4163, %v4163
        %v4196 = vpack.c.bf16 %v4164, %v4164
        %v4197 = vpack.c.bf16 %v4165, %v4165
        %v4198 = vpack.c.bf16 %v4166, %v4166
        %v4199 = vpack.c.bf16 %v4167, %v4167
        %v4200 = vpack.c.bf16 %v4168, %v4168
        %v4201 = vpack.c.bf16 %v4169, %v4169
        %v4202 = vpack.c.bf16 %v4170, %v4170
        %v4204 = vshrl.u32 %v4171, 16
        %v4206 = vrot.slane %v4204, 7
        %v4207 = vshll.u32 %v4171, 16
        %v4209 = vor.u32 %v4206, %v4207
        %v4210 = vrot.slane %v4206, 4
        %v4212 = vshrl.u32 %v4172, 16
        %v4214 = vrot.slane %v4212, 7
        %v4215 = vshll.u32 %v4172, 16
        %v4217 = vor.u32 %v4214, %v4215
        %v4218 = vsel %vm633, %v4210, %v4217
        %v4219 = vrot.slane %v4214, 4
        %v4221 = vshrl.u32 %v4173, 16
        %v4223 = vrot.slane %v4221, 7
        %v4224 = vshll.u32 %v4173, 16
        %v4226 = vor.u32 %v4223, %v4224
        %v4227 = vrot.slane %v4223, 4
        %v4229 = vshrl.u32 %v4174, 16
        %v4231 = vrot.slane %v4229, 7
        %v4232 = vshll.u32 %v4174, 16
        %v4234 = vor.u32 %v4231, %v4232
        %v4235 = vsel %vm633, %v4227, %v4234
        %v4236 = vrot.slane %v4231, 4
        %v4238 = vshrl.u32 %v4175, 16
        %v4240 = vrot.slane %v4238, 7
        %v4241 = vshll.u32 %v4175, 16
        %v4243 = vor.u32 %v4240, %v4241
        %v4244 = vrot.slane %v4240, 4
        %v4246 = vshrl.u32 %v4176, 16
        %v4248 = vrot.slane %v4246, 7
        %v4249 = vshll.u32 %v4176, 16
        %v4251 = vor.u32 %v4248, %v4249
        %v4252 = vsel %vm633, %v4244, %v4251
        %v4253 = vrot.slane %v4248, 4
        %v4255 = vshrl.u32 %v4177, 16
        %v4257 = vrot.slane %v4255, 7
        %v4258 = vshll.u32 %v4177, 16
        %v4260 = vor.u32 %v4257, %v4258
        %v4261 = vrot.slane %v4257, 4
        %v4263 = vshrl.u32 %v4178, 16
        %v4265 = vrot.slane %v4263, 7
        %v4266 = vshll.u32 %v4178, 16
        %v4268 = vor.u32 %v4265, %v4266
        %v4269 = vsel %vm633, %v4261, %v4268
        %v4270 = vrot.slane %v4265, 4
        %v4272 = vshrl.u32 %v4179, 16
        %v4274 = vrot.slane %v4272, 7
        %v4275 = vshll.u32 %v4179, 16
        %v4277 = vor.u32 %v4274, %v4275
        %v4278 = vrot.slane %v4274, 4
        %v4280 = vshrl.u32 %v4180, 16
        %v4282 = vrot.slane %v4280, 7
        %v4283 = vshll.u32 %v4180, 16
        %v4285 = vor.u32 %v4282, %v4283
        %v4286 = vsel %vm633, %v4278, %v4285
        %v4287 = vrot.slane %v4282, 4
        %v4289 = vshrl.u32 %v4181, 16
        %v4291 = vrot.slane %v4289, 7
        %v4292 = vshll.u32 %v4181, 16
        %v4294 = vor.u32 %v4291, %v4292
        %v4295 = vrot.slane %v4291, 4
        %v4297 = vshrl.u32 %v4182, 16
        %v4299 = vrot.slane %v4297, 7
        %v4300 = vshll.u32 %v4182, 16
        %v4302 = vor.u32 %v4299, %v4300
        %v4303 = vsel %vm633, %v4295, %v4302
        %v4304 = vrot.slane %v4299, 4
        %v4306 = vshrl.u32 %v4183, 16
        %v4308 = vrot.slane %v4306, 7
        %v4309 = vshll.u32 %v4183, 16
        %v4311 = vor.u32 %v4308, %v4309
        %v4312 = vrot.slane %v4308, 4
        %v4314 = vshrl.u32 %v4184, 16
        %v4316 = vrot.slane %v4314, 7
        %v4317 = vshll.u32 %v4184, 16
        %v4319 = vor.u32 %v4316, %v4317
        %v4320 = vsel %vm633, %v4312, %v4319
        %v4321 = vrot.slane %v4316, 4
        %v4323 = vshrl.u32 %v4185, 16
        %v4325 = vrot.slane %v4323, 7
        %v4326 = vshll.u32 %v4185, 16
        %v4328 = vor.u32 %v4325, %v4326
        %v4329 = vrot.slane %v4325, 4
        %v4331 = vshrl.u32 %v4186, 16
        %v4333 = vrot.slane %v4331, 7
        %v4334 = vshll.u32 %v4186, 16
        %v4336 = vor.u32 %v4333, %v4334
        %v4337 = vsel %vm633, %v4329, %v4336
        %v4338 = vrot.slane %v4333, 4
        %v4340 = vshrl.u32 %v4187, 16
        %v4342 = vrot.slane %v4340, 7
        %v4343 = vshll.u32 %v4187, 16
        %v4345 = vor.u32 %v4342, %v4343
        %v4346 = vrot.slane %v4342, 4
        %v4348 = vshrl.u32 %v4188, 16
        %v4350 = vrot.slane %v4348, 7
        %v4351 = vshll.u32 %v4188, 16
        %v4353 = vor.u32 %v4350, %v4351
        %v4354 = vsel %vm633, %v4346, %v4353
        %v4355 = vrot.slane %v4350, 4
        %v4357 = vshrl.u32 %v4189, 16
        %v4359 = vrot.slane %v4357, 7
        %v4360 = vshll.u32 %v4189, 16
        %v4362 = vor.u32 %v4359, %v4360
        %v4363 = vrot.slane %v4359, 4
        %v4365 = vshrl.u32 %v4190, 16
        %v4367 = vrot.slane %v4365, 7
        %v4368 = vshll.u32 %v4190, 16
        %v4370 = vor.u32 %v4367, %v4368
        %v4371 = vsel %vm633, %v4363, %v4370
        %v4372 = vrot.slane %v4367, 4
        %v4374 = vshrl.u32 %v4191, 16
        %v4376 = vrot.slane %v4374, 7
        %v4377 = vshll.u32 %v4191, 16
        %v4379 = vor.u32 %v4376, %v4377
        %v4380 = vrot.slane %v4376, 4
        %v4382 = vshrl.u32 %v4192, 16
        %v4384 = vrot.slane %v4382, 7
        %v4385 = vshll.u32 %v4192, 16
        %v4387 = vor.u32 %v4384, %v4385
        %v4388 = vsel %vm633, %v4380, %v4387
        %v4389 = vrot.slane %v4384, 4
        %v4391 = vshrl.u32 %v4193, 16
        %v4393 = vrot.slane %v4391, 7
        %v4394 = vshll.u32 %v4193, 16
        %v4396 = vor.u32 %v4393, %v4394
        %v4397 = vrot.slane %v4393, 4
        %v4399 = vshrl.u32 %v4194, 16
        %v4401 = vrot.slane %v4399, 7
        %v4402 = vshll.u32 %v4194, 16
        %v4404 = vor.u32 %v4401, %v4402
        %v4405 = vsel %vm633, %v4397, %v4404
        %v4406 = vrot.slane %v4401, 4
        %v4408 = vshrl.u32 %v4195, 16
        %v4410 = vrot.slane %v4408, 7
        %v4411 = vshll.u32 %v4195, 16
        %v4413 = vor.u32 %v4410, %v4411
        %v4414 = vrot.slane %v4410, 4
        %v4416 = vshrl.u32 %v4196, 16
        %v4418 = vrot.slane %v4416, 7
        %v4419 = vshll.u32 %v4196, 16
        %v4421 = vor.u32 %v4418, %v4419
        %v4422 = vsel %vm633, %v4414, %v4421
        %v4423 = vrot.slane %v4418, 4
        %v4425 = vshrl.u32 %v4197, 16
        %v4427 = vrot.slane %v4425, 7
        %v4428 = vshll.u32 %v4197, 16
        %v4430 = vor.u32 %v4427, %v4428
        %v4431 = vrot.slane %v4427, 4
        %v4433 = vshrl.u32 %v4198, 16
        %v4435 = vrot.slane %v4433, 7
        %v4436 = vshll.u32 %v4198, 16
        %v4438 = vor.u32 %v4435, %v4436
        %v4439 = vsel %vm633, %v4431, %v4438
        %v4440 = vrot.slane %v4435, 4
        %v4442 = vshrl.u32 %v4199, 16
        %v4444 = vrot.slane %v4442, 7
        %v4445 = vshll.u32 %v4199, 16
        %v4447 = vor.u32 %v4444, %v4445
        %v4448 = vrot.slane %v4444, 4
        %v4450 = vshrl.u32 %v4200, 16
        %v4452 = vrot.slane %v4450, 7
        %v4453 = vshll.u32 %v4200, 16
        %v4455 = vor.u32 %v4452, %v4453
        %v4456 = vsel %vm633, %v4448, %v4455
        %v4457 = vrot.slane %v4452, 4
        %v4459 = vshrl.u32 %v4201, 16
        %v4461 = vrot.slane %v4459, 7
        %v4462 = vshll.u32 %v4201, 16
        %v4464 = vor.u32 %v4461, %v4462
        %v4465 = vrot.slane %v4461, 4
        %v4467 = vshrl.u32 %v4202, 16
        %v4469 = vrot.slane %v4467, 7
        %v4470 = vshll.u32 %v4202, 16
        %v4472 = vor.u32 %v4469, %v4470
        %v4473 = vsel %vm633, %v4465, %v4472
        %v4474 = vrot.slane %v4469, 4
        %s4523 = scalar_lea.vmem [#allocation3], 12
        %v4524 = vld [vmem:[%s4523] sm:$0xf]
        %v4525 = vsel %vm956, %v4209, %v4524
        %4526 = vst [vmem:[%s4523] sm:$0xf] %v4525
        %4527 = vst [vmem:[%s4523 + $0x4] sm:$0xf] %v4218
        %v4528 = vld [vmem:[%s4523 + $0x8] sm:$0x1]
        %v4529 = vsel %vm342, %v4219, %v4528
        %4530 = vst [vmem:[%s4523 + $0x8] sm:$0x1] %v4529
        %v4531 = vld [vmem:[%s4523 + $0xc] sm:$0xf]
        %v4532 = vsel %vm956, %v4226, %v4531
        %4533 = vst [vmem:[%s4523 + $0xc] sm:$0xf] %v4532
        %4534 = vst [vmem:[%s4523 + $0x10] sm:$0xf] %v4235
        %v4535 = vld [vmem:[%s4523 + $0x14] sm:$0x1]
        %v4536 = vsel %vm342, %v4236, %v4535
        %4537 = vst [vmem:[%s4523 + $0x14] sm:$0x1] %v4536
        %v4538 = vld [vmem:[%s4523 + $0x18] sm:$0xf]
        %v4539 = vsel %vm956, %v4243, %v4538
        %4540 = vst [vmem:[%s4523 + $0x18] sm:$0xf] %v4539
        %4541 = vst [vmem:[%s4523 + $0x1c] sm:$0xf] %v4252
        %v4542 = vld [vmem:[%s4523 + $0x20] sm:$0x1]
        %v4543 = vsel %vm342, %v4253, %v4542
        %4544 = vst [vmem:[%s4523 + $0x20] sm:$0x1] %v4543
        %v4545 = vld [vmem:[%s4523 + $0x24] sm:$0xf]
        %v4546 = vsel %vm956, %v4260, %v4545
        %4547 = vst [vmem:[%s4523 + $0x24] sm:$0xf] %v4546
        %4548 = vst [vmem:[%s4523 + $0x28] sm:$0xf] %v4269
        %v4549 = vld [vmem:[%s4523 + $0x2c] sm:$0x1]
        %v4550 = vsel %vm342, %v4270, %v4549
        %4551 = vst [vmem:[%s4523 + $0x2c] sm:$0x1] %v4550
        %v4552 = vld [vmem:[%s4523 + $0x30] sm:$0xf]
        %v4553 = vsel %vm956, %v4277, %v4552
        %4554 = vst [vmem:[%s4523 + $0x30] sm:$0xf] %v4553
        %4555 = vst [vmem:[%s4523 + $0x34] sm:$0xf] %v4286
        %v4556 = vld [vmem:[%s4523 + $0x38] sm:$0x1]
        %v4557 = vsel %vm342, %v4287, %v4556
        %4558 = vst [vmem:[%s4523 + $0x38] sm:$0x1] %v4557
        %v4559 = vld [vmem:[%s4523 + $0x3c] sm:$0xf]
        %v4560 = vsel %vm956, %v4294, %v4559
        %4561 = vst [vmem:[%s4523 + $0x3c] sm:$0xf] %v4560
        %4562 = vst [vmem:[%s4523 + $0x40] sm:$0xf] %v4303
        %v4563 = vld [vmem:[%s4523 + $0x44] sm:$0x1]
        %v4564 = vsel %vm342, %v4304, %v4563
        %4565 = vst [vmem:[%s4523 + $0x44] sm:$0x1] %v4564
        %v4566 = vld [vmem:[%s4523 + $0x48] sm:$0xf]
        %v4567 = vsel %vm956, %v4311, %v4566
        %4568 = vst [vmem:[%s4523 + $0x48] sm:$0xf] %v4567
        %4569 = vst [vmem:[%s4523 + $0x4c] sm:$0xf] %v4320
        %v4570 = vld [vmem:[%s4523 + $0x50] sm:$0x1]
        %v4571 = vsel %vm342, %v4321, %v4570
        %4572 = vst [vmem:[%s4523 + $0x50] sm:$0x1] %v4571
        %v4573 = vld [vmem:[%s4523 + $0x54] sm:$0xf]
        %v4574 = vsel %vm956, %v4328, %v4573
        %4575 = vst [vmem:[%s4523 + $0x54] sm:$0xf] %v4574
        %4576 = vst [vmem:[%s4523 + $0x58] sm:$0xf] %v4337
        %v4577 = vld [vmem:[%s4523 + $0x5c] sm:$0x1]
        %v4578 = vsel %vm342, %v4338, %v4577
        %4579 = vst [vmem:[%s4523 + $0x5c] sm:$0x1] %v4578
        %v4580 = vld [vmem:[%s4523 + $0x60] sm:$0xf]
        %v4581 = vsel %vm956, %v4345, %v4580
        %4582 = vst [vmem:[%s4523 + $0x60] sm:$0xf] %v4581
        %4583 = vst [vmem:[%s4523 + $0x64] sm:$0xf] %v4354
        %v4584 = vld [vmem:[%s4523 + $0x68] sm:$0x1]
        %v4585 = vsel %vm342, %v4355, %v4584
        %4586 = vst [vmem:[%s4523 + $0x68] sm:$0x1] %v4585
        %v4587 = vld [vmem:[%s4523 + $0x6c] sm:$0xf]
        %v4588 = vsel %vm956, %v4362, %v4587
        %4589 = vst [vmem:[%s4523 + $0x6c] sm:$0xf] %v4588
        %4590 = vst [vmem:[%s4523 + $0x70] sm:$0xf] %v4371
        %v4591 = vld [vmem:[%s4523 + $0x74] sm:$0x1]
        %v4592 = vsel %vm342, %v4372, %v4591
        %4593 = vst [vmem:[%s4523 + $0x74] sm:$0x1] %v4592
        %v4594 = vld [vmem:[%s4523 + $0x78] sm:$0xf]
        %v4595 = vsel %vm956, %v4379, %v4594
        %4596 = vst [vmem:[%s4523 + $0x78] sm:$0xf] %v4595
        %4597 = vst [vmem:[%s4523 + $0x7c] sm:$0xf] %v4388
        %v4598 = vld [vmem:[%s4523 + $0x80] sm:$0x1]
        %v4599 = vsel %vm342, %v4389, %v4598
        %4600 = vst [vmem:[%s4523 + $0x80] sm:$0x1] %v4599
        %v4601 = vld [vmem:[%s4523 + $0x84] sm:$0xf]
        %v4602 = vsel %vm956, %v4396, %v4601
        %4603 = vst [vmem:[%s4523 + $0x84] sm:$0xf] %v4602
        %4604 = vst [vmem:[%s4523 + $0x88] sm:$0xf] %v4405
        %v4605 = vld [vmem:[%s4523 + $0x8c] sm:$0x1]
        %v4606 = vsel %vm342, %v4406, %v4605
        %4607 = vst [vmem:[%s4523 + $0x8c] sm:$0x1] %v4606
        %v4608 = vld [vmem:[%s4523 + $0x90] sm:$0xf]
        %v4609 = vsel %vm956, %v4413, %v4608
        %4610 = vst [vmem:[%s4523 + $0x90] sm:$0xf] %v4609
        %4611 = vst [vmem:[%s4523 + $0x94] sm:$0xf] %v4422
        %v4612 = vld [vmem:[%s4523 + $0x98] sm:$0x1]
        %v4613 = vsel %vm342, %v4423, %v4612
        %4614 = vst [vmem:[%s4523 + $0x98] sm:$0x1] %v4613
        %v4615 = vld [vmem:[%s4523 + $0x9c] sm:$0xf]
        %v4616 = vsel %vm956, %v4430, %v4615
        %4617 = vst [vmem:[%s4523 + $0x9c] sm:$0xf] %v4616
        %4618 = vst [vmem:[%s4523 + $0xa0] sm:$0xf] %v4439
        %v4619 = vld [vmem:[%s4523 + $0xa4] sm:$0x1]
        %v4620 = vsel %vm342, %v4440, %v4619
        %4621 = vst [vmem:[%s4523 + $0xa4] sm:$0x1] %v4620
        %v4622 = vld [vmem:[%s4523 + $0xa8] sm:$0xf]
        %v4623 = vsel %vm956, %v4447, %v4622
        %4624 = vst [vmem:[%s4523 + $0xa8] sm:$0xf] %v4623
        %4625 = vst [vmem:[%s4523 + $0xac] sm:$0xf] %v4456
        %v4626 = vld [vmem:[%s4523 + $0xb0] sm:$0x1]
        %v4627 = vsel %vm342, %v4457, %v4626
        %4628 = vst [vmem:[%s4523 + $0xb0] sm:$0x1] %v4627
        %v4629 = vld [vmem:[%s4523 + $0xb4] sm:$0xf]
        %v4630 = vsel %vm956, %v4464, %v4629
        %4631 = vst [vmem:[%s4523 + $0xb4] sm:$0xf] %v4630
        %4632 = vst [vmem:[%s4523 + $0xb8] sm:$0xf] %v4473
        %v4633 = vld [vmem:[%s4523 + $0xbc] sm:$0x1]
        %v4634 = vsel %vm342, %v4474, %v4633
        %4635 = vst [vmem:[%s4523 + $0xbc] sm:$0x1] %v4634
        %v4636 = vld [vmem:[#allocation3] sm:$0xf]
        %v4637 = vld [vmem:[#allocation3 + $0x4] sm:$0xf]
        %v4638 = vld [vmem:[#allocation3 + $0xc] sm:$0xf]
        %v4639 = vld [vmem:[#allocation3 + $0x10] sm:$0xf]
        %v4640 = vld [vmem:[#allocation3 + $0x18] sm:$0xf]
        %v4641 = vld [vmem:[#allocation3 + $0x1c] sm:$0xf]
        %v4642 = vld [vmem:[#allocation3 + $0x24] sm:$0xf]
        %v4643 = vld [vmem:[#allocation3 + $0x28] sm:$0xf]
        %v4644 = vld [vmem:[#allocation3 + $0x30] sm:$0xf]
        %v4645 = vld [vmem:[#allocation3 + $0x34] sm:$0xf]
        %v4646 = vld [vmem:[#allocation3 + $0x3c] sm:$0xf]
        %v4647 = vld [vmem:[#allocation3 + $0x40] sm:$0xf]
        %v4648 = vld [vmem:[#allocation3 + $0x48] sm:$0xf]
        %v4649 = vld [vmem:[#allocation3 + $0x4c] sm:$0xf]
        %v4650 = vld [vmem:[#allocation3 + $0x54] sm:$0xf]
        %v4651 = vld [vmem:[#allocation3 + $0x58] sm:$0xf]
        %v4652 = vld [vmem:[#allocation3 + $0x60] sm:$0xf]
        %v4653 = vld [vmem:[#allocation3 + $0x64] sm:$0xf]
        %v4654 = vld [vmem:[#allocation3 + $0x6c] sm:$0xf]
        %v4655 = vld [vmem:[#allocation3 + $0x70] sm:$0xf]
        %v4656 = vld [vmem:[#allocation3 + $0x78] sm:$0xf]
        %v4657 = vld [vmem:[#allocation3 + $0x7c] sm:$0xf]
        %v4658 = vld [vmem:[#allocation3 + $0x84] sm:$0xf]
        %v4659 = vld [vmem:[#allocation3 + $0x88] sm:$0xf]
        %v4660 = vld [vmem:[#allocation3 + $0x90] sm:$0xf]
        %v4661 = vld [vmem:[#allocation3 + $0x94] sm:$0xf]
        %v4662 = vld [vmem:[#allocation3 + $0x9c] sm:$0xf]
        %v4663 = vld [vmem:[#allocation3 + $0xa0] sm:$0xf]
        %v4664 = vld [vmem:[#allocation3 + $0xa8] sm:$0xf]
        %v4665 = vld [vmem:[#allocation3 + $0xac] sm:$0xf]
        %v4666 = vld [vmem:[#allocation3 + $0xb4] sm:$0xf]
        %v4667 = vld [vmem:[#allocation3 + $0xb8] sm:$0xf]
        %v4668 = vld [vmem:[#allocation3 + $0x8] sm:$0x1]
        %v4669 = vld [vmem:[#allocation3 + $0x14] sm:$0x1]
        %v4670 = vld [vmem:[#allocation3 + $0x20] sm:$0x1]
        %v4671 = vld [vmem:[#allocation3 + $0x2c] sm:$0x1]
        %v4672 = vld [vmem:[#allocation3 + $0x38] sm:$0x1]
        %v4673 = vld [vmem:[#allocation3 + $0x44] sm:$0x1]
        %v4674 = vld [vmem:[#allocation3 + $0x50] sm:$0x1]
        %v4675 = vld [vmem:[#allocation3 + $0x5c] sm:$0x1]
        %v4676 = vld [vmem:[#allocation3 + $0x68] sm:$0x1]
        %v4677 = vld [vmem:[#allocation3 + $0x74] sm:$0x1]
        %v4678 = vld [vmem:[#allocation3 + $0x80] sm:$0x1]
        %v4679 = vld [vmem:[#allocation3 + $0x8c] sm:$0x1]
        %v4680 = vld [vmem:[#allocation3 + $0x98] sm:$0x1]
        %v4681 = vld [vmem:[#allocation3 + $0xa4] sm:$0x1]
        %v4682 = vld [vmem:[#allocation3 + $0xb0] sm:$0x1]
        %v4683 = vld [vmem:[#allocation3 + $0xbc] sm:$0x1]
        %v4684 = vld [vmem:[#allocation3] sm:$0xe]
        %v4685 = vld [vmem:[#allocation3 + $0xc] sm:$0xe]
        %v4686 = vld [vmem:[#allocation3 + $0x18] sm:$0xe]
        %v4687 = vld [vmem:[#allocation3 + $0x24] sm:$0xe]
        %v4688 = vld [vmem:[#allocation3 + $0x30] sm:$0xe]
        %v4689 = vld [vmem:[#allocation3 + $0x3c] sm:$0xe]
        %v4690 = vld [vmem:[#allocation3 + $0x48] sm:$0xe]
        %v4691 = vld [vmem:[#allocation3 + $0x54] sm:$0xe]
        %v4692 = vld [vmem:[#allocation3 + $0x60] sm:$0xe]
        %v4693 = vld [vmem:[#allocation3 + $0x6c] sm:$0xe]
        %v4694 = vld [vmem:[#allocation3 + $0x78] sm:$0xe]
        %v4695 = vld [vmem:[#allocation3 + $0x84] sm:$0xe]
        %v4696 = vld [vmem:[#allocation3 + $0x90] sm:$0xe]
        %v4697 = vld [vmem:[#allocation3 + $0x9c] sm:$0xe]
        %v4698 = vld [vmem:[#allocation3 + $0xa8] sm:$0xe]
        %v4699 = vld [vmem:[#allocation3 + $0xb4] sm:$0xe]
        %v4732 = vunpack.c.l.b16 %v4636
        %v4733 = vunpack.c.l.b16 %v4637
        %v4734 = vunpack.c.l.b16 %v4638
        %v4735 = vunpack.c.l.b16 %v4639
        %v4736 = vunpack.c.l.b16 %v4640
        %v4737 = vunpack.c.l.b16 %v4641
        %v4738 = vunpack.c.l.b16 %v4642
        %v4739 = vunpack.c.l.b16 %v4643
        %v4740 = vunpack.c.l.b16 %v4644
        %v4741 = vunpack.c.l.b16 %v4645
        %v4742 = vunpack.c.l.b16 %v4646
        %v4743 = vunpack.c.l.b16 %v4647
        %v4744 = vunpack.c.l.b16 %v4648
        %v4745 = vunpack.c.l.b16 %v4649
        %v4746 = vunpack.c.l.b16 %v4650
        %v4747 = vunpack.c.l.b16 %v4651
        %v4748 = vunpack.c.l.b16 %v4652
        %v4749 = vunpack.c.l.b16 %v4653
        %v4750 = vunpack.c.l.b16 %v4654
        %v4751 = vunpack.c.l.b16 %v4655
        %v4752 = vunpack.c.l.b16 %v4656
        %v4753 = vunpack.c.l.b16 %v4657
        %v4754 = vunpack.c.l.b16 %v4658
        %v4755 = vunpack.c.l.b16 %v4659
        %v4756 = vunpack.c.l.b16 %v4660
        %v4757 = vunpack.c.l.b16 %v4661
        %v4758 = vunpack.c.l.b16 %v4662
        %v4759 = vunpack.c.l.b16 %v4663
        %v4760 = vunpack.c.l.b16 %v4664
        %v4761 = vunpack.c.l.b16 %v4665
        %v4762 = vunpack.c.l.b16 %v4666
        %v4763 = vunpack.c.l.b16 %v4667
        %v4764 = vpack.c.b16 %v4733, %v4732
        %v4765 = vpack.c.b16 %v4735, %v4734
        %v4766 = vpack.c.b16 %v4737, %v4736
        %v4767 = vpack.c.b16 %v4739, %v4738
        %v4768 = vpack.c.b16 %v4741, %v4740
        %v4769 = vpack.c.b16 %v4743, %v4742
        %v4770 = vpack.c.b16 %v4745, %v4744
        %v4771 = vpack.c.b16 %v4747, %v4746
        %v4772 = vpack.c.b16 %v4749, %v4748
        %v4773 = vpack.c.b16 %v4751, %v4750
        %v4774 = vpack.c.b16 %v4753, %v4752
        %v4775 = vpack.c.b16 %v4755, %v4754
        %v4776 = vpack.c.b16 %v4757, %v4756
        %v4777 = vpack.c.b16 %v4759, %v4758
        %v4778 = vpack.c.b16 %v4761, %v4760
        %v4779 = vpack.c.b16 %v4763, %v4762
        %v4812 = vunpack.c.l.b16 %v4668
        %v4813 = vunpack.c.l.b16 %v4669
        %v4814 = vunpack.c.l.b16 %v4670
        %v4815 = vunpack.c.l.b16 %v4671
        %v4816 = vunpack.c.l.b16 %v4672
        %v4817 = vunpack.c.l.b16 %v4673
        %v4818 = vunpack.c.l.b16 %v4674
        %v4819 = vunpack.c.l.b16 %v4675
        %v4820 = vunpack.c.l.b16 %v4676
        %v4821 = vunpack.c.l.b16 %v4677
        %v4822 = vunpack.c.l.b16 %v4678
        %v4823 = vunpack.c.l.b16 %v4679
        %v4824 = vunpack.c.l.b16 %v4680
        %v4825 = vunpack.c.l.b16 %v4681
        %v4826 = vunpack.c.l.b16 %v4682
        %v4827 = vunpack.c.l.b16 %v4683
        %v4828 = vpack.c.b16 %v4812, %v4812
        %v4829 = vpack.c.b16 %v4813, %v4813
        %v4830 = vpack.c.b16 %v4814, %v4814
        %v4831 = vpack.c.b16 %v4815, %v4815
        %v4832 = vpack.c.b16 %v4816, %v4816
        %v4833 = vpack.c.b16 %v4817, %v4817
        %v4834 = vpack.c.b16 %v4818, %v4818
        %v4835 = vpack.c.b16 %v4819, %v4819
        %v4836 = vpack.c.b16 %v4820, %v4820
        %v4837 = vpack.c.b16 %v4821, %v4821
        %v4838 = vpack.c.b16 %v4822, %v4822
        %v4839 = vpack.c.b16 %v4823, %v4823
        %v4840 = vpack.c.b16 %v4824, %v4824
        %v4841 = vpack.c.b16 %v4825, %v4825
        %v4842 = vpack.c.b16 %v4826, %v4826
        %v4843 = vpack.c.b16 %v4827, %v4827
        %v4845 = vshrl.u32 %v4764, 16
        %v4847 = vshll.u32 %v4764, 16
        %v4849 = vrot.slane %v4847, 1
        %v4850 = vor.u32 %v4845, %v4849
        %v4852 = vshll.u32 %v4828, 16
        %v4854 = vrot.slane %v4852, 1
        %v4855 = vsel %vm1277, %v4850, %v4854
        %v4857 = vshrl.u32 %v4765, 16
        %v4859 = vshll.u32 %v4765, 16
        %v4861 = vrot.slane %v4859, 1
        %v4862 = vor.u32 %v4857, %v4861
        %v4864 = vshll.u32 %v4829, 16
        %v4866 = vrot.slane %v4864, 1
        %v4867 = vsel %vm1277, %v4862, %v4866
        %v4869 = vshrl.u32 %v4766, 16
        %v4871 = vshll.u32 %v4766, 16
        %v4873 = vrot.slane %v4871, 1
        %v4874 = vor.u32 %v4869, %v4873
        %v4876 = vshll.u32 %v4830, 16
        %v4878 = vrot.slane %v4876, 1
        %v4879 = vsel %vm1277, %v4874, %v4878
        %v4881 = vshrl.u32 %v4767, 16
        %v4883 = vshll.u32 %v4767, 16
        %v4885 = vrot.slane %v4883, 1
        %v4886 = vor.u32 %v4881, %v4885
        %v4888 = vshll.u32 %v4831, 16
        %v4890 = vrot.slane %v4888, 1
        %v4891 = vsel %vm1277, %v4886, %v4890
        %v4893 = vshrl.u32 %v4768, 16
        %v4895 = vshll.u32 %v4768, 16
        %v4897 = vrot.slane %v4895, 1
        %v4898 = vor.u32 %v4893, %v4897
        %v4900 = vshll.u32 %v4832, 16
        %v4902 = vrot.slane %v4900, 1
        %v4903 = vsel %vm1277, %v4898, %v4902
        %v4905 = vshrl.u32 %v4769, 16
        %v4907 = vshll.u32 %v4769, 16
        %v4909 = vrot.slane %v4907, 1
        %v4910 = vor.u32 %v4905, %v4909
        %v4912 = vshll.u32 %v4833, 16
        %v4914 = vrot.slane %v4912, 1
        %v4915 = vsel %vm1277, %v4910, %v4914
        %v4917 = vshrl.u32 %v4770, 16
        %v4919 = vshll.u32 %v4770, 16
        %v4921 = vrot.slane %v4919, 1
        %v4922 = vor.u32 %v4917, %v4921
        %v4924 = vshll.u32 %v4834, 16
        %v4926 = vrot.slane %v4924, 1
        %v4927 = vsel %vm1277, %v4922, %v4926
        %v4929 = vshrl.u32 %v4771, 16
        %v4931 = vshll.u32 %v4771, 16
        %v4933 = vrot.slane %v4931, 1
        %v4934 = vor.u32 %v4929, %v4933
        %v4936 = vshll.u32 %v4835, 16
        %v4938 = vrot.slane %v4936, 1
        %v4939 = vsel %vm1277, %v4934, %v4938
        %v4941 = vshrl.u32 %v4772, 16
        %v4943 = vshll.u32 %v4772, 16
        %v4945 = vrot.slane %v4943, 1
        %v4946 = vor.u32 %v4941, %v4945
        %v4948 = vshll.u32 %v4836, 16
        %v4950 = vrot.slane %v4948, 1
        %v4951 = vsel %vm1277, %v4946, %v4950
        %v4953 = vshrl.u32 %v4773, 16
        %v4955 = vshll.u32 %v4773, 16
        %v4957 = vrot.slane %v4955, 1
        %v4958 = vor.u32 %v4953, %v4957
        %v4960 = vshll.u32 %v4837, 16
        %v4962 = vrot.slane %v4960, 1
        %v4963 = vsel %vm1277, %v4958, %v4962
        %v4965 = vshrl.u32 %v4774, 16
        %v4967 = vshll.u32 %v4774, 16
        %v4969 = vrot.slane %v4967, 1
        %v4970 = vor.u32 %v4965, %v4969
        %v4972 = vshll.u32 %v4838, 16
        %v4974 = vrot.slane %v4972, 1
        %v4975 = vsel %vm1277, %v4970, %v4974
        %v4977 = vshrl.u32 %v4775, 16
        %v4979 = vshll.u32 %v4775, 16
        %v4981 = vrot.slane %v4979, 1
        %v4982 = vor.u32 %v4977, %v4981
        %v4984 = vshll.u32 %v4839, 16
        %v4986 = vrot.slane %v4984, 1
        %v4987 = vsel %vm1277, %v4982, %v4986
        %v4989 = vshrl.u32 %v4776, 16
        %v4991 = vshll.u32 %v4776, 16
        %v4993 = vrot.slane %v4991, 1
        %v4994 = vor.u32 %v4989, %v4993
        %v4996 = vshll.u32 %v4840, 16
        %v4998 = vrot.slane %v4996, 1
        %v4999 = vsel %vm1277, %v4994, %v4998
        %v5001 = vshrl.u32 %v4777, 16
        %v5003 = vshll.u32 %v4777, 16
        %v5005 = vrot.slane %v5003, 1
        %v5006 = vor.u32 %v5001, %v5005
        %v5008 = vshll.u32 %v4841, 16
        %v5010 = vrot.slane %v5008, 1
        %v5011 = vsel %vm1277, %v5006, %v5010
        %v5013 = vshrl.u32 %v4778, 16
        %v5015 = vshll.u32 %v4778, 16
        %v5017 = vrot.slane %v5015, 1
        %v5018 = vor.u32 %v5013, %v5017
        %v5020 = vshll.u32 %v4842, 16
        %v5022 = vrot.slane %v5020, 1
        %v5023 = vsel %vm1277, %v5018, %v5022
        %v5025 = vshrl.u32 %v4779, 16
        %v5027 = vshll.u32 %v4779, 16
        %v5029 = vrot.slane %v5027, 1
        %v5030 = vor.u32 %v5025, %v5029
        %v5032 = vshll.u32 %v4843, 16
        %v5034 = vrot.slane %v5032, 1
        %v5035 = vsel %vm1277, %v5030, %v5034
        %v5068 = vunpack.c.l.b16 %v4684
        %v5069 = vunpack.c.l.b16 %v4685
        %v5070 = vunpack.c.l.b16 %v4686
        %v5071 = vunpack.c.l.b16 %v4687
        %v5072 = vunpack.c.l.b16 %v4688
        %v5073 = vunpack.c.l.b16 %v4689
        %v5074 = vunpack.c.l.b16 %v4690
        %v5075 = vunpack.c.l.b16 %v4691
        %v5076 = vunpack.c.l.b16 %v4692
        %v5077 = vunpack.c.l.b16 %v4693
        %v5078 = vunpack.c.l.b16 %v4694
        %v5079 = vunpack.c.l.b16 %v4695
        %v5080 = vunpack.c.l.b16 %v4696
        %v5081 = vunpack.c.l.b16 %v4697
        %v5082 = vunpack.c.l.b16 %v4698
        %v5083 = vunpack.c.l.b16 %v4699
        %v5084 = vpack.c.b16 %v4733, %v5068
        %v5085 = vpack.c.b16 %v4735, %v5069
        %v5086 = vpack.c.b16 %v4737, %v5070
        %v5087 = vpack.c.b16 %v4739, %v5071
        %v5088 = vpack.c.b16 %v4741, %v5072
        %v5089 = vpack.c.b16 %v4743, %v5073
        %v5090 = vpack.c.b16 %v4745, %v5074
        %v5091 = vpack.c.b16 %v4747, %v5075
        %v5092 = vpack.c.b16 %v4749, %v5076
        %v5093 = vpack.c.b16 %v4751, %v5077
        %v5094 = vpack.c.b16 %v4753, %v5078
        %v5095 = vpack.c.b16 %v4755, %v5079
        %v5096 = vpack.c.b16 %v4757, %v5080
        %v5097 = vpack.c.b16 %v4759, %v5081
        %v5098 = vpack.c.b16 %v4761, %v5082
        %v5099 = vpack.c.b16 %v4763, %v5083
        %v5100 = vrot.slane %v5084, 1
        %v5101 = vrot.slane %v4828, 1
        %v5102 = vsel %vm1534, %v5100, %v5101
        %v5103 = vrot.slane %v5085, 1
        %v5104 = vrot.slane %v4829, 1
        %v5105 = vsel %vm1534, %v5103, %v5104
        %v5106 = vrot.slane %v5086, 1
        %v5107 = vrot.slane %v4830, 1
        %v5108 = vsel %vm1534, %v5106, %v5107
        %v5109 = vrot.slane %v5087, 1
        %v5110 = vrot.slane %v4831, 1
        %v5111 = vsel %vm1534, %v5109, %v5110
        %v5112 = vrot.slane %v5088, 1
        %v5113 = vrot.slane %v4832, 1
        %v5114 = vsel %vm1534, %v5112, %v5113
        %v5115 = vrot.slane %v5089, 1
        %v5116 = vrot.slane %v4833, 1
        %v5117 = vsel %vm1534, %v5115, %v5116
        %v5118 = vrot.slane %v5090, 1
        %v5119 = vrot.slane %v4834, 1
        %v5120 = vsel %vm1534, %v5118, %v5119
        %v5121 = vrot.slane %v5091, 1
        %v5122 = vrot.slane %v4835, 1
        %v5123 = vsel %vm1534, %v5121, %v5122
        %v5124 = vrot.slane %v5092, 1
        %v5125 = vrot.slane %v4836, 1
        %v5126 = vsel %vm1534, %v5124, %v5125
        %v5127 = vrot.slane %v5093, 1
        %v5128 = vrot.slane %v4837, 1
        %v5129 = vsel %vm1534, %v5127, %v5128
        %v5130 = vrot.slane %v5094, 1
        %v5131 = vrot.slane %v4838, 1
        %v5132 = vsel %vm1534, %v5130, %v5131
        %v5133 = vrot.slane %v5095, 1
        %v5134 = vrot.slane %v4839, 1
        %v5135 = vsel %vm1534, %v5133, %v5134
        %v5136 = vrot.slane %v5096, 1
        %v5137 = vrot.slane %v4840, 1
        %v5138 = vsel %vm1534, %v5136, %v5137
        %v5139 = vrot.slane %v5097, 1
        %v5140 = vrot.slane %v4841, 1
        %v5141 = vsel %vm1534, %v5139, %v5140
        %v5142 = vrot.slane %v5098, 1
        %v5143 = vrot.slane %v4842, 1
        %v5144 = vsel %vm1534, %v5142, %v5143
        %v5145 = vrot.slane %v5099, 1
        %v5146 = vrot.slane %v4843, 1
        %v5147 = vsel %vm1534, %v5145, %v5146
        %v5164 = vld [vmem:[#allocation9] sm:$0xf]
        %v5165 = vld [vmem:[#allocation9 + $0x4] sm:$0xf]
        %v5166 = vld [vmem:[#allocation9 + $0x8] sm:$0xf]
        %v5167 = vld [vmem:[#allocation9 + $0xc] sm:$0xf]
        %v5168 = vld [vmem:[#allocation9 + $0x10] sm:$0xf]
        %v5169 = vld [vmem:[#allocation9 + $0x14] sm:$0xf]
        %v5170 = vld [vmem:[#allocation9 + $0x18] sm:$0xf]
        %v5171 = vld [vmem:[#allocation9 + $0x1c] sm:$0xf]
        %v5172 = vld [vmem:[#allocation9 + $0x20] sm:$0xf]
        %v5173 = vld [vmem:[#allocation9 + $0x24] sm:$0xf]
        %v5174 = vld [vmem:[#allocation9 + $0x28] sm:$0xf]
        %v5175 = vld [vmem:[#allocation9 + $0x2c] sm:$0xf]
        %v5176 = vld [vmem:[#allocation9 + $0x30] sm:$0xf]
        %v5177 = vld [vmem:[#allocation9 + $0x34] sm:$0xf]
        %v5178 = vld [vmem:[#allocation9 + $0x38] sm:$0xf]
        %v5179 = vld [vmem:[#allocation9 + $0x3c] sm:$0xf]
        %v5180 = vld [vmem:[#allocation9 + $0x40] sm:$0xf]
        %v5181 = vld [vmem:[#allocation9 + $0x44] sm:$0xf]
        %v5182 = vld [vmem:[#allocation9 + $0x48] sm:$0xf]
        %v5183 = vld [vmem:[#allocation9 + $0x4c] sm:$0xf]
        %v5184 = vld [vmem:[#allocation9 + $0x50] sm:$0xf]
        %v5185 = vld [vmem:[#allocation9 + $0x54] sm:$0xf]
        %v5186 = vld [vmem:[#allocation9 + $0x58] sm:$0xf]
        %v5187 = vld [vmem:[#allocation9 + $0x5c] sm:$0xf]
        %v5188 = vld [vmem:[#allocation9 + $0x60] sm:$0xf]
        %v5189 = vld [vmem:[#allocation9 + $0x64] sm:$0xf]
        %v5190 = vld [vmem:[#allocation9 + $0x68] sm:$0xf]
        %v5191 = vld [vmem:[#allocation9 + $0x6c] sm:$0xf]
        %v5192 = vld [vmem:[#allocation9 + $0x70] sm:$0xf]
        %v5193 = vld [vmem:[#allocation9 + $0x74] sm:$0xf]
        %v5194 = vld [vmem:[#allocation9 + $0x78] sm:$0xf]
        %v5195 = vld [vmem:[#allocation9 + $0x7c] sm:$0xf]
        %v5196 = vld [vmem:[#allocation9 + $0x80] sm:$0xf]
        %v5197 = vld [vmem:[#allocation9 + $0x84] sm:$0xf]
        %v5198 = vld [vmem:[#allocation9 + $0x88] sm:$0xf]
        %v5199 = vld [vmem:[#allocation9 + $0x8c] sm:$0xf]
        %v5200 = vld [vmem:[#allocation9 + $0x90] sm:$0xf]
        %v5201 = vld [vmem:[#allocation9 + $0x94] sm:$0xf]
        %v5202 = vld [vmem:[#allocation9 + $0x98] sm:$0xf]
        %v5203 = vld [vmem:[#allocation9 + $0x9c] sm:$0xf]
        %v5204 = vld [vmem:[#allocation9 + $0xa0] sm:$0xf]
        %v5205 = vld [vmem:[#allocation9 + $0xa4] sm:$0xf]
        %v5206 = vld [vmem:[#allocation9 + $0xa8] sm:$0xf]
        %v5207 = vld [vmem:[#allocation9 + $0xac] sm:$0xf]
        %v5208 = vld [vmem:[#allocation9 + $0xb0] sm:$0xf]
        %v5209 = vld [vmem:[#allocation9 + $0xb4] sm:$0xf]
        %v5210 = vld [vmem:[#allocation9 + $0xb8] sm:$0xf]
        %v5211 = vld [vmem:[#allocation9 + $0xbc] sm:$0xf]
        %v5212 = vld [vmem:[%s4523] sm:$0xf]
        %v5213 = vld [vmem:[%s4523 + $0x4] sm:$0xf]
        %v5214 = vld [vmem:[%s4523 + $0xc] sm:$0xf]
        %v5215 = vld [vmem:[%s4523 + $0x10] sm:$0xf]
        %v5216 = vld [vmem:[%s4523 + $0x18] sm:$0xf]
        %v5217 = vld [vmem:[%s4523 + $0x1c] sm:$0xf]
        %v5218 = vld [vmem:[%s4523 + $0x24] sm:$0xf]
        %v5219 = vld [vmem:[%s4523 + $0x28] sm:$0xf]
        %v5220 = vld [vmem:[%s4523 + $0x30] sm:$0xf]
        %v5221 = vld [vmem:[%s4523 + $0x34] sm:$0xf]
        %v5222 = vld [vmem:[%s4523 + $0x3c] sm:$0xf]
        %v5223 = vld [vmem:[%s4523 + $0x40] sm:$0xf]
        %v5224 = vld [vmem:[%s4523 + $0x48] sm:$0xf]
        %v5225 = vld [vmem:[%s4523 + $0x4c] sm:$0xf]
        %v5226 = vld [vmem:[%s4523 + $0x54] sm:$0xf]
        %v5227 = vld [vmem:[%s4523 + $0x58] sm:$0xf]
        %v5228 = vld [vmem:[%s4523 + $0x60] sm:$0xf]
        %v5229 = vld [vmem:[%s4523 + $0x64] sm:$0xf]
        %v5230 = vld [vmem:[%s4523 + $0x6c] sm:$0xf]
        %v5231 = vld [vmem:[%s4523 + $0x70] sm:$0xf]
        %v5232 = vld [vmem:[%s4523 + $0x78] sm:$0xf]
        %v5233 = vld [vmem:[%s4523 + $0x7c] sm:$0xf]
        %v5234 = vld [vmem:[%s4523 + $0x84] sm:$0xf]
        %v5235 = vld [vmem:[%s4523 + $0x88] sm:$0xf]
        %v5236 = vld [vmem:[%s4523 + $0x90] sm:$0xf]
        %v5237 = vld [vmem:[%s4523 + $0x94] sm:$0xf]
        %v5238 = vld [vmem:[%s4523 + $0x9c] sm:$0xf]
        %v5239 = vld [vmem:[%s4523 + $0xa0] sm:$0xf]
        %v5240 = vld [vmem:[%s4523 + $0xa8] sm:$0xf]
        %v5241 = vld [vmem:[%s4523 + $0xac] sm:$0xf]
        %v5242 = vld [vmem:[%s4523 + $0xb4] sm:$0xf]
        %v5243 = vld [vmem:[%s4523 + $0xb8] sm:$0xf]
        %v5244 = vld [vmem:[%s4523 + $0x8] sm:$0x1]
        %v5245 = vld [vmem:[%s4523 + $0x14] sm:$0x1]
        %v5246 = vld [vmem:[%s4523 + $0x20] sm:$0x1]
        %v5247 = vld [vmem:[%s4523 + $0x2c] sm:$0x1]
        %v5248 = vld [vmem:[%s4523 + $0x38] sm:$0x1]
        %v5249 = vld [vmem:[%s4523 + $0x44] sm:$0x1]
        %v5250 = vld [vmem:[%s4523 + $0x50] sm:$0x1]
        %v5251 = vld [vmem:[%s4523 + $0x5c] sm:$0x1]
        %v5252 = vld [vmem:[%s4523 + $0x68] sm:$0x1]
        %v5253 = vld [vmem:[%s4523 + $0x74] sm:$0x1]
        %v5254 = vld [vmem:[%s4523 + $0x80] sm:$0x1]
        %v5255 = vld [vmem:[%s4523 + $0x8c] sm:$0x1]
        %v5256 = vld [vmem:[%s4523 + $0x98] sm:$0x1]
        %v5257 = vld [vmem:[%s4523 + $0xa4] sm:$0x1]
        %v5258 = vld [vmem:[%s4523 + $0xb0] sm:$0x1]
        %v5259 = vld [vmem:[%s4523 + $0xbc] sm:$0x1]
        %v5260 = vld [vmem:[%s4523] sm:$0xe]
        %v5261 = vld [vmem:[%s4523 + $0xc] sm:$0xe]
        %v5262 = vld [vmem:[%s4523 + $0x18] sm:$0xe]
        %v5263 = vld [vmem:[%s4523 + $0x24] sm:$0xe]
        %v5264 = vld [vmem:[%s4523 + $0x30] sm:$0xe]
        %v5265 = vld [vmem:[%s4523 + $0x3c] sm:$0xe]
        %v5266 = vld [vmem:[%s4523 + $0x48] sm:$0xe]
        %v5267 = vld [vmem:[%s4523 + $0x54] sm:$0xe]
        %v5268 = vld [vmem:[%s4523 + $0x60] sm:$0xe]
        %v5269 = vld [vmem:[%s4523 + $0x6c] sm:$0xe]
        %v5270 = vld [vmem:[%s4523 + $0x78] sm:$0xe]
        %v5271 = vld [vmem:[%s4523 + $0x84] sm:$0xe]
        %v5272 = vld [vmem:[%s4523 + $0x90] sm:$0xe]
        %v5273 = vld [vmem:[%s4523 + $0x9c] sm:$0xe]
        %v5274 = vld [vmem:[%s4523 + $0xa8] sm:$0xe]
        %v5275 = vld [vmem:[%s4523 + $0xb4] sm:$0xe]
        %v5308 = vunpack.c.l.b16 %v5212
        %v5309 = vunpack.c.l.b16 %v5213
        %v5310 = vunpack.c.l.b16 %v5214
        %v5311 = vunpack.c.l.b16 %v5215
        %v5312 = vunpack.c.l.b16 %v5216
        %v5313 = vunpack.c.l.b16 %v5217
        %v5314 = vunpack.c.l.b16 %v5218
        %v5315 = vunpack.c.l.b16 %v5219
        %v5316 = vunpack.c.l.b16 %v5220
        %v5317 = vunpack.c.l.b16 %v5221
        %v5318 = vunpack.c.l.b16 %v5222
        %v5319 = vunpack.c.l.b16 %v5223
        %v5320 = vunpack.c.l.b16 %v5224
        %v5321 = vunpack.c.l.b16 %v5225
        %v5322 = vunpack.c.l.b16 %v5226
        %v5323 = vunpack.c.l.b16 %v5227
        %v5324 = vunpack.c.l.b16 %v5228
        %v5325 = vunpack.c.l.b16 %v5229
        %v5326 = vunpack.c.l.b16 %v5230
        %v5327 = vunpack.c.l.b16 %v5231
        %v5328 = vunpack.c.l.b16 %v5232
        %v5329 = vunpack.c.l.b16 %v5233
        %v5330 = vunpack.c.l.b16 %v5234
        %v5331 = vunpack.c.l.b16 %v5235
        %v5332 = vunpack.c.l.b16 %v5236
        %v5333 = vunpack.c.l.b16 %v5237
        %v5334 = vunpack.c.l.b16 %v5238
        %v5335 = vunpack.c.l.b16 %v5239
        %v5336 = vunpack.c.l.b16 %v5240
        %v5337 = vunpack.c.l.b16 %v5241
        %v5338 = vunpack.c.l.b16 %v5242
        %v5339 = vunpack.c.l.b16 %v5243
        %v5340 = vpack.c.b16 %v5309, %v5308
        %v5341 = vpack.c.b16 %v5311, %v5310
        %v5342 = vpack.c.b16 %v5313, %v5312
        %v5343 = vpack.c.b16 %v5315, %v5314
        %v5344 = vpack.c.b16 %v5317, %v5316
        %v5345 = vpack.c.b16 %v5319, %v5318
        %v5346 = vpack.c.b16 %v5321, %v5320
        %v5347 = vpack.c.b16 %v5323, %v5322
        %v5348 = vpack.c.b16 %v5325, %v5324
        %v5349 = vpack.c.b16 %v5327, %v5326
        %v5350 = vpack.c.b16 %v5329, %v5328
        %v5351 = vpack.c.b16 %v5331, %v5330
        %v5352 = vpack.c.b16 %v5333, %v5332
        %v5353 = vpack.c.b16 %v5335, %v5334
        %v5354 = vpack.c.b16 %v5337, %v5336
        %v5355 = vpack.c.b16 %v5339, %v5338
        %v5388 = vunpack.c.l.b16 %v5244
        %v5389 = vunpack.c.l.b16 %v5245
        %v5390 = vunpack.c.l.b16 %v5246
        %v5391 = vunpack.c.l.b16 %v5247
        %v5392 = vunpack.c.l.b16 %v5248
        %v5393 = vunpack.c.l.b16 %v5249
        %v5394 = vunpack.c.l.b16 %v5250
        %v5395 = vunpack.c.l.b16 %v5251
        %v5396 = vunpack.c.l.b16 %v5252
        %v5397 = vunpack.c.l.b16 %v5253
        %v5398 = vunpack.c.l.b16 %v5254
        %v5399 = vunpack.c.l.b16 %v5255
        %v5400 = vunpack.c.l.b16 %v5256
        %v5401 = vunpack.c.l.b16 %v5257
        %v5402 = vunpack.c.l.b16 %v5258
        %v5403 = vunpack.c.l.b16 %v5259
        %v5404 = vpack.c.b16 %v5388, %v5388
        %v5405 = vpack.c.b16 %v5389, %v5389
        %v5406 = vpack.c.b16 %v5390, %v5390
        %v5407 = vpack.c.b16 %v5391, %v5391
        %v5408 = vpack.c.b16 %v5392, %v5392
        %v5409 = vpack.c.b16 %v5393, %v5393
        %v5410 = vpack.c.b16 %v5394, %v5394
        %v5411 = vpack.c.b16 %v5395, %v5395
        %v5412 = vpack.c.b16 %v5396, %v5396
        %v5413 = vpack.c.b16 %v5397, %v5397
        %v5414 = vpack.c.b16 %v5398, %v5398
        %v5415 = vpack.c.b16 %v5399, %v5399
        %v5416 = vpack.c.b16 %v5400, %v5400
        %v5417 = vpack.c.b16 %v5401, %v5401
        %v5418 = vpack.c.b16 %v5402, %v5402
        %v5419 = vpack.c.b16 %v5403, %v5403
        %v5421 = vshrl.u32 %v5340, 16
        %v5423 = vshll.u32 %v5340, 16
        %v5425 = vrot.slane %v5423, 1
        %v5426 = vor.u32 %v5421, %v5425
        %v5428 = vshll.u32 %v5404, 16
        %v5430 = vrot.slane %v5428, 1
        %v5431 = vsel %vm1277, %v5426, %v5430
        %v5433 = vshrl.u32 %v5341, 16
        %v5435 = vshll.u32 %v5341, 16
        %v5437 = vrot.slane %v5435, 1
        %v5438 = vor.u32 %v5433, %v5437
        %v5440 = vshll.u32 %v5405, 16
        %v5442 = vrot.slane %v5440, 1
        %v5443 = vsel %vm1277, %v5438, %v5442
        %v5445 = vshrl.u32 %v5342, 16
        %v5447 = vshll.u32 %v5342, 16
        %v5449 = vrot.slane %v5447, 1
        %v5450 = vor.u32 %v5445, %v5449
        %v5452 = vshll.u32 %v5406, 16
        %v5454 = vrot.slane %v5452, 1
        %v5455 = vsel %vm1277, %v5450, %v5454
        %v5457 = vshrl.u32 %v5343, 16
        %v5459 = vshll.u32 %v5343, 16
        %v5461 = vrot.slane %v5459, 1
        %v5462 = vor.u32 %v5457, %v5461
        %v5464 = vshll.u32 %v5407, 16
        %v5466 = vrot.slane %v5464, 1
        %v5467 = vsel %vm1277, %v5462, %v5466
        %v5469 = vshrl.u32 %v5344, 16
        %v5471 = vshll.u32 %v5344, 16
        %v5473 = vrot.slane %v5471, 1
        %v5474 = vor.u32 %v5469, %v5473
        %v5476 = vshll.u32 %v5408, 16
        %v5478 = vrot.slane %v5476, 1
        %v5479 = vsel %vm1277, %v5474, %v5478
        %v5481 = vshrl.u32 %v5345, 16
        %v5483 = vshll.u32 %v5345, 16
        %v5485 = vrot.slane %v5483, 1
        %v5486 = vor.u32 %v5481, %v5485
        %v5488 = vshll.u32 %v5409, 16
        %v5490 = vrot.slane %v5488, 1
        %v5491 = vsel %vm1277, %v5486, %v5490
        %v5493 = vshrl.u32 %v5346, 16
        %v5495 = vshll.u32 %v5346, 16
        %v5497 = vrot.slane %v5495, 1
        %v5498 = vor.u32 %v5493, %v5497
        %v5500 = vshll.u32 %v5410, 16
        %v5502 = vrot.slane %v5500, 1
        %v5503 = vsel %vm1277, %v5498, %v5502
        %v5505 = vshrl.u32 %v5347, 16
        %v5507 = vshll.u32 %v5347, 16
        %v5509 = vrot.slane %v5507, 1
        %v5510 = vor.u32 %v5505, %v5509
        %v5512 = vshll.u32 %v5411, 16
        %v5514 = vrot.slane %v5512, 1
        %v5515 = vsel %vm1277, %v5510, %v5514
        %v5517 = vshrl.u32 %v5348, 16
        %v5519 = vshll.u32 %v5348, 16
        %v5521 = vrot.slane %v5519, 1
        %v5522 = vor.u32 %v5517, %v5521
        %v5524 = vshll.u32 %v5412, 16
        %v5526 = vrot.slane %v5524, 1
        %v5527 = vsel %vm1277, %v5522, %v5526
        %v5529 = vshrl.u32 %v5349, 16
        %v5531 = vshll.u32 %v5349, 16
        %v5533 = vrot.slane %v5531, 1
        %v5534 = vor.u32 %v5529, %v5533
        %v5536 = vshll.u32 %v5413, 16
        %v5538 = vrot.slane %v5536, 1
        %v5539 = vsel %vm1277, %v5534, %v5538
        %v5541 = vshrl.u32 %v5350, 16
        %v5543 = vshll.u32 %v5350, 16
        %v5545 = vrot.slane %v5543, 1
        %v5546 = vor.u32 %v5541, %v5545
        %v5548 = vshll.u32 %v5414, 16
        %v5550 = vrot.slane %v5548, 1
        %v5551 = vsel %vm1277, %v5546, %v5550
        %v5553 = vshrl.u32 %v5351, 16
        %v5555 = vshll.u32 %v5351, 16
        %v5557 = vrot.slane %v5555, 1
        %v5558 = vor.u32 %v5553, %v5557
        %v5560 = vshll.u32 %v5415, 16
        %v5562 = vrot.slane %v5560, 1
        %v5563 = vsel %vm1277, %v5558, %v5562
        %v5565 = vshrl.u32 %v5352, 16
        %v5567 = vshll.u32 %v5352, 16
        %v5569 = vrot.slane %v5567, 1
        %v5570 = vor.u32 %v5565, %v5569
        %v5572 = vshll.u32 %v5416, 16
        %v5574 = vrot.slane %v5572, 1
        %v5575 = vsel %vm1277, %v5570, %v5574
        %v5577 = vshrl.u32 %v5353, 16
        %v5579 = vshll.u32 %v5353, 16
        %v5581 = vrot.slane %v5579, 1
        %v5582 = vor.u32 %v5577, %v5581
        %v5584 = vshll.u32 %v5417, 16
        %v5586 = vrot.slane %v5584, 1
        %v5587 = vsel %vm1277, %v5582, %v5586
        %v5589 = vshrl.u32 %v5354, 16
        %v5591 = vshll.u32 %v5354, 16
        %v5593 = vrot.slane %v5591, 1
        %v5594 = vor.u32 %v5589, %v5593
        %v5596 = vshll.u32 %v5418, 16
        %v5598 = vrot.slane %v5596, 1
        %v5599 = vsel %vm1277, %v5594, %v5598
        %v5601 = vshrl.u32 %v5355, 16
        %v5603 = vshll.u32 %v5355, 16
        %v5605 = vrot.slane %v5603, 1
        %v5606 = vor.u32 %v5601, %v5605
        %v5608 = vshll.u32 %v5419, 16
        %v5610 = vrot.slane %v5608, 1
        %v5611 = vsel %vm1277, %v5606, %v5610
        %v5644 = vunpack.c.l.b16 %v5260
        %v5645 = vunpack.c.l.b16 %v5261
        %v5646 = vunpack.c.l.b16 %v5262
        %v5647 = vunpack.c.l.b16 %v5263
        %v5648 = vunpack.c.l.b16 %v5264
        %v5649 = vunpack.c.l.b16 %v5265
        %v5650 = vunpack.c.l.b16 %v5266
        %v5651 = vunpack.c.l.b16 %v5267
        %v5652 = vunpack.c.l.b16 %v5268
        %v5653 = vunpack.c.l.b16 %v5269
        %v5654 = vunpack.c.l.b16 %v5270
        %v5655 = vunpack.c.l.b16 %v5271
        %v5656 = vunpack.c.l.b16 %v5272
        %v5657 = vunpack.c.l.b16 %v5273
        %v5658 = vunpack.c.l.b16 %v5274
        %v5659 = vunpack.c.l.b16 %v5275
        %v5660 = vpack.c.b16 %v5309, %v5644
        %v5661 = vpack.c.b16 %v5311, %v5645
        %v5662 = vpack.c.b16 %v5313, %v5646
        %v5663 = vpack.c.b16 %v5315, %v5647
        %v5664 = vpack.c.b16 %v5317, %v5648
        %v5665 = vpack.c.b16 %v5319, %v5649
        %v5666 = vpack.c.b16 %v5321, %v5650
        %v5667 = vpack.c.b16 %v5323, %v5651
        %v5668 = vpack.c.b16 %v5325, %v5652
        %v5669 = vpack.c.b16 %v5327, %v5653
        %v5670 = vpack.c.b16 %v5329, %v5654
        %v5671 = vpack.c.b16 %v5331, %v5655
        %v5672 = vpack.c.b16 %v5333, %v5656
        %v5673 = vpack.c.b16 %v5335, %v5657
        %v5674 = vpack.c.b16 %v5337, %v5658
        %v5675 = vpack.c.b16 %v5339, %v5659
        %v5676 = vrot.slane %v5660, 1
        %v5677 = vrot.slane %v5404, 1
        %v5678 = vsel %vm1534, %v5676, %v5677
        %v5679 = vrot.slane %v5661, 1
        %v5680 = vrot.slane %v5405, 1
        %v5681 = vsel %vm1534, %v5679, %v5680
        %v5682 = vrot.slane %v5662, 1
        %v5683 = vrot.slane %v5406, 1
        %v5684 = vsel %vm1534, %v5682, %v5683
        %v5685 = vrot.slane %v5663, 1
        %v5686 = vrot.slane %v5407, 1
        %v5687 = vsel %vm1534, %v5685, %v5686
        %v5688 = vrot.slane %v5664, 1
        %v5689 = vrot.slane %v5408, 1
        %v5690 = vsel %vm1534, %v5688, %v5689
        %v5691 = vrot.slane %v5665, 1
        %v5692 = vrot.slane %v5409, 1
        %v5693 = vsel %vm1534, %v5691, %v5692
        %v5694 = vrot.slane %v5666, 1
        %v5695 = vrot.slane %v5410, 1
        %v5696 = vsel %vm1534, %v5694, %v5695
        %v5697 = vrot.slane %v5667, 1
        %v5698 = vrot.slane %v5411, 1
        %v5699 = vsel %vm1534, %v5697, %v5698
        %v5700 = vrot.slane %v5668, 1
        %v5701 = vrot.slane %v5412, 1
        %v5702 = vsel %vm1534, %v5700, %v5701
        %v5703 = vrot.slane %v5669, 1
        %v5704 = vrot.slane %v5413, 1
        %v5705 = vsel %vm1534, %v5703, %v5704
        %v5706 = vrot.slane %v5670, 1
        %v5707 = vrot.slane %v5414, 1
        %v5708 = vsel %vm1534, %v5706, %v5707
        %v5709 = vrot.slane %v5671, 1
        %v5710 = vrot.slane %v5415, 1
        %v5711 = vsel %vm1534, %v5709, %v5710
        %v5712 = vrot.slane %v5672, 1
        %v5713 = vrot.slane %v5416, 1
        %v5714 = vsel %vm1534, %v5712, %v5713
        %v5715 = vrot.slane %v5673, 1
        %v5716 = vrot.slane %v5417, 1
        %v5717 = vsel %vm1534, %v5715, %v5716
        %v5718 = vrot.slane %v5674, 1
        %v5719 = vrot.slane %v5418, 1
        %v5720 = vsel %vm1534, %v5718, %v5719
        %v5721 = vrot.slane %v5675, 1
        %v5722 = vrot.slane %v5419, 1
        %v5723 = vsel %vm1534, %v5721, %v5722
        %s5740 = scalar_lea.vmem [#allocation9], 192
        %v5741 = vld [vmem:[%s5740] sm:$0xf]
        %v5742 = vld [vmem:[%s5740 + $0x4] sm:$0xf]
        %v5743 = vld [vmem:[%s5740 + $0x8] sm:$0xf]
        %v5744 = vld [vmem:[%s5740 + $0xc] sm:$0xf]
        %v5745 = vld [vmem:[%s5740 + $0x10] sm:$0xf]
        %v5746 = vld [vmem:[%s5740 + $0x14] sm:$0xf]
        %v5747 = vld [vmem:[%s5740 + $0x18] sm:$0xf]
        %v5748 = vld [vmem:[%s5740 + $0x1c] sm:$0xf]
        %v5749 = vld [vmem:[%s5740 + $0x20] sm:$0xf]
        %v5750 = vld [vmem:[%s5740 + $0x24] sm:$0xf]
        %v5751 = vld [vmem:[%s5740 + $0x28] sm:$0xf]
        %v5752 = vld [vmem:[%s5740 + $0x2c] sm:$0xf]
        %v5753 = vld [vmem:[%s5740 + $0x30] sm:$0xf]
        %v5754 = vld [vmem:[%s5740 + $0x34] sm:$0xf]
        %v5755 = vld [vmem:[%s5740 + $0x38] sm:$0xf]
        %v5756 = vld [vmem:[%s5740 + $0x3c] sm:$0xf]
        %v5757 = vld [vmem:[%s5740 + $0x40] sm:$0xf]
        %v5758 = vld [vmem:[%s5740 + $0x44] sm:$0xf]
        %v5759 = vld [vmem:[%s5740 + $0x48] sm:$0xf]
        %v5760 = vld [vmem:[%s5740 + $0x4c] sm:$0xf]
        %v5761 = vld [vmem:[%s5740 + $0x50] sm:$0xf]
        %v5762 = vld [vmem:[%s5740 + $0x54] sm:$0xf]
        %v5763 = vld [vmem:[%s5740 + $0x58] sm:$0xf]
        %v5764 = vld [vmem:[%s5740 + $0x5c] sm:$0xf]
        %v5765 = vld [vmem:[%s5740 + $0x60] sm:$0xf]
        %v5766 = vld [vmem:[%s5740 + $0x64] sm:$0xf]
        %v5767 = vld [vmem:[%s5740 + $0x68] sm:$0xf]
        %v5768 = vld [vmem:[%s5740 + $0x6c] sm:$0xf]
        %v5769 = vld [vmem:[%s5740 + $0x70] sm:$0xf]
        %v5770 = vld [vmem:[%s5740 + $0x74] sm:$0xf]
        %v5771 = vld [vmem:[%s5740 + $0x78] sm:$0xf]
        %v5772 = vld [vmem:[%s5740 + $0x7c] sm:$0xf]
        %v5773 = vld [vmem:[%s5740 + $0x80] sm:$0xf]
        %v5774 = vld [vmem:[%s5740 + $0x84] sm:$0xf]
        %v5775 = vld [vmem:[%s5740 + $0x88] sm:$0xf]
        %v5776 = vld [vmem:[%s5740 + $0x8c] sm:$0xf]
        %v5777 = vld [vmem:[%s5740 + $0x90] sm:$0xf]
        %v5778 = vld [vmem:[%s5740 + $0x94] sm:$0xf]
        %v5779 = vld [vmem:[%s5740 + $0x98] sm:$0xf]
        %v5780 = vld [vmem:[%s5740 + $0x9c] sm:$0xf]
        %v5781 = vld [vmem:[%s5740 + $0xa0] sm:$0xf]
        %v5782 = vld [vmem:[%s5740 + $0xa4] sm:$0xf]
        %v5783 = vld [vmem:[%s5740 + $0xa8] sm:$0xf]
        %v5784 = vld [vmem:[%s5740 + $0xac] sm:$0xf]
        %v5785 = vld [vmem:[%s5740 + $0xb0] sm:$0xf]
        %v5786 = vld [vmem:[%s5740 + $0xb4] sm:$0xf]
        %v5787 = vld [vmem:[%s5740 + $0xb8] sm:$0xf]
        %v5788 = vld [vmem:[%s5740 + $0xbc] sm:$0xf]
        %v5837 = vunpack.c.l.b16 %v5741
        %v5838 = vunpack.c.l.b16 %v5742
        %v5839 = vunpack.c.l.b16 %v5743
        %v5840 = vunpack.c.l.b16 %v5744
        %v5841 = vunpack.c.l.b16 %v5745
        %v5842 = vunpack.c.l.b16 %v5746
        %v5843 = vunpack.c.l.b16 %v5747
        %v5844 = vunpack.c.l.b16 %v5748
        %v5845 = vunpack.c.l.b16 %v5749
        %v5846 = vunpack.c.l.b16 %v5750
        %v5847 = vunpack.c.l.b16 %v5751
        %v5848 = vunpack.c.l.b16 %v5752
        %v5849 = vunpack.c.l.b16 %v5753
        %v5850 = vunpack.c.l.b16 %v5754
        %v5851 = vunpack.c.l.b16 %v5755
        %v5852 = vunpack.c.l.b16 %v5756
        %v5853 = vunpack.c.l.b16 %v5757
        %v5854 = vunpack.c.l.b16 %v5758
        %v5855 = vunpack.c.l.b16 %v5759
        %v5856 = vunpack.c.l.b16 %v5760
        %v5857 = vunpack.c.l.b16 %v5761
        %v5858 = vunpack.c.l.b16 %v5762
        %v5859 = vunpack.c.l.b16 %v5763
        %v5860 = vunpack.c.l.b16 %v5764
        %v5861 = vunpack.c.l.b16 %v5765
        %v5862 = vunpack.c.l.b16 %v5766
        %v5863 = vunpack.c.l.b16 %v5767
        %v5864 = vunpack.c.l.b16 %v5768
        %v5865 = vunpack.c.l.b16 %v5769
        %v5866 = vunpack.c.l.b16 %v5770
        %v5867 = vunpack.c.l.b16 %v5771
        %v5868 = vunpack.c.l.b16 %v5772
        %v5869 = vunpack.c.l.b16 %v5773
        %v5870 = vunpack.c.l.b16 %v5774
        %v5871 = vunpack.c.l.b16 %v5775
        %v5872 = vunpack.c.l.b16 %v5776
        %v5873 = vunpack.c.l.b16 %v5777
        %v5874 = vunpack.c.l.b16 %v5778
        %v5875 = vunpack.c.l.b16 %v5779
        %v5876 = vunpack.c.l.b16 %v5780
        %v5877 = vunpack.c.l.b16 %v5781
        %v5878 = vunpack.c.l.b16 %v5782
        %v5879 = vunpack.c.l.b16 %v5783
        %v5880 = vunpack.c.l.b16 %v5784
        %v5881 = vunpack.c.l.b16 %v5785
        %v5882 = vunpack.c.l.b16 %v5786
        %v5883 = vunpack.c.l.b16 %v5787
        %v5884 = vunpack.c.l.b16 %v5788
        %v5885 = vpack.c.b16 %v5838, %v5837
        %v5886 = vpack.c.b16 %v5840, %v5839
        %v5887 = vpack.c.b16 %v5842, %v5841
        %v5888 = vpack.c.b16 %v5844, %v5843
        %v5889 = vpack.c.b16 %v5846, %v5845
        %v5890 = vpack.c.b16 %v5848, %v5847
        %v5891 = vpack.c.b16 %v5850, %v5849
        %v5892 = vpack.c.b16 %v5852, %v5851
        %v5893 = vpack.c.b16 %v5854, %v5853
        %v5894 = vpack.c.b16 %v5856, %v5855
        %v5895 = vpack.c.b16 %v5858, %v5857
        %v5896 = vpack.c.b16 %v5860, %v5859
        %v5897 = vpack.c.b16 %v5862, %v5861
        %v5898 = vpack.c.b16 %v5864, %v5863
        %v5899 = vpack.c.b16 %v5866, %v5865
        %v5900 = vpack.c.b16 %v5868, %v5867
        %v5901 = vpack.c.b16 %v5870, %v5869
        %v5902 = vpack.c.b16 %v5872, %v5871
        %v5903 = vpack.c.b16 %v5874, %v5873
        %v5904 = vpack.c.b16 %v5876, %v5875
        %v5905 = vpack.c.b16 %v5878, %v5877
        %v5906 = vpack.c.b16 %v5880, %v5879
        %v5907 = vpack.c.b16 %v5882, %v5881
        %v5908 = vpack.c.b16 %v5884, %v5883
        %5933 = vmatpush.bf16.msra.mxu0 %v5892
        %5934 = vmatpush.bf16.msra.mxu0 %v5891
        %5935 = vmatpush.bf16.msra.mxu0 %v5890
        %5936 = vmatpush.bf16.msra.mxu0 %v5889
        %5937 = vmatpush.bf16.msra.mxu0 %v5888
        %5938 = vmatpush.bf16.msra.mxu0 %v5887
        %5939 = vmatpush.bf16.msra.mxu0 %v5886
        %5940 = vmatpush.bf16.msra.mxu0 %v5885
        %5941 = vmatmul.bf16.gmra.mxu0 %v5340
        %v5942 = vpop.f32.mrf.mxu0
        %v5943 = vadd.f32 0.0, %v5942
        %v5944 = vpop.f32.mrf.mxu0
        %v5945 = vadd.f32 0.0, %v5944
        %5946 = vmatmul.bf16.gmra.mxu0 %v5341
        %v5947 = vpop.f32.mrf.mxu0
        %v5948 = vadd.f32 0.0, %v5947
        %v5949 = vpop.f32.mrf.mxu0
        %v5950 = vadd.f32 0.0, %v5949
        %5951 = vmatmul.bf16.gmra.mxu0 %v5342
        %v5952 = vpop.f32.mrf.mxu0
        %v5953 = vadd.f32 0.0, %v5952
        %v5954 = vpop.f32.mrf.mxu0
        %v5955 = vadd.f32 0.0, %v5954
        %5956 = vmatmul.bf16.gmra.mxu0 %v5343
        %v5957 = vpop.f32.mrf.mxu0
        %v5958 = vadd.f32 0.0, %v5957
        %v5959 = vpop.f32.mrf.mxu0
        %v5960 = vadd.f32 0.0, %v5959
        %5961 = vmatmul.bf16.gmra.mxu0 %v5344
        %v5962 = vpop.f32.mrf.mxu0
        %v5963 = vadd.f32 0.0, %v5962
        %v5964 = vpop.f32.mrf.mxu0
        %v5965 = vadd.f32 0.0, %v5964
        %5966 = vmatmul.bf16.gmra.mxu0 %v5345
        %v5967 = vpop.f32.mrf.mxu0
        %v5968 = vadd.f32 0.0, %v5967
        %v5969 = vpop.f32.mrf.mxu0
        %v5970 = vadd.f32 0.0, %v5969
        %5971 = vmatmul.bf16.gmra.mxu0 %v5346
        %v5972 = vpop.f32.mrf.mxu0
        %v5973 = vadd.f32 0.0, %v5972
        %v5974 = vpop.f32.mrf.mxu0
        %v5975 = vadd.f32 0.0, %v5974
        %5976 = vmatmul.bf16.gmra.mxu0 %v5347
        %v5977 = vpop.f32.mrf.mxu0
        %v5978 = vadd.f32 0.0, %v5977
        %v5979 = vpop.f32.mrf.mxu0
        %v5980 = vadd.f32 0.0, %v5979
        %5981 = vmatmul.bf16.gmra.mxu0 %v5348
        %v5982 = vpop.f32.mrf.mxu0
        %v5983 = vadd.f32 0.0, %v5982
        %v5984 = vpop.f32.mrf.mxu0
        %v5985 = vadd.f32 0.0, %v5984
        %5986 = vmatmul.bf16.gmra.mxu0 %v5349
        %v5987 = vpop.f32.mrf.mxu0
        %v5988 = vadd.f32 0.0, %v5987
        %v5989 = vpop.f32.mrf.mxu0
        %v5990 = vadd.f32 0.0, %v5989
        %5991 = vmatmul.bf16.gmra.mxu0 %v5350
        %v5992 = vpop.f32.mrf.mxu0
        %v5993 = vadd.f32 0.0, %v5992
        %v5994 = vpop.f32.mrf.mxu0
        %v5995 = vadd.f32 0.0, %v5994
        %5996 = vmatmul.bf16.gmra.mxu0 %v5351
        %v5997 = vpop.f32.mrf.mxu0
        %v5998 = vadd.f32 0.0, %v5997
        %v5999 = vpop.f32.mrf.mxu0
        %v6000 = vadd.f32 0.0, %v5999
        %6001 = vmatmul.bf16.gmra.mxu0 %v5352
        %v6002 = vpop.f32.mrf.mxu0
        %v6003 = vadd.f32 0.0, %v6002
        %v6004 = vpop.f32.mrf.mxu0
        %v6005 = vadd.f32 0.0, %v6004
        %6006 = vmatmul.bf16.gmra.mxu0 %v5353
        %v6007 = vpop.f32.mrf.mxu0
        %v6008 = vadd.f32 0.0, %v6007
        %v6009 = vpop.f32.mrf.mxu0
        %v6010 = vadd.f32 0.0, %v6009
        %6011 = vmatmul.bf16.gmra.mxu0 %v5354
        %v6012 = vpop.f32.mrf.mxu0
        %v6013 = vadd.f32 0.0, %v6012
        %v6014 = vpop.f32.mrf.mxu0
        %v6015 = vadd.f32 0.0, %v6014
        %6016 = vmatmul.bf16.gmra.mxu0 %v5355
        %v6017 = vpop.f32.mrf.mxu0
        %v6018 = vadd.f32 0.0, %v6017
        %v6019 = vpop.f32.mrf.mxu0
        %v6020 = vadd.f32 0.0, %v6019
        %6021 = vdwg.mxu0
        %6022 = vmatpush.bf16.msra.mxu0 %v5900
        %6023 = vmatpush.bf16.msra.mxu0 %v5899
        %6024 = vmatpush.bf16.msra.mxu0 %v5898
        %6025 = vmatpush.bf16.msra.mxu0 %v5897
        %6026 = vmatpush.bf16.msra.mxu0 %v5896
        %6027 = vmatpush.bf16.msra.mxu0 %v5895
        %6028 = vmatpush.bf16.msra.mxu0 %v5894
        %6029 = vmatpush.bf16.msra.mxu0 %v5893
        %6030 = vmatmul.bf16.gmra.mxu0 %v5431
        %v6031 = vpop.f32.mrf.mxu0
        %v6032 = vadd.f32 %v5943, %v6031
        %v6033 = vpop.f32.mrf.mxu0
        %v6034 = vadd.f32 %v5945, %v6033
        %6035 = vmatmul.bf16.gmra.mxu0 %v5443
        %v6036 = vpop.f32.mrf.mxu0
        %v6037 = vadd.f32 %v5948, %v6036
        %v6038 = vpop.f32.mrf.mxu0
        %v6039 = vadd.f32 %v5950, %v6038
        %6040 = vmatmul.bf16.gmra.mxu0 %v5455
        %v6041 = vpop.f32.mrf.mxu0
        %v6042 = vadd.f32 %v5953, %v6041
        %v6043 = vpop.f32.mrf.mxu0
        %v6044 = vadd.f32 %v5955, %v6043
        %6045 = vmatmul.bf16.gmra.mxu0 %v5467
        %v6046 = vpop.f32.mrf.mxu0
        %v6047 = vadd.f32 %v5958, %v6046
        %v6048 = vpop.f32.mrf.mxu0
        %v6049 = vadd.f32 %v5960, %v6048
        %6050 = vmatmul.bf16.gmra.mxu0 %v5479
        %v6051 = vpop.f32.mrf.mxu0
        %v6052 = vadd.f32 %v5963, %v6051
        %v6053 = vpop.f32.mrf.mxu0
        %v6054 = vadd.f32 %v5965, %v6053
        %6055 = vmatmul.bf16.gmra.mxu0 %v5491
        %v6056 = vpop.f32.mrf.mxu0
        %v6057 = vadd.f32 %v5968, %v6056
        %v6058 = vpop.f32.mrf.mxu0
        %v6059 = vadd.f32 %v5970, %v6058
        %6060 = vmatmul.bf16.gmra.mxu0 %v5503
        %v6061 = vpop.f32.mrf.mxu0
        %v6062 = vadd.f32 %v5973, %v6061
        %v6063 = vpop.f32.mrf.mxu0
        %v6064 = vadd.f32 %v5975, %v6063
        %6065 = vmatmul.bf16.gmra.mxu0 %v5515
        %v6066 = vpop.f32.mrf.mxu0
        %v6067 = vadd.f32 %v5978, %v6066
        %v6068 = vpop.f32.mrf.mxu0
        %v6069 = vadd.f32 %v5980, %v6068
        %6070 = vmatmul.bf16.gmra.mxu0 %v5527
        %v6071 = vpop.f32.mrf.mxu0
        %v6072 = vadd.f32 %v5983, %v6071
        %v6073 = vpop.f32.mrf.mxu0
        %v6074 = vadd.f32 %v5985, %v6073
        %6075 = vmatmul.bf16.gmra.mxu0 %v5539
        %v6076 = vpop.f32.mrf.mxu0
        %v6077 = vadd.f32 %v5988, %v6076
        %v6078 = vpop.f32.mrf.mxu0
        %v6079 = vadd.f32 %v5990, %v6078
        %6080 = vmatmul.bf16.gmra.mxu0 %v5551
        %v6081 = vpop.f32.mrf.mxu0
        %v6082 = vadd.f32 %v5993, %v6081
        %v6083 = vpop.f32.mrf.mxu0
        %v6084 = vadd.f32 %v5995, %v6083
        %6085 = vmatmul.bf16.gmra.mxu0 %v5563
        %v6086 = vpop.f32.mrf.mxu0
        %v6087 = vadd.f32 %v5998, %v6086
        %v6088 = vpop.f32.mrf.mxu0
        %v6089 = vadd.f32 %v6000, %v6088
        %6090 = vmatmul.bf16.gmra.mxu0 %v5575
        %v6091 = vpop.f32.mrf.mxu0
        %v6092 = vadd.f32 %v6003, %v6091
        %v6093 = vpop.f32.mrf.mxu0
        %v6094 = vadd.f32 %v6005, %v6093
        %6095 = vmatmul.bf16.gmra.mxu0 %v5587
        %v6096 = vpop.f32.mrf.mxu0
        %v6097 = vadd.f32 %v6008, %v6096
        %v6098 = vpop.f32.mrf.mxu0
        %v6099 = vadd.f32 %v6010, %v6098
        %6100 = vmatmul.bf16.gmra.mxu0 %v5599
        %v6101 = vpop.f32.mrf.mxu0
        %v6102 = vadd.f32 %v6013, %v6101
        %v6103 = vpop.f32.mrf.mxu0
        %v6104 = vadd.f32 %v6015, %v6103
        %6105 = vmatmul.bf16.gmra.mxu0 %v5611
        %v6106 = vpop.f32.mrf.mxu0
        %v6107 = vadd.f32 %v6018, %v6106
        %v6108 = vpop.f32.mrf.mxu0
        %v6109 = vadd.f32 %v6020, %v6108
        %6110 = vdwg.mxu0
        %6111 = vmatpush.bf16.msra.mxu0 %v5908
        %6112 = vmatpush.bf16.msra.mxu0 %v5907
        %6113 = vmatpush.bf16.msra.mxu0 %v5906
        %6114 = vmatpush.bf16.msra.mxu0 %v5905
        %6115 = vmatpush.bf16.msra.mxu0 %v5904
        %6116 = vmatpush.bf16.msra.mxu0 %v5903
        %6117 = vmatpush.bf16.msra.mxu0 %v5902
        %6118 = vmatpush.bf16.msra.mxu0 %v5901
        %6119 = vmatmul.bf16.gmra.mxu0 %v5678
        %v6120 = vpop.f32.mrf.mxu0
        %v6121 = vadd.f32 %v6032, %v6120
        %v6122 = vpop.f32.mrf.mxu0
        %v6123 = vadd.f32 %v6034, %v6122
        %6124 = vmatmul.bf16.gmra.mxu0 %v5681
        %v6125 = vpop.f32.mrf.mxu0
        %v6126 = vadd.f32 %v6037, %v6125
        %v6127 = vpop.f32.mrf.mxu0
        %v6128 = vadd.f32 %v6039, %v6127
        %6129 = vmatmul.bf16.gmra.mxu0 %v5684
        %v6130 = vpop.f32.mrf.mxu0
        %v6131 = vadd.f32 %v6042, %v6130
        %v6132 = vpop.f32.mrf.mxu0
        %v6133 = vadd.f32 %v6044, %v6132
        %6134 = vmatmul.bf16.gmra.mxu0 %v5687
        %v6135 = vpop.f32.mrf.mxu0
        %v6136 = vadd.f32 %v6047, %v6135
        %v6137 = vpop.f32.mrf.mxu0
        %v6138 = vadd.f32 %v6049, %v6137
        %6139 = vmatmul.bf16.gmra.mxu0 %v5690
        %v6140 = vpop.f32.mrf.mxu0
        %v6141 = vadd.f32 %v6052, %v6140
        %v6142 = vpop.f32.mrf.mxu0
        %v6143 = vadd.f32 %v6054, %v6142
        %6144 = vmatmul.bf16.gmra.mxu0 %v5693
        %v6145 = vpop.f32.mrf.mxu0
        %v6146 = vadd.f32 %v6057, %v6145
        %v6147 = vpop.f32.mrf.mxu0
        %v6148 = vadd.f32 %v6059, %v6147
        %6149 = vmatmul.bf16.gmra.mxu0 %v5696
        %v6150 = vpop.f32.mrf.mxu0
        %v6151 = vadd.f32 %v6062, %v6150
        %v6152 = vpop.f32.mrf.mxu0
        %v6153 = vadd.f32 %v6064, %v6152
        %6154 = vmatmul.bf16.gmra.mxu0 %v5699
        %v6155 = vpop.f32.mrf.mxu0
        %v6156 = vadd.f32 %v6067, %v6155
        %v6157 = vpop.f32.mrf.mxu0
        %v6158 = vadd.f32 %v6069, %v6157
        %6159 = vmatmul.bf16.gmra.mxu0 %v5702
        %v6160 = vpop.f32.mrf.mxu0
        %v6161 = vadd.f32 %v6072, %v6160
        %v6162 = vpop.f32.mrf.mxu0
        %v6163 = vadd.f32 %v6074, %v6162
        %6164 = vmatmul.bf16.gmra.mxu0 %v5705
        %v6165 = vpop.f32.mrf.mxu0
        %v6166 = vadd.f32 %v6077, %v6165
        %v6167 = vpop.f32.mrf.mxu0
        %v6168 = vadd.f32 %v6079, %v6167
        %6169 = vmatmul.bf16.gmra.mxu0 %v5708
        %v6170 = vpop.f32.mrf.mxu0
        %v6171 = vadd.f32 %v6082, %v6170
        %v6172 = vpop.f32.mrf.mxu0
        %v6173 = vadd.f32 %v6084, %v6172
        %6174 = vmatmul.bf16.gmra.mxu0 %v5711
        %v6175 = vpop.f32.mrf.mxu0
        %v6176 = vadd.f32 %v6087, %v6175
        %v6177 = vpop.f32.mrf.mxu0
        %v6178 = vadd.f32 %v6089, %v6177
        %6179 = vmatmul.bf16.gmra.mxu0 %v5714
        %v6180 = vpop.f32.mrf.mxu0
        %v6181 = vadd.f32 %v6092, %v6180
        %v6182 = vpop.f32.mrf.mxu0
        %v6183 = vadd.f32 %v6094, %v6182
        %6184 = vmatmul.bf16.gmra.mxu0 %v5717
        %v6185 = vpop.f32.mrf.mxu0
        %v6186 = vadd.f32 %v6097, %v6185
        %v6187 = vpop.f32.mrf.mxu0
        %v6188 = vadd.f32 %v6099, %v6187
        %6189 = vmatmul.bf16.gmra.mxu0 %v5720
        %v6190 = vpop.f32.mrf.mxu0
        %v6191 = vadd.f32 %v6102, %v6190
        %v6192 = vpop.f32.mrf.mxu0
        %v6193 = vadd.f32 %v6104, %v6192
        %6194 = vmatmul.bf16.gmra.mxu0 %v5723
        %v6195 = vpop.f32.mrf.mxu0
        %v6196 = vadd.f32 %v6107, %v6195
        %v6197 = vpop.f32.mrf.mxu0
        %v6198 = vadd.f32 %v6109, %v6197
        %6199 = vdwg.mxu0
        %v6248 = vunpack.c.l.b16 %v5164
        %v6249 = vunpack.c.l.b16 %v5165
        %v6250 = vunpack.c.l.b16 %v5166
        %v6251 = vunpack.c.l.b16 %v5167
        %v6252 = vunpack.c.l.b16 %v5168
        %v6253 = vunpack.c.l.b16 %v5169
        %v6254 = vunpack.c.l.b16 %v5170
        %v6255 = vunpack.c.l.b16 %v5171
        %v6256 = vunpack.c.l.b16 %v5172
        %v6257 = vunpack.c.l.b16 %v5173
        %v6258 = vunpack.c.l.b16 %v5174
        %v6259 = vunpack.c.l.b16 %v5175
        %v6260 = vunpack.c.l.b16 %v5176
        %v6261 = vunpack.c.l.b16 %v5177
        %v6262 = vunpack.c.l.b16 %v5178
        %v6263 = vunpack.c.l.b16 %v5179
        %v6264 = vunpack.c.l.b16 %v5180
        %v6265 = vunpack.c.l.b16 %v5181
        %v6266 = vunpack.c.l.b16 %v5182
        %v6267 = vunpack.c.l.b16 %v5183
        %v6268 = vunpack.c.l.b16 %v5184
        %v6269 = vunpack.c.l.b16 %v5185
        %v6270 = vunpack.c.l.b16 %v5186
        %v6271 = vunpack.c.l.b16 %v5187
        %v6272 = vunpack.c.l.b16 %v5188
        %v6273 = vunpack.c.l.b16 %v5189
        %v6274 = vunpack.c.l.b16 %v5190
        %v6275 = vunpack.c.l.b16 %v5191
        %v6276 = vunpack.c.l.b16 %v5192
        %v6277 = vunpack.c.l.b16 %v5193
        %v6278 = vunpack.c.l.b16 %v5194
        %v6279 = vunpack.c.l.b16 %v5195
        %v6280 = vunpack.c.l.b16 %v5196
        %v6281 = vunpack.c.l.b16 %v5197
        %v6282 = vunpack.c.l.b16 %v5198
        %v6283 = vunpack.c.l.b16 %v5199
        %v6284 = vunpack.c.l.b16 %v5200
        %v6285 = vunpack.c.l.b16 %v5201
        %v6286 = vunpack.c.l.b16 %v5202
        %v6287 = vunpack.c.l.b16 %v5203
        %v6288 = vunpack.c.l.b16 %v5204
        %v6289 = vunpack.c.l.b16 %v5205
        %v6290 = vunpack.c.l.b16 %v5206
        %v6291 = vunpack.c.l.b16 %v5207
        %v6292 = vunpack.c.l.b16 %v5208
        %v6293 = vunpack.c.l.b16 %v5209
        %v6294 = vunpack.c.l.b16 %v5210
        %v6295 = vunpack.c.l.b16 %v5211
        %v6296 = vpack.c.b16 %v6249, %v6248
        %v6297 = vpack.c.b16 %v6251, %v6250
        %v6298 = vpack.c.b16 %v6253, %v6252
        %v6299 = vpack.c.b16 %v6255, %v6254
        %v6300 = vpack.c.b16 %v6257, %v6256
        %v6301 = vpack.c.b16 %v6259, %v6258
        %v6302 = vpack.c.b16 %v6261, %v6260
        %v6303 = vpack.c.b16 %v6263, %v6262
        %v6304 = vpack.c.b16 %v6265, %v6264
        %v6305 = vpack.c.b16 %v6267, %v6266
        %v6306 = vpack.c.b16 %v6269, %v6268
        %v6307 = vpack.c.b16 %v6271, %v6270
        %v6308 = vpack.c.b16 %v6273, %v6272
        %v6309 = vpack.c.b16 %v6275, %v6274
        %v6310 = vpack.c.b16 %v6277, %v6276
        %v6311 = vpack.c.b16 %v6279, %v6278
        %v6312 = vpack.c.b16 %v6281, %v6280
        %v6313 = vpack.c.b16 %v6283, %v6282
        %v6314 = vpack.c.b16 %v6285, %v6284
        %v6315 = vpack.c.b16 %v6287, %v6286
        %v6316 = vpack.c.b16 %v6289, %v6288
        %v6317 = vpack.c.b16 %v6291, %v6290
        %v6318 = vpack.c.b16 %v6293, %v6292
        %v6319 = vpack.c.b16 %v6295, %v6294
        %6344 = vmatpush.bf16.msra.mxu0 %v6303
        %6345 = vmatpush.bf16.msra.mxu0 %v6302
        %6346 = vmatpush.bf16.msra.mxu0 %v6301
        %6347 = vmatpush.bf16.msra.mxu0 %v6300
        %6348 = vmatpush.bf16.msra.mxu0 %v6299
        %6349 = vmatpush.bf16.msra.mxu0 %v6298
        %6350 = vmatpush.bf16.msra.mxu0 %v6297
        %6351 = vmatpush.bf16.msra.mxu0 %v6296
        %6352 = vmatmul.bf16.gmra.mxu0 %v4764
        %v6353 = vpop.f32.mrf.mxu0
        %v6354 = vadd.f32 %v6121, %v6353
        %v6355 = vpop.f32.mrf.mxu0
        %v6356 = vadd.f32 %v6123, %v6355
        %6357 = vmatmul.bf16.gmra.mxu0 %v4765
        %v6358 = vpop.f32.mrf.mxu0
        %v6359 = vadd.f32 %v6126, %v6358
        %v6360 = vpop.f32.mrf.mxu0
        %v6361 = vadd.f32 %v6128, %v6360
        %6362 = vmatmul.bf16.gmra.mxu0 %v4766
        %v6363 = vpop.f32.mrf.mxu0
        %v6364 = vadd.f32 %v6131, %v6363
        %v6365 = vpop.f32.mrf.mxu0
        %v6366 = vadd.f32 %v6133, %v6365
        %6367 = vmatmul.bf16.gmra.mxu0 %v4767
        %v6368 = vpop.f32.mrf.mxu0
        %v6369 = vadd.f32 %v6136, %v6368
        %v6370 = vpop.f32.mrf.mxu0
        %v6371 = vadd.f32 %v6138, %v6370
        %6372 = vmatmul.bf16.gmra.mxu0 %v4768
        %v6373 = vpop.f32.mrf.mxu0
        %v6374 = vadd.f32 %v6141, %v6373
        %v6375 = vpop.f32.mrf.mxu0
        %v6376 = vadd.f32 %v6143, %v6375
        %6377 = vmatmul.bf16.gmra.mxu0 %v4769
        %v6378 = vpop.f32.mrf.mxu0
        %v6379 = vadd.f32 %v6146, %v6378
        %v6380 = vpop.f32.mrf.mxu0
        %v6381 = vadd.f32 %v6148, %v6380
        %6382 = vmatmul.bf16.gmra.mxu0 %v4770
        %v6383 = vpop.f32.mrf.mxu0
        %v6384 = vadd.f32 %v6151, %v6383
        %v6385 = vpop.f32.mrf.mxu0
        %v6386 = vadd.f32 %v6153, %v6385
        %6387 = vmatmul.bf16.gmra.mxu0 %v4771
        %v6388 = vpop.f32.mrf.mxu0
        %v6389 = vadd.f32 %v6156, %v6388
        %v6390 = vpop.f32.mrf.mxu0
        %v6391 = vadd.f32 %v6158, %v6390
        %6392 = vmatmul.bf16.gmra.mxu0 %v4772
        %v6393 = vpop.f32.mrf.mxu0
        %v6394 = vadd.f32 %v6161, %v6393
        %v6395 = vpop.f32.mrf.mxu0
        %v6396 = vadd.f32 %v6163, %v6395
        %6397 = vmatmul.bf16.gmra.mxu0 %v4773
        %v6398 = vpop.f32.mrf.mxu0
        %v6399 = vadd.f32 %v6166, %v6398
        %v6400 = vpop.f32.mrf.mxu0
        %v6401 = vadd.f32 %v6168, %v6400
        %6402 = vmatmul.bf16.gmra.mxu0 %v4774
        %v6403 = vpop.f32.mrf.mxu0
        %v6404 = vadd.f32 %v6171, %v6403
        %v6405 = vpop.f32.mrf.mxu0
        %v6406 = vadd.f32 %v6173, %v6405
        %6407 = vmatmul.bf16.gmra.mxu0 %v4775
        %v6408 = vpop.f32.mrf.mxu0
        %v6409 = vadd.f32 %v6176, %v6408
        %v6410 = vpop.f32.mrf.mxu0
        %v6411 = vadd.f32 %v6178, %v6410
        %6412 = vmatmul.bf16.gmra.mxu0 %v4776
        %v6413 = vpop.f32.mrf.mxu0
        %v6414 = vadd.f32 %v6181, %v6413
        %v6415 = vpop.f32.mrf.mxu0
        %v6416 = vadd.f32 %v6183, %v6415
        %6417 = vmatmul.bf16.gmra.mxu0 %v4777
        %v6418 = vpop.f32.mrf.mxu0
        %v6419 = vadd.f32 %v6186, %v6418
        %v6420 = vpop.f32.mrf.mxu0
        %v6421 = vadd.f32 %v6188, %v6420
        %6422 = vmatmul.bf16.gmra.mxu0 %v4778
        %v6423 = vpop.f32.mrf.mxu0
        %v6424 = vadd.f32 %v6191, %v6423
        %v6425 = vpop.f32.mrf.mxu0
        %v6426 = vadd.f32 %v6193, %v6425
        %6427 = vmatmul.bf16.gmra.mxu0 %v4779
        %v6428 = vpop.f32.mrf.mxu0
        %v6429 = vadd.f32 %v6196, %v6428
        %v6430 = vpop.f32.mrf.mxu0
        %v6431 = vadd.f32 %v6198, %v6430
        %6432 = vdwg.mxu0
        %6433 = vmatpush.bf16.msra.mxu0 %v6311
        %6434 = vmatpush.bf16.msra.mxu0 %v6310
        %6435 = vmatpush.bf16.msra.mxu0 %v6309
        %6436 = vmatpush.bf16.msra.mxu0 %v6308
        %6437 = vmatpush.bf16.msra.mxu0 %v6307
        %6438 = vmatpush.bf16.msra.mxu0 %v6306
        %6439 = vmatpush.bf16.msra.mxu0 %v6305
        %6440 = vmatpush.bf16.msra.mxu0 %v6304
        %6441 = vmatmul.bf16.gmra.mxu0 %v4855
        %v6442 = vpop.f32.mrf.mxu0
        %v6443 = vadd.f32 %v6354, %v6442
        %v6444 = vpop.f32.mrf.mxu0
        %v6445 = vadd.f32 %v6356, %v6444
        %6446 = vmatmul.bf16.gmra.mxu0 %v4867
        %v6447 = vpop.f32.mrf.mxu0
        %v6448 = vadd.f32 %v6359, %v6447
        %v6449 = vpop.f32.mrf.mxu0
        %v6450 = vadd.f32 %v6361, %v6449
        %6451 = vmatmul.bf16.gmra.mxu0 %v4879
        %v6452 = vpop.f32.mrf.mxu0
        %v6453 = vadd.f32 %v6364, %v6452
        %v6454 = vpop.f32.mrf.mxu0
        %v6455 = vadd.f32 %v6366, %v6454
        %6456 = vmatmul.bf16.gmra.mxu0 %v4891
        %v6457 = vpop.f32.mrf.mxu0
        %v6458 = vadd.f32 %v6369, %v6457
        %v6459 = vpop.f32.mrf.mxu0
        %v6460 = vadd.f32 %v6371, %v6459
        %6461 = vmatmul.bf16.gmra.mxu0 %v4903
        %v6462 = vpop.f32.mrf.mxu0
        %v6463 = vadd.f32 %v6374, %v6462
        %v6464 = vpop.f32.mrf.mxu0
        %v6465 = vadd.f32 %v6376, %v6464
        %6466 = vmatmul.bf16.gmra.mxu0 %v4915
        %v6467 = vpop.f32.mrf.mxu0
        %v6468 = vadd.f32 %v6379, %v6467
        %v6469 = vpop.f32.mrf.mxu0
        %v6470 = vadd.f32 %v6381, %v6469
        %6471 = vmatmul.bf16.gmra.mxu0 %v4927
        %v6472 = vpop.f32.mrf.mxu0
        %v6473 = vadd.f32 %v6384, %v6472
        %v6474 = vpop.f32.mrf.mxu0
        %v6475 = vadd.f32 %v6386, %v6474
        %6476 = vmatmul.bf16.gmra.mxu0 %v4939
        %v6477 = vpop.f32.mrf.mxu0
        %v6478 = vadd.f32 %v6389, %v6477
        %v6479 = vpop.f32.mrf.mxu0
        %v6480 = vadd.f32 %v6391, %v6479
        %6481 = vmatmul.bf16.gmra.mxu0 %v4951
        %v6482 = vpop.f32.mrf.mxu0
        %v6483 = vadd.f32 %v6394, %v6482
        %v6484 = vpop.f32.mrf.mxu0
        %v6485 = vadd.f32 %v6396, %v6484
        %6486 = vmatmul.bf16.gmra.mxu0 %v4963
        %v6487 = vpop.f32.mrf.mxu0
        %v6488 = vadd.f32 %v6399, %v6487
        %v6489 = vpop.f32.mrf.mxu0
        %v6490 = vadd.f32 %v6401, %v6489
        %6491 = vmatmul.bf16.gmra.mxu0 %v4975
        %v6492 = vpop.f32.mrf.mxu0
        %v6493 = vadd.f32 %v6404, %v6492
        %v6494 = vpop.f32.mrf.mxu0
        %v6495 = vadd.f32 %v6406, %v6494
        %6496 = vmatmul.bf16.gmra.mxu0 %v4987
        %v6497 = vpop.f32.mrf.mxu0
        %v6498 = vadd.f32 %v6409, %v6497
        %v6499 = vpop.f32.mrf.mxu0
        %v6500 = vadd.f32 %v6411, %v6499
        %6501 = vmatmul.bf16.gmra.mxu0 %v4999
        %v6502 = vpop.f32.mrf.mxu0
        %v6503 = vadd.f32 %v6414, %v6502
        %v6504 = vpop.f32.mrf.mxu0
        %v6505 = vadd.f32 %v6416, %v6504
        %6506 = vmatmul.bf16.gmra.mxu0 %v5011
        %v6507 = vpop.f32.mrf.mxu0
        %v6508 = vadd.f32 %v6419, %v6507
        %v6509 = vpop.f32.mrf.mxu0
        %v6510 = vadd.f32 %v6421, %v6509
        %6511 = vmatmul.bf16.gmra.mxu0 %v5023
        %v6512 = vpop.f32.mrf.mxu0
        %v6513 = vadd.f32 %v6424, %v6512
        %v6514 = vpop.f32.mrf.mxu0
        %v6515 = vadd.f32 %v6426, %v6514
        %6516 = vmatmul.bf16.gmra.mxu0 %v5035
        %v6517 = vpop.f32.mrf.mxu0
        %v6518 = vadd.f32 %v6429, %v6517
        %v6519 = vpop.f32.mrf.mxu0
        %v6520 = vadd.f32 %v6431, %v6519
        %6521 = vdwg.mxu0
        %6522 = vmatpush.bf16.msra.mxu0 %v6319
        %6523 = vmatpush.bf16.msra.mxu0 %v6318
        %6524 = vmatpush.bf16.msra.mxu0 %v6317
        %6525 = vmatpush.bf16.msra.mxu0 %v6316
        %6526 = vmatpush.bf16.msra.mxu0 %v6315
        %6527 = vmatpush.bf16.msra.mxu0 %v6314
        %6528 = vmatpush.bf16.msra.mxu0 %v6313
        %6529 = vmatpush.bf16.msra.mxu0 %v6312
        %6530 = vmatmul.bf16.gmra.mxu0 %v5102
        %v6531 = vpop.f32.mrf.mxu0
        %v6532 = vadd.f32 %v6443, %v6531
        %v6533 = vpop.f32.mrf.mxu0
        %v6534 = vadd.f32 %v6445, %v6533
        %6535 = vmatmul.bf16.gmra.mxu0 %v5105
        %v6536 = vpop.f32.mrf.mxu0
        %v6537 = vadd.f32 %v6448, %v6536
        %v6538 = vpop.f32.mrf.mxu0
        %v6539 = vadd.f32 %v6450, %v6538
        %6540 = vmatmul.bf16.gmra.mxu0 %v5108
        %v6541 = vpop.f32.mrf.mxu0
        %v6542 = vadd.f32 %v6453, %v6541
        %v6543 = vpop.f32.mrf.mxu0
        %v6544 = vadd.f32 %v6455, %v6543
        %6545 = vmatmul.bf16.gmra.mxu0 %v5111
        %v6546 = vpop.f32.mrf.mxu0
        %v6547 = vadd.f32 %v6458, %v6546
        %v6548 = vpop.f32.mrf.mxu0
        %v6549 = vadd.f32 %v6460, %v6548
        %6550 = vmatmul.bf16.gmra.mxu0 %v5114
        %v6551 = vpop.f32.mrf.mxu0
        %v6552 = vadd.f32 %v6463, %v6551
        %v6553 = vpop.f32.mrf.mxu0
        %v6554 = vadd.f32 %v6465, %v6553
        %6555 = vmatmul.bf16.gmra.mxu0 %v5117
        %v6556 = vpop.f32.mrf.mxu0
        %v6557 = vadd.f32 %v6468, %v6556
        %v6558 = vpop.f32.mrf.mxu0
        %v6559 = vadd.f32 %v6470, %v6558
        %6560 = vmatmul.bf16.gmra.mxu0 %v5120
        %v6561 = vpop.f32.mrf.mxu0
        %v6562 = vadd.f32 %v6473, %v6561
        %v6563 = vpop.f32.mrf.mxu0
        %v6564 = vadd.f32 %v6475, %v6563
        %6565 = vmatmul.bf16.gmra.mxu0 %v5123
        %v6566 = vpop.f32.mrf.mxu0
        %v6567 = vadd.f32 %v6478, %v6566
        %v6568 = vpop.f32.mrf.mxu0
        %v6569 = vadd.f32 %v6480, %v6568
        %6570 = vmatmul.bf16.gmra.mxu0 %v5126
        %v6571 = vpop.f32.mrf.mxu0
        %v6572 = vadd.f32 %v6483, %v6571
        %v6573 = vpop.f32.mrf.mxu0
        %v6574 = vadd.f32 %v6485, %v6573
        %6575 = vmatmul.bf16.gmra.mxu0 %v5129
        %v6576 = vpop.f32.mrf.mxu0
        %v6577 = vadd.f32 %v6488, %v6576
        %v6578 = vpop.f32.mrf.mxu0
        %v6579 = vadd.f32 %v6490, %v6578
        %6580 = vmatmul.bf16.gmra.mxu0 %v5132
        %v6581 = vpop.f32.mrf.mxu0
        %v6582 = vadd.f32 %v6493, %v6581
        %v6583 = vpop.f32.mrf.mxu0
        %v6584 = vadd.f32 %v6495, %v6583
        %6585 = vmatmul.bf16.gmra.mxu0 %v5135
        %v6586 = vpop.f32.mrf.mxu0
        %v6587 = vadd.f32 %v6498, %v6586
        %v6588 = vpop.f32.mrf.mxu0
        %v6589 = vadd.f32 %v6500, %v6588
        %6590 = vmatmul.bf16.gmra.mxu0 %v5138
        %v6591 = vpop.f32.mrf.mxu0
        %v6592 = vadd.f32 %v6503, %v6591
        %v6593 = vpop.f32.mrf.mxu0
        %v6594 = vadd.f32 %v6505, %v6593
        %6595 = vmatmul.bf16.gmra.mxu0 %v5141
        %v6596 = vpop.f32.mrf.mxu0
        %v6597 = vadd.f32 %v6508, %v6596
        %v6598 = vpop.f32.mrf.mxu0
        %v6599 = vadd.f32 %v6510, %v6598
        %6600 = vmatmul.bf16.gmra.mxu0 %v5144
        %v6601 = vpop.f32.mrf.mxu0
        %v6602 = vadd.f32 %v6513, %v6601
        %v6603 = vpop.f32.mrf.mxu0
        %v6604 = vadd.f32 %v6515, %v6603
        %6605 = vmatmul.bf16.gmra.mxu0 %v5147
        %v6606 = vpop.f32.mrf.mxu0
        %v6607 = vadd.f32 %v6518, %v6606
        %v6608 = vpop.f32.mrf.mxu0
        %v6609 = vadd.f32 %v6520, %v6608
        %6610 = vdwg.mxu0
        %s6611 = scalar_lea.vmem [#allocation3], 24
        %v6612 = vld [vmem:[%s6611] sm:$0xf]
        %v6613 = vld [vmem:[%s6611 + $0x4] sm:$0xf]
        %v6614 = vld [vmem:[%s6611 + $0xc] sm:$0xf]
        %v6615 = vld [vmem:[%s6611 + $0x10] sm:$0xf]
        %v6616 = vld [vmem:[%s6611 + $0x18] sm:$0xf]
        %v6617 = vld [vmem:[%s6611 + $0x1c] sm:$0xf]
        %v6618 = vld [vmem:[%s6611 + $0x24] sm:$0xf]
        %v6619 = vld [vmem:[%s6611 + $0x28] sm:$0xf]
        %v6620 = vld [vmem:[%s6611 + $0x30] sm:$0xf]
        %v6621 = vld [vmem:[%s6611 + $0x34] sm:$0xf]
        %v6622 = vld [vmem:[%s6611 + $0x3c] sm:$0xf]
        %v6623 = vld [vmem:[%s6611 + $0x40] sm:$0xf]
        %v6624 = vld [vmem:[%s6611 + $0x48] sm:$0xf]
        %v6625 = vld [vmem:[%s6611 + $0x4c] sm:$0xf]
        %v6626 = vld [vmem:[%s6611 + $0x54] sm:$0xf]
        %v6627 = vld [vmem:[%s6611 + $0x58] sm:$0xf]
        %v6628 = vld [vmem:[%s6611 + $0x60] sm:$0xf]
        %v6629 = vld [vmem:[%s6611 + $0x64] sm:$0xf]
        %v6630 = vld [vmem:[%s6611 + $0x6c] sm:$0xf]
        %v6631 = vld [vmem:[%s6611 + $0x70] sm:$0xf]
        %v6632 = vld [vmem:[%s6611 + $0x78] sm:$0xf]
        %v6633 = vld [vmem:[%s6611 + $0x7c] sm:$0xf]
        %v6634 = vld [vmem:[%s6611 + $0x84] sm:$0xf]
        %v6635 = vld [vmem:[%s6611 + $0x88] sm:$0xf]
        %v6636 = vld [vmem:[%s6611 + $0x90] sm:$0xf]
        %v6637 = vld [vmem:[%s6611 + $0x94] sm:$0xf]
        %v6638 = vld [vmem:[%s6611 + $0x9c] sm:$0xf]
        %v6639 = vld [vmem:[%s6611 + $0xa0] sm:$0xf]
        %v6640 = vld [vmem:[%s6611 + $0xa8] sm:$0xf]
        %v6641 = vld [vmem:[%s6611 + $0xac] sm:$0xf]
        %v6642 = vld [vmem:[%s6611 + $0xb4] sm:$0xf]
        %v6643 = vld [vmem:[%s6611 + $0xb8] sm:$0xf]
        %v6644 = vld [vmem:[%s6611 + $0x8] sm:$0x1]
        %v6645 = vld [vmem:[%s6611 + $0x14] sm:$0x1]
        %v6646 = vld [vmem:[%s6611 + $0x20] sm:$0x1]
        %v6647 = vld [vmem:[%s6611 + $0x2c] sm:$0x1]
        %v6648 = vld [vmem:[%s6611 + $0x38] sm:$0x1]
        %v6649 = vld [vmem:[%s6611 + $0x44] sm:$0x1]
        %v6650 = vld [vmem:[%s6611 + $0x50] sm:$0x1]
        %v6651 = vld [vmem:[%s6611 + $0x5c] sm:$0x1]
        %v6652 = vld [vmem:[%s6611 + $0x68] sm:$0x1]
        %v6653 = vld [vmem:[%s6611 + $0x74] sm:$0x1]
        %v6654 = vld [vmem:[%s6611 + $0x80] sm:$0x1]
        %v6655 = vld [vmem:[%s6611 + $0x8c] sm:$0x1]
        %v6656 = vld [vmem:[%s6611 + $0x98] sm:$0x1]
        %v6657 = vld [vmem:[%s6611 + $0xa4] sm:$0x1]
        %v6658 = vld [vmem:[%s6611 + $0xb0] sm:$0x1]
        %v6659 = vld [vmem:[%s6611 + $0xbc] sm:$0x1]
        %v6660 = vld [vmem:[%s6611] sm:$0xe]
        %v6661 = vld [vmem:[%s6611 + $0xc] sm:$0xe]
        %v6662 = vld [vmem:[%s6611 + $0x18] sm:$0xe]
        %v6663 = vld [vmem:[%s6611 + $0x24] sm:$0xe]
        %v6664 = vld [vmem:[%s6611 + $0x30] sm:$0xe]
        %v6665 = vld [vmem:[%s6611 + $0x3c] sm:$0xe]
        %v6666 = vld [vmem:[%s6611 + $0x48] sm:$0xe]
        %v6667 = vld [vmem:[%s6611 + $0x54] sm:$0xe]
        %v6668 = vld [vmem:[%s6611 + $0x60] sm:$0xe]
        %v6669 = vld [vmem:[%s6611 + $0x6c] sm:$0xe]
        %v6670 = vld [vmem:[%s6611 + $0x78] sm:$0xe]
        %v6671 = vld [vmem:[%s6611 + $0x84] sm:$0xe]
        %v6672 = vld [vmem:[%s6611 + $0x90] sm:$0xe]
        %v6673 = vld [vmem:[%s6611 + $0x9c] sm:$0xe]
        %v6674 = vld [vmem:[%s6611 + $0xa8] sm:$0xe]
        %v6675 = vld [vmem:[%s6611 + $0xb4] sm:$0xe]
        %v6708 = vunpack.c.l.b16 %v6612
        %v6709 = vunpack.c.l.b16 %v6613
        %v6710 = vunpack.c.l.b16 %v6614
        %v6711 = vunpack.c.l.b16 %v6615
        %v6712 = vunpack.c.l.b16 %v6616
        %v6713 = vunpack.c.l.b16 %v6617
        %v6714 = vunpack.c.l.b16 %v6618
        %v6715 = vunpack.c.l.b16 %v6619
        %v6716 = vunpack.c.l.b16 %v6620
        %v6717 = vunpack.c.l.b16 %v6621
        %v6718 = vunpack.c.l.b16 %v6622
        %v6719 = vunpack.c.l.b16 %v6623
        %v6720 = vunpack.c.l.b16 %v6624
        %v6721 = vunpack.c.l.b16 %v6625
        %v6722 = vunpack.c.l.b16 %v6626
        %v6723 = vunpack.c.l.b16 %v6627
        %v6724 = vunpack.c.l.b16 %v6628
        %v6725 = vunpack.c.l.b16 %v6629
        %v6726 = vunpack.c.l.b16 %v6630
        %v6727 = vunpack.c.l.b16 %v6631
        %v6728 = vunpack.c.l.b16 %v6632
        %v6729 = vunpack.c.l.b16 %v6633
        %v6730 = vunpack.c.l.b16 %v6634
        %v6731 = vunpack.c.l.b16 %v6635
        %v6732 = vunpack.c.l.b16 %v6636
        %v6733 = vunpack.c.l.b16 %v6637
        %v6734 = vunpack.c.l.b16 %v6638
        %v6735 = vunpack.c.l.b16 %v6639
        %v6736 = vunpack.c.l.b16 %v6640
        %v6737 = vunpack.c.l.b16 %v6641
        %v6738 = vunpack.c.l.b16 %v6642
        %v6739 = vunpack.c.l.b16 %v6643
        %v6740 = vpack.c.b16 %v6709, %v6708
        %v6741 = vpack.c.b16 %v6711, %v6710
        %v6742 = vpack.c.b16 %v6713, %v6712
        %v6743 = vpack.c.b16 %v6715, %v6714
        %v6744 = vpack.c.b16 %v6717, %v6716
        %v6745 = vpack.c.b16 %v6719, %v6718
        %v6746 = vpack.c.b16 %v6721, %v6720
        %v6747 = vpack.c.b16 %v6723, %v6722
        %v6748 = vpack.c.b16 %v6725, %v6724
        %v6749 = vpack.c.b16 %v6727, %v6726
        %v6750 = vpack.c.b16 %v6729, %v6728
        %v6751 = vpack.c.b16 %v6731, %v6730
        %v6752 = vpack.c.b16 %v6733, %v6732
        %v6753 = vpack.c.b16 %v6735, %v6734
        %v6754 = vpack.c.b16 %v6737, %v6736
        %v6755 = vpack.c.b16 %v6739, %v6738
        %v6788 = vunpack.c.l.b16 %v6644
        %v6789 = vunpack.c.l.b16 %v6645
        %v6790 = vunpack.c.l.b16 %v6646
        %v6791 = vunpack.c.l.b16 %v6647
        %v6792 = vunpack.c.l.b16 %v6648
        %v6793 = vunpack.c.l.b16 %v6649
        %v6794 = vunpack.c.l.b16 %v6650
        %v6795 = vunpack.c.l.b16 %v6651
        %v6796 = vunpack.c.l.b16 %v6652
        %v6797 = vunpack.c.l.b16 %v6653
        %v6798 = vunpack.c.l.b16 %v6654
        %v6799 = vunpack.c.l.b16 %v6655
        %v6800 = vunpack.c.l.b16 %v6656
        %v6801 = vunpack.c.l.b16 %v6657
        %v6802 = vunpack.c.l.b16 %v6658
        %v6803 = vunpack.c.l.b16 %v6659
        %v6804 = vpack.c.b16 %v6788, %v6788
        %v6805 = vpack.c.b16 %v6789, %v6789
        %v6806 = vpack.c.b16 %v6790, %v6790
        %v6807 = vpack.c.b16 %v6791, %v6791
        %v6808 = vpack.c.b16 %v6792, %v6792
        %v6809 = vpack.c.b16 %v6793, %v6793
        %v6810 = vpack.c.b16 %v6794, %v6794
        %v6811 = vpack.c.b16 %v6795, %v6795
        %v6812 = vpack.c.b16 %v6796, %v6796
        %v6813 = vpack.c.b16 %v6797, %v6797
        %v6814 = vpack.c.b16 %v6798, %v6798
        %v6815 = vpack.c.b16 %v6799, %v6799
        %v6816 = vpack.c.b16 %v6800, %v6800
        %v6817 = vpack.c.b16 %v6801, %v6801
        %v6818 = vpack.c.b16 %v6802, %v6802
        %v6819 = vpack.c.b16 %v6803, %v6803
        %v6821 = vshrl.u32 %v6740, 16
        %v6823 = vshll.u32 %v6740, 16
        %v6825 = vrot.slane %v6823, 1
        %v6826 = vor.u32 %v6821, %v6825
        %v6828 = vshll.u32 %v6804, 16
        %v6830 = vrot.slane %v6828, 1
        %v6831 = vsel %vm1277, %v6826, %v6830
        %v6833 = vshrl.u32 %v6741, 16
        %v6835 = vshll.u32 %v6741, 16
        %v6837 = vrot.slane %v6835, 1
        %v6838 = vor.u32 %v6833, %v6837
        %v6840 = vshll.u32 %v6805, 16
        %v6842 = vrot.slane %v6840, 1
        %v6843 = vsel %vm1277, %v6838, %v6842
        %v6845 = vshrl.u32 %v6742, 16
        %v6847 = vshll.u32 %v6742, 16
        %v6849 = vrot.slane %v6847, 1
        %v6850 = vor.u32 %v6845, %v6849
        %v6852 = vshll.u32 %v6806, 16
        %v6854 = vrot.slane %v6852, 1
        %v6855 = vsel %vm1277, %v6850, %v6854
        %v6857 = vshrl.u32 %v6743, 16
        %v6859 = vshll.u32 %v6743, 16
        %v6861 = vrot.slane %v6859, 1
        %v6862 = vor.u32 %v6857, %v6861
        %v6864 = vshll.u32 %v6807, 16
        %v6866 = vrot.slane %v6864, 1
        %v6867 = vsel %vm1277, %v6862, %v6866
        %v6869 = vshrl.u32 %v6744, 16
        %v6871 = vshll.u32 %v6744, 16
        %v6873 = vrot.slane %v6871, 1
        %v6874 = vor.u32 %v6869, %v6873
        %v6876 = vshll.u32 %v6808, 16
        %v6878 = vrot.slane %v6876, 1
        %v6879 = vsel %vm1277, %v6874, %v6878
        %v6881 = vshrl.u32 %v6745, 16
        %v6883 = vshll.u32 %v6745, 16
        %v6885 = vrot.slane %v6883, 1
        %v6886 = vor.u32 %v6881, %v6885
        %v6888 = vshll.u32 %v6809, 16
        %v6890 = vrot.slane %v6888, 1
        %v6891 = vsel %vm1277, %v6886, %v6890
        %v6893 = vshrl.u32 %v6746, 16
        %v6895 = vshll.u32 %v6746, 16
        %v6897 = vrot.slane %v6895, 1
        %v6898 = vor.u32 %v6893, %v6897
        %v6900 = vshll.u32 %v6810, 16
        %v6902 = vrot.slane %v6900, 1
        %v6903 = vsel %vm1277, %v6898, %v6902
        %v6905 = vshrl.u32 %v6747, 16
        %v6907 = vshll.u32 %v6747, 16
        %v6909 = vrot.slane %v6907, 1
        %v6910 = vor.u32 %v6905, %v6909
        %v6912 = vshll.u32 %v6811, 16
        %v6914 = vrot.slane %v6912, 1
        %v6915 = vsel %vm1277, %v6910, %v6914
        %v6917 = vshrl.u32 %v6748, 16
        %v6919 = vshll.u32 %v6748, 16
        %v6921 = vrot.slane %v6919, 1
        %v6922 = vor.u32 %v6917, %v6921
        %v6924 = vshll.u32 %v6812, 16
        %v6926 = vrot.slane %v6924, 1
        %v6927 = vsel %vm1277, %v6922, %v6926
        %v6929 = vshrl.u32 %v6749, 16
        %v6931 = vshll.u32 %v6749, 16
        %v6933 = vrot.slane %v6931, 1
        %v6934 = vor.u32 %v6929, %v6933
        %v6936 = vshll.u32 %v6813, 16
        %v6938 = vrot.slane %v6936, 1
        %v6939 = vsel %vm1277, %v6934, %v6938
        %v6941 = vshrl.u32 %v6750, 16
        %v6943 = vshll.u32 %v6750, 16
        %v6945 = vrot.slane %v6943, 1
        %v6946 = vor.u32 %v6941, %v6945
        %v6948 = vshll.u32 %v6814, 16
        %v6950 = vrot.slane %v6948, 1
        %v6951 = vsel %vm1277, %v6946, %v6950
        %v6953 = vshrl.u32 %v6751, 16
        %v6955 = vshll.u32 %v6751, 16
        %v6957 = vrot.slane %v6955, 1
        %v6958 = vor.u32 %v6953, %v6957
        %v6960 = vshll.u32 %v6815, 16
        %v6962 = vrot.slane %v6960, 1
        %v6963 = vsel %vm1277, %v6958, %v6962
        %v6965 = vshrl.u32 %v6752, 16
        %v6967 = vshll.u32 %v6752, 16
        %v6969 = vrot.slane %v6967, 1
        %v6970 = vor.u32 %v6965, %v6969
        %v6972 = vshll.u32 %v6816, 16
        %v6974 = vrot.slane %v6972, 1
        %v6975 = vsel %vm1277, %v6970, %v6974
        %v6977 = vshrl.u32 %v6753, 16
        %v6979 = vshll.u32 %v6753, 16
        %v6981 = vrot.slane %v6979, 1
        %v6982 = vor.u32 %v6977, %v6981
        %v6984 = vshll.u32 %v6817, 16
        %v6986 = vrot.slane %v6984, 1
        %v6987 = vsel %vm1277, %v6982, %v6986
        %v6989 = vshrl.u32 %v6754, 16
        %v6991 = vshll.u32 %v6754, 16
        %v6993 = vrot.slane %v6991, 1
        %v6994 = vor.u32 %v6989, %v6993
        %v6996 = vshll.u32 %v6818, 16
        %v6998 = vrot.slane %v6996, 1
        %v6999 = vsel %vm1277, %v6994, %v6998
        %v7001 = vshrl.u32 %v6755, 16
        %v7003 = vshll.u32 %v6755, 16
        %v7005 = vrot.slane %v7003, 1
        %v7006 = vor.u32 %v7001, %v7005
        %v7008 = vshll.u32 %v6819, 16
        %v7010 = vrot.slane %v7008, 1
        %v7011 = vsel %vm1277, %v7006, %v7010
        %v7044 = vunpack.c.l.b16 %v6660
        %v7045 = vunpack.c.l.b16 %v6661
        %v7046 = vunpack.c.l.b16 %v6662
        %v7047 = vunpack.c.l.b16 %v6663
        %v7048 = vunpack.c.l.b16 %v6664
        %v7049 = vunpack.c.l.b16 %v6665
        %v7050 = vunpack.c.l.b16 %v6666
        %v7051 = vunpack.c.l.b16 %v6667
        %v7052 = vunpack.c.l.b16 %v6668
        %v7053 = vunpack.c.l.b16 %v6669
        %v7054 = vunpack.c.l.b16 %v6670
        %v7055 = vunpack.c.l.b16 %v6671
        %v7056 = vunpack.c.l.b16 %v6672
        %v7057 = vunpack.c.l.b16 %v6673
        %v7058 = vunpack.c.l.b16 %v6674
        %v7059 = vunpack.c.l.b16 %v6675
        %v7060 = vpack.c.b16 %v6709, %v7044
        %v7061 = vpack.c.b16 %v6711, %v7045
        %v7062 = vpack.c.b16 %v6713, %v7046
        %v7063 = vpack.c.b16 %v6715, %v7047
        %v7064 = vpack.c.b16 %v6717, %v7048
        %v7065 = vpack.c.b16 %v6719, %v7049
        %v7066 = vpack.c.b16 %v6721, %v7050
        %v7067 = vpack.c.b16 %v6723, %v7051
        %v7068 = vpack.c.b16 %v6725, %v7052
        %v7069 = vpack.c.b16 %v6727, %v7053
        %v7070 = vpack.c.b16 %v6729, %v7054
        %v7071 = vpack.c.b16 %v6731, %v7055
        %v7072 = vpack.c.b16 %v6733, %v7056
        %v7073 = vpack.c.b16 %v6735, %v7057
        %v7074 = vpack.c.b16 %v6737, %v7058
        %v7075 = vpack.c.b16 %v6739, %v7059
        %v7076 = vrot.slane %v7060, 1
        %v7077 = vrot.slane %v6804, 1
        %v7078 = vsel %vm1534, %v7076, %v7077
        %v7079 = vrot.slane %v7061, 1
        %v7080 = vrot.slane %v6805, 1
        %v7081 = vsel %vm1534, %v7079, %v7080
        %v7082 = vrot.slane %v7062, 1
        %v7083 = vrot.slane %v6806, 1
        %v7084 = vsel %vm1534, %v7082, %v7083
        %v7085 = vrot.slane %v7063, 1
        %v7086 = vrot.slane %v6807, 1
        %v7087 = vsel %vm1534, %v7085, %v7086
        %v7088 = vrot.slane %v7064, 1
        %v7089 = vrot.slane %v6808, 1
        %v7090 = vsel %vm1534, %v7088, %v7089
        %v7091 = vrot.slane %v7065, 1
        %v7092 = vrot.slane %v6809, 1
        %v7093 = vsel %vm1534, %v7091, %v7092
        %v7094 = vrot.slane %v7066, 1
        %v7095 = vrot.slane %v6810, 1
        %v7096 = vsel %vm1534, %v7094, %v7095
        %v7097 = vrot.slane %v7067, 1
        %v7098 = vrot.slane %v6811, 1
        %v7099 = vsel %vm1534, %v7097, %v7098
        %v7100 = vrot.slane %v7068, 1
        %v7101 = vrot.slane %v6812, 1
        %v7102 = vsel %vm1534, %v7100, %v7101
        %v7103 = vrot.slane %v7069, 1
        %v7104 = vrot.slane %v6813, 1
        %v7105 = vsel %vm1534, %v7103, %v7104
        %v7106 = vrot.slane %v7070, 1
        %v7107 = vrot.slane %v6814, 1
        %v7108 = vsel %vm1534, %v7106, %v7107
        %v7109 = vrot.slane %v7071, 1
        %v7110 = vrot.slane %v6815, 1
        %v7111 = vsel %vm1534, %v7109, %v7110
        %v7112 = vrot.slane %v7072, 1
        %v7113 = vrot.slane %v6816, 1
        %v7114 = vsel %vm1534, %v7112, %v7113
        %v7115 = vrot.slane %v7073, 1
        %v7116 = vrot.slane %v6817, 1
        %v7117 = vsel %vm1534, %v7115, %v7116
        %v7118 = vrot.slane %v7074, 1
        %v7119 = vrot.slane %v6818, 1
        %v7120 = vsel %vm1534, %v7118, %v7119
        %v7121 = vrot.slane %v7075, 1
        %v7122 = vrot.slane %v6819, 1
        %v7123 = vsel %vm1534, %v7121, %v7122
        %s7140 = scalar_lea.vmem [#allocation9], 384
        %v7141 = vld [vmem:[%s7140] sm:$0xf]
        %v7142 = vld [vmem:[%s7140 + $0x4] sm:$0xf]
        %v7143 = vld [vmem:[%s7140 + $0x8] sm:$0xf]
        %v7144 = vld [vmem:[%s7140 + $0xc] sm:$0xf]
        %v7145 = vld [vmem:[%s7140 + $0x10] sm:$0xf]
        %v7146 = vld [vmem:[%s7140 + $0x14] sm:$0xf]
        %v7147 = vld [vmem:[%s7140 + $0x18] sm:$0xf]
        %v7148 = vld [vmem:[%s7140 + $0x1c] sm:$0xf]
        %v7149 = vld [vmem:[%s7140 + $0x20] sm:$0xf]
        %v7150 = vld [vmem:[%s7140 + $0x24] sm:$0xf]
        %v7151 = vld [vmem:[%s7140 + $0x28] sm:$0xf]
        %v7152 = vld [vmem:[%s7140 + $0x2c] sm:$0xf]
        %v7153 = vld [vmem:[%s7140 + $0x30] sm:$0xf]
        %v7154 = vld [vmem:[%s7140 + $0x34] sm:$0xf]
        %v7155 = vld [vmem:[%s7140 + $0x38] sm:$0xf]
        %v7156 = vld [vmem:[%s7140 + $0x3c] sm:$0xf]
        %v7157 = vld [vmem:[%s7140 + $0x40] sm:$0xf]
        %v7158 = vld [vmem:[%s7140 + $0x44] sm:$0xf]
        %v7159 = vld [vmem:[%s7140 + $0x48] sm:$0xf]
        %v7160 = vld [vmem:[%s7140 + $0x4c] sm:$0xf]
        %v7161 = vld [vmem:[%s7140 + $0x50] sm:$0xf]
        %v7162 = vld [vmem:[%s7140 + $0x54] sm:$0xf]
        %v7163 = vld [vmem:[%s7140 + $0x58] sm:$0xf]
        %v7164 = vld [vmem:[%s7140 + $0x5c] sm:$0xf]
        %v7165 = vld [vmem:[%s7140 + $0x60] sm:$0xf]
        %v7166 = vld [vmem:[%s7140 + $0x64] sm:$0xf]
        %v7167 = vld [vmem:[%s7140 + $0x68] sm:$0xf]
        %v7168 = vld [vmem:[%s7140 + $0x6c] sm:$0xf]
        %v7169 = vld [vmem:[%s7140 + $0x70] sm:$0xf]
        %v7170 = vld [vmem:[%s7140 + $0x74] sm:$0xf]
        %v7171 = vld [vmem:[%s7140 + $0x78] sm:$0xf]
        %v7172 = vld [vmem:[%s7140 + $0x7c] sm:$0xf]
        %v7173 = vld [vmem:[%s7140 + $0x80] sm:$0xf]
        %v7174 = vld [vmem:[%s7140 + $0x84] sm:$0xf]
        %v7175 = vld [vmem:[%s7140 + $0x88] sm:$0xf]
        %v7176 = vld [vmem:[%s7140 + $0x8c] sm:$0xf]
        %v7177 = vld [vmem:[%s7140 + $0x90] sm:$0xf]
        %v7178 = vld [vmem:[%s7140 + $0x94] sm:$0xf]
        %v7179 = vld [vmem:[%s7140 + $0x98] sm:$0xf]
        %v7180 = vld [vmem:[%s7140 + $0x9c] sm:$0xf]
        %v7181 = vld [vmem:[%s7140 + $0xa0] sm:$0xf]
        %v7182 = vld [vmem:[%s7140 + $0xa4] sm:$0xf]
        %v7183 = vld [vmem:[%s7140 + $0xa8] sm:$0xf]
        %v7184 = vld [vmem:[%s7140 + $0xac] sm:$0xf]
        %v7185 = vld [vmem:[%s7140 + $0xb0] sm:$0xf]
        %v7186 = vld [vmem:[%s7140 + $0xb4] sm:$0xf]
        %v7187 = vld [vmem:[%s7140 + $0xb8] sm:$0xf]
        %v7188 = vld [vmem:[%s7140 + $0xbc] sm:$0xf]
        %v7237 = vunpack.c.l.b16 %v7141
        %v7238 = vunpack.c.l.b16 %v7142
        %v7239 = vunpack.c.l.b16 %v7143
        %v7240 = vunpack.c.l.b16 %v7144
        %v7241 = vunpack.c.l.b16 %v7145
        %v7242 = vunpack.c.l.b16 %v7146
        %v7243 = vunpack.c.l.b16 %v7147
        %v7244 = vunpack.c.l.b16 %v7148
        %v7245 = vunpack.c.l.b16 %v7149
        %v7246 = vunpack.c.l.b16 %v7150
        %v7247 = vunpack.c.l.b16 %v7151
        %v7248 = vunpack.c.l.b16 %v7152
        %v7249 = vunpack.c.l.b16 %v7153
        %v7250 = vunpack.c.l.b16 %v7154
        %v7251 = vunpack.c.l.b16 %v7155
        %v7252 = vunpack.c.l.b16 %v7156
        %v7253 = vunpack.c.l.b16 %v7157
        %v7254 = vunpack.c.l.b16 %v7158
        %v7255 = vunpack.c.l.b16 %v7159
        %v7256 = vunpack.c.l.b16 %v7160
        %v7257 = vunpack.c.l.b16 %v7161
        %v7258 = vunpack.c.l.b16 %v7162
        %v7259 = vunpack.c.l.b16 %v7163
        %v7260 = vunpack.c.l.b16 %v7164
        %v7261 = vunpack.c.l.b16 %v7165
        %v7262 = vunpack.c.l.b16 %v7166
        %v7263 = vunpack.c.l.b16 %v7167
        %v7264 = vunpack.c.l.b16 %v7168
        %v7265 = vunpack.c.l.b16 %v7169
        %v7266 = vunpack.c.l.b16 %v7170
        %v7267 = vunpack.c.l.b16 %v7171
        %v7268 = vunpack.c.l.b16 %v7172
        %v7269 = vunpack.c.l.b16 %v7173
        %v7270 = vunpack.c.l.b16 %v7174
        %v7271 = vunpack.c.l.b16 %v7175
        %v7272 = vunpack.c.l.b16 %v7176
        %v7273 = vunpack.c.l.b16 %v7177
        %v7274 = vunpack.c.l.b16 %v7178
        %v7275 = vunpack.c.l.b16 %v7179
        %v7276 = vunpack.c.l.b16 %v7180
        %v7277 = vunpack.c.l.b16 %v7181
        %v7278 = vunpack.c.l.b16 %v7182
        %v7279 = vunpack.c.l.b16 %v7183
        %v7280 = vunpack.c.l.b16 %v7184
        %v7281 = vunpack.c.l.b16 %v7185
        %v7282 = vunpack.c.l.b16 %v7186
        %v7283 = vunpack.c.l.b16 %v7187
        %v7284 = vunpack.c.l.b16 %v7188
        %v7285 = vpack.c.b16 %v7238, %v7237
        %v7286 = vpack.c.b16 %v7240, %v7239
        %v7287 = vpack.c.b16 %v7242, %v7241
        %v7288 = vpack.c.b16 %v7244, %v7243
        %v7289 = vpack.c.b16 %v7246, %v7245
        %v7290 = vpack.c.b16 %v7248, %v7247
        %v7291 = vpack.c.b16 %v7250, %v7249
        %v7292 = vpack.c.b16 %v7252, %v7251
        %v7293 = vpack.c.b16 %v7254, %v7253
        %v7294 = vpack.c.b16 %v7256, %v7255
        %v7295 = vpack.c.b16 %v7258, %v7257
        %v7296 = vpack.c.b16 %v7260, %v7259
        %v7297 = vpack.c.b16 %v7262, %v7261
        %v7298 = vpack.c.b16 %v7264, %v7263
        %v7299 = vpack.c.b16 %v7266, %v7265
        %v7300 = vpack.c.b16 %v7268, %v7267
        %v7301 = vpack.c.b16 %v7270, %v7269
        %v7302 = vpack.c.b16 %v7272, %v7271
        %v7303 = vpack.c.b16 %v7274, %v7273
        %v7304 = vpack.c.b16 %v7276, %v7275
        %v7305 = vpack.c.b16 %v7278, %v7277
        %v7306 = vpack.c.b16 %v7280, %v7279
        %v7307 = vpack.c.b16 %v7282, %v7281
        %v7308 = vpack.c.b16 %v7284, %v7283
        %7333 = vmatpush.bf16.msra.mxu0 %v7292
        %7334 = vmatpush.bf16.msra.mxu0 %v7291
        %7335 = vmatpush.bf16.msra.mxu0 %v7290
        %7336 = vmatpush.bf16.msra.mxu0 %v7289
        %7337 = vmatpush.bf16.msra.mxu0 %v7288
        %7338 = vmatpush.bf16.msra.mxu0 %v7287
        %7339 = vmatpush.bf16.msra.mxu0 %v7286
        %7340 = vmatpush.bf16.msra.mxu0 %v7285
        %7341 = vmatmul.bf16.gmra.mxu0 %v6740
        %v7342 = vpop.f32.mrf.mxu0
        %v7343 = vadd.f32 0.0, %v7342
        %v7344 = vpop.f32.mrf.mxu0
        %v7345 = vadd.f32 0.0, %v7344
        %7346 = vmatmul.bf16.gmra.mxu0 %v6741
        %v7347 = vpop.f32.mrf.mxu0
        %v7348 = vadd.f32 0.0, %v7347
        %v7349 = vpop.f32.mrf.mxu0
        %v7350 = vadd.f32 0.0, %v7349
        %7351 = vmatmul.bf16.gmra.mxu0 %v6742
        %v7352 = vpop.f32.mrf.mxu0
        %v7353 = vadd.f32 0.0, %v7352
        %v7354 = vpop.f32.mrf.mxu0
        %v7355 = vadd.f32 0.0, %v7354
        %7356 = vmatmul.bf16.gmra.mxu0 %v6743
        %v7357 = vpop.f32.mrf.mxu0
        %v7358 = vadd.f32 0.0, %v7357
        %v7359 = vpop.f32.mrf.mxu0
        %v7360 = vadd.f32 0.0, %v7359
        %7361 = vmatmul.bf16.gmra.mxu0 %v6744
        %v7362 = vpop.f32.mrf.mxu0
        %v7363 = vadd.f32 0.0, %v7362
        %v7364 = vpop.f32.mrf.mxu0
        %v7365 = vadd.f32 0.0, %v7364
        %7366 = vmatmul.bf16.gmra.mxu0 %v6745
        %v7367 = vpop.f32.mrf.mxu0
        %v7368 = vadd.f32 0.0, %v7367
        %v7369 = vpop.f32.mrf.mxu0
        %v7370 = vadd.f32 0.0, %v7369
        %7371 = vmatmul.bf16.gmra.mxu0 %v6746
        %v7372 = vpop.f32.mrf.mxu0
        %v7373 = vadd.f32 0.0, %v7372
        %v7374 = vpop.f32.mrf.mxu0
        %v7375 = vadd.f32 0.0, %v7374
        %7376 = vmatmul.bf16.gmra.mxu0 %v6747
        %v7377 = vpop.f32.mrf.mxu0
        %v7378 = vadd.f32 0.0, %v7377
        %v7379 = vpop.f32.mrf.mxu0
        %v7380 = vadd.f32 0.0, %v7379
        %7381 = vmatmul.bf16.gmra.mxu0 %v6748
        %v7382 = vpop.f32.mrf.mxu0
        %v7383 = vadd.f32 0.0, %v7382
        %v7384 = vpop.f32.mrf.mxu0
        %v7385 = vadd.f32 0.0, %v7384
        %7386 = vmatmul.bf16.gmra.mxu0 %v6749
        %v7387 = vpop.f32.mrf.mxu0
        %v7388 = vadd.f32 0.0, %v7387
        %v7389 = vpop.f32.mrf.mxu0
        %v7390 = vadd.f32 0.0, %v7389
        %7391 = vmatmul.bf16.gmra.mxu0 %v6750
        %v7392 = vpop.f32.mrf.mxu0
        %v7393 = vadd.f32 0.0, %v7392
        %v7394 = vpop.f32.mrf.mxu0
        %v7395 = vadd.f32 0.0, %v7394
        %7396 = vmatmul.bf16.gmra.mxu0 %v6751
        %v7397 = vpop.f32.mrf.mxu0
        %v7398 = vadd.f32 0.0, %v7397
        %v7399 = vpop.f32.mrf.mxu0
        %v7400 = vadd.f32 0.0, %v7399
        %7401 = vmatmul.bf16.gmra.mxu0 %v6752
        %v7402 = vpop.f32.mrf.mxu0
        %v7403 = vadd.f32 0.0, %v7402
        %v7404 = vpop.f32.mrf.mxu0
        %v7405 = vadd.f32 0.0, %v7404
        %7406 = vmatmul.bf16.gmra.mxu0 %v6753
        %v7407 = vpop.f32.mrf.mxu0
        %v7408 = vadd.f32 0.0, %v7407
        %v7409 = vpop.f32.mrf.mxu0
        %v7410 = vadd.f32 0.0, %v7409
        %7411 = vmatmul.bf16.gmra.mxu0 %v6754
        %v7412 = vpop.f32.mrf.mxu0
        %v7413 = vadd.f32 0.0, %v7412
        %v7414 = vpop.f32.mrf.mxu0
        %v7415 = vadd.f32 0.0, %v7414
        %7416 = vmatmul.bf16.gmra.mxu0 %v6755
        %v7417 = vpop.f32.mrf.mxu0
        %v7418 = vadd.f32 0.0, %v7417
        %v7419 = vpop.f32.mrf.mxu0
        %v7420 = vadd.f32 0.0, %v7419
        %7421 = vdwg.mxu0
        %7422 = vmatpush.bf16.msra.mxu0 %v7300
        %7423 = vmatpush.bf16.msra.mxu0 %v7299
        %7424 = vmatpush.bf16.msra.mxu0 %v7298
        %7425 = vmatpush.bf16.msra.mxu0 %v7297
        %7426 = vmatpush.bf16.msra.mxu0 %v7296
        %7427 = vmatpush.bf16.msra.mxu0 %v7295
        %7428 = vmatpush.bf16.msra.mxu0 %v7294
        %7429 = vmatpush.bf16.msra.mxu0 %v7293
        %7430 = vmatmul.bf16.gmra.mxu0 %v6831
        %v7431 = vpop.f32.mrf.mxu0
        %v7432 = vadd.f32 %v7343, %v7431
        %v7433 = vpop.f32.mrf.mxu0
        %v7434 = vadd.f32 %v7345, %v7433
        %7435 = vmatmul.bf16.gmra.mxu0 %v6843
        %v7436 = vpop.f32.mrf.mxu0
        %v7437 = vadd.f32 %v7348, %v7436
        %v7438 = vpop.f32.mrf.mxu0
        %v7439 = vadd.f32 %v7350, %v7438
        %7440 = vmatmul.bf16.gmra.mxu0 %v6855
        %v7441 = vpop.f32.mrf.mxu0
        %v7442 = vadd.f32 %v7353, %v7441
        %v7443 = vpop.f32.mrf.mxu0
        %v7444 = vadd.f32 %v7355, %v7443
        %7445 = vmatmul.bf16.gmra.mxu0 %v6867
        %v7446 = vpop.f32.mrf.mxu0
        %v7447 = vadd.f32 %v7358, %v7446
        %v7448 = vpop.f32.mrf.mxu0
        %v7449 = vadd.f32 %v7360, %v7448
        %7450 = vmatmul.bf16.gmra.mxu0 %v6879
        %v7451 = vpop.f32.mrf.mxu0
        %v7452 = vadd.f32 %v7363, %v7451
        %v7453 = vpop.f32.mrf.mxu0
        %v7454 = vadd.f32 %v7365, %v7453
        %7455 = vmatmul.bf16.gmra.mxu0 %v6891
        %v7456 = vpop.f32.mrf.mxu0
        %v7457 = vadd.f32 %v7368, %v7456
        %v7458 = vpop.f32.mrf.mxu0
        %v7459 = vadd.f32 %v7370, %v7458
        %7460 = vmatmul.bf16.gmra.mxu0 %v6903
        %v7461 = vpop.f32.mrf.mxu0
        %v7462 = vadd.f32 %v7373, %v7461
        %v7463 = vpop.f32.mrf.mxu0
        %v7464 = vadd.f32 %v7375, %v7463
        %7465 = vmatmul.bf16.gmra.mxu0 %v6915
        %v7466 = vpop.f32.mrf.mxu0
        %v7467 = vadd.f32 %v7378, %v7466
        %v7468 = vpop.f32.mrf.mxu0
        %v7469 = vadd.f32 %v7380, %v7468
        %7470 = vmatmul.bf16.gmra.mxu0 %v6927
        %v7471 = vpop.f32.mrf.mxu0
        %v7472 = vadd.f32 %v7383, %v7471
        %v7473 = vpop.f32.mrf.mxu0
        %v7474 = vadd.f32 %v7385, %v7473
        %7475 = vmatmul.bf16.gmra.mxu0 %v6939
        %v7476 = vpop.f32.mrf.mxu0
        %v7477 = vadd.f32 %v7388, %v7476
        %v7478 = vpop.f32.mrf.mxu0
        %v7479 = vadd.f32 %v7390, %v7478
        %7480 = vmatmul.bf16.gmra.mxu0 %v6951
        %v7481 = vpop.f32.mrf.mxu0
        %v7482 = vadd.f32 %v7393, %v7481
        %v7483 = vpop.f32.mrf.mxu0
        %v7484 = vadd.f32 %v7395, %v7483
        %7485 = vmatmul.bf16.gmra.mxu0 %v6963
        %v7486 = vpop.f32.mrf.mxu0
        %v7487 = vadd.f32 %v7398, %v7486
        %v7488 = vpop.f32.mrf.mxu0
        %v7489 = vadd.f32 %v7400, %v7488
        %7490 = vmatmul.bf16.gmra.mxu0 %v6975
        %v7491 = vpop.f32.mrf.mxu0
        %v7492 = vadd.f32 %v7403, %v7491
        %v7493 = vpop.f32.mrf.mxu0
        %v7494 = vadd.f32 %v7405, %v7493
        %7495 = vmatmul.bf16.gmra.mxu0 %v6987
        %v7496 = vpop.f32.mrf.mxu0
        %v7497 = vadd.f32 %v7408, %v7496
        %v7498 = vpop.f32.mrf.mxu0
        %v7499 = vadd.f32 %v7410, %v7498
        %7500 = vmatmul.bf16.gmra.mxu0 %v6999
        %v7501 = vpop.f32.mrf.mxu0
        %v7502 = vadd.f32 %v7413, %v7501
        %v7503 = vpop.f32.mrf.mxu0
        %v7504 = vadd.f32 %v7415, %v7503
        %7505 = vmatmul.bf16.gmra.mxu0 %v7011
        %v7506 = vpop.f32.mrf.mxu0
        %v7507 = vadd.f32 %v7418, %v7506
        %v7508 = vpop.f32.mrf.mxu0
        %v7509 = vadd.f32 %v7420, %v7508
        %7510 = vdwg.mxu0
        %7511 = vmatpush.bf16.msra.mxu0 %v7308
        %7512 = vmatpush.bf16.msra.mxu0 %v7307
        %7513 = vmatpush.bf16.msra.mxu0 %v7306
        %7514 = vmatpush.bf16.msra.mxu0 %v7305
        %7515 = vmatpush.bf16.msra.mxu0 %v7304
        %7516 = vmatpush.bf16.msra.mxu0 %v7303
        %7517 = vmatpush.bf16.msra.mxu0 %v7302
        %7518 = vmatpush.bf16.msra.mxu0 %v7301
        %7519 = vmatmul.bf16.gmra.mxu0 %v7078
        %v7520 = vpop.f32.mrf.mxu0
        %v7521 = vadd.f32 %v7432, %v7520
        %v7522 = vpop.f32.mrf.mxu0
        %v7523 = vadd.f32 %v7434, %v7522
        %7524 = vmatmul.bf16.gmra.mxu0 %v7081
        %v7525 = vpop.f32.mrf.mxu0
        %v7526 = vadd.f32 %v7437, %v7525
        %v7527 = vpop.f32.mrf.mxu0
        %v7528 = vadd.f32 %v7439, %v7527
        %7529 = vmatmul.bf16.gmra.mxu0 %v7084
        %v7530 = vpop.f32.mrf.mxu0
        %v7531 = vadd.f32 %v7442, %v7530
        %v7532 = vpop.f32.mrf.mxu0
        %v7533 = vadd.f32 %v7444, %v7532
        %7534 = vmatmul.bf16.gmra.mxu0 %v7087
        %v7535 = vpop.f32.mrf.mxu0
        %v7536 = vadd.f32 %v7447, %v7535
        %v7537 = vpop.f32.mrf.mxu0
        %v7538 = vadd.f32 %v7449, %v7537
        %7539 = vmatmul.bf16.gmra.mxu0 %v7090
        %v7540 = vpop.f32.mrf.mxu0
        %v7541 = vadd.f32 %v7452, %v7540
        %v7542 = vpop.f32.mrf.mxu0
        %v7543 = vadd.f32 %v7454, %v7542
        %7544 = vmatmul.bf16.gmra.mxu0 %v7093
        %v7545 = vpop.f32.mrf.mxu0
        %v7546 = vadd.f32 %v7457, %v7545
        %v7547 = vpop.f32.mrf.mxu0
        %v7548 = vadd.f32 %v7459, %v7547
        %7549 = vmatmul.bf16.gmra.mxu0 %v7096
        %v7550 = vpop.f32.mrf.mxu0
        %v7551 = vadd.f32 %v7462, %v7550
        %v7552 = vpop.f32.mrf.mxu0
        %v7553 = vadd.f32 %v7464, %v7552
        %7554 = vmatmul.bf16.gmra.mxu0 %v7099
        %v7555 = vpop.f32.mrf.mxu0
        %v7556 = vadd.f32 %v7467, %v7555
        %v7557 = vpop.f32.mrf.mxu0
        %v7558 = vadd.f32 %v7469, %v7557
        %7559 = vmatmul.bf16.gmra.mxu0 %v7102
        %v7560 = vpop.f32.mrf.mxu0
        %v7561 = vadd.f32 %v7472, %v7560
        %v7562 = vpop.f32.mrf.mxu0
        %v7563 = vadd.f32 %v7474, %v7562
        %7564 = vmatmul.bf16.gmra.mxu0 %v7105
        %v7565 = vpop.f32.mrf.mxu0
        %v7566 = vadd.f32 %v7477, %v7565
        %v7567 = vpop.f32.mrf.mxu0
        %v7568 = vadd.f32 %v7479, %v7567
        %7569 = vmatmul.bf16.gmra.mxu0 %v7108
        %v7570 = vpop.f32.mrf.mxu0
        %v7571 = vadd.f32 %v7482, %v7570
        %v7572 = vpop.f32.mrf.mxu0
        %v7573 = vadd.f32 %v7484, %v7572
        %7574 = vmatmul.bf16.gmra.mxu0 %v7111
        %v7575 = vpop.f32.mrf.mxu0
        %v7576 = vadd.f32 %v7487, %v7575
        %v7577 = vpop.f32.mrf.mxu0
        %v7578 = vadd.f32 %v7489, %v7577
        %7579 = vmatmul.bf16.gmra.mxu0 %v7114
        %v7580 = vpop.f32.mrf.mxu0
        %v7581 = vadd.f32 %v7492, %v7580
        %v7582 = vpop.f32.mrf.mxu0
        %v7583 = vadd.f32 %v7494, %v7582
        %7584 = vmatmul.bf16.gmra.mxu0 %v7117
        %v7585 = vpop.f32.mrf.mxu0
        %v7586 = vadd.f32 %v7497, %v7585
        %v7587 = vpop.f32.mrf.mxu0
        %v7588 = vadd.f32 %v7499, %v7587
        %7589 = vmatmul.bf16.gmra.mxu0 %v7120
        %v7590 = vpop.f32.mrf.mxu0
        %v7591 = vadd.f32 %v7502, %v7590
        %v7592 = vpop.f32.mrf.mxu0
        %v7593 = vadd.f32 %v7504, %v7592
        %7594 = vmatmul.bf16.gmra.mxu0 %v7123
        %v7595 = vpop.f32.mrf.mxu0
        %v7596 = vadd.f32 %v7507, %v7595
        %v7597 = vpop.f32.mrf.mxu0
        %v7598 = vadd.f32 %v7509, %v7597
        %7599 = vdwg.mxu0
        %v7600 = vadd.f32 %v6532, %v7521
        %v7601 = vadd.f32 %v6534, %v7523
        %v7602 = vadd.f32 %v6537, %v7526
        %v7603 = vadd.f32 %v6539, %v7528
        %v7604 = vadd.f32 %v6542, %v7531
        %v7605 = vadd.f32 %v6544, %v7533
        %v7606 = vadd.f32 %v6547, %v7536
        %v7607 = vadd.f32 %v6549, %v7538
        %v7608 = vadd.f32 %v6552, %v7541
        %v7609 = vadd.f32 %v6554, %v7543
        %v7610 = vadd.f32 %v6557, %v7546
        %v7611 = vadd.f32 %v6559, %v7548
        %v7612 = vadd.f32 %v6562, %v7551
        %v7613 = vadd.f32 %v6564, %v7553
        %v7614 = vadd.f32 %v6567, %v7556
        %v7615 = vadd.f32 %v6569, %v7558
        %v7616 = vadd.f32 %v6572, %v7561
        %v7617 = vadd.f32 %v6574, %v7563
        %v7618 = vadd.f32 %v6577, %v7566
        %v7619 = vadd.f32 %v6579, %v7568
        %v7620 = vadd.f32 %v6582, %v7571
        %v7621 = vadd.f32 %v6584, %v7573
        %v7622 = vadd.f32 %v6587, %v7576
        %v7623 = vadd.f32 %v6589, %v7578
        %v7624 = vadd.f32 %v6592, %v7581
        %v7625 = vadd.f32 %v6594, %v7583
        %v7626 = vadd.f32 %v6597, %v7586
        %v7627 = vadd.f32 %v6599, %v7588
        %v7628 = vadd.f32 %v6602, %v7591
        %v7629 = vadd.f32 %v6604, %v7593
        %v7630 = vadd.f32 %v6607, %v7596
        %v7631 = vadd.f32 %v6609, %v7598
        %v7632 = vld [vmem:[%s5] sm:$0x1]
        %v7634 = vperm.slane %v7632, 0
        %v7636 = vmul.f32 %v7600, %v7634
        %v7637 = vmul.f32 %v7601, %v7634
        %v7638 = vmul.f32 %v7602, %v7634
        %v7639 = vmul.f32 %v7603, %v7634
        %v7640 = vmul.f32 %v7604, %v7634
        %v7641 = vmul.f32 %v7605, %v7634
        %v7642 = vmul.f32 %v7606, %v7634
        %v7643 = vmul.f32 %v7607, %v7634
        %v7644 = vmul.f32 %v7608, %v7634
        %v7645 = vmul.f32 %v7609, %v7634
        %v7646 = vmul.f32 %v7610, %v7634
        %v7647 = vmul.f32 %v7611, %v7634
        %v7648 = vmul.f32 %v7612, %v7634
        %v7649 = vmul.f32 %v7613, %v7634
        %v7650 = vmul.f32 %v7614, %v7634
        %v7651 = vmul.f32 %v7615, %v7634
        %v7652 = vmul.f32 %v7616, %v7634
        %v7653 = vmul.f32 %v7617, %v7634
        %v7654 = vmul.f32 %v7618, %v7634
        %v7655 = vmul.f32 %v7619, %v7634
        %v7656 = vmul.f32 %v7620, %v7634
        %v7657 = vmul.f32 %v7621, %v7634
        %v7658 = vmul.f32 %v7622, %v7634
        %v7659 = vmul.f32 %v7623, %v7634
        %v7660 = vmul.f32 %v7624, %v7634
        %v7661 = vmul.f32 %v7625, %v7634
        %v7662 = vmul.f32 %v7626, %v7634
        %v7663 = vmul.f32 %v7627, %v7634
        %v7664 = vmul.f32 %v7628, %v7634
        %v7665 = vmul.f32 %v7629, %v7634
        %v7666 = vmul.f32 %v7630, %v7634
        %v7667 = vmul.f32 %v7631, %v7634
        %v7668 = vld [vmem:[%s6] sm:$0x1]
        %v7670 = vperm.slane %v7668, 0
        %v7672 = vadd.f32 %v7636, %v7670
        %v7673 = vadd.f32 %v7637, %v7670
        %v7674 = vadd.f32 %v7638, %v7670
        %v7675 = vadd.f32 %v7639, %v7670
        %v7676 = vadd.f32 %v7640, %v7670
        %v7677 = vadd.f32 %v7641, %v7670
        %v7678 = vadd.f32 %v7642, %v7670
        %v7679 = vadd.f32 %v7643, %v7670
        %v7680 = vadd.f32 %v7644, %v7670
        %v7681 = vadd.f32 %v7645, %v7670
        %v7682 = vadd.f32 %v7646, %v7670
        %v7683 = vadd.f32 %v7647, %v7670
        %v7684 = vadd.f32 %v7648, %v7670
        %v7685 = vadd.f32 %v7649, %v7670
        %v7686 = vadd.f32 %v7650, %v7670
        %v7687 = vadd.f32 %v7651, %v7670
        %v7688 = vadd.f32 %v7652, %v7670
        %v7689 = vadd.f32 %v7653, %v7670
        %v7690 = vadd.f32 %v7654, %v7670
        %v7691 = vadd.f32 %v7655, %v7670
        %v7692 = vadd.f32 %v7656, %v7670
        %v7693 = vadd.f32 %v7657, %v7670
        %v7694 = vadd.f32 %v7658, %v7670
        %v7695 = vadd.f32 %v7659, %v7670
        %v7696 = vadd.f32 %v7660, %v7670
        %v7697 = vadd.f32 %v7661, %v7670
        %v7698 = vadd.f32 %v7662, %v7670
        %v7699 = vadd.f32 %v7663, %v7670
        %v7700 = vadd.f32 %v7664, %v7670
        %v7701 = vadd.f32 %v7665, %v7670
        %v7702 = vadd.f32 %v7666, %v7670
        %v7703 = vadd.f32 %v7667, %v7670
        %v7704 = vadd.f32 %v7672, %v568
        %v7705 = vadd.f32 %v7673, %v569
        %v7706 = vadd.f32 %v7674, %v570
        %v7707 = vadd.f32 %v7675, %v571
        %v7708 = vadd.f32 %v7676, %v572
        %v7709 = vadd.f32 %v7677, %v573
        %v7710 = vadd.f32 %v7678, %v574
        %v7711 = vadd.f32 %v7679, %v575
        %v7712 = vadd.f32 %v7680, %v576
        %v7713 = vadd.f32 %v7681, %v577
        %v7714 = vadd.f32 %v7682, %v578
        %v7715 = vadd.f32 %v7683, %v579
        %v7716 = vadd.f32 %v7684, %v580
        %v7717 = vadd.f32 %v7685, %v581
        %v7718 = vadd.f32 %v7686, %v582
        %v7719 = vadd.f32 %v7687, %v583
        %v7720 = vadd.f32 %v7688, %v584
        %v7721 = vadd.f32 %v7689, %v585
        %v7722 = vadd.f32 %v7690, %v586
        %v7723 = vadd.f32 %v7691, %v587
        %v7724 = vadd.f32 %v7692, %v588
        %v7725 = vadd.f32 %v7693, %v589
        %v7726 = vadd.f32 %v7694, %v590
        %v7727 = vadd.f32 %v7695, %v591
        %v7728 = vadd.f32 %v7696, %v592
        %v7729 = vadd.f32 %v7697, %v593
        %v7730 = vadd.f32 %v7698, %v594
        %v7731 = vadd.f32 %v7699, %v595
        %v7732 = vadd.f32 %v7700, %v596
        %v7733 = vadd.f32 %v7701, %v597
        %v7734 = vadd.f32 %v7702, %v598
        %v7735 = vadd.f32 %v7703, %v599
        %v7736 = vmax.f32 %v7704, 0.0
        %v7737 = vmax.f32 %v7705, 0.0
        %v7738 = vmax.f32 %v7706, 0.0
        %v7739 = vmax.f32 %v7707, 0.0
        %v7740 = vmax.f32 %v7708, 0.0
        %v7741 = vmax.f32 %v7709, 0.0
        %v7742 = vmax.f32 %v7710, 0.0
        %v7743 = vmax.f32 %v7711, 0.0
        %v7744 = vmax.f32 %v7712, 0.0
        %v7745 = vmax.f32 %v7713, 0.0
        %v7746 = vmax.f32 %v7714, 0.0
        %v7747 = vmax.f32 %v7715, 0.0
        %v7748 = vmax.f32 %v7716, 0.0
        %v7749 = vmax.f32 %v7717, 0.0
        %v7750 = vmax.f32 %v7718, 0.0
        %v7751 = vmax.f32 %v7719, 0.0
        %v7752 = vmax.f32 %v7720, 0.0
        %v7753 = vmax.f32 %v7721, 0.0
        %v7754 = vmax.f32 %v7722, 0.0
        %v7755 = vmax.f32 %v7723, 0.0
        %v7756 = vmax.f32 %v7724, 0.0
        %v7757 = vmax.f32 %v7725, 0.0
        %v7758 = vmax.f32 %v7726, 0.0
        %v7759 = vmax.f32 %v7727, 0.0
        %v7760 = vmax.f32 %v7728, 0.0
        %v7761 = vmax.f32 %v7729, 0.0
        %v7762 = vmax.f32 %v7730, 0.0
        %v7763 = vmax.f32 %v7731, 0.0
        %v7764 = vmax.f32 %v7732, 0.0
        %v7765 = vmax.f32 %v7733, 0.0
        %v7766 = vmax.f32 %v7734, 0.0
        %v7767 = vmax.f32 %v7735, 0.0
        %7768 = vst [vmem:[%s331] sm:$0xff] %v7736
        %7769 = vst [vmem:[%s331 + $0x8] sm:$0xff] %v7737
        %7770 = vst [vmem:[%s331 + $0x10] sm:$0xff] %v7738
        %7771 = vst [vmem:[%s331 + $0x18] sm:$0xff] %v7739
        %7772 = vst [vmem:[%s331 + $0x20] sm:$0xff] %v7740
        %7773 = vst [vmem:[%s331 + $0x28] sm:$0xff] %v7741
        %7774 = vst [vmem:[%s331 + $0x30] sm:$0xff] %v7742
        %7775 = vst [vmem:[%s331 + $0x38] sm:$0xff] %v7743
        %7776 = vst [vmem:[%s331 + $0x40] sm:$0xff] %v7744
        %7777 = vst [vmem:[%s331 + $0x48] sm:$0xff] %v7745
        %7778 = vst [vmem:[%s331 + $0x50] sm:$0xff] %v7746
        %7779 = vst [vmem:[%s331 + $0x58] sm:$0xff] %v7747
        %7780 = vst [vmem:[%s331 + $0x60] sm:$0xff] %v7748
        %7781 = vst [vmem:[%s331 + $0x68] sm:$0xff] %v7749
        %7782 = vst [vmem:[%s331 + $0x70] sm:$0xff] %v7750
        %7783 = vst [vmem:[%s331 + $0x78] sm:$0xff] %v7751
        %7784 = vst [vmem:[%s331 + $0x80] sm:$0xff] %v7752
        %7785 = vst [vmem:[%s331 + $0x88] sm:$0xff] %v7753
        %7786 = vst [vmem:[%s331 + $0x90] sm:$0xff] %v7754
        %7787 = vst [vmem:[%s331 + $0x98] sm:$0xff] %v7755
        %7788 = vst [vmem:[%s331 + $0xa0] sm:$0xff] %v7756
        %7789 = vst [vmem:[%s331 + $0xa8] sm:$0xff] %v7757
        %7790 = vst [vmem:[%s331 + $0xb0] sm:$0xff] %v7758
        %7791 = vst [vmem:[%s331 + $0xb8] sm:$0xff] %v7759
        %7792 = vst [vmem:[%s331 + $0xc0] sm:$0xff] %v7760
        %7793 = vst [vmem:[%s331 + $0xc8] sm:$0xff] %v7761
        %7794 = vst [vmem:[%s331 + $0xd0] sm:$0xff] %v7762
        %7795 = vst [vmem:[%s331 + $0xd8] sm:$0xff] %v7763
        %7796 = vst [vmem:[%s331 + $0xe0] sm:$0xff] %v7764
        %7797 = vst [vmem:[%s331 + $0xe8] sm:$0xff] %v7765
        %7798 = vst [vmem:[%s331 + $0xf0] sm:$0xff] %v7766
        %7799 = vst [vmem:[%s331 + $0xf8] sm:$0xff] %v7767
        %s7800 = sand.u32 %s185, 1
        %s7801 = scalar_lea.sflag [#allocation6], %s7800
        %s7802 = sand.u32 %s185, 1
        %s7803 = smul.addr %s7802, 256
        %s7804 = scalar_lea.vmem [#allocation10], %s7803
        // Predicated region
        $region61: #{tpu_custom_call.1} parent=47 // pred_check
          %p7805 = pneg %p195
        $region62: #{tpu_custom_call.1} parent=47 // pred_check_branch
          %7807 = sbr.rel (%p7805) target = $region64
        $region63: #{tpu_custom_call.1} parent=47 // pred_region
          %7809 = vsyncadd %s7801, 0
          %s7810 = smul.addr %s25, 32
          %s7811 = smul.addr %s7810, 8
          %s7812 = scalar_lea.hbm %s7, %s7811
          %s7813 = sshll.u32 %s7804, 4
          %s7814 = int_to_ptr.vmem [resolvable:$true] %s7813
          %s7815 = sshll.u32 %s7812, 4
          %s7816 = int_to_ptr.hbm [resolvable:$true] %s7815
          %7821 = dma.vmem_to_hbm [thread:$0]  %s7814, 4096, %s7816, %s7801, 128, 128, 8
        $region64: #{tpu_custom_call.1} parent=47 // pred_fallthru
          _
      $region48: #{tpu_custom_call.1} parent=5 // pred_fallthru
        _
      %p7822 = scmp.le.s32.totalorder 2, %s20
      // Predicated region
      $region65: #{tpu_custom_call.1} parent=5 // pred_check
        %p7823 = pneg %p7822
      $region66: #{tpu_custom_call.1} parent=5 // pred_check_branch
        %7825 = sbr.rel (%p7823) target = $region68
      $region67: #{tpu_custom_call.1} parent=5 // pred_region
        %s7826 = ssub.s32 %s20, 2
        // Predicated region
        $region69: #{tpu_custom_call.1} parent=67 // pred_check
          %p7827 = pneg %p201
        $region70: #{tpu_custom_call.1} parent=67 // pred_check_branch
          %7829 = sbr.rel (%p7827) target = $region72
        $region71: #{tpu_custom_call.1} parent=67 // pred_region
          %s7830 = sand.u32 %s186, 1
          %s7831 = scalar_lea.sflag [#allocation6], %s7830
          %s7832 = sand.u32 %s186, 1
          %s7833 = smul.addr %s7832, 256
          %s7834 = scalar_lea.vmem [#allocation10], %s7833
          %7836 = dma.done %s7831, 4096
        $region72: #{tpu_custom_call.1} parent=67 // pred_fallthru
          _
      $region68: #{tpu_custom_call.1} parent=5 // pred_fallthru
        _
    $region6: #{tpu_custom_call.1} parent=1 // loop_footer
      %s24 = sadd.s32 1, %s20
    $region7: #{tpu_custom_call.1} parent=1 // loop_footer_branch
      %19 = sbr.rel target = $region3
    $region8: #{tpu_custom_call.1} parent=1 // loop_exit
      _
    %7837 = vsyncpa [#allocation5], 1
    %s7838 = scalar_lea.sflag [#allocation5], 1
    %7839 = vsyncpa %s7838, 1
    %7840 = vsyncpa [#allocation8], 1
    %7841 = vsyncpa [#allocation6], 1
    %s7842 = scalar_lea.sflag [#allocation6], 1
    %7843 = vsyncpa %s7842, 1

</llo_original>
